<compile_context>
chip_gen: v6e
topology: v6e:2x2x1
jax: 0.10.0
libtpu: 0.0.40
codegen_flags: <defaults>
</compile_context>

<pallas_src>
import functools
import math

import jax
import jax.numpy as jnp
from jax.experimental import pallas as pl
from jax.experimental.pallas import tpu as pltpu


# -----------------------------------------------------------------------------
# Fused kernel: segment embed + PE + time encoder + var encoder (one row tile)
# -----------------------------------------------------------------------------
def fused_crossformer_kernel(x_ref, biaspe_ref, tmask_ref, vmask_ref, wseg_ref,
                             t_wqkv, t_wo, t_w1, t_w2, t_vec, t_b1,
                             v_wqkv, v_wo, v_w1, v_w2, v_vec, v_b1,
                             o_ref, *, num_heads, ff_chunk):
    H = num_heads

    # --- segment embedding + positional encoding (tiny K=4 matmul, kept f32) ---
    x = x_ref[...]                                                        # (M, L) f32
    emb = jnp.dot(x, wseg_ref[...], preferred_element_type=jnp.float32) + biaspe_ref[...]

    # masks are precomputed in the wrapper and DMA'd with a constant index_map
    time_mask = tmask_ref[...]                                            # (M, M) f32 additive
    var_mask = vmask_ref[...]

    def layer_norm(val, w, b, eps=1e-5):
        mu = jnp.mean(val, axis=-1, keepdims=True)
        var = jnp.mean(jnp.square(val - mu), axis=-1, keepdims=True)
        return (val - mu) * jax.lax.rsqrt(var + eps) * w + b

    def encoder_layer(xf32, wqkv_ref, wo_ref, w1_ref, w2_ref, vec_ref, b1_ref, mask):
        M, E = xf32.shape
        FF = w1_ref.shape[-1]
        Dh = E // H

        # packed per-layer vectors (rows): [bqkv(3E), bo, ln1w, ln1b, b2, ln2w, ln2b, unused]
        bqkv = vec_ref[0:1, :]            # (1, 3E)  Q slice pre-scaled by 1/sqrt(Dh) at init
        bo   = vec_ref[1:2, :E]
        ln1w = vec_ref[2:3, :E]
        ln1b = vec_ref[3:4, :E]
        b2   = vec_ref[4:5, :E]
        ln2w = vec_ref[5:6, :E]
        ln2b = vec_ref[6:7, :E]

        # fused QKV projection over all M rows (bf16 into MXU, f32 accumulate)
        xb = xf32.astype(jnp.bfloat16)
        qkv = jnp.dot(xb, wqkv_ref[...], preferred_element_type=jnp.float32) + bqkv  # (M, 3E)
        q, k, v = qkv[:, :E], qkv[:, E:2 * E], qkv[:, 2 * E:]

        # Per-head loop fully unrolled (H=4); every head processes all M rows in one 2-D
        # matmul with the block-diagonal mask supplying the sequence/batch structure.
        heads = []
        for h in range(H):
            sl = slice(h * Dh, (h + 1) * Dh)
            qh = q[:, sl].astype(jnp.bfloat16)          # 1/sqrt(Dh) already folded into wqkv
            kh = k[:, sl].astype(jnp.bfloat16)
            vh = v[:, sl].astype(jnp.bfloat16)
            s = jax.lax.dot_general(qh, kh, (((1,), (1,)), ((), ())),
                                    preferred_element_type=jnp.float32) + mask       # (M, M)
            s = s - jnp.max(s, axis=-1, keepdims=True)
            p = jnp.exp(s)
            p = p * pl.reciprocal(jnp.sum(p, axis=-1, keepdims=True), approx=True)
            heads.append(jnp.dot(p.astype(jnp.bfloat16), vh,
                                 preferred_element_type=jnp.float32))                # (M, Dh)
        attn = jnp.concatenate(heads, axis=-1)                                       # (M, E)
        attn = jnp.dot(attn.astype(jnp.bfloat16), wo_ref[...],
                       preferred_element_type=jnp.float32) + bo

        # post-norm residual 1
        y1 = layer_norm(xf32 + attn, ln1w, ln1b)

        # feed-forward (Linear -> ReLU -> Linear), FF dimension processed in chunks so the
        # (M, FF) intermediate never materializes; f32 elementwise keeps the v5e-safe path.
        y1b = y1.astype(jnp.bfloat16)
        ff = jnp.zeros((M, E), jnp.float32) + b2
        for c0 in range(0, FF, ff_chunk):
            c1 = c0 + ff_chunk
            hdn = jnp.dot(y1b, w1_ref[:, c0:c1],
                          preferred_element_type=jnp.float32) + b1_ref[0:1, c0:c1]
            hdn = jnp.maximum(hdn, 0.0).astype(jnp.bfloat16)
            ff = ff + jnp.dot(hdn, w2_ref[c0:c1, :], preferred_element_type=jnp.float32)

        # post-norm residual 2
        return layer_norm(y1 + ff, ln2w, ln2b)

    # time encoder: attention among rows of the same (batch, variable)  (seq len = S)
    y = encoder_layer(emb, t_wqkv, t_wo, t_w1, t_w2, t_vec, t_b1, time_mask)
    # var encoder: attention among rows of the same (batch, segment)    (seq len = D)
    y = encoder_layer(y, v_wqkv, v_wo, v_w1, v_w2, v_vec, v_b1, var_mask)

    # rows already in (batch, variable, segment) order == 'b (d n) e'
    o_ref[...] = y.astype(o_ref.dtype)


# -----------------------------------------------------------------------------
# Parameter init (deterministic, synthetic) + positional encoding
# -----------------------------------------------------------------------------
def sinusoidal_pe(max_len, d_model):
    pos = jnp.arange(max_len, dtype=jnp.float32)[:, None]
    div = jnp.exp(jnp.arange(0, d_model, 2, dtype=jnp.float32)
                  * (-math.log(10000.0) / d_model))
    return jnp.stack([jnp.sin(pos * div), jnp.cos(pos * div)], axis=-1).reshape(max_len, d_model)


def init_encoder_layer_params(key, E, FF, num_heads):
    ks = jax.random.split(key, 4)
    sd = 0.02
    Dh = E // num_heads
    scale = 1.0 / math.sqrt(Dh)

    # fold the 1/sqrt(Dh) attention scale into the Q projection (weights + bias)
    wqkv = sd * jax.random.normal(ks[0], (E, 3 * E), jnp.float32)
    wqkv = wqkv.at[:, :E].multiply(scale)

    # packed small vectors (rows): [bqkv(3E), bo, ln1w, ln1b, b2, ln2w, ln2b, unused]
    vec = jnp.zeros((8, 3 * E), jnp.float32)
    vec = vec.at[0, :E].multiply(scale)   # bqkv Q slice scaled too (zeros here, but explicit)
    vec = vec.at[2, :E].set(1.0)          # ln1 weight
    vec = vec.at[5, :E].set(1.0)          # ln2 weight

    return {
        # weights stored pre-transposed (kernel does x @ W) and in bf16 for the MXU
        "wqkv": wqkv.astype(jnp.bfloat16),
        "wo":   (sd * jax.random.normal(ks[1], (E, E), jnp.float32)).astype(jnp.bfloat16),
        "w1":   (sd * jax.random.normal(ks[2], (E, FF), jnp.float32)).astype(jnp.bfloat16),
        "w2":   (sd * jax.random.normal(ks[3], (FF, E), jnp.float32)).astype(jnp.bfloat16),
        "vec":  vec,
        "b1":   jnp.zeros((1, FF), jnp.float32),   # FF-wide bias kept separate (no dead lanes)
    }


def init_params(key, output_dim, input_len, segment_len, num_heads, dim_feedforward=2048):
    num_segments = input_len // segment_len
    k0, k1, k2 = jax.random.split(key, 3)
    return {
        "seg_w": 0.02 * jax.random.normal(k0, (segment_len, output_dim), jnp.float32),
        "seg_b": jnp.zeros((output_dim,), jnp.float32),
        "pe": sinusoidal_pe(num_segments, output_dim),
        "time": init_encoder_layer_params(k1, output_dim, dim_feedforward, num_heads),
        "var": init_encoder_layer_params(k2, output_dim, dim_feedforward, num_heads),
    }


# -----------------------------------------------------------------------------
# Row-tile sizing: fold whole batch elements into each grid step
# -----------------------------------------------------------------------------
def _batches_per_step(B, R, target_rows=128):
    # largest divisor of B such that bpg * R <= target_rows (maximize MXU M per step)
    best = 1
    for d in range(1, B + 1):
        if B % d == 0 and d * R <= target_rows:
            best = d
    # keep >= 2 parallel grid steps whenever the batch allows it (v7x has 2 TensorCores);
    # on single-TC chips (v5e/v6e) the extra step is ~0.35us — negligible at these sizes.
    if B >= 2 and B // best < 2:
        for d in range(best, 0, -1):
            if B % d == 0 and B // d >= 2:
                best = d
                break
    return best


# -----------------------------------------------------------------------------
# Forward pass: one fused pallas_call over row tiles (batch folded into rows)
# -----------------------------------------------------------------------------
@functools.partial(jax.jit, static_argnames=("segment_len", "num_heads"))
def crossed_transformer_encoder(inputs, params, segment_len, num_heads):
    B, D, L_in = inputs.shape
    L = segment_len
    S = L_in // L
    R = D * S
    E = params["seg_w"].shape[1]

    bpg = _batches_per_step(B, R)          # batch elements per grid step
    M = bpg * R                            # rows per grid step
    n_tiles = B // bpg

    # 'b d (n s) -> (b d n) s' — contiguous regroup, free in XLA
    x_seg = inputs.reshape(B * R, L).astype(jnp.float32)

    # segment-linear bias + positional encoding, pre-tiled over (batch, variable) -> (B*R, E)
    bias_pe = jnp.tile(params["pe"], (B * D, 1)) + params["seg_b"][None, :]

    # additive attention masks, hoisted out of the kernel (built once, reused every step).
    # Row ordering inside a tile: row = b*R + d*S + s  (b local to the tile).
    rr = jnp.arange(M, dtype=jnp.int32)
    same_time = (rr[:, None] // S) == (rr[None, :] // S)                  # same (batch, var)
    same_var = ((rr[:, None] // R) == (rr[None, :] // R)) & \
               ((rr[:, None] % S) == (rr[None, :] % S))                   # same (batch, seg)
    neg = jnp.float32(-1e30)
    time_mask = jnp.where(same_time, 0.0, neg).astype(jnp.float32)
    var_mask = jnp.where(same_var, 0.0, neg).astype(jnp.float32)

    t, v = params["time"], params["var"]
    weight_args = (params["seg_w"],
                   t["wqkv"], t["wo"], t["w1"], t["w2"], t["vec"], t["b1"],
                   v["wqkv"], v["wo"], v["w1"], v["w2"], v["vec"], v["b1"])

    ff_chunk = min(512, int(t["w1"].shape[1]))
    kernel = functools.partial(fused_crossformer_kernel,
                               num_heads=num_heads, ff_chunk=ff_chunk)

    row_map = lambda i: (i, 0)
    const_map = lambda i: (0, 0)
    in_specs = ([pl.BlockSpec((M, L), row_map),          # x rows
                 pl.BlockSpec((M, E), row_map),          # bias + PE rows
                 pl.BlockSpec((M, M), const_map),        # time mask (grid-invariant)
                 pl.BlockSpec((M, M), const_map)]        # var mask  (grid-invariant)
                + [pl.BlockSpec(a.shape, const_map) for a in weight_args])

    out = pl.pallas_call(
        kernel,
        out_shape=jax.ShapeDtypeStruct((B * R, E), jnp.float32),
        grid=(n_tiles,),
        in_specs=in_specs,
        out_specs=pl.BlockSpec((M, E), row_map),
        compiler_params=pltpu.CompilerParams(
            dimension_semantics=("parallel",),
            vmem_limit_bytes=64 * 1024 * 1024,
        ),
    )(x_seg, bias_pe, time_mask, var_mask, *weight_args)

    # output rows are ordered (variable, segment) within each batch element == 'b (d n) e'
    return out.reshape(B, R, E)


if __name__ == "__main__":
    # module config (small shapes consistent with the forward; batch=8 exercises batch folding)
    batch, num_vars = 8, 4
    input_len, segment_len = 16, 4
    output_dim, num_heads = 32, 4
    num_segments = input_len // segment_len

    key = jax.random.PRNGKey(0)
    k_in, k_par = jax.random.split(key)
    inputs = jax.random.normal(k_in, (batch, num_vars, input_len), dtype=jnp.float32)
    params = init_params(k_par, output_dim, input_len, segment_len, num_heads)

    out = crossed_transformer_encoder(inputs, params,
                                      segment_len=segment_len, num_heads=num_heads)
    out = jax.block_until_ready(out)

    assert out.shape == (batch, num_vars * num_segments, output_dim), out.shape
    assert bool(jnp.all(jnp.isfinite(out)))
    # TODO(synk): dropout is treated as identity (eval mode); stochastic dropout not emitted.
    print("KERNEL_OK")
</pallas_src>

<mosaic_0001>
module attributes {stable_mosaic.version = 11 : i64} {
  func.func @fused_crossformer_kernel(%arg0: i32, %arg1: memref<64x4xf32, #tpu.memory_space<vmem>>, %arg2: memref<64x32xf32, #tpu.memory_space<vmem>>, %arg3: memref<64x64xf32, #tpu.memory_space<vmem>>, %arg4: memref<64x64xf32, #tpu.memory_space<vmem>>, %arg5: memref<4x32xf32, #tpu.memory_space<vmem>>, %arg6: memref<32x96xbf16, #tpu.memory_space<vmem>>, %arg7: memref<32x32xbf16, #tpu.memory_space<vmem>>, %arg8: memref<32x2048xbf16, #tpu.memory_space<vmem>>, %arg9: memref<2048x32xbf16, #tpu.memory_space<vmem>>, %arg10: memref<8x96xf32, #tpu.memory_space<vmem>>, %arg11: memref<1x2048xf32, #tpu.memory_space<vmem>>, %arg12: memref<32x96xbf16, #tpu.memory_space<vmem>>, %arg13: memref<32x32xbf16, #tpu.memory_space<vmem>>, %arg14: memref<32x2048xbf16, #tpu.memory_space<vmem>>, %arg15: memref<2048x32xbf16, #tpu.memory_space<vmem>>, %arg16: memref<8x96xf32, #tpu.memory_space<vmem>>, %arg17: memref<1x2048xf32, #tpu.memory_space<vmem>>, %arg18: memref<64x32xf32, #tpu.memory_space<vmem>>) attributes {dimension_semantics = [#tpu.dimension_semantics<parallel>], iteration_bounds = array<i64: 2>, scalar_prefetch = 0 : i64, scratch_operands = 0 : i64, tpu.core_type = #tpu.core_type<tc>, window_params = [{transform_indices = @transform_0, window_bounds = array<i64: 64, 4>}, {transform_indices = @transform_1, window_bounds = array<i64: 64, 32>}, {pipeline_mode = #tpu.pipeline_mode<synchronous>, transform_indices = @transform_2, window_bounds = array<i64: 64, 64>}, {pipeline_mode = #tpu.pipeline_mode<synchronous>, transform_indices = @transform_3, window_bounds = array<i64: 64, 64>}, {pipeline_mode = #tpu.pipeline_mode<synchronous>, transform_indices = @transform_4, window_bounds = array<i64: 4, 32>}, {pipeline_mode = #tpu.pipeline_mode<synchronous>, transform_indices = @transform_5, window_bounds = array<i64: 32, 96>}, {pipeline_mode = #tpu.pipeline_mode<synchronous>, transform_indices = @transform_6, window_bounds = array<i64: 32, 32>}, {pipeline_mode = #tpu.pipeline_mode<synchronous>, transform_indices = @transform_7, window_bounds = array<i64: 32, 2048>}, {pipeline_mode = #tpu.pipeline_mode<synchronous>, transform_indices = @transform_8, window_bounds = array<i64: 2048, 32>}, {pipeline_mode = #tpu.pipeline_mode<synchronous>, transform_indices = @transform_9, window_bounds = array<i64: 8, 96>}, {pipeline_mode = #tpu.pipeline_mode<synchronous>, transform_indices = @transform_10, window_bounds = array<i64: 1, 2048>}, {pipeline_mode = #tpu.pipeline_mode<synchronous>, transform_indices = @transform_11, window_bounds = array<i64: 32, 96>}, {pipeline_mode = #tpu.pipeline_mode<synchronous>, transform_indices = @transform_12, window_bounds = array<i64: 32, 32>}, {pipeline_mode = #tpu.pipeline_mode<synchronous>, transform_indices = @transform_13, window_bounds = array<i64: 32, 2048>}, {pipeline_mode = #tpu.pipeline_mode<synchronous>, transform_indices = @transform_14, window_bounds = array<i64: 2048, 32>}, {pipeline_mode = #tpu.pipeline_mode<synchronous>, transform_indices = @transform_15, window_bounds = array<i64: 8, 96>}, {pipeline_mode = #tpu.pipeline_mode<synchronous>, transform_indices = @transform_16, window_bounds = array<i64: 1, 2048>}, {transform_indices = @transform_17, window_bounds = array<i64: 64, 32>}]} {
    %c0 = arith.constant 0 : index
    %c0_0 = arith.constant 0 : index
    %0 = vector.load %arg1[%c0, %c0_0] : memref<64x4xf32, #tpu.memory_space<vmem>>, vector<64x4xf32>
    %c0_1 = arith.constant 0 : index
    %c0_2 = arith.constant 0 : index
    %1 = vector.load %arg5[%c0_1, %c0_2] : memref<4x32xf32, #tpu.memory_space<vmem>>, vector<4x32xf32>
    %cst = arith.constant dense<0.000000e+00> : vector<64x32xf32>
    %2 = tpu.matmul %0, %1, %cst {dimension_numbers = #tpu.dot_dimension_numbers<[1], [0], [0], [1], [0, 0, 1, 1], [], []>} : vector<64x4xf32>, vector<4x32xf32>, vector<64x32xf32> -> vector<64x32xf32>
    %c0_3 = arith.constant 0 : index
    %c0_4 = arith.constant 0 : index
    %3 = vector.load %arg2[%c0_3, %c0_4] : memref<64x32xf32, #tpu.memory_space<vmem>>, vector<64x32xf32>
    %4 = arith.addf %2, %3 : vector<64x32xf32>
    %c0_5 = arith.constant 0 : index
    %c0_6 = arith.constant 0 : index
    %5 = vector.load %arg3[%c0_5, %c0_6] : memref<64x64xf32, #tpu.memory_space<vmem>>, vector<64x64xf32>
    %c0_7 = arith.constant 0 : index
    %c0_8 = arith.constant 0 : index
    %6 = vector.load %arg4[%c0_7, %c0_8] : memref<64x64xf32, #tpu.memory_space<vmem>>, vector<64x64xf32>
    %c0_9 = arith.constant 0 : index
    %c0_10 = arith.constant 0 : index
    %7 = vector.load %arg10[%c0_9, %c0_10] : memref<8x96xf32, #tpu.memory_space<vmem>>, vector<1x96xf32>
    %c1 = arith.constant 1 : index
    %c0_11 = arith.constant 0 : index
    %8 = vector.load %arg10[%c1, %c0_11] : memref<8x96xf32, #tpu.memory_space<vmem>>, vector<1x32xf32>
    %c2 = arith.constant 2 : index
    %c0_12 = arith.constant 0 : index
    %9 = vector.load %arg10[%c2, %c0_12] : memref<8x96xf32, #tpu.memory_space<vmem>>, vector<1x32xf32>
    %c3 = arith.constant 3 : index
    %c0_13 = arith.constant 0 : index
    %10 = vector.load %arg10[%c3, %c0_13] : memref<8x96xf32, #tpu.memory_space<vmem>>, vector<1x32xf32>
    %c4 = arith.constant 4 : index
    %c0_14 = arith.constant 0 : index
    %11 = vector.load %arg10[%c4, %c0_14] : memref<8x96xf32, #tpu.memory_space<vmem>>, vector<1x32xf32>
    %c5 = arith.constant 5 : index
    %c0_15 = arith.constant 0 : index
    %12 = vector.load %arg10[%c5, %c0_15] : memref<8x96xf32, #tpu.memory_space<vmem>>, vector<1x32xf32>
    %c6 = arith.constant 6 : index
    %c0_16 = arith.constant 0 : index
    %13 = vector.load %arg10[%c6, %c0_16] : memref<8x96xf32, #tpu.memory_space<vmem>>, vector<1x32xf32>
    %14 = arith.truncf %4 : vector<64x32xf32> to vector<64x32xbf16>
    %c0_17 = arith.constant 0 : index
    %c0_18 = arith.constant 0 : index
    %15 = vector.load %arg6[%c0_17, %c0_18] : memref<32x96xbf16, #tpu.memory_space<vmem>>, vector<32x96xbf16>
    %cst_19 = arith.constant dense<0.000000e+00> : vector<64x96xf32>
    %16 = tpu.matmul %14, %15, %cst_19 {dimension_numbers = #tpu.dot_dimension_numbers<[1], [0], [0], [1], [0, 0, 1, 1], [], []>} : vector<64x32xbf16>, vector<32x96xbf16>, vector<64x96xf32> -> vector<64x96xf32>
    %17 = vector.broadcast %7 : vector<1x96xf32> to vector<64x96xf32>
    %18 = arith.addf %16, %17 : vector<64x96xf32>
    %19 = vector.extract_strided_slice %18 {offsets = [0, 0], sizes = [64, 32], strides = [1, 1]} : vector<64x96xf32> to vector<64x32xf32>
    %20 = vector.extract_strided_slice %18 {offsets = [0, 32], sizes = [64, 32], strides = [1, 1]} : vector<64x96xf32> to vector<64x32xf32>
    %21 = vector.extract_strided_slice %18 {offsets = [0, 64], sizes = [64, 32], strides = [1, 1]} : vector<64x96xf32> to vector<64x32xf32>
    %22 = vector.extract_strided_slice %19 {offsets = [0, 0], sizes = [64, 8], strides = [1, 1]} : vector<64x32xf32> to vector<64x8xf32>
    %23 = arith.truncf %22 : vector<64x8xf32> to vector<64x8xbf16>
    %24 = vector.extract_strided_slice %20 {offsets = [0, 0], sizes = [64, 8], strides = [1, 1]} : vector<64x32xf32> to vector<64x8xf32>
    %25 = arith.truncf %24 : vector<64x8xf32> to vector<64x8xbf16>
    %26 = vector.extract_strided_slice %21 {offsets = [0, 0], sizes = [64, 8], strides = [1, 1]} : vector<64x32xf32> to vector<64x8xf32>
    %27 = arith.truncf %26 : vector<64x8xf32> to vector<64x8xbf16>
    %cst_20 = arith.constant dense<0.000000e+00> : vector<64x64xf32>
    %28 = tpu.matmul %23, %25, %cst_20 {dimension_numbers = #tpu.dot_dimension_numbers<[1], [1], [0], [0], [0, 0, 1, 0], [], []>} : vector<64x8xbf16>, vector<64x8xbf16>, vector<64x64xf32> -> vector<64x64xf32>
    %29 = arith.addf %28, %5 : vector<64x64xf32>
    %cst_21 = arith.constant dense<0xFF800000> : vector<64xf32>
    %30 = vector.multi_reduction <maximumf>, %29, %cst_21 [1] : vector<64x64xf32> to vector<64xf32>
    %31 = vector.shape_cast %30 : vector<64xf32> to vector<64x1xf32>
    %32 = vector.broadcast %31 : vector<64x1xf32> to vector<64x64xf32>
    %33 = arith.subf %29, %32 : vector<64x64xf32>
    %34 = math.exp %33 : vector<64x64xf32>
    %cst_22 = arith.constant dense<0.000000e+00> : vector<64xf32>
    %35 = vector.multi_reduction <add>, %34, %cst_22 [1] : vector<64x64xf32> to vector<64xf32>
    %36 = vector.shape_cast %35 : vector<64xf32> to vector<64x1xf32>
    %37 = tpu.reciprocal %36 {approx = true} : vector<64x1xf32> -> vector<64x1xf32>
    %38 = vector.broadcast %37 : vector<64x1xf32> to vector<64x64xf32>
    %39 = arith.mulf %34, %38 : vector<64x64xf32>
    %40 = arith.truncf %39 : vector<64x64xf32> to vector<64x64xbf16>
    %cst_23 = arith.constant dense<0.000000e+00> : vector<64x8xf32>
    %41 = tpu.matmul %40, %27, %cst_23 {dimension_numbers = #tpu.dot_dimension_numbers<[1], [0], [0], [1], [0, 0, 1, 1], [], []>} : vector<64x64xbf16>, vector<64x8xbf16>, vector<64x8xf32> -> vector<64x8xf32>
    %42 = vector.extract_strided_slice %19 {offsets = [0, 8], sizes = [64, 8], strides = [1, 1]} : vector<64x32xf32> to vector<64x8xf32>
    %43 = arith.truncf %42 : vector<64x8xf32> to vector<64x8xbf16>
    %44 = vector.extract_strided_slice %20 {offsets = [0, 8], sizes = [64, 8], strides = [1, 1]} : vector<64x32xf32> to vector<64x8xf32>
    %45 = arith.truncf %44 : vector<64x8xf32> to vector<64x8xbf16>
    %46 = vector.extract_strided_slice %21 {offsets = [0, 8], sizes = [64, 8], strides = [1, 1]} : vector<64x32xf32> to vector<64x8xf32>
    %47 = arith.truncf %46 : vector<64x8xf32> to vector<64x8xbf16>
    %cst_24 = arith.constant dense<0.000000e+00> : vector<64x64xf32>
    %48 = tpu.matmul %43, %45, %cst_24 {dimension_numbers = #tpu.dot_dimension_numbers<[1], [1], [0], [0], [0, 0, 1, 0], [], []>} : vector<64x8xbf16>, vector<64x8xbf16>, vector<64x64xf32> -> vector<64x64xf32>
    %49 = arith.addf %48, %5 : vector<64x64xf32>
    %cst_25 = arith.constant dense<0xFF800000> : vector<64xf32>
    %50 = vector.multi_reduction <maximumf>, %49, %cst_25 [1] : vector<64x64xf32> to vector<64xf32>
    %51 = vector.shape_cast %50 : vector<64xf32> to vector<64x1xf32>
    %52 = vector.broadcast %51 : vector<64x1xf32> to vector<64x64xf32>
    %53 = arith.subf %49, %52 : vector<64x64xf32>
    %54 = math.exp %53 : vector<64x64xf32>
    %cst_26 = arith.constant dense<0.000000e+00> : vector<64xf32>
    %55 = vector.multi_reduction <add>, %54, %cst_26 [1] : vector<64x64xf32> to vector<64xf32>
    %56 = vector.shape_cast %55 : vector<64xf32> to vector<64x1xf32>
    %57 = tpu.reciprocal %56 {approx = true} : vector<64x1xf32> -> vector<64x1xf32>
    %58 = vector.broadcast %57 : vector<64x1xf32> to vector<64x64xf32>
    %59 = arith.mulf %54, %58 : vector<64x64xf32>
    %60 = arith.truncf %59 : vector<64x64xf32> to vector<64x64xbf16>
    %cst_27 = arith.constant dense<0.000000e+00> : vector<64x8xf32>
    %61 = tpu.matmul %60, %47, %cst_27 {dimension_numbers = #tpu.dot_dimension_numbers<[1], [0], [0], [1], [0, 0, 1, 1], [], []>} : vector<64x64xbf16>, vector<64x8xbf16>, vector<64x8xf32> -> vector<64x8xf32>
    %62 = vector.extract_strided_slice %19 {offsets = [0, 16], sizes = [64, 8], strides = [1, 1]} : vector<64x32xf32> to vector<64x8xf32>
    %63 = arith.truncf %62 : vector<64x8xf32> to vector<64x8xbf16>
    %64 = vector.extract_strided_slice %20 {offsets = [0, 16], sizes = [64, 8], strides = [1, 1]} : vector<64x32xf32> to vector<64x8xf32>
    %65 = arith.truncf %64 : vector<64x8xf32> to vector<64x8xbf16>
    %66 = vector.extract_strided_slice %21 {offsets = [0, 16], sizes = [64, 8], strides = [1, 1]} : vector<64x32xf32> to vector<64x8xf32>
    %67 = arith.truncf %66 : vector<64x8xf32> to vector<64x8xbf16>
    %cst_28 = arith.constant dense<0.000000e+00> : vector<64x64xf32>
    %68 = tpu.matmul %63, %65, %cst_28 {dimension_numbers = #tpu.dot_dimension_numbers<[1], [1], [0], [0], [0, 0, 1, 0], [], []>} : vector<64x8xbf16>, vector<64x8xbf16>, vector<64x64xf32> -> vector<64x64xf32>
    %69 = arith.addf %68, %5 : vector<64x64xf32>
    %cst_29 = arith.constant dense<0xFF800000> : vector<64xf32>
    %70 = vector.multi_reduction <maximumf>, %69, %cst_29 [1] : vector<64x64xf32> to vector<64xf32>
    %71 = vector.shape_cast %70 : vector<64xf32> to vector<64x1xf32>
    %72 = vector.broadcast %71 : vector<64x1xf32> to vector<64x64xf32>
    %73 = arith.subf %69, %72 : vector<64x64xf32>
    %74 = math.exp %73 : vector<64x64xf32>
    %cst_30 = arith.constant dense<0.000000e+00> : vector<64xf32>
    %75 = vector.multi_reduction <add>, %74, %cst_30 [1] : vector<64x64xf32> to vector<64xf32>
    %76 = vector.shape_cast %75 : vector<64xf32> to vector<64x1xf32>
    %77 = tpu.reciprocal %76 {approx = true} : vector<64x1xf32> -> vector<64x1xf32>
    %78 = vector.broadcast %77 : vector<64x1xf32> to vector<64x64xf32>
    %79 = arith.mulf %74, %78 : vector<64x64xf32>
    %80 = arith.truncf %79 : vector<64x64xf32> to vector<64x64xbf16>
    %cst_31 = arith.constant dense<0.000000e+00> : vector<64x8xf32>
    %81 = tpu.matmul %80, %67, %cst_31 {dimension_numbers = #tpu.dot_dimension_numbers<[1], [0], [0], [1], [0, 0, 1, 1], [], []>} : vector<64x64xbf16>, vector<64x8xbf16>, vector<64x8xf32> -> vector<64x8xf32>
    %82 = vector.extract_strided_slice %19 {offsets = [0, 24], sizes = [64, 8], strides = [1, 1]} : vector<64x32xf32> to vector<64x8xf32>
    %83 = arith.truncf %82 : vector<64x8xf32> to vector<64x8xbf16>
    %84 = vector.extract_strided_slice %20 {offsets = [0, 24], sizes = [64, 8], strides = [1, 1]} : vector<64x32xf32> to vector<64x8xf32>
    %85 = arith.truncf %84 : vector<64x8xf32> to vector<64x8xbf16>
    %86 = vector.extract_strided_slice %21 {offsets = [0, 24], sizes = [64, 8], strides = [1, 1]} : vector<64x32xf32> to vector<64x8xf32>
    %87 = arith.truncf %86 : vector<64x8xf32> to vector<64x8xbf16>
    %cst_32 = arith.constant dense<0.000000e+00> : vector<64x64xf32>
    %88 = tpu.matmul %83, %85, %cst_32 {dimension_numbers = #tpu.dot_dimension_numbers<[1], [1], [0], [0], [0, 0, 1, 0], [], []>} : vector<64x8xbf16>, vector<64x8xbf16>, vector<64x64xf32> -> vector<64x64xf32>
    %89 = arith.addf %88, %5 : vector<64x64xf32>
    %cst_33 = arith.constant dense<0xFF800000> : vector<64xf32>
    %90 = vector.multi_reduction <maximumf>, %89, %cst_33 [1] : vector<64x64xf32> to vector<64xf32>
    %91 = vector.shape_cast %90 : vector<64xf32> to vector<64x1xf32>
    %92 = vector.broadcast %91 : vector<64x1xf32> to vector<64x64xf32>
    %93 = arith.subf %89, %92 : vector<64x64xf32>
    %94 = math.exp %93 : vector<64x64xf32>
    %cst_34 = arith.constant dense<0.000000e+00> : vector<64xf32>
    %95 = vector.multi_reduction <add>, %94, %cst_34 [1] : vector<64x64xf32> to vector<64xf32>
    %96 = vector.shape_cast %95 : vector<64xf32> to vector<64x1xf32>
    %97 = tpu.reciprocal %96 {approx = true} : vector<64x1xf32> -> vector<64x1xf32>
    %98 = vector.broadcast %97 : vector<64x1xf32> to vector<64x64xf32>
    %99 = arith.mulf %94, %98 : vector<64x64xf32>
    %100 = arith.truncf %99 : vector<64x64xf32> to vector<64x64xbf16>
    %cst_35 = arith.constant dense<0.000000e+00> : vector<64x8xf32>
    %101 = tpu.matmul %100, %87, %cst_35 {dimension_numbers = #tpu.dot_dimension_numbers<[1], [0], [0], [1], [0, 0, 1, 1], [], []>} : vector<64x64xbf16>, vector<64x8xbf16>, vector<64x8xf32> -> vector<64x8xf32>
    %102 = tpu.concatenate %41, %61, %81, %101 in 1 : vector<64x8xf32>, vector<64x8xf32>, vector<64x8xf32>, vector<64x8xf32> -> vector<64x32xf32>
    %103 = arith.truncf %102 : vector<64x32xf32> to vector<64x32xbf16>
    %c0_36 = arith.constant 0 : index
    %c0_37 = arith.constant 0 : index
    %104 = vector.load %arg7[%c0_36, %c0_37] : memref<32x32xbf16, #tpu.memory_space<vmem>>, vector<32x32xbf16>
    %cst_38 = arith.constant dense<0.000000e+00> : vector<64x32xf32>
    %105 = tpu.matmul %103, %104, %cst_38 {dimension_numbers = #tpu.dot_dimension_numbers<[1], [0], [0], [1], [0, 0, 1, 1], [], []>} : vector<64x32xbf16>, vector<32x32xbf16>, vector<64x32xf32> -> vector<64x32xf32>
    %106 = vector.broadcast %8 : vector<1x32xf32> to vector<64x32xf32>
    %107 = arith.addf %105, %106 : vector<64x32xf32>
    %108 = arith.addf %4, %107 : vector<64x32xf32>
    %cst_39 = arith.constant dense<0.000000e+00> : vector<64xf32>
    %109 = vector.multi_reduction <add>, %108, %cst_39 [1] : vector<64x32xf32> to vector<64xf32>
    %110 = vector.shape_cast %109 : vector<64xf32> to vector<64x1xf32>
    %cst_40 = arith.constant 3.200000e+01 : f32
    %111 = vector.broadcast %cst_40 : f32 to vector<64x1xf32>
    %112 = arith.divf %110, %111 : vector<64x1xf32>
    %113 = vector.broadcast %112 : vector<64x1xf32> to vector<64x32xf32>
    %114 = arith.subf %108, %113 : vector<64x32xf32>
    %115 = arith.mulf %114, %114 : vector<64x32xf32>
    %cst_41 = arith.constant dense<0.000000e+00> : vector<64xf32>
    %116 = vector.multi_reduction <add>, %115, %cst_41 [1] : vector<64x32xf32> to vector<64xf32>
    %117 = vector.shape_cast %116 : vector<64xf32> to vector<64x1xf32>
    %cst_42 = arith.constant 3.200000e+01 : f32
    %118 = vector.broadcast %cst_42 : f32 to vector<64x1xf32>
    %119 = arith.divf %117, %118 : vector<64x1xf32>
    %120 = vector.broadcast %112 : vector<64x1xf32> to vector<64x32xf32>
    %121 = arith.subf %108, %120 : vector<64x32xf32>
    %cst_43 = arith.constant 9.99999974E-6 : f32
    %122 = vector.broadcast %cst_43 : f32 to vector<64x1xf32>
    %123 = arith.addf %119, %122 : vector<64x1xf32>
    %124 = math.rsqrt %123 : vector<64x1xf32>
    %125 = vector.broadcast %124 : vector<64x1xf32> to vector<64x32xf32>
    %126 = arith.mulf %121, %125 : vector<64x32xf32>
    %127 = vector.broadcast %9 : vector<1x32xf32> to vector<64x32xf32>
    %128 = arith.mulf %126, %127 : vector<64x32xf32>
    %129 = vector.broadcast %10 : vector<1x32xf32> to vector<64x32xf32>
    %130 = arith.addf %128, %129 : vector<64x32xf32>
    %131 = arith.truncf %130 : vector<64x32xf32> to vector<64x32xbf16>
    %cst_44 = arith.constant 0.000000e+00 : f32
    %132 = vector.broadcast %cst_44 : f32 to vector<64x32xf32>
    %133 = vector.broadcast %11 : vector<1x32xf32> to vector<64x32xf32>
    %134 = arith.addf %132, %133 : vector<64x32xf32>
    %c0_45 = arith.constant 0 : index
    %c0_46 = arith.constant 0 : index
    %135 = vector.load %arg8[%c0_45, %c0_46] : memref<32x2048xbf16, #tpu.memory_space<vmem>>, vector<32x512xbf16>
    %cst_47 = arith.constant dense<0.000000e+00> : vector<64x512xf32>
    %136 = tpu.matmul %131, %135, %cst_47 {dimension_numbers = #tpu.dot_dimension_numbers<[1], [0], [0], [1], [0, 0, 1, 1], [], []>} : vector<64x32xbf16>, vector<32x512xbf16>, vector<64x512xf32> -> vector<64x512xf32>
    %c0_48 = arith.constant 0 : index
    %c0_49 = arith.constant 0 : index
    %137 = vector.load %arg11[%c0_48, %c0_49] : memref<1x2048xf32, #tpu.memory_space<vmem>>, vector<1x512xf32>
    %138 = vector.broadcast %137 : vector<1x512xf32> to vector<64x512xf32>
    %139 = arith.addf %136, %138 : vector<64x512xf32>
    %cst_50 = arith.constant 0.000000e+00 : f32
    %140 = vector.broadcast %cst_50 : f32 to vector<64x512xf32>
    %141 = arith.maximumf %139, %140 : vector<64x512xf32>
    %142 = arith.truncf %141 : vector<64x512xf32> to vector<64x512xbf16>
    %c0_51 = arith.constant 0 : index
    %c0_52 = arith.constant 0 : index
    %143 = vector.load %arg9[%c0_51, %c0_52] : memref<2048x32xbf16, #tpu.memory_space<vmem>>, vector<512x32xbf16>
    %cst_53 = arith.constant dense<0.000000e+00> : vector<64x32xf32>
    %144 = tpu.matmul %142, %143, %cst_53 {dimension_numbers = #tpu.dot_dimension_numbers<[1], [0], [0], [1], [0, 0, 1, 1], [], []>} : vector<64x512xbf16>, vector<512x32xbf16>, vector<64x32xf32> -> vector<64x32xf32>
    %145 = arith.addf %134, %144 : vector<64x32xf32>
    %c0_54 = arith.constant 0 : index
    %c512 = arith.constant 512 : index
    %146 = vector.load %arg8[%c0_54, %c512] : memref<32x2048xbf16, #tpu.memory_space<vmem>>, vector<32x512xbf16>
    %cst_55 = arith.constant dense<0.000000e+00> : vector<64x512xf32>
    %147 = tpu.matmul %131, %146, %cst_55 {dimension_numbers = #tpu.dot_dimension_numbers<[1], [0], [0], [1], [0, 0, 1, 1], [], []>} : vector<64x32xbf16>, vector<32x512xbf16>, vector<64x512xf32> -> vector<64x512xf32>
    %c0_56 = arith.constant 0 : index
    %c512_57 = arith.constant 512 : index
    %148 = vector.load %arg11[%c0_56, %c512_57] : memref<1x2048xf32, #tpu.memory_space<vmem>>, vector<1x512xf32>
    %149 = vector.broadcast %148 : vector<1x512xf32> to vector<64x512xf32>
    %150 = arith.addf %147, %149 : vector<64x512xf32>
    %cst_58 = arith.constant 0.000000e+00 : f32
    %151 = vector.broadcast %cst_58 : f32 to vector<64x512xf32>
    %152 = arith.maximumf %150, %151 : vector<64x512xf32>
    %153 = arith.truncf %152 : vector<64x512xf32> to vector<64x512xbf16>
    %c512_59 = arith.constant 512 : index
    %c0_60 = arith.constant 0 : index
    %154 = vector.load %arg9[%c512_59, %c0_60] : memref<2048x32xbf16, #tpu.memory_space<vmem>>, vector<512x32xbf16>
    %cst_61 = arith.constant dense<0.000000e+00> : vector<64x32xf32>
    %155 = tpu.matmul %153, %154, %cst_61 {dimension_numbers = #tpu.dot_dimension_numbers<[1], [0], [0], [1], [0, 0, 1, 1], [], []>} : vector<64x512xbf16>, vector<512x32xbf16>, vector<64x32xf32> -> vector<64x32xf32>
    %156 = arith.addf %145, %155 : vector<64x32xf32>
    %c0_62 = arith.constant 0 : index
    %c1024 = arith.constant 1024 : index
    %157 = vector.load %arg8[%c0_62, %c1024] : memref<32x2048xbf16, #tpu.memory_space<vmem>>, vector<32x512xbf16>
    %cst_63 = arith.constant dense<0.000000e+00> : vector<64x512xf32>
    %158 = tpu.matmul %131, %157, %cst_63 {dimension_numbers = #tpu.dot_dimension_numbers<[1], [0], [0], [1], [0, 0, 1, 1], [], []>} : vector<64x32xbf16>, vector<32x512xbf16>, vector<64x512xf32> -> vector<64x512xf32>
    %c0_64 = arith.constant 0 : index
    %c1024_65 = arith.constant 1024 : index
    %159 = vector.load %arg11[%c0_64, %c1024_65] : memref<1x2048xf32, #tpu.memory_space<vmem>>, vector<1x512xf32>
    %160 = vector.broadcast %159 : vector<1x512xf32> to vector<64x512xf32>
    %161 = arith.addf %158, %160 : vector<64x512xf32>
    %cst_66 = arith.constant 0.000000e+00 : f32
    %162 = vector.broadcast %cst_66 : f32 to vector<64x512xf32>
    %163 = arith.maximumf %161, %162 : vector<64x512xf32>
    %164 = arith.truncf %163 : vector<64x512xf32> to vector<64x512xbf16>
    %c1024_67 = arith.constant 1024 : index
    %c0_68 = arith.constant 0 : index
    %165 = vector.load %arg9[%c1024_67, %c0_68] : memref<2048x32xbf16, #tpu.memory_space<vmem>>, vector<512x32xbf16>
    %cst_69 = arith.constant dense<0.000000e+00> : vector<64x32xf32>
    %166 = tpu.matmul %164, %165, %cst_69 {dimension_numbers = #tpu.dot_dimension_numbers<[1], [0], [0], [1], [0, 0, 1, 1], [], []>} : vector<64x512xbf16>, vector<512x32xbf16>, vector<64x32xf32> -> vector<64x32xf32>
    %167 = arith.addf %156, %166 : vector<64x32xf32>
    %c0_70 = arith.constant 0 : index
    %c1536 = arith.constant 1536 : index
    %168 = vector.load %arg8[%c0_70, %c1536] : memref<32x2048xbf16, #tpu.memory_space<vmem>>, vector<32x512xbf16>
    %cst_71 = arith.constant dense<0.000000e+00> : vector<64x512xf32>
    %169 = tpu.matmul %131, %168, %cst_71 {dimension_numbers = #tpu.dot_dimension_numbers<[1], [0], [0], [1], [0, 0, 1, 1], [], []>} : vector<64x32xbf16>, vector<32x512xbf16>, vector<64x512xf32> -> vector<64x512xf32>
    %c0_72 = arith.constant 0 : index
    %c1536_73 = arith.constant 1536 : index
    %170 = vector.load %arg11[%c0_72, %c1536_73] : memref<1x2048xf32, #tpu.memory_space<vmem>>, vector<1x512xf32>
    %171 = vector.broadcast %170 : vector<1x512xf32> to vector<64x512xf32>
    %172 = arith.addf %169, %171 : vector<64x512xf32>
    %cst_74 = arith.constant 0.000000e+00 : f32
    %173 = vector.broadcast %cst_74 : f32 to vector<64x512xf32>
    %174 = arith.maximumf %172, %173 : vector<64x512xf32>
    %175 = arith.truncf %174 : vector<64x512xf32> to vector<64x512xbf16>
    %c1536_75 = arith.constant 1536 : index
    %c0_76 = arith.constant 0 : index
    %176 = vector.load %arg9[%c1536_75, %c0_76] : memref<2048x32xbf16, #tpu.memory_space<vmem>>, vector<512x32xbf16>
    %cst_77 = arith.constant dense<0.000000e+00> : vector<64x32xf32>
    %177 = tpu.matmul %175, %176, %cst_77 {dimension_numbers = #tpu.dot_dimension_numbers<[1], [0], [0], [1], [0, 0, 1, 1], [], []>} : vector<64x512xbf16>, vector<512x32xbf16>, vector<64x32xf32> -> vector<64x32xf32>
    %178 = arith.addf %167, %177 : vector<64x32xf32>
    %179 = arith.addf %130, %178 : vector<64x32xf32>
    %cst_78 = arith.constant dense<0.000000e+00> : vector<64xf32>
    %180 = vector.multi_reduction <add>, %179, %cst_78 [1] : vector<64x32xf32> to vector<64xf32>
    %181 = vector.shape_cast %180 : vector<64xf32> to vector<64x1xf32>
    %cst_79 = arith.constant 3.200000e+01 : f32
    %182 = vector.broadcast %cst_79 : f32 to vector<64x1xf32>
    %183 = arith.divf %181, %182 : vector<64x1xf32>
    %184 = vector.broadcast %183 : vector<64x1xf32> to vector<64x32xf32>
    %185 = arith.subf %179, %184 : vector<64x32xf32>
    %186 = arith.mulf %185, %185 : vector<64x32xf32>
    %cst_80 = arith.constant dense<0.000000e+00> : vector<64xf32>
    %187 = vector.multi_reduction <add>, %186, %cst_80 [1] : vector<64x32xf32> to vector<64xf32>
    %188 = vector.shape_cast %187 : vector<64xf32> to vector<64x1xf32>
    %cst_81 = arith.constant 3.200000e+01 : f32
    %189 = vector.broadcast %cst_81 : f32 to vector<64x1xf32>
    %190 = arith.divf %188, %189 : vector<64x1xf32>
    %191 = vector.broadcast %183 : vector<64x1xf32> to vector<64x32xf32>
    %192 = arith.subf %179, %191 : vector<64x32xf32>
    %cst_82 = arith.constant 9.99999974E-6 : f32
    %193 = vector.broadcast %cst_82 : f32 to vector<64x1xf32>
    %194 = arith.addf %190, %193 : vector<64x1xf32>
    %195 = math.rsqrt %194 : vector<64x1xf32>
    %196 = vector.broadcast %195 : vector<64x1xf32> to vector<64x32xf32>
    %197 = arith.mulf %192, %196 : vector<64x32xf32>
    %198 = vector.broadcast %12 : vector<1x32xf32> to vector<64x32xf32>
    %199 = arith.mulf %197, %198 : vector<64x32xf32>
    %200 = vector.broadcast %13 : vector<1x32xf32> to vector<64x32xf32>
    %201 = arith.addf %199, %200 : vector<64x32xf32>
    %c0_83 = arith.constant 0 : index
    %c0_84 = arith.constant 0 : index
    %202 = vector.load %arg16[%c0_83, %c0_84] : memref<8x96xf32, #tpu.memory_space<vmem>>, vector<1x96xf32>
    %c1_85 = arith.constant 1 : index
    %c0_86 = arith.constant 0 : index
    %203 = vector.load %arg16[%c1_85, %c0_86] : memref<8x96xf32, #tpu.memory_space<vmem>>, vector<1x32xf32>
    %c2_87 = arith.constant 2 : index
    %c0_88 = arith.constant 0 : index
    %204 = vector.load %arg16[%c2_87, %c0_88] : memref<8x96xf32, #tpu.memory_space<vmem>>, vector<1x32xf32>
    %c3_89 = arith.constant 3 : index
    %c0_90 = arith.constant 0 : index
    %205 = vector.load %arg16[%c3_89, %c0_90] : memref<8x96xf32, #tpu.memory_space<vmem>>, vector<1x32xf32>
    %c4_91 = arith.constant 4 : index
    %c0_92 = arith.constant 0 : index
    %206 = vector.load %arg16[%c4_91, %c0_92] : memref<8x96xf32, #tpu.memory_space<vmem>>, vector<1x32xf32>
    %c5_93 = arith.constant 5 : index
    %c0_94 = arith.constant 0 : index
    %207 = vector.load %arg16[%c5_93, %c0_94] : memref<8x96xf32, #tpu.memory_space<vmem>>, vector<1x32xf32>
    %c6_95 = arith.constant 6 : index
    %c0_96 = arith.constant 0 : index
    %208 = vector.load %arg16[%c6_95, %c0_96] : memref<8x96xf32, #tpu.memory_space<vmem>>, vector<1x32xf32>
    %209 = arith.truncf %201 : vector<64x32xf32> to vector<64x32xbf16>
    %c0_97 = arith.constant 0 : index
    %c0_98 = arith.constant 0 : index
    %210 = vector.load %arg12[%c0_97, %c0_98] : memref<32x96xbf16, #tpu.memory_space<vmem>>, vector<32x96xbf16>
    %cst_99 = arith.constant dense<0.000000e+00> : vector<64x96xf32>
    %211 = tpu.matmul %209, %210, %cst_99 {dimension_numbers = #tpu.dot_dimension_numbers<[1], [0], [0], [1], [0, 0, 1, 1], [], []>} : vector<64x32xbf16>, vector<32x96xbf16>, vector<64x96xf32> -> vector<64x96xf32>
    %212 = vector.broadcast %202 : vector<1x96xf32> to vector<64x96xf32>
    %213 = arith.addf %211, %212 : vector<64x96xf32>
    %214 = vector.extract_strided_slice %213 {offsets = [0, 0], sizes = [64, 32], strides = [1, 1]} : vector<64x96xf32> to vector<64x32xf32>
    %215 = vector.extract_strided_slice %213 {offsets = [0, 32], sizes = [64, 32], strides = [1, 1]} : vector<64x96xf32> to vector<64x32xf32>
    %216 = vector.extract_strided_slice %213 {offsets = [0, 64], sizes = [64, 32], strides = [1, 1]} : vector<64x96xf32> to vector<64x32xf32>
    %217 = vector.extract_strided_slice %214 {offsets = [0, 0], sizes = [64, 8], strides = [1, 1]} : vector<64x32xf32> to vector<64x8xf32>
    %218 = arith.truncf %217 : vector<64x8xf32> to vector<64x8xbf16>
    %219 = vector.extract_strided_slice %215 {offsets = [0, 0], sizes = [64, 8], strides = [1, 1]} : vector<64x32xf32> to vector<64x8xf32>
    %220 = arith.truncf %219 : vector<64x8xf32> to vector<64x8xbf16>
    %221 = vector.extract_strided_slice %216 {offsets = [0, 0], sizes = [64, 8], strides = [1, 1]} : vector<64x32xf32> to vector<64x8xf32>
    %222 = arith.truncf %221 : vector<64x8xf32> to vector<64x8xbf16>
    %cst_100 = arith.constant dense<0.000000e+00> : vector<64x64xf32>
    %223 = tpu.matmul %218, %220, %cst_100 {dimension_numbers = #tpu.dot_dimension_numbers<[1], [1], [0], [0], [0, 0, 1, 0], [], []>} : vector<64x8xbf16>, vector<64x8xbf16>, vector<64x64xf32> -> vector<64x64xf32>
    %224 = arith.addf %223, %6 : vector<64x64xf32>
    %cst_101 = arith.constant dense<0xFF800000> : vector<64xf32>
    %225 = vector.multi_reduction <maximumf>, %224, %cst_101 [1] : vector<64x64xf32> to vector<64xf32>
    %226 = vector.shape_cast %225 : vector<64xf32> to vector<64x1xf32>
    %227 = vector.broadcast %226 : vector<64x1xf32> to vector<64x64xf32>
    %228 = arith.subf %224, %227 : vector<64x64xf32>
    %229 = math.exp %228 : vector<64x64xf32>
    %cst_102 = arith.constant dense<0.000000e+00> : vector<64xf32>
    %230 = vector.multi_reduction <add>, %229, %cst_102 [1] : vector<64x64xf32> to vector<64xf32>
    %231 = vector.shape_cast %230 : vector<64xf32> to vector<64x1xf32>
    %232 = tpu.reciprocal %231 {approx = true} : vector<64x1xf32> -> vector<64x1xf32>
    %233 = vector.broadcast %232 : vector<64x1xf32> to vector<64x64xf32>
    %234 = arith.mulf %229, %233 : vector<64x64xf32>
    %235 = arith.truncf %234 : vector<64x64xf32> to vector<64x64xbf16>
    %cst_103 = arith.constant dense<0.000000e+00> : vector<64x8xf32>
    %236 = tpu.matmul %235, %222, %cst_103 {dimension_numbers = #tpu.dot_dimension_numbers<[1], [0], [0], [1], [0, 0, 1, 1], [], []>} : vector<64x64xbf16>, vector<64x8xbf16>, vector<64x8xf32> -> vector<64x8xf32>
    %237 = vector.extract_strided_slice %214 {offsets = [0, 8], sizes = [64, 8], strides = [1, 1]} : vector<64x32xf32> to vector<64x8xf32>
    %238 = arith.truncf %237 : vector<64x8xf32> to vector<64x8xbf16>
    %239 = vector.extract_strided_slice %215 {offsets = [0, 8], sizes = [64, 8], strides = [1, 1]} : vector<64x32xf32> to vector<64x8xf32>
    %240 = arith.truncf %239 : vector<64x8xf32> to vector<64x8xbf16>
    %241 = vector.extract_strided_slice %216 {offsets = [0, 8], sizes = [64, 8], strides = [1, 1]} : vector<64x32xf32> to vector<64x8xf32>
    %242 = arith.truncf %241 : vector<64x8xf32> to vector<64x8xbf16>
    %cst_104 = arith.constant dense<0.000000e+00> : vector<64x64xf32>
    %243 = tpu.matmul %238, %240, %cst_104 {dimension_numbers = #tpu.dot_dimension_numbers<[1], [1], [0], [0], [0, 0, 1, 0], [], []>} : vector<64x8xbf16>, vector<64x8xbf16>, vector<64x64xf32> -> vector<64x64xf32>
    %244 = arith.addf %243, %6 : vector<64x64xf32>
    %cst_105 = arith.constant dense<0xFF800000> : vector<64xf32>
    %245 = vector.multi_reduction <maximumf>, %244, %cst_105 [1] : vector<64x64xf32> to vector<64xf32>
    %246 = vector.shape_cast %245 : vector<64xf32> to vector<64x1xf32>
    %247 = vector.broadcast %246 : vector<64x1xf32> to vector<64x64xf32>
    %248 = arith.subf %244, %247 : vector<64x64xf32>
    %249 = math.exp %248 : vector<64x64xf32>
    %cst_106 = arith.constant dense<0.000000e+00> : vector<64xf32>
    %250 = vector.multi_reduction <add>, %249, %cst_106 [1] : vector<64x64xf32> to vector<64xf32>
    %251 = vector.shape_cast %250 : vector<64xf32> to vector<64x1xf32>
    %252 = tpu.reciprocal %251 {approx = true} : vector<64x1xf32> -> vector<64x1xf32>
    %253 = vector.broadcast %252 : vector<64x1xf32> to vector<64x64xf32>
    %254 = arith.mulf %249, %253 : vector<64x64xf32>
    %255 = arith.truncf %254 : vector<64x64xf32> to vector<64x64xbf16>
    %cst_107 = arith.constant dense<0.000000e+00> : vector<64x8xf32>
    %256 = tpu.matmul %255, %242, %cst_107 {dimension_numbers = #tpu.dot_dimension_numbers<[1], [0], [0], [1], [0, 0, 1, 1], [], []>} : vector<64x64xbf16>, vector<64x8xbf16>, vector<64x8xf32> -> vector<64x8xf32>
    %257 = vector.extract_strided_slice %214 {offsets = [0, 16], sizes = [64, 8], strides = [1, 1]} : vector<64x32xf32> to vector<64x8xf32>
    %258 = arith.truncf %257 : vector<64x8xf32> to vector<64x8xbf16>
    %259 = vector.extract_strided_slice %215 {offsets = [0, 16], sizes = [64, 8], strides = [1, 1]} : vector<64x32xf32> to vector<64x8xf32>
    %260 = arith.truncf %259 : vector<64x8xf32> to vector<64x8xbf16>
    %261 = vector.extract_strided_slice %216 {offsets = [0, 16], sizes = [64, 8], strides = [1, 1]} : vector<64x32xf32> to vector<64x8xf32>
    %262 = arith.truncf %261 : vector<64x8xf32> to vector<64x8xbf16>
    %cst_108 = arith.constant dense<0.000000e+00> : vector<64x64xf32>
    %263 = tpu.matmul %258, %260, %cst_108 {dimension_numbers = #tpu.dot_dimension_numbers<[1], [1], [0], [0], [0, 0, 1, 0], [], []>} : vector<64x8xbf16>, vector<64x8xbf16>, vector<64x64xf32> -> vector<64x64xf32>
    %264 = arith.addf %263, %6 : vector<64x64xf32>
    %cst_109 = arith.constant dense<0xFF800000> : vector<64xf32>
    %265 = vector.multi_reduction <maximumf>, %264, %cst_109 [1] : vector<64x64xf32> to vector<64xf32>
    %266 = vector.shape_cast %265 : vector<64xf32> to vector<64x1xf32>
    %267 = vector.broadcast %266 : vector<64x1xf32> to vector<64x64xf32>
    %268 = arith.subf %264, %267 : vector<64x64xf32>
    %269 = math.exp %268 : vector<64x64xf32>
    %cst_110 = arith.constant dense<0.000000e+00> : vector<64xf32>
    %270 = vector.multi_reduction <add>, %269, %cst_110 [1] : vector<64x64xf32> to vector<64xf32>
    %271 = vector.shape_cast %270 : vector<64xf32> to vector<64x1xf32>
    %272 = tpu.reciprocal %271 {approx = true} : vector<64x1xf32> -> vector<64x1xf32>
    %273 = vector.broadcast %272 : vector<64x1xf32> to vector<64x64xf32>
    %274 = arith.mulf %269, %273 : vector<64x64xf32>
    %275 = arith.truncf %274 : vector<64x64xf32> to vector<64x64xbf16>
    %cst_111 = arith.constant dense<0.000000e+00> : vector<64x8xf32>
    %276 = tpu.matmul %275, %262, %cst_111 {dimension_numbers = #tpu.dot_dimension_numbers<[1], [0], [0], [1], [0, 0, 1, 1], [], []>} : vector<64x64xbf16>, vector<64x8xbf16>, vector<64x8xf32> -> vector<64x8xf32>
    %277 = vector.extract_strided_slice %214 {offsets = [0, 24], sizes = [64, 8], strides = [1, 1]} : vector<64x32xf32> to vector<64x8xf32>
    %278 = arith.truncf %277 : vector<64x8xf32> to vector<64x8xbf16>
    %279 = vector.extract_strided_slice %215 {offsets = [0, 24], sizes = [64, 8], strides = [1, 1]} : vector<64x32xf32> to vector<64x8xf32>
    %280 = arith.truncf %279 : vector<64x8xf32> to vector<64x8xbf16>
    %281 = vector.extract_strided_slice %216 {offsets = [0, 24], sizes = [64, 8], strides = [1, 1]} : vector<64x32xf32> to vector<64x8xf32>
    %282 = arith.truncf %281 : vector<64x8xf32> to vector<64x8xbf16>
    %cst_112 = arith.constant dense<0.000000e+00> : vector<64x64xf32>
    %283 = tpu.matmul %278, %280, %cst_112 {dimension_numbers = #tpu.dot_dimension_numbers<[1], [1], [0], [0], [0, 0, 1, 0], [], []>} : vector<64x8xbf16>, vector<64x8xbf16>, vector<64x64xf32> -> vector<64x64xf32>
    %284 = arith.addf %283, %6 : vector<64x64xf32>
    %cst_113 = arith.constant dense<0xFF800000> : vector<64xf32>
    %285 = vector.multi_reduction <maximumf>, %284, %cst_113 [1] : vector<64x64xf32> to vector<64xf32>
    %286 = vector.shape_cast %285 : vector<64xf32> to vector<64x1xf32>
    %287 = vector.broadcast %286 : vector<64x1xf32> to vector<64x64xf32>
    %288 = arith.subf %284, %287 : vector<64x64xf32>
    %289 = math.exp %288 : vector<64x64xf32>
    %cst_114 = arith.constant dense<0.000000e+00> : vector<64xf32>
    %290 = vector.multi_reduction <add>, %289, %cst_114 [1] : vector<64x64xf32> to vector<64xf32>
    %291 = vector.shape_cast %290 : vector<64xf32> to vector<64x1xf32>
    %292 = tpu.reciprocal %291 {approx = true} : vector<64x1xf32> -> vector<64x1xf32>
    %293 = vector.broadcast %292 : vector<64x1xf32> to vector<64x64xf32>
    %294 = arith.mulf %289, %293 : vector<64x64xf32>
    %295 = arith.truncf %294 : vector<64x64xf32> to vector<64x64xbf16>
    %cst_115 = arith.constant dense<0.000000e+00> : vector<64x8xf32>
    %296 = tpu.matmul %295, %282, %cst_115 {dimension_numbers = #tpu.dot_dimension_numbers<[1], [0], [0], [1], [0, 0, 1, 1], [], []>} : vector<64x64xbf16>, vector<64x8xbf16>, vector<64x8xf32> -> vector<64x8xf32>
    %297 = tpu.concatenate %236, %256, %276, %296 in 1 : vector<64x8xf32>, vector<64x8xf32>, vector<64x8xf32>, vector<64x8xf32> -> vector<64x32xf32>
    %298 = arith.truncf %297 : vector<64x32xf32> to vector<64x32xbf16>
    %c0_116 = arith.constant 0 : index
    %c0_117 = arith.constant 0 : index
    %299 = vector.load %arg13[%c0_116, %c0_117] : memref<32x32xbf16, #tpu.memory_space<vmem>>, vector<32x32xbf16>
    %cst_118 = arith.constant dense<0.000000e+00> : vector<64x32xf32>
    %300 = tpu.matmul %298, %299, %cst_118 {dimension_numbers = #tpu.dot_dimension_numbers<[1], [0], [0], [1], [0, 0, 1, 1], [], []>} : vector<64x32xbf16>, vector<32x32xbf16>, vector<64x32xf32> -> vector<64x32xf32>
    %301 = vector.broadcast %203 : vector<1x32xf32> to vector<64x32xf32>
    %302 = arith.addf %300, %301 : vector<64x32xf32>
    %303 = arith.addf %201, %302 : vector<64x32xf32>
    %cst_119 = arith.constant dense<0.000000e+00> : vector<64xf32>
    %304 = vector.multi_reduction <add>, %303, %cst_119 [1] : vector<64x32xf32> to vector<64xf32>
    %305 = vector.shape_cast %304 : vector<64xf32> to vector<64x1xf32>
    %cst_120 = arith.constant 3.200000e+01 : f32
    %306 = vector.broadcast %cst_120 : f32 to vector<64x1xf32>
    %307 = arith.divf %305, %306 : vector<64x1xf32>
    %308 = vector.broadcast %307 : vector<64x1xf32> to vector<64x32xf32>
    %309 = arith.subf %303, %308 : vector<64x32xf32>
    %310 = arith.mulf %309, %309 : vector<64x32xf32>
    %cst_121 = arith.constant dense<0.000000e+00> : vector<64xf32>
    %311 = vector.multi_reduction <add>, %310, %cst_121 [1] : vector<64x32xf32> to vector<64xf32>
    %312 = vector.shape_cast %311 : vector<64xf32> to vector<64x1xf32>
    %cst_122 = arith.constant 3.200000e+01 : f32
    %313 = vector.broadcast %cst_122 : f32 to vector<64x1xf32>
    %314 = arith.divf %312, %313 : vector<64x1xf32>
    %315 = vector.broadcast %307 : vector<64x1xf32> to vector<64x32xf32>
    %316 = arith.subf %303, %315 : vector<64x32xf32>
    %cst_123 = arith.constant 9.99999974E-6 : f32
    %317 = vector.broadcast %cst_123 : f32 to vector<64x1xf32>
    %318 = arith.addf %314, %317 : vector<64x1xf32>
    %319 = math.rsqrt %318 : vector<64x1xf32>
    %320 = vector.broadcast %319 : vector<64x1xf32> to vector<64x32xf32>
    %321 = arith.mulf %316, %320 : vector<64x32xf32>
    %322 = vector.broadcast %204 : vector<1x32xf32> to vector<64x32xf32>
    %323 = arith.mulf %321, %322 : vector<64x32xf32>
    %324 = vector.broadcast %205 : vector<1x32xf32> to vector<64x32xf32>
    %325 = arith.addf %323, %324 : vector<64x32xf32>
    %326 = arith.truncf %325 : vector<64x32xf32> to vector<64x32xbf16>
    %cst_124 = arith.constant 0.000000e+00 : f32
    %327 = vector.broadcast %cst_124 : f32 to vector<64x32xf32>
    %328 = vector.broadcast %206 : vector<1x32xf32> to vector<64x32xf32>
    %329 = arith.addf %327, %328 : vector<64x32xf32>
    %c0_125 = arith.constant 0 : index
    %c0_126 = arith.constant 0 : index
    %330 = vector.load %arg14[%c0_125, %c0_126] : memref<32x2048xbf16, #tpu.memory_space<vmem>>, vector<32x512xbf16>
    %cst_127 = arith.constant dense<0.000000e+00> : vector<64x512xf32>
    %331 = tpu.matmul %326, %330, %cst_127 {dimension_numbers = #tpu.dot_dimension_numbers<[1], [0], [0], [1], [0, 0, 1, 1], [], []>} : vector<64x32xbf16>, vector<32x512xbf16>, vector<64x512xf32> -> vector<64x512xf32>
    %c0_128 = arith.constant 0 : index
    %c0_129 = arith.constant 0 : index
    %332 = vector.load %arg17[%c0_128, %c0_129] : memref<1x2048xf32, #tpu.memory_space<vmem>>, vector<1x512xf32>
    %333 = vector.broadcast %332 : vector<1x512xf32> to vector<64x512xf32>
    %334 = arith.addf %331, %333 : vector<64x512xf32>
    %cst_130 = arith.constant 0.000000e+00 : f32
    %335 = vector.broadcast %cst_130 : f32 to vector<64x512xf32>
    %336 = arith.maximumf %334, %335 : vector<64x512xf32>
    %337 = arith.truncf %336 : vector<64x512xf32> to vector<64x512xbf16>
    %c0_131 = arith.constant 0 : index
    %c0_132 = arith.constant 0 : index
    %338 = vector.load %arg15[%c0_131, %c0_132] : memref<2048x32xbf16, #tpu.memory_space<vmem>>, vector<512x32xbf16>
    %cst_133 = arith.constant dense<0.000000e+00> : vector<64x32xf32>
    %339 = tpu.matmul %337, %338, %cst_133 {dimension_numbers = #tpu.dot_dimension_numbers<[1], [0], [0], [1], [0, 0, 1, 1], [], []>} : vector<64x512xbf16>, vector<512x32xbf16>, vector<64x32xf32> -> vector<64x32xf32>
    %340 = arith.addf %329, %339 : vector<64x32xf32>
    %c0_134 = arith.constant 0 : index
    %c512_135 = arith.constant 512 : index
    %341 = vector.load %arg14[%c0_134, %c512_135] : memref<32x2048xbf16, #tpu.memory_space<vmem>>, vector<32x512xbf16>
    %cst_136 = arith.constant dense<0.000000e+00> : vector<64x512xf32>
    %342 = tpu.matmul %326, %341, %cst_136 {dimension_numbers = #tpu.dot_dimension_numbers<[1], [0], [0], [1], [0, 0, 1, 1], [], []>} : vector<64x32xbf16>, vector<32x512xbf16>, vector<64x512xf32> -> vector<64x512xf32>
    %c0_137 = arith.constant 0 : index
    %c512_138 = arith.constant 512 : index
    %343 = vector.load %arg17[%c0_137, %c512_138] : memref<1x2048xf32, #tpu.memory_space<vmem>>, vector<1x512xf32>
    %344 = vector.broadcast %343 : vector<1x512xf32> to vector<64x512xf32>
    %345 = arith.addf %342, %344 : vector<64x512xf32>
    %cst_139 = arith.constant 0.000000e+00 : f32
    %346 = vector.broadcast %cst_139 : f32 to vector<64x512xf32>
    %347 = arith.maximumf %345, %346 : vector<64x512xf32>
    %348 = arith.truncf %347 : vector<64x512xf32> to vector<64x512xbf16>
    %c512_140 = arith.constant 512 : index
    %c0_141 = arith.constant 0 : index
    %349 = vector.load %arg15[%c512_140, %c0_141] : memref<2048x32xbf16, #tpu.memory_space<vmem>>, vector<512x32xbf16>
    %cst_142 = arith.constant dense<0.000000e+00> : vector<64x32xf32>
    %350 = tpu.matmul %348, %349, %cst_142 {dimension_numbers = #tpu.dot_dimension_numbers<[1], [0], [0], [1], [0, 0, 1, 1], [], []>} : vector<64x512xbf16>, vector<512x32xbf16>, vector<64x32xf32> -> vector<64x32xf32>
    %351 = arith.addf %340, %350 : vector<64x32xf32>
    %c0_143 = arith.constant 0 : index
    %c1024_144 = arith.constant 1024 : index
    %352 = vector.load %arg14[%c0_143, %c1024_144] : memref<32x2048xbf16, #tpu.memory_space<vmem>>, vector<32x512xbf16>
    %cst_145 = arith.constant dense<0.000000e+00> : vector<64x512xf32>
    %353 = tpu.matmul %326, %352, %cst_145 {dimension_numbers = #tpu.dot_dimension_numbers<[1], [0], [0], [1], [0, 0, 1, 1], [], []>} : vector<64x32xbf16>, vector<32x512xbf16>, vector<64x512xf32> -> vector<64x512xf32>
    %c0_146 = arith.constant 0 : index
    %c1024_147 = arith.constant 1024 : index
    %354 = vector.load %arg17[%c0_146, %c1024_147] : memref<1x2048xf32, #tpu.memory_space<vmem>>, vector<1x512xf32>
    %355 = vector.broadcast %354 : vector<1x512xf32> to vector<64x512xf32>
    %356 = arith.addf %353, %355 : vector<64x512xf32>
    %cst_148 = arith.constant 0.000000e+00 : f32
    %357 = vector.broadcast %cst_148 : f32 to vector<64x512xf32>
    %358 = arith.maximumf %356, %357 : vector<64x512xf32>
    %359 = arith.truncf %358 : vector<64x512xf32> to vector<64x512xbf16>
    %c1024_149 = arith.constant 1024 : index
    %c0_150 = arith.constant 0 : index
    %360 = vector.load %arg15[%c1024_149, %c0_150] : memref<2048x32xbf16, #tpu.memory_space<vmem>>, vector<512x32xbf16>
    %cst_151 = arith.constant dense<0.000000e+00> : vector<64x32xf32>
    %361 = tpu.matmul %359, %360, %cst_151 {dimension_numbers = #tpu.dot_dimension_numbers<[1], [0], [0], [1], [0, 0, 1, 1], [], []>} : vector<64x512xbf16>, vector<512x32xbf16>, vector<64x32xf32> -> vector<64x32xf32>
    %362 = arith.addf %351, %361 : vector<64x32xf32>
    %c0_152 = arith.constant 0 : index
    %c1536_153 = arith.constant 1536 : index
    %363 = vector.load %arg14[%c0_152, %c1536_153] : memref<32x2048xbf16, #tpu.memory_space<vmem>>, vector<32x512xbf16>
    %cst_154 = arith.constant dense<0.000000e+00> : vector<64x512xf32>
    %364 = tpu.matmul %326, %363, %cst_154 {dimension_numbers = #tpu.dot_dimension_numbers<[1], [0], [0], [1], [0, 0, 1, 1], [], []>} : vector<64x32xbf16>, vector<32x512xbf16>, vector<64x512xf32> -> vector<64x512xf32>
    %c0_155 = arith.constant 0 : index
    %c1536_156 = arith.constant 1536 : index
    %365 = vector.load %arg17[%c0_155, %c1536_156] : memref<1x2048xf32, #tpu.memory_space<vmem>>, vector<1x512xf32>
    %366 = vector.broadcast %365 : vector<1x512xf32> to vector<64x512xf32>
    %367 = arith.addf %364, %366 : vector<64x512xf32>
    %cst_157 = arith.constant 0.000000e+00 : f32
    %368 = vector.broadcast %cst_157 : f32 to vector<64x512xf32>
    %369 = arith.maximumf %367, %368 : vector<64x512xf32>
    %370 = arith.truncf %369 : vector<64x512xf32> to vector<64x512xbf16>
    %c1536_158 = arith.constant 1536 : index
    %c0_159 = arith.constant 0 : index
    %371 = vector.load %arg15[%c1536_158, %c0_159] : memref<2048x32xbf16, #tpu.memory_space<vmem>>, vector<512x32xbf16>
    %cst_160 = arith.constant dense<0.000000e+00> : vector<64x32xf32>
    %372 = tpu.matmul %370, %371, %cst_160 {dimension_numbers = #tpu.dot_dimension_numbers<[1], [0], [0], [1], [0, 0, 1, 1], [], []>} : vector<64x512xbf16>, vector<512x32xbf16>, vector<64x32xf32> -> vector<64x32xf32>
    %373 = arith.addf %362, %372 : vector<64x32xf32>
    %374 = arith.addf %325, %373 : vector<64x32xf32>
    %cst_161 = arith.constant dense<0.000000e+00> : vector<64xf32>
    %375 = vector.multi_reduction <add>, %374, %cst_161 [1] : vector<64x32xf32> to vector<64xf32>
    %376 = vector.shape_cast %375 : vector<64xf32> to vector<64x1xf32>
    %cst_162 = arith.constant 3.200000e+01 : f32
    %377 = vector.broadcast %cst_162 : f32 to vector<64x1xf32>
    %378 = arith.divf %376, %377 : vector<64x1xf32>
    %379 = vector.broadcast %378 : vector<64x1xf32> to vector<64x32xf32>
    %380 = arith.subf %374, %379 : vector<64x32xf32>
    %381 = arith.mulf %380, %380 : vector<64x32xf32>
    %cst_163 = arith.constant dense<0.000000e+00> : vector<64xf32>
    %382 = vector.multi_reduction <add>, %381, %cst_163 [1] : vector<64x32xf32> to vector<64xf32>
    %383 = vector.shape_cast %382 : vector<64xf32> to vector<64x1xf32>
    %cst_164 = arith.constant 3.200000e+01 : f32
    %384 = vector.broadcast %cst_164 : f32 to vector<64x1xf32>
    %385 = arith.divf %383, %384 : vector<64x1xf32>
    %386 = vector.broadcast %378 : vector<64x1xf32> to vector<64x32xf32>
    %387 = arith.subf %374, %386 : vector<64x32xf32>
    %cst_165 = arith.constant 9.99999974E-6 : f32
    %388 = vector.broadcast %cst_165 : f32 to vector<64x1xf32>
    %389 = arith.addf %385, %388 : vector<64x1xf32>
    %390 = math.rsqrt %389 : vector<64x1xf32>
    %391 = vector.broadcast %390 : vector<64x1xf32> to vector<64x32xf32>
    %392 = arith.mulf %387, %391 : vector<64x32xf32>
    %393 = vector.broadcast %207 : vector<1x32xf32> to vector<64x32xf32>
    %394 = arith.mulf %392, %393 : vector<64x32xf32>
    %395 = vector.broadcast %208 : vector<1x32xf32> to vector<64x32xf32>
    %396 = arith.addf %394, %395 : vector<64x32xf32>
    %c0_166 = arith.constant 0 : index
    %c0_167 = arith.constant 0 : index
    %397 = vector.load %arg18[%c0_166, %c0_167] : memref<64x32xf32, #tpu.memory_space<vmem>>, vector<64x32xf32>
    tpu.vector_store %arg18[%c0_166, %c0_167], %396 {strides = array<i32>} : memref<64x32xf32, #tpu.memory_space<vmem>>, vector<64x32xf32>,
    return
  }
  func.func @transform_0(%arg0: i32) -> (i32, i32) {
    %c0_i32 = arith.constant 0 : i32
    %c0_i32_0 = arith.constant 0 : i32
    return %arg0, %c0_i32 : i32, i32
  }
  func.func @transform_1(%arg0: i32) -> (i32, i32) {
    %c0_i32 = arith.constant 0 : i32
    %c0_i32_0 = arith.constant 0 : i32
    return %arg0, %c0_i32 : i32, i32
  }
  func.func @transform_2(%arg0: i32) -> (i32, i32) {
    %c0_i32 = arith.constant 0 : i32
    %c0_i32_0 = arith.constant 0 : i32
    %c0_i32_1 = arith.constant 0 : i32
    return %c0_i32, %c0_i32_0 : i32, i32
  }
  func.func @transform_3(%arg0: i32) -> (i32, i32) {
    %c0_i32 = arith.constant 0 : i32
    %c0_i32_0 = arith.constant 0 : i32
    %c0_i32_1 = arith.constant 0 : i32
    return %c0_i32, %c0_i32_0 : i32, i32
  }
  func.func @transform_4(%arg0: i32) -> (i32, i32) {
    %c0_i32 = arith.constant 0 : i32
    %c0_i32_0 = arith.constant 0 : i32
    %c0_i32_1 = arith.constant 0 : i32
    return %c0_i32, %c0_i32_0 : i32, i32
  }
  func.func @transform_5(%arg0: i32) -> (i32, i32) {
    %c0_i32 = arith.constant 0 : i32
    %c0_i32_0 = arith.constant 0 : i32
    %c0_i32_1 = arith.constant 0 : i32
    return %c0_i32, %c0_i32_0 : i32, i32
  }
  func.func @transform_6(%arg0: i32) -> (i32, i32) {
    %c0_i32 = arith.constant 0 : i32
    %c0_i32_0 = arith.constant 0 : i32
    %c0_i32_1 = arith.constant 0 : i32
    return %c0_i32, %c0_i32_0 : i32, i32
  }
  func.func @transform_7(%arg0: i32) -> (i32, i32) {
    %c0_i32 = arith.constant 0 : i32
    %c0_i32_0 = arith.constant 0 : i32
    %c0_i32_1 = arith.constant 0 : i32
    return %c0_i32, %c0_i32_0 : i32, i32
  }
  func.func @transform_8(%arg0: i32) -> (i32, i32) {
    %c0_i32 = arith.constant 0 : i32
    %c0_i32_0 = arith.constant 0 : i32
    %c0_i32_1 = arith.constant 0 : i32
    return %c0_i32, %c0_i32_0 : i32, i32
  }
  func.func @transform_9(%arg0: i32) -> (i32, i32) {
    %c0_i32 = arith.constant 0 : i32
    %c0_i32_0 = arith.constant 0 : i32
    %c0_i32_1 = arith.constant 0 : i32
    return %c0_i32, %c0_i32_0 : i32, i32
  }
  func.func @transform_10(%arg0: i32) -> (i32, i32) {
    %c0_i32 = arith.constant 0 : i32
    %c0_i32_0 = arith.constant 0 : i32
    %c0_i32_1 = arith.constant 0 : i32
    return %c0_i32, %c0_i32_0 : i32, i32
  }
  func.func @transform_11(%arg0: i32) -> (i32, i32) {
    %c0_i32 = arith.constant 0 : i32
    %c0_i32_0 = arith.constant 0 : i32
    %c0_i32_1 = arith.constant 0 : i32
    return %c0_i32, %c0_i32_0 : i32, i32
  }
  func.func @transform_12(%arg0: i32) -> (i32, i32) {
    %c0_i32 = arith.constant 0 : i32
    %c0_i32_0 = arith.constant 0 : i32
    %c0_i32_1 = arith.constant 0 : i32
    return %c0_i32, %c0_i32_0 : i32, i32
  }
  func.func @transform_13(%arg0: i32) -> (i32, i32) {
    %c0_i32 = arith.constant 0 : i32
    %c0_i32_0 = arith.constant 0 : i32
    %c0_i32_1 = arith.constant 0 : i32
    return %c0_i32, %c0_i32_0 : i32, i32
  }
  func.func @transform_14(%arg0: i32) -> (i32, i32) {
    %c0_i32 = arith.constant 0 : i32
    %c0_i32_0 = arith.constant 0 : i32
    %c0_i32_1 = arith.constant 0 : i32
    return %c0_i32, %c0_i32_0 : i32, i32
  }
  func.func @transform_15(%arg0: i32) -> (i32, i32) {
    %c0_i32 = arith.constant 0 : i32
    %c0_i32_0 = arith.constant 0 : i32
    %c0_i32_1 = arith.constant 0 : i32
    return %c0_i32, %c0_i32_0 : i32, i32
  }
  func.func @transform_16(%arg0: i32) -> (i32, i32) {
    %c0_i32 = arith.constant 0 : i32
    %c0_i32_0 = arith.constant 0 : i32
    %c0_i32_1 = arith.constant 0 : i32
    return %c0_i32, %c0_i32_0 : i32, i32
  }
  func.func @transform_17(%arg0: i32) -> (i32, i32) {
    %c0_i32 = arith.constant 0 : i32
    %c0_i32_0 = arith.constant 0 : i32
    return %arg0, %c0_i32 : i32, i32
  }
}

</mosaic_0001>

<llo_original>
// kernel: crossed_transformer_encoder.1
$region0: #{crossed_transformer_encoder.1}
  #allocation0 [shape = 'u32[]', space=smem, size = 0x4, offset = 0x4, fixed_abs, tag = 'smem constant byte address 0x4 - core index']
  #allocation1 [shape = 'u32[144,128]{1,0:T(1,128)}', space=vmem, size = 0x12000, scoped, tag = 'internal scratch']
  %s0 = inlined_call_operand.vmem [shape: f32[128,4], index: 0, kind: input, shape index: {}]
  %s1 = inlined_call_operand.vmem [shape: f32[128,32], index: 1, kind: input, shape index: {}]
  %s2 = inlined_call_operand.vmem [shape: f32[64,64], index: 2, kind: input, shape index: {}]
  %s3 = inlined_call_operand.vmem [shape: f32[64,64], index: 3, kind: input, shape index: {}]
  %s4 = inlined_call_operand.vmem [shape: f32[4,32], index: 4, kind: input, shape index: {}]
  %s5 = inlined_call_operand.vmem [shape: bf16[32,96], index: 5, kind: input, shape index: {}]
  %s6 = inlined_call_operand.vmem [shape: bf16[32,32], index: 6, kind: input, shape index: {}]
  %s7 = inlined_call_operand.vmem [shape: bf16[32,2048], index: 7, kind: input, shape index: {}]
  %s8 = inlined_call_operand.vmem [shape: bf16[2048,32], index: 8, kind: input, shape index: {}]
  %s9 = inlined_call_operand.vmem [shape: f32[8,96], index: 9, kind: input, shape index: {}]
  %s10 = inlined_call_operand.vmem [shape: f32[1,2048], index: 10, kind: input, shape index: {}]
  %s11 = inlined_call_operand.vmem [shape: bf16[32,96], index: 11, kind: input, shape index: {}]
  %s12 = inlined_call_operand.vmem [shape: bf16[32,32], index: 12, kind: input, shape index: {}]
  %s13 = inlined_call_operand.vmem [shape: bf16[32,2048], index: 13, kind: input, shape index: {}]
  %s14 = inlined_call_operand.vmem [shape: bf16[2048,32], index: 14, kind: input, shape index: {}]
  %s15 = inlined_call_operand.vmem [shape: f32[8,96], index: 15, kind: input, shape index: {}]
  %s16 = inlined_call_operand.vmem [shape: f32[1,2048], index: 16, kind: input, shape index: {}]
  %s17 = inlined_call_operand.hbm [shape: f32[128,32], index: 17, kind: output, shape index: {}]
  %s18 = sld [smem:[#allocation0]]
  $region101: #{crossed_transformer_encoder.1} parent=0
    _
  %s20 = ssub.s32 1, %s18
  %s21 = scalar_select 0, %s20, %s18
  $region1: #{crossed_transformer_encoder.1} parent=0
    #allocation2 [shape = 'u8[65536]{0}', space=vmem, size = 0x10000, scoped, tag = 'output window, operand 0']
    #allocation3 [shape = 's32[2]{0}', space=sflag, size = 0x8, scoped, tag = 'scoped memory for crossed_transformer_encoder.1']
    %22 = vsyncpa [#allocation3], 0
    %s23 = scalar_lea.sflag [#allocation3], 1
    %24 = vsyncpa %s23, 0
    loop: start=0, step=1, limit=4
    $region2: #{crossed_transformer_encoder.1} parent=1 // loop_pre_header
      _
    $region3: #{crossed_transformer_encoder.1} parent=1 // loop_header
      %s26 = sphi 0, %s30
      %p27 = scmp.ge.s32.totalorder %s26, 4
      %s36 = sphi 0, %s38
      %s39 = sphi 0, %s36
      %s40 = sphi 0, %s39
      %s56 = sphi 0, %s40
      %s62 = sphi 0, %s64
      %s65 = sphi 0, %s62
      %s66 = sphi 0, %s65
      %s82 = sphi 0, %s66
      %s86 = sphi 0, %s86
      %s88 = sphi 0, %s86
      %s89 = sphi 0, %s88
      %s103 = sphi 0, %s89
      %s107 = sphi 0, %s107
      %s109 = sphi 0, %s107
      %s110 = sphi 0, %s109
      %s124 = sphi 0, %s110
      %s128 = sphi 0, %s128
      %s130 = sphi 0, %s128
      %s131 = sphi 0, %s130
      %s145 = sphi 0, %s131
      %s149 = sphi 0, %s149
      %s151 = sphi 0, %s149
      %s152 = sphi 0, %s151
      %s166 = sphi 0, %s152
      %s170 = sphi 0, %s170
      %s172 = sphi 0, %s170
      %s173 = sphi 0, %s172
      %s187 = sphi 0, %s173
      %s191 = sphi 0, %s191
      %s193 = sphi 0, %s191
      %s194 = sphi 0, %s193
      %s208 = sphi 0, %s194
      %s212 = sphi 0, %s212
      %s214 = sphi 0, %s212
      %s215 = sphi 0, %s214
      %s229 = sphi 0, %s215
      %s233 = sphi 0, %s233
      %s235 = sphi 0, %s233
      %s236 = sphi 0, %s235
      %s250 = sphi 0, %s236
      %s254 = sphi 0, %s254
      %s256 = sphi 0, %s254
      %s257 = sphi 0, %s256
      %s271 = sphi 0, %s257
      %s275 = sphi 0, %s275
      %s277 = sphi 0, %s275
      %s278 = sphi 0, %s277
      %s292 = sphi 0, %s278
      %s296 = sphi 0, %s296
      %s298 = sphi 0, %s296
      %s299 = sphi 0, %s298
      %s313 = sphi 0, %s299
      %s317 = sphi 0, %s317
      %s319 = sphi 0, %s317
      %s320 = sphi 0, %s319
      %s334 = sphi 0, %s320
      %s338 = sphi 0, %s338
      %s340 = sphi 0, %s338
      %s341 = sphi 0, %s340
      %s355 = sphi 0, %s341
      %s359 = sphi 0, %s359
      %s361 = sphi 0, %s359
      %s362 = sphi 0, %s361
      %s376 = sphi 0, %s362
      %s380 = sphi 0, %s380
      %s382 = sphi 0, %s380
      %s383 = sphi 0, %s382
      %s397 = sphi 0, %s383
      %s403 = sphi 0, %s405
      %s406 = sphi 0, %s403
      %s407 = sphi 0, %s406
      %s423 = sphi 0, %s407
    $region4: #{crossed_transformer_encoder.1} parent=1 // loop_header_branch
      %29 = sbr.rel (%p27) target = $region8
    $region5: #{crossed_transformer_encoder.1} parent=1 // loop_body
      %s31 = ssub.s32 %s26, 1
      %s32 = ssub.s32 %s26, 2
      %s33 = sadd.s32 %s26, 1
      %s34 = ssub.s32 %s26, %s33
      %p35 = scmp.eq.s32.totalorder %s34, 0
      %s37 = sadd.s32 %s36, 1
      %s38 = scalar_select %p35, %s36, %s37
      %p41 = pneg %p35
      %p42 = scmp.eq.s32.totalorder %s26, 1
      %p43 = por %p41, %p42
      %p44 = scmp.ne.s32.totalorder %s36, %s39
      %p45 = scmp.eq.s32.totalorder %s26, 0
      %p46 = por %p44, %p45
      %p47 = scmp.ne.s32.totalorder %s36, %s39
      %p48 = scmp.eq.s32.totalorder %s31, 1
      %p49 = por %p47, %p48
      %p50 = scmp.ne.s32.totalorder %s39, %s40
      %p51 = scmp.eq.s32.totalorder %s31, 0
      %p52 = por %p50, %p51
      %p53 = scmp.ne.s32.totalorder %s39, %s40
      %p54 = scmp.eq.s32.totalorder %s32, 1
      %p55 = por %p53, %p54
      %p57 = scmp.ne.s32.totalorder %s40, %s56
      %p58 = scmp.eq.s32.totalorder %s32, 0
      %p59 = por %p57, %p58
      %s60 = ssub.s32 %s26, %s33
      %p61 = scmp.eq.s32.totalorder %s60, 0
      %s63 = sadd.s32 %s62, 1
      %s64 = scalar_select %p61, %s62, %s63
      %p67 = pneg %p61
      %p68 = scmp.eq.s32.totalorder %s26, 1
      %p69 = por %p67, %p68
      %p70 = scmp.ne.s32.totalorder %s62, %s65
      %p71 = scmp.eq.s32.totalorder %s26, 0
      %p72 = por %p70, %p71
      %p73 = scmp.ne.s32.totalorder %s62, %s65
      %p74 = scmp.eq.s32.totalorder %s31, 1
      %p75 = por %p73, %p74
      %p76 = scmp.ne.s32.totalorder %s65, %s66
      %p77 = scmp.eq.s32.totalorder %s31, 0
      %p78 = por %p76, %p77
      %p79 = scmp.ne.s32.totalorder %s65, %s66
      %p80 = scmp.eq.s32.totalorder %s32, 1
      %p81 = por %p79, %p80
      %p83 = scmp.ne.s32.totalorder %s66, %s82
      %p84 = scmp.eq.s32.totalorder %s32, 0
      %p85 = por %p83, %p84
      %s87 = sadd.s32 %s86, 1
      %p90 = scmp.eq.s32.totalorder %s26, 1
      %p91 = scmp.ne.s32.totalorder %s86, %s88
      %p92 = scmp.eq.s32.totalorder %s26, 0
      %p93 = por %p91, %p92
      %p94 = scmp.ne.s32.totalorder %s86, %s88
      %p95 = scmp.eq.s32.totalorder %s31, 1
      %p96 = por %p94, %p95
      %p97 = scmp.ne.s32.totalorder %s88, %s89
      %p98 = scmp.eq.s32.totalorder %s31, 0
      %p99 = por %p97, %p98
      %p100 = scmp.ne.s32.totalorder %s88, %s89
      %p101 = scmp.eq.s32.totalorder %s32, 1
      %p102 = por %p100, %p101
      %p104 = scmp.ne.s32.totalorder %s89, %s103
      %p105 = scmp.eq.s32.totalorder %s32, 0
      %p106 = por %p104, %p105
      %s108 = sadd.s32 %s107, 1
      %p111 = scmp.eq.s32.totalorder %s26, 1
      %p112 = scmp.ne.s32.totalorder %s107, %s109
      %p113 = scmp.eq.s32.totalorder %s26, 0
      %p114 = por %p112, %p113
      %p115 = scmp.ne.s32.totalorder %s107, %s109
      %p116 = scmp.eq.s32.totalorder %s31, 1
      %p117 = por %p115, %p116
      %p118 = scmp.ne.s32.totalorder %s109, %s110
      %p119 = scmp.eq.s32.totalorder %s31, 0
      %p120 = por %p118, %p119
      %p121 = scmp.ne.s32.totalorder %s109, %s110
      %p122 = scmp.eq.s32.totalorder %s32, 1
      %p123 = por %p121, %p122
      %p125 = scmp.ne.s32.totalorder %s110, %s124
      %p126 = scmp.eq.s32.totalorder %s32, 0
      %p127 = por %p125, %p126
      %s129 = sadd.s32 %s128, 1
      %p132 = scmp.eq.s32.totalorder %s26, 1
      %p133 = scmp.ne.s32.totalorder %s128, %s130
      %p134 = scmp.eq.s32.totalorder %s26, 0
      %p135 = por %p133, %p134
      %p136 = scmp.ne.s32.totalorder %s128, %s130
      %p137 = scmp.eq.s32.totalorder %s31, 1
      %p138 = por %p136, %p137
      %p139 = scmp.ne.s32.totalorder %s130, %s131
      %p140 = scmp.eq.s32.totalorder %s31, 0
      %p141 = por %p139, %p140
      %p142 = scmp.ne.s32.totalorder %s130, %s131
      %p143 = scmp.eq.s32.totalorder %s32, 1
      %p144 = por %p142, %p143
      %p146 = scmp.ne.s32.totalorder %s131, %s145
      %p147 = scmp.eq.s32.totalorder %s32, 0
      %p148 = por %p146, %p147
      %s150 = sadd.s32 %s149, 1
      %p153 = scmp.eq.s32.totalorder %s26, 1
      %p154 = scmp.ne.s32.totalorder %s149, %s151
      %p155 = scmp.eq.s32.totalorder %s26, 0
      %p156 = por %p154, %p155
      %p157 = scmp.ne.s32.totalorder %s149, %s151
      %p158 = scmp.eq.s32.totalorder %s31, 1
      %p159 = por %p157, %p158
      %p160 = scmp.ne.s32.totalorder %s151, %s152
      %p161 = scmp.eq.s32.totalorder %s31, 0
      %p162 = por %p160, %p161
      %p163 = scmp.ne.s32.totalorder %s151, %s152
      %p164 = scmp.eq.s32.totalorder %s32, 1
      %p165 = por %p163, %p164
      %p167 = scmp.ne.s32.totalorder %s152, %s166
      %p168 = scmp.eq.s32.totalorder %s32, 0
      %p169 = por %p167, %p168
      %s171 = sadd.s32 %s170, 1
      %p174 = scmp.eq.s32.totalorder %s26, 1
      %p175 = scmp.ne.s32.totalorder %s170, %s172
      %p176 = scmp.eq.s32.totalorder %s26, 0
      %p177 = por %p175, %p176
      %p178 = scmp.ne.s32.totalorder %s170, %s172
      %p179 = scmp.eq.s32.totalorder %s31, 1
      %p180 = por %p178, %p179
      %p181 = scmp.ne.s32.totalorder %s172, %s173
      %p182 = scmp.eq.s32.totalorder %s31, 0
      %p183 = por %p181, %p182
      %p184 = scmp.ne.s32.totalorder %s172, %s173
      %p185 = scmp.eq.s32.totalorder %s32, 1
      %p186 = por %p184, %p185
      %p188 = scmp.ne.s32.totalorder %s173, %s187
      %p189 = scmp.eq.s32.totalorder %s32, 0
      %p190 = por %p188, %p189
      %s192 = sadd.s32 %s191, 1
      %p195 = scmp.eq.s32.totalorder %s26, 1
      %p196 = scmp.ne.s32.totalorder %s191, %s193
      %p197 = scmp.eq.s32.totalorder %s26, 0
      %p198 = por %p196, %p197
      %p199 = scmp.ne.s32.totalorder %s191, %s193
      %p200 = scmp.eq.s32.totalorder %s31, 1
      %p201 = por %p199, %p200
      %p202 = scmp.ne.s32.totalorder %s193, %s194
      %p203 = scmp.eq.s32.totalorder %s31, 0
      %p204 = por %p202, %p203
      %p205 = scmp.ne.s32.totalorder %s193, %s194
      %p206 = scmp.eq.s32.totalorder %s32, 1
      %p207 = por %p205, %p206
      %p209 = scmp.ne.s32.totalorder %s194, %s208
      %p210 = scmp.eq.s32.totalorder %s32, 0
      %p211 = por %p209, %p210
      %s213 = sadd.s32 %s212, 1
      %p216 = scmp.eq.s32.totalorder %s26, 1
      %p217 = scmp.ne.s32.totalorder %s212, %s214
      %p218 = scmp.eq.s32.totalorder %s26, 0
      %p219 = por %p217, %p218
      %p220 = scmp.ne.s32.totalorder %s212, %s214
      %p221 = scmp.eq.s32.totalorder %s31, 1
      %p222 = por %p220, %p221
      %p223 = scmp.ne.s32.totalorder %s214, %s215
      %p224 = scmp.eq.s32.totalorder %s31, 0
      %p225 = por %p223, %p224
      %p226 = scmp.ne.s32.totalorder %s214, %s215
      %p227 = scmp.eq.s32.totalorder %s32, 1
      %p228 = por %p226, %p227
      %p230 = scmp.ne.s32.totalorder %s215, %s229
      %p231 = scmp.eq.s32.totalorder %s32, 0
      %p232 = por %p230, %p231
      %s234 = sadd.s32 %s233, 1
      %p237 = scmp.eq.s32.totalorder %s26, 1
      %p238 = scmp.ne.s32.totalorder %s233, %s235
      %p239 = scmp.eq.s32.totalorder %s26, 0
      %p240 = por %p238, %p239
      %p241 = scmp.ne.s32.totalorder %s233, %s235
      %p242 = scmp.eq.s32.totalorder %s31, 1
      %p243 = por %p241, %p242
      %p244 = scmp.ne.s32.totalorder %s235, %s236
      %p245 = scmp.eq.s32.totalorder %s31, 0
      %p246 = por %p244, %p245
      %p247 = scmp.ne.s32.totalorder %s235, %s236
      %p248 = scmp.eq.s32.totalorder %s32, 1
      %p249 = por %p247, %p248
      %p251 = scmp.ne.s32.totalorder %s236, %s250
      %p252 = scmp.eq.s32.totalorder %s32, 0
      %p253 = por %p251, %p252
      %s255 = sadd.s32 %s254, 1
      %p258 = scmp.eq.s32.totalorder %s26, 1
      %p259 = scmp.ne.s32.totalorder %s254, %s256
      %p260 = scmp.eq.s32.totalorder %s26, 0
      %p261 = por %p259, %p260
      %p262 = scmp.ne.s32.totalorder %s254, %s256
      %p263 = scmp.eq.s32.totalorder %s31, 1
      %p264 = por %p262, %p263
      %p265 = scmp.ne.s32.totalorder %s256, %s257
      %p266 = scmp.eq.s32.totalorder %s31, 0
      %p267 = por %p265, %p266
      %p268 = scmp.ne.s32.totalorder %s256, %s257
      %p269 = scmp.eq.s32.totalorder %s32, 1
      %p270 = por %p268, %p269
      %p272 = scmp.ne.s32.totalorder %s257, %s271
      %p273 = scmp.eq.s32.totalorder %s32, 0
      %p274 = por %p272, %p273
      %s276 = sadd.s32 %s275, 1
      %p279 = scmp.eq.s32.totalorder %s26, 1
      %p280 = scmp.ne.s32.totalorder %s275, %s277
      %p281 = scmp.eq.s32.totalorder %s26, 0
      %p282 = por %p280, %p281
      %p283 = scmp.ne.s32.totalorder %s275, %s277
      %p284 = scmp.eq.s32.totalorder %s31, 1
      %p285 = por %p283, %p284
      %p286 = scmp.ne.s32.totalorder %s277, %s278
      %p287 = scmp.eq.s32.totalorder %s31, 0
      %p288 = por %p286, %p287
      %p289 = scmp.ne.s32.totalorder %s277, %s278
      %p290 = scmp.eq.s32.totalorder %s32, 1
      %p291 = por %p289, %p290
      %p293 = scmp.ne.s32.totalorder %s278, %s292
      %p294 = scmp.eq.s32.totalorder %s32, 0
      %p295 = por %p293, %p294
      %s297 = sadd.s32 %s296, 1
      %p300 = scmp.eq.s32.totalorder %s26, 1
      %p301 = scmp.ne.s32.totalorder %s296, %s298
      %p302 = scmp.eq.s32.totalorder %s26, 0
      %p303 = por %p301, %p302
      %p304 = scmp.ne.s32.totalorder %s296, %s298
      %p305 = scmp.eq.s32.totalorder %s31, 1
      %p306 = por %p304, %p305
      %p307 = scmp.ne.s32.totalorder %s298, %s299
      %p308 = scmp.eq.s32.totalorder %s31, 0
      %p309 = por %p307, %p308
      %p310 = scmp.ne.s32.totalorder %s298, %s299
      %p311 = scmp.eq.s32.totalorder %s32, 1
      %p312 = por %p310, %p311
      %p314 = scmp.ne.s32.totalorder %s299, %s313
      %p315 = scmp.eq.s32.totalorder %s32, 0
      %p316 = por %p314, %p315
      %s318 = sadd.s32 %s317, 1
      %p321 = scmp.eq.s32.totalorder %s26, 1
      %p322 = scmp.ne.s32.totalorder %s317, %s319
      %p323 = scmp.eq.s32.totalorder %s26, 0
      %p324 = por %p322, %p323
      %p325 = scmp.ne.s32.totalorder %s317, %s319
      %p326 = scmp.eq.s32.totalorder %s31, 1
      %p327 = por %p325, %p326
      %p328 = scmp.ne.s32.totalorder %s319, %s320
      %p329 = scmp.eq.s32.totalorder %s31, 0
      %p330 = por %p328, %p329
      %p331 = scmp.ne.s32.totalorder %s319, %s320
      %p332 = scmp.eq.s32.totalorder %s32, 1
      %p333 = por %p331, %p332
      %p335 = scmp.ne.s32.totalorder %s320, %s334
      %p336 = scmp.eq.s32.totalorder %s32, 0
      %p337 = por %p335, %p336
      %s339 = sadd.s32 %s338, 1
      %p342 = scmp.eq.s32.totalorder %s26, 1
      %p343 = scmp.ne.s32.totalorder %s338, %s340
      %p344 = scmp.eq.s32.totalorder %s26, 0
      %p345 = por %p343, %p344
      %p346 = scmp.ne.s32.totalorder %s338, %s340
      %p347 = scmp.eq.s32.totalorder %s31, 1
      %p348 = por %p346, %p347
      %p349 = scmp.ne.s32.totalorder %s340, %s341
      %p350 = scmp.eq.s32.totalorder %s31, 0
      %p351 = por %p349, %p350
      %p352 = scmp.ne.s32.totalorder %s340, %s341
      %p353 = scmp.eq.s32.totalorder %s32, 1
      %p354 = por %p352, %p353
      %p356 = scmp.ne.s32.totalorder %s341, %s355
      %p357 = scmp.eq.s32.totalorder %s32, 0
      %p358 = por %p356, %p357
      %s360 = sadd.s32 %s359, 1
      %p363 = scmp.eq.s32.totalorder %s26, 1
      %p364 = scmp.ne.s32.totalorder %s359, %s361
      %p365 = scmp.eq.s32.totalorder %s26, 0
      %p366 = por %p364, %p365
      %p367 = scmp.ne.s32.totalorder %s359, %s361
      %p368 = scmp.eq.s32.totalorder %s31, 1
      %p369 = por %p367, %p368
      %p370 = scmp.ne.s32.totalorder %s361, %s362
      %p371 = scmp.eq.s32.totalorder %s31, 0
      %p372 = por %p370, %p371
      %p373 = scmp.ne.s32.totalorder %s361, %s362
      %p374 = scmp.eq.s32.totalorder %s32, 1
      %p375 = por %p373, %p374
      %p377 = scmp.ne.s32.totalorder %s362, %s376
      %p378 = scmp.eq.s32.totalorder %s32, 0
      %p379 = por %p377, %p378
      %s381 = sadd.s32 %s380, 1
      %p384 = scmp.eq.s32.totalorder %s26, 1
      %p385 = scmp.ne.s32.totalorder %s380, %s382
      %p386 = scmp.eq.s32.totalorder %s26, 0
      %p387 = por %p385, %p386
      %p388 = scmp.ne.s32.totalorder %s380, %s382
      %p389 = scmp.eq.s32.totalorder %s31, 1
      %p390 = por %p388, %p389
      %p391 = scmp.ne.s32.totalorder %s382, %s383
      %p392 = scmp.eq.s32.totalorder %s31, 0
      %p393 = por %p391, %p392
      %p394 = scmp.ne.s32.totalorder %s382, %s383
      %p395 = scmp.eq.s32.totalorder %s32, 1
      %p396 = por %p394, %p395
      %p398 = scmp.ne.s32.totalorder %s383, %s397
      %p399 = scmp.eq.s32.totalorder %s32, 0
      %p400 = por %p398, %p399
      %s401 = ssub.s32 %s26, %s33
      %p402 = scmp.eq.s32.totalorder %s401, 0
      %s404 = sadd.s32 %s403, 1
      %s405 = scalar_select %p402, %s403, %s404
      %p408 = pneg %p402
      %p409 = scmp.eq.s32.totalorder %s26, 1
      %p410 = por %p408, %p409
      %p411 = scmp.ne.s32.totalorder %s403, %s406
      %p412 = scmp.eq.s32.totalorder %s26, 0
      %p413 = por %p411, %p412
      %p414 = scmp.ne.s32.totalorder %s403, %s406
      %p415 = scmp.eq.s32.totalorder %s31, 1
      %p416 = por %p414, %p415
      %p417 = scmp.ne.s32.totalorder %s406, %s407
      %p418 = scmp.eq.s32.totalorder %s31, 0
      %p419 = por %p417, %p418
      %p420 = scmp.ne.s32.totalorder %s406, %s407
      %p421 = scmp.eq.s32.totalorder %s32, 1
      %p422 = por %p420, %p421
      %p424 = scmp.ne.s32.totalorder %s407, %s423
      %p425 = scmp.eq.s32.totalorder %s32, 0
      %p426 = por %p424, %p425
      %p427 = scmp.le.s32.totalorder 1, %s26
      %p428 = scmp.lt.s32.totalorder %s26, 3
      %p429 = pnand %p427, %p428
      %p430 = pneg %p429
      // Predicated region
      $region9: #{crossed_transformer_encoder.1} parent=5 // pred_check
        _
      $region10: #{crossed_transformer_encoder.1} parent=5 // pred_check_branch
        %432 = sbr.rel (%p429) target = $region12
      $region11: #{crossed_transformer_encoder.1} parent=5 // pred_region
        %s433 = ssub.s32 %s26, 1
        // Predicated region
        $region13: #{crossed_transformer_encoder.1} parent=11 // pred_check
          %p434 = pneg %p99
        $region14: #{crossed_transformer_encoder.1} parent=11 // pred_check_branch
          %436 = sbr.rel (%p434) target = $region16
        $region15: #{crossed_transformer_encoder.1} parent=11 // pred_region
          _
        $region16: #{crossed_transformer_encoder.1} parent=11 // pred_fallthru
          _
        // Predicated region
        $region17: #{crossed_transformer_encoder.1} parent=11 // pred_check
          %p437 = pneg %p120
        $region18: #{crossed_transformer_encoder.1} parent=11 // pred_check_branch
          %439 = sbr.rel (%p437) target = $region20
        $region19: #{crossed_transformer_encoder.1} parent=11 // pred_region
          _
        $region20: #{crossed_transformer_encoder.1} parent=11 // pred_fallthru
          _
        // Predicated region
        $region21: #{crossed_transformer_encoder.1} parent=11 // pred_check
          %p440 = pneg %p141
        $region22: #{crossed_transformer_encoder.1} parent=11 // pred_check_branch
          %442 = sbr.rel (%p440) target = $region24
        $region23: #{crossed_transformer_encoder.1} parent=11 // pred_region
          _
        $region24: #{crossed_transformer_encoder.1} parent=11 // pred_fallthru
          _
        // Predicated region
        $region25: #{crossed_transformer_encoder.1} parent=11 // pred_check
          %p443 = pneg %p162
        $region26: #{crossed_transformer_encoder.1} parent=11 // pred_check_branch
          %445 = sbr.rel (%p443) target = $region28
        $region27: #{crossed_transformer_encoder.1} parent=11 // pred_region
          _
        $region28: #{crossed_transformer_encoder.1} parent=11 // pred_fallthru
          _
        // Predicated region
        $region29: #{crossed_transformer_encoder.1} parent=11 // pred_check
          %p446 = pneg %p183
        $region30: #{crossed_transformer_encoder.1} parent=11 // pred_check_branch
          %448 = sbr.rel (%p446) target = $region32
        $region31: #{crossed_transformer_encoder.1} parent=11 // pred_region
          _
        $region32: #{crossed_transformer_encoder.1} parent=11 // pred_fallthru
          _
        // Predicated region
        $region33: #{crossed_transformer_encoder.1} parent=11 // pred_check
          %p449 = pneg %p204
        $region34: #{crossed_transformer_encoder.1} parent=11 // pred_check_branch
          %451 = sbr.rel (%p449) target = $region36
        $region35: #{crossed_transformer_encoder.1} parent=11 // pred_region
          _
        $region36: #{crossed_transformer_encoder.1} parent=11 // pred_fallthru
          _
        // Predicated region
        $region37: #{crossed_transformer_encoder.1} parent=11 // pred_check
          %p452 = pneg %p225
        $region38: #{crossed_transformer_encoder.1} parent=11 // pred_check_branch
          %454 = sbr.rel (%p452) target = $region40
        $region39: #{crossed_transformer_encoder.1} parent=11 // pred_region
          _
        $region40: #{crossed_transformer_encoder.1} parent=11 // pred_fallthru
          _
        // Predicated region
        $region41: #{crossed_transformer_encoder.1} parent=11 // pred_check
          %p455 = pneg %p246
        $region42: #{crossed_transformer_encoder.1} parent=11 // pred_check_branch
          %457 = sbr.rel (%p455) target = $region44
        $region43: #{crossed_transformer_encoder.1} parent=11 // pred_region
          _
        $region44: #{crossed_transformer_encoder.1} parent=11 // pred_fallthru
          _
        // Predicated region
        $region45: #{crossed_transformer_encoder.1} parent=11 // pred_check
          %p458 = pneg %p267
        $region46: #{crossed_transformer_encoder.1} parent=11 // pred_check_branch
          %460 = sbr.rel (%p458) target = $region48
        $region47: #{crossed_transformer_encoder.1} parent=11 // pred_region
          _
        $region48: #{crossed_transformer_encoder.1} parent=11 // pred_fallthru
          _
        // Predicated region
        $region49: #{crossed_transformer_encoder.1} parent=11 // pred_check
          %p461 = pneg %p288
        $region50: #{crossed_transformer_encoder.1} parent=11 // pred_check_branch
          %463 = sbr.rel (%p461) target = $region52
        $region51: #{crossed_transformer_encoder.1} parent=11 // pred_region
          _
        $region52: #{crossed_transformer_encoder.1} parent=11 // pred_fallthru
          _
        // Predicated region
        $region53: #{crossed_transformer_encoder.1} parent=11 // pred_check
          %p464 = pneg %p309
        $region54: #{crossed_transformer_encoder.1} parent=11 // pred_check_branch
          %466 = sbr.rel (%p464) target = $region56
        $region55: #{crossed_transformer_encoder.1} parent=11 // pred_region
          _
        $region56: #{crossed_transformer_encoder.1} parent=11 // pred_fallthru
          _
        // Predicated region
        $region57: #{crossed_transformer_encoder.1} parent=11 // pred_check
          %p467 = pneg %p330
        $region58: #{crossed_transformer_encoder.1} parent=11 // pred_check_branch
          %469 = sbr.rel (%p467) target = $region60
        $region59: #{crossed_transformer_encoder.1} parent=11 // pred_region
          _
        $region60: #{crossed_transformer_encoder.1} parent=11 // pred_fallthru
          _
        // Predicated region
        $region61: #{crossed_transformer_encoder.1} parent=11 // pred_check
          %p470 = pneg %p351
        $region62: #{crossed_transformer_encoder.1} parent=11 // pred_check_branch
          %472 = sbr.rel (%p470) target = $region64
        $region63: #{crossed_transformer_encoder.1} parent=11 // pred_region
          _
        $region64: #{crossed_transformer_encoder.1} parent=11 // pred_fallthru
          _
        // Predicated region
        $region65: #{crossed_transformer_encoder.1} parent=11 // pred_check
          %p473 = pneg %p372
        $region66: #{crossed_transformer_encoder.1} parent=11 // pred_check_branch
          %475 = sbr.rel (%p473) target = $region68
        $region67: #{crossed_transformer_encoder.1} parent=11 // pred_region
          _
        $region68: #{crossed_transformer_encoder.1} parent=11 // pred_fallthru
          _
        // Predicated region
        $region69: #{crossed_transformer_encoder.1} parent=11 // pred_check
          %p476 = pneg %p393
        $region70: #{crossed_transformer_encoder.1} parent=11 // pred_check_branch
          %478 = sbr.rel (%p476) target = $region72
        $region71: #{crossed_transformer_encoder.1} parent=11 // pred_region
          _
        $region72: #{crossed_transformer_encoder.1} parent=11 // pred_fallthru
          _
      $region12: #{crossed_transformer_encoder.1} parent=5 // pred_fallthru
        _
      %p479 = scmp.lt.s32.totalorder %s26, 2
      // Predicated region
      $region73: #{crossed_transformer_encoder.1} parent=5 // pred_check
        %p480 = pneg %p479
      $region74: #{crossed_transformer_encoder.1} parent=5 // pred_check_branch
        %482 = sbr.rel (%p480) target = $region76
      $region75: #{crossed_transformer_encoder.1} parent=5 // pred_region
        // Predicated region
        $region77: #{crossed_transformer_encoder.1} parent=75 // pred_check
          %p483 = pneg %p46
        $region78: #{crossed_transformer_encoder.1} parent=75 // pred_check_branch
          %485 = sbr.rel (%p483) target = $region80
        $region79: #{crossed_transformer_encoder.1} parent=75 // pred_region
          %s486 = smul.u32 8, %s26
          %p487 = scmp.lt.s32.totalorder %s486, 15
          %s488 = scalar_select %p487, %s486, 15
          %s489 = smul.addr %s488, 8
          %s490 = scalar_lea.vmem %s0, %s489
          %s491 = smul.u32 8, %s26
        $region80: #{crossed_transformer_encoder.1} parent=75 // pred_fallthru
          _
        // Predicated region
        $region81: #{crossed_transformer_encoder.1} parent=75 // pred_check
          %p492 = pneg %p72
        $region82: #{crossed_transformer_encoder.1} parent=75 // pred_check_branch
          %494 = sbr.rel (%p492) target = $region84
        $region83: #{crossed_transformer_encoder.1} parent=75 // pred_region
          %s495 = smul.u32 8, %s26
          %p496 = scmp.lt.s32.totalorder %s495, 15
          %s497 = scalar_select %p496, %s495, 15
          %s498 = smul.addr %s497, 8
          %s499 = scalar_lea.vmem %s1, %s498
          %s500 = smul.u32 8, %s26
        $region84: #{crossed_transformer_encoder.1} parent=75 // pred_fallthru
          _
      $region76: #{crossed_transformer_encoder.1} parent=5 // pred_fallthru
        _
      %p501 = scmp.le.s32.totalorder 1, %s26
      %p502 = scmp.lt.s32.totalorder %s26, 3
      %p503 = pnand %p501, %p502
      %p504 = pneg %p503
      // Predicated region
      $region85: #{crossed_transformer_encoder.1} parent=5 // pred_check
        _
      $region86: #{crossed_transformer_encoder.1} parent=5 // pred_check_branch
        %506 = sbr.rel (%p503) target = $region88
      $region87: #{crossed_transformer_encoder.1} parent=5 // pred_region
        %s507 = ssub.s32 %s26, 1
        %s508 = smul.u32 8, %s31
        %p509 = scmp.lt.s32.totalorder %s508, 15
        %s510 = scalar_select %p509, %s508, 15
        %s511 = smul.addr %s510, 8
        %s512 = scalar_lea.vmem %s0, %s511
        %p513 = pneg %p52
        %p514 = pneg %p49
        %s515 = smul.u32 8, %s31
        %p516 = scmp.lt.s32.totalorder %s515, 15
        %s517 = scalar_select %p516, %s515, 15
        %s518 = smul.addr %s517, 8
        %s519 = scalar_lea.vmem %s1, %s518
        %p520 = pneg %p78
        %p521 = pneg %p75
        %p522 = pneg %p99
        %p523 = pneg %p96
        %p524 = pneg %p120
        %p525 = pneg %p117
        %p526 = pneg %p141
        %p527 = pneg %p138
        %p528 = pneg %p162
        %p529 = pneg %p159
        %p530 = pneg %p183
        %p531 = pneg %p180
        %p532 = pneg %p204
        %p533 = pneg %p201
        %p534 = pneg %p225
        %p535 = pneg %p222
        %p536 = pneg %p246
        %p537 = pneg %p243
        %p538 = pneg %p267
        %p539 = pneg %p264
        %p540 = pneg %p288
        %p541 = pneg %p285
        %p542 = pneg %p309
        %p543 = pneg %p306
        %p544 = pneg %p330
        %p545 = pneg %p327
        %p546 = pneg %p351
        %p547 = pneg %p348
        %p548 = pneg %p372
        %p549 = pneg %p369
        %p550 = pneg %p393
        %p551 = pneg %p390
        %p552 = pneg %p419
        %p553 = pneg %p416
        %s554 = sand.u32 %s406, 1
        %s555 = scalar_lea.sflag [#allocation3], %s554
        %s556 = sand.u32 %s406, 1
        %s557 = smul.addr %s556, 64
        %s558 = scalar_lea.vmem [#allocation2], %s557
        %s559 = smul.u32 8, %s31
        %p560 = scmp.lt.s32.totalorder %s559, 15
        %s561 = scalar_select %p560, %s559, 15
        %s562 = smul.addr %s561, 8
        %s563 = scalar_lea.vmem %s0, %s562
        %s564 = smul.u32 8, %s31
        %s565 = smul.u32 8, %s31
        %p566 = scmp.lt.s32.totalorder %s565, 15
        %s567 = scalar_select %p566, %s565, 15
        %s568 = smul.addr %s567, 8
        %s569 = scalar_lea.vmem %s1, %s568
        %s570 = smul.u32 8, %s31
        %s571 = smul.u32 8, %s31
        %v573 = vld [vmem:[%s563] sm:$0xff]
        %v574 = vld [vmem:[%s563 + $0x8] sm:$0xff]
        %v575 = vld [vmem:[%s563 + $0x10] sm:$0xff]
        %v576 = vld [vmem:[%s563 + $0x18] sm:$0xff]
        %v577 = vld [vmem:[%s563 + $0x20] sm:$0xff]
        %v578 = vld [vmem:[%s563 + $0x28] sm:$0xff]
        %v579 = vld [vmem:[%s563 + $0x30] sm:$0xff]
        %v580 = vld [vmem:[%s563 + $0x38] sm:$0xff]
        %v581 = vld [vmem:[%s4] sm:$0xf]
        %v582 = vld [vmem:[%s569] sm:$0xff]
        %v583 = vld [vmem:[%s569 + $0x8] sm:$0xff]
        %v584 = vld [vmem:[%s569 + $0x10] sm:$0xff]
        %v585 = vld [vmem:[%s569 + $0x18] sm:$0xff]
        %v586 = vld [vmem:[%s569 + $0x20] sm:$0xff]
        %v587 = vld [vmem:[%s569 + $0x28] sm:$0xff]
        %v588 = vld [vmem:[%s569 + $0x30] sm:$0xff]
        %v589 = vld [vmem:[%s569 + $0x38] sm:$0xff]
        %vm590 = vcmask 31744
        %v592 = vsel %vm590, %v573, 0
        %v595 = vsel %vm590, %v574, 0
        %v598 = vsel %vm590, %v575, 0
        %v601 = vsel %vm590, %v576, 0
        %v604 = vsel %vm590, %v577, 0
        %v607 = vsel %vm590, %v578, 0
        %v610 = vsel %vm590, %v579, 0
        %v613 = vsel %vm590, %v580, 0
        %vm615 = vcmask 1043456
        %v617 = vsel %vm615, %v581, 0
        %619 = vmatprep.subr.mxu0 0.0
        %620 = vmatpush1.msra.mxu0 0.0
        %621 = vmatprep.subr.mxu0 0.0
        %622 = vmatpush1.msra.mxu0 0.0
        %623 = vmatprep.subr.mxu0 0.0
        %624 = vmatpush1.msra.mxu0 0.0
        %625 = vmatprep.subr.mxu0 0.0
        %626 = vmatpush1.msra.mxu0 0.0
        %627 = vmatprep.subr.mxu0 0.0
        %628 = vmatpush1.msra.mxu0 0.0
        %629 = vmatprep.subr.mxu0 0.0
        %630 = vmatpush1.msra.mxu0 0.0
        %631 = vmatprep.subr.mxu0 0.0
        %632 = vmatpush1.msra.mxu0 0.0
        %633 = vmatprep.subr.mxu0 0.0
        %634 = vmatpush1.msra.mxu0 0.0
        %635 = vmatprep.subr.mxu0 0.0
        %636 = vmatpush1.msra.mxu0 0.0
        %637 = vmatprep.subr.mxu0 0.0
        %638 = vmatpush1.msra.mxu0 0.0
        %639 = vmatprep.subr.mxu0 0.0
        %640 = vmatpush1.msra.mxu0 0.0
        %641 = vmatprep.subr.mxu0 0.0
        %642 = vmatpush1.msra.mxu0 0.0
        %643 = vmatprep.subr.mxu0 0.0
        %644 = vmatpush1.msra.mxu0 0.0
        %645 = vmatprep.subr.mxu0 0.0
        %646 = vmatpush1.msra.mxu0 0.0
        %647 = vmatprep.subr.mxu0 0.0
        %648 = vmatpush1.msra.mxu0 0.0
        %649 = vmatprep.subr.mxu0 0.0
        %650 = vmatpush1.msra.mxu0 %v617
        %651 = vmatprep.subr.mxu0 0.0
        %652 = vmatpush2.msra.mxu0 0.0
        %653 = vmatprep.subr.mxu0 0.0
        %654 = vmatpush2.msra.mxu0 0.0
        %655 = vmatprep.subr.mxu0 0.0
        %656 = vmatpush2.msra.mxu0 0.0
        %657 = vmatprep.subr.mxu0 0.0
        %658 = vmatpush2.msra.mxu0 0.0
        %659 = vmatprep.subr.mxu0 0.0
        %660 = vmatpush2.msra.mxu0 0.0
        %661 = vmatprep.subr.mxu0 0.0
        %662 = vmatpush2.msra.mxu0 0.0
        %663 = vmatprep.subr.mxu0 0.0
        %664 = vmatpush2.msra.mxu0 0.0
        %665 = vmatprep.subr.mxu0 0.0
        %666 = vmatpush2.msra.mxu0 0.0
        %667 = vmatprep.subr.mxu0 0.0
        %668 = vmatpush2.msra.mxu0 0.0
        %669 = vmatprep.subr.mxu0 0.0
        %670 = vmatpush2.msra.mxu0 0.0
        %671 = vmatprep.subr.mxu0 0.0
        %672 = vmatpush2.msra.mxu0 0.0
        %673 = vmatprep.subr.mxu0 0.0
        %674 = vmatpush2.msra.mxu0 0.0
        %675 = vmatprep.subr.mxu0 0.0
        %676 = vmatpush2.msra.mxu0 0.0
        %677 = vmatprep.subr.mxu0 0.0
        %678 = vmatpush2.msra.mxu0 0.0
        %679 = vmatprep.subr.mxu0 0.0
        %680 = vmatpush2.msra.mxu0 0.0
        %681 = vmatprep.subr.mxu0 0.0
        %682 = vmatpush2.msra.mxu0 0.0
        %683 = vmatprep.mubr.f32.mxu0 0.0
        %684 = vmatmul.mubr.f32.gmra.mxu0 %v592
        %v685 = vpop.f32.mrf.mxu0
        %v686 = vadd.f32 %v582, %v685
        %v687 = vpop.f32.mrf.mxu0
        %688 = vmatprep.mubr.f32.mxu0 0.0
        %689 = vmatmul.mubr.f32.gmra.mxu0 %v595
        %v690 = vpop.f32.mrf.mxu0
        %v691 = vadd.f32 %v583, %v690
        %v692 = vpop.f32.mrf.mxu0
        %693 = vmatprep.mubr.f32.mxu0 0.0
        %694 = vmatmul.mubr.f32.gmra.mxu0 %v598
        %v695 = vpop.f32.mrf.mxu0
        %v696 = vadd.f32 %v584, %v695
        %v697 = vpop.f32.mrf.mxu0
        %698 = vmatprep.mubr.f32.mxu0 0.0
        %699 = vmatmul.mubr.f32.gmra.mxu0 %v601
        %v700 = vpop.f32.mrf.mxu0
        %v701 = vadd.f32 %v585, %v700
        %v702 = vpop.f32.mrf.mxu0
        %703 = vmatprep.mubr.f32.mxu0 0.0
        %704 = vmatmul.mubr.f32.gmra.mxu0 %v604
        %v705 = vpop.f32.mrf.mxu0
        %v706 = vadd.f32 %v586, %v705
        %v707 = vpop.f32.mrf.mxu0
        %708 = vmatprep.mubr.f32.mxu0 0.0
        %709 = vmatmul.mubr.f32.gmra.mxu0 %v607
        %v710 = vpop.f32.mrf.mxu0
        %v711 = vadd.f32 %v587, %v710
        %v712 = vpop.f32.mrf.mxu0
        %713 = vmatprep.mubr.f32.mxu0 0.0
        %714 = vmatmul.mubr.f32.gmra.mxu0 %v610
        %v715 = vpop.f32.mrf.mxu0
        %v716 = vadd.f32 %v588, %v715
        %v717 = vpop.f32.mrf.mxu0
        %718 = vmatprep.mubr.f32.mxu0 0.0
        %719 = vmatmul.mubr.f32.gmra.mxu0 %v613
        %v720 = vpop.f32.mrf.mxu0
        %v721 = vadd.f32 %v589, %v720
        %v722 = vpop.f32.mrf.mxu0
        %723 = vdwg.mxu0
        %v724 = vld [vmem:[%s2] sm:$0xff]
        %v725 = vld [vmem:[%s2 + $0x8] sm:$0xff]
        %v726 = vld [vmem:[%s2 + $0x10] sm:$0xff]
        %v727 = vld [vmem:[%s2 + $0x18] sm:$0xff]
        %v728 = vld [vmem:[%s2 + $0x20] sm:$0xff]
        %v729 = vld [vmem:[%s2 + $0x28] sm:$0xff]
        %v730 = vld [vmem:[%s2 + $0x30] sm:$0xff]
        %v731 = vld [vmem:[%s2 + $0x38] sm:$0xff]
        %v732 = vld [vmem:[%s3] sm:$0xff]
        %v733 = vld [vmem:[%s3 + $0x8] sm:$0xff]
        %v734 = vld [vmem:[%s3 + $0x10] sm:$0xff]
        %v735 = vld [vmem:[%s3 + $0x18] sm:$0xff]
        %v736 = vld [vmem:[%s3 + $0x20] sm:$0xff]
        %v737 = vld [vmem:[%s3 + $0x28] sm:$0xff]
        %v738 = vld [vmem:[%s3 + $0x30] sm:$0xff]
        %v739 = vld [vmem:[%s3 + $0x38] sm:$0xff]
        %v740 = vld [vmem:[%s9] sm:$0x1]
        %v741 = vld [vmem:[%s9 + $0x1] sm:$0x1]
        %v742 = vld [vmem:[%s9 + $0x2] sm:$0x1]
        %v743 = vld [vmem:[%s9 + $0x3] sm:$0x1]
        %v744 = vld [vmem:[%s9 + $0x4] sm:$0x1]
        %v745 = vld [vmem:[%s9 + $0x5] sm:$0x1]
        %v746 = vld [vmem:[%s9 + $0x6] sm:$0x1]
        %v747 = vpack.c.bf16 %v691, %v686
        %v748 = vpack.c.bf16 %v701, %v696
        %v749 = vpack.c.bf16 %v711, %v706
        %v750 = vpack.c.bf16 %v721, %v716
        %v751 = vld [vmem:[%s5] sm:$0xf]
        %v752 = vld [vmem:[%s5 + $0x4] sm:$0xf]
        %v753 = vld [vmem:[%s5 + $0x8] sm:$0xf]
        %v754 = vld [vmem:[%s5 + $0xc] sm:$0xf]
        %v755 = vlaneseq
        %v756 = vshrl.u32 %v755, 7
        %v757 = vsub.s32 0, %v756
        %v758 = vrot.slane %v740, %v757
        %v763 = vunpack.c.l.b16 %v751
        %v764 = vunpack.c.l.b16 %v752
        %v765 = vunpack.c.l.b16 %v753
        %v766 = vunpack.c.l.b16 %v754
        %v767 = vpack.c.b16 %v764, %v763
        %v768 = vpack.c.b16 %v766, %v765
        %vm771 = vcmask 261120
        %v773 = vsel %vm771, %v747, 0
        %v776 = vsel %vm771, %v748, 0
        %v779 = vsel %vm771, %v749, 0
        %v782 = vsel %vm771, %v750, 0
        %784 = vmatprep.subr.bf16.mxu0 0
        %785 = vmatpush1.bf16.msra.mxu0 0
        %786 = vmatprep.subr.bf16.mxu0 0
        %787 = vmatpush1.bf16.msra.mxu0 0
        %788 = vmatprep.subr.bf16.mxu0 0
        %789 = vmatpush1.bf16.msra.mxu0 0
        %790 = vmatprep.subr.bf16.mxu0 0
        %791 = vmatpush1.bf16.msra.mxu0 0
        %792 = vmatprep.subr.bf16.mxu0 0
        %793 = vmatpush1.bf16.msra.mxu0 0
        %794 = vmatprep.subr.bf16.mxu0 0
        %795 = vmatpush1.bf16.msra.mxu0 0
        %796 = vmatprep.subr.bf16.mxu0 0
        %797 = vmatpush1.bf16.msra.mxu0 %v768
        %798 = vmatprep.subr.bf16.mxu0 0
        %799 = vmatpush1.bf16.msra.mxu0 %v767
        %800 = vmatprep.subr.bf16.mxu0 0
        %801 = vmatpush2.bf16.msra.mxu0 0
        %802 = vmatprep.subr.bf16.mxu0 0
        %803 = vmatpush2.bf16.msra.mxu0 0
        %804 = vmatprep.subr.bf16.mxu0 0
        %805 = vmatpush2.bf16.msra.mxu0 0
        %806 = vmatprep.subr.bf16.mxu0 0
        %807 = vmatpush2.bf16.msra.mxu0 0
        %808 = vmatprep.subr.bf16.mxu0 0
        %809 = vmatpush2.bf16.msra.mxu0 0
        %810 = vmatprep.subr.bf16.mxu0 0
        %811 = vmatpush2.bf16.msra.mxu0 0
        %812 = vmatprep.subr.bf16.mxu0 0
        %813 = vmatpush2.bf16.msra.mxu0 0
        %814 = vmatprep.subr.bf16.mxu0 0
        %815 = vmatpush2.bf16.msra.mxu0 0
        %816 = vmatprep.mubr.bf16.mxu0 0
        %817 = vmatmul.mubr.bf16.gmra.mxu0 %v773
        %v818 = vpop.f32.mrf.mxu0
        %v819 = vadd.f32 %v758, %v818
        %v820 = vpop.f32.mrf.mxu0
        %v821 = vpop.f32.mrf.mxu0
        %v822 = vadd.f32 %v758, %v821
        %v823 = vpop.f32.mrf.mxu0
        %824 = vmatprep.mubr.bf16.mxu0 0
        %825 = vmatmul.mubr.bf16.gmra.mxu0 %v776
        %v826 = vpop.f32.mrf.mxu0
        %v827 = vadd.f32 %v758, %v826
        %v828 = vpop.f32.mrf.mxu0
        %v829 = vpop.f32.mrf.mxu0
        %v830 = vadd.f32 %v758, %v829
        %v831 = vpop.f32.mrf.mxu0
        %832 = vmatprep.mubr.bf16.mxu0 0
        %833 = vmatmul.mubr.bf16.gmra.mxu0 %v779
        %v834 = vpop.f32.mrf.mxu0
        %v835 = vadd.f32 %v758, %v834
        %v836 = vpop.f32.mrf.mxu0
        %v837 = vpop.f32.mrf.mxu0
        %v838 = vadd.f32 %v758, %v837
        %v839 = vpop.f32.mrf.mxu0
        %840 = vmatprep.mubr.bf16.mxu0 0
        %841 = vmatmul.mubr.bf16.gmra.mxu0 %v782
        %v842 = vpop.f32.mrf.mxu0
        %v843 = vadd.f32 %v758, %v842
        %v844 = vpop.f32.mrf.mxu0
        %v845 = vpop.f32.mrf.mxu0
        %v846 = vadd.f32 %v758, %v845
        %v847 = vpop.f32.mrf.mxu0
        %848 = vdwg.mxu0
        %v849 = vpack.c.bf16 %v822, %v819
        %v850 = vpack.c.bf16 %v830, %v827
        %v851 = vpack.c.bf16 %v838, %v835
        %v852 = vpack.c.bf16 %v846, %v843
        %857 = vrot.lane.b32.xlu0 %v849, 96
        %v858 = vpop.permute.xlu0 %857
        %859 = vrot.lane.b32.xlu0 %v850, 96
        %v860 = vpop.permute.xlu0 %859
        %861 = vrot.lane.b32.xlu0 %v851, 96
        %v862 = vpop.permute.xlu0 %861
        %863 = vrot.lane.b32.xlu0 %v852, 96
        %v864 = vpop.permute.xlu0 %863
        %vm865 = vcmask 64512
        %v867 = vsel %vm865, %v849, 0
        %v870 = vsel %vm865, %v850, 0
        %v873 = vsel %vm865, %v851, 0
        %v876 = vsel %vm865, %v852, 0
        %v879 = vsel %vm865, %v858, 0
        %v882 = vsel %vm865, %v860, 0
        %v885 = vsel %vm865, %v862, 0
        %v888 = vsel %vm865, %v864, 0
        %890 = vmatprep.subr.bf16.mxu0 0
        %891 = vmatpush1.bf16.xpose.msra.mxu0 0
        %892 = vmatprep.subr.bf16.mxu0 0
        %893 = vmatpush1.bf16.xpose.msra.mxu0 0
        %894 = vmatprep.subr.bf16.mxu0 0
        %895 = vmatpush1.bf16.xpose.msra.mxu0 0
        %896 = vmatprep.subr.bf16.mxu0 0
        %897 = vmatpush1.bf16.xpose.msra.mxu0 0
        %898 = vmatprep.subr.bf16.mxu0 0
        %899 = vmatpush1.bf16.xpose.msra.mxu0 %v888
        %900 = vmatprep.subr.bf16.mxu0 0
        %901 = vmatpush1.bf16.xpose.msra.mxu0 %v885
        %902 = vmatprep.subr.bf16.mxu0 0
        %903 = vmatpush1.bf16.xpose.msra.mxu0 %v882
        %904 = vmatprep.subr.bf16.mxu0 0
        %905 = vmatpush1.bf16.xpose.msra.mxu0 %v879
        %906 = vmatprep.subr.bf16.mxu0 0
        %907 = vmatpush2.bf16.xpose.msra.mxu0 0
        %908 = vmatprep.subr.bf16.mxu0 0
        %909 = vmatpush2.bf16.xpose.msra.mxu0 0
        %910 = vmatprep.subr.bf16.mxu0 0
        %911 = vmatpush2.bf16.xpose.msra.mxu0 0
        %912 = vmatprep.subr.bf16.mxu0 0
        %913 = vmatpush2.bf16.xpose.msra.mxu0 0
        %914 = vmatprep.subr.bf16.mxu0 0
        %915 = vmatpush2.bf16.xpose.msra.mxu0 0
        %916 = vmatprep.subr.bf16.mxu0 0
        %917 = vmatpush2.bf16.xpose.msra.mxu0 0
        %918 = vmatprep.subr.bf16.mxu0 0
        %919 = vmatpush2.bf16.xpose.msra.mxu0 0
        %920 = vmatprep.subr.bf16.mxu0 0
        %921 = vmatpush2.bf16.xpose.msra.mxu0 0
        %922 = vmatprep.mubr.bf16.mxu0 0
        %923 = vmatmul.mubr.bf16.gmra.mxu0 %v867
        %v924 = vpop.f32.mrf.mxu0
        %v925 = vadd.f32 %v724, %v924
        %v926 = vpop.f32.mrf.mxu0
        %v927 = vpop.f32.mrf.mxu0
        %v928 = vadd.f32 %v725, %v927
        %v929 = vpop.f32.mrf.mxu0
        %930 = vmatprep.mubr.bf16.mxu0 0
        %931 = vmatmul.mubr.bf16.gmra.mxu0 %v870
        %v932 = vpop.f32.mrf.mxu0
        %v933 = vadd.f32 %v726, %v932
        %v934 = vpop.f32.mrf.mxu0
        %v935 = vpop.f32.mrf.mxu0
        %v936 = vadd.f32 %v727, %v935
        %v937 = vpop.f32.mrf.mxu0
        %938 = vmatprep.mubr.bf16.mxu0 0
        %939 = vmatmul.mubr.bf16.gmra.mxu0 %v873
        %v940 = vpop.f32.mrf.mxu0
        %v941 = vadd.f32 %v728, %v940
        %v942 = vpop.f32.mrf.mxu0
        %v943 = vpop.f32.mrf.mxu0
        %v944 = vadd.f32 %v729, %v943
        %v945 = vpop.f32.mrf.mxu0
        %946 = vmatprep.mubr.bf16.mxu0 0
        %947 = vmatmul.mubr.bf16.gmra.mxu0 %v876
        %v948 = vpop.f32.mrf.mxu0
        %v949 = vadd.f32 %v730, %v948
        %v950 = vpop.f32.mrf.mxu0
        %v951 = vpop.f32.mrf.mxu0
        %v952 = vadd.f32 %v731, %v951
        %v953 = vpop.f32.mrf.mxu0
        %954 = vdwg.mxu0
        %vm955 = vcmask 523264
        %v956 = vsel %vm955, %v925, -inf
        %957 = vmax.xlane.f32.xlu0 %v956
        %v958 = vpop.xlane.xlu0 %957
        %v959 = vsel %vm955, %v928, -inf
        %960 = vmax.xlane.f32.xlu0 %v959
        %v961 = vpop.xlane.xlu0 %960
        %v962 = vsel %vm955, %v933, -inf
        %963 = vmax.xlane.f32.xlu0 %v962
        %v964 = vpop.xlane.xlu0 %963
        %v965 = vsel %vm955, %v936, -inf
        %966 = vmax.xlane.f32.xlu0 %v965
        %v967 = vpop.xlane.xlu0 %966
        %v968 = vsel %vm955, %v941, -inf
        %969 = vmax.xlane.f32.xlu0 %v968
        %v970 = vpop.xlane.xlu0 %969
        %v971 = vsel %vm955, %v944, -inf
        %972 = vmax.xlane.f32.xlu0 %v971
        %v973 = vpop.xlane.xlu0 %972
        %v974 = vsel %vm955, %v949, -inf
        %975 = vmax.xlane.f32.xlu0 %v974
        %v976 = vpop.xlane.xlu0 %975
        %v977 = vsel %vm955, %v952, -inf
        %978 = vmax.xlane.f32.xlu0 %v977
        %v979 = vpop.xlane.xlu0 %978
        %v980 = vsub.f32 %v925, %v958
        %v981 = vsub.f32 %v928, %v961
        %v982 = vsub.f32 %v933, %v964
        %v983 = vsub.f32 %v936, %v967
        %v984 = vsub.f32 %v941, %v970
        %v985 = vsub.f32 %v944, %v973
        %v986 = vsub.f32 %v949, %v976
        %v987 = vsub.f32 %v952, %v979
        %v988 = vmul.f32 %v980, 1.442695
        %v989 = vpow.pop %v988
        %v990 = vmul.f32 %v981, 1.442695
        %v991 = vpow.pop %v990
        %v992 = vmul.f32 %v982, 1.442695
        %v993 = vpow.pop %v992
        %v994 = vmul.f32 %v983, 1.442695
        %v995 = vpow.pop %v994
        %v996 = vmul.f32 %v984, 1.442695
        %v997 = vpow.pop %v996
        %v998 = vmul.f32 %v985, 1.442695
        %v999 = vpow.pop %v998
        %v1000 = vmul.f32 %v986, 1.442695
        %v1001 = vpow.pop %v1000
        %v1002 = vmul.f32 %v987, 1.442695
        %v1003 = vpow.pop %v1002
        %v1004 = vsel %vm955, %v989, 0.0
        %1005 = vadd.xlane.f32.xlu0 %v1004
        %v1006 = vpop.xlane.xlu0 %1005
        %v1007 = vsel %vm955, %v991, 0.0
        %1008 = vadd.xlane.f32.xlu0 %v1007
        %v1009 = vpop.xlane.xlu0 %1008
        %v1010 = vsel %vm955, %v993, 0.0
        %1011 = vadd.xlane.f32.xlu0 %v1010
        %v1012 = vpop.xlane.xlu0 %1011
        %v1013 = vsel %vm955, %v995, 0.0
        %1014 = vadd.xlane.f32.xlu0 %v1013
        %v1015 = vpop.xlane.xlu0 %1014
        %v1016 = vsel %vm955, %v997, 0.0
        %1017 = vadd.xlane.f32.xlu0 %v1016
        %v1018 = vpop.xlane.xlu0 %1017
        %v1019 = vsel %vm955, %v999, 0.0
        %1020 = vadd.xlane.f32.xlu0 %v1019
        %v1021 = vpop.xlane.xlu0 %1020
        %v1022 = vsel %vm955, %v1001, 0.0
        %1023 = vadd.xlane.f32.xlu0 %v1022
        %v1024 = vpop.xlane.xlu0 %1023
        %v1025 = vsel %vm955, %v1003, 0.0
        %1026 = vadd.xlane.f32.xlu0 %v1025
        %v1027 = vpop.xlane.xlu0 %1026
        %v1028 = vrcp.pop %v1006
        %v1029 = vrcp.pop %v1009
        %v1030 = vrcp.pop %v1012
        %v1031 = vrcp.pop %v1015
        %v1032 = vrcp.pop %v1018
        %v1033 = vrcp.pop %v1021
        %v1034 = vrcp.pop %v1024
        %v1035 = vrcp.pop %v1027
        %v1036 = vmul.f32 %v989, %v1028
        %v1037 = vmul.f32 %v991, %v1029
        %v1038 = vmul.f32 %v993, %v1030
        %v1039 = vmul.f32 %v995, %v1031
        %v1040 = vmul.f32 %v997, %v1032
        %v1041 = vmul.f32 %v999, %v1033
        %v1042 = vmul.f32 %v1001, %v1034
        %v1043 = vmul.f32 %v1003, %v1035
        %v1044 = vpack.c.bf16 %v1037, %v1036
        %v1045 = vpack.c.bf16 %v1039, %v1038
        %v1046 = vpack.c.bf16 %v1041, %v1040
        %v1047 = vpack.c.bf16 %v1043, %v1042
        %1048 = vrot.lane.b32.xlu0 %v849, 64
        %v1049 = vpop.permute.xlu0 %1048
        %1050 = vrot.lane.b32.xlu0 %v850, 64
        %v1051 = vpop.permute.xlu0 %1050
        %1052 = vrot.lane.b32.xlu0 %v851, 64
        %v1053 = vpop.permute.xlu0 %1052
        %1054 = vrot.lane.b32.xlu0 %v852, 64
        %v1055 = vpop.permute.xlu0 %1054
        %v1061 = vsel %vm955, %v1044, 0
        %v1064 = vsel %vm955, %v1045, 0
        %v1067 = vsel %vm955, %v1046, 0
        %v1070 = vsel %vm955, %v1047, 0
        %1072 = vmatprep.subr.bf16.mxu0 0
        %1073 = vmatpush1.bf16.msra.mxu0 0
        %1074 = vmatprep.subr.bf16.mxu0 0
        %1075 = vmatpush1.bf16.msra.mxu0 0
        %1076 = vmatprep.subr.bf16.mxu0 0
        %1077 = vmatpush1.bf16.msra.mxu0 0
        %1078 = vmatprep.subr.bf16.mxu0 0
        %1079 = vmatpush1.bf16.msra.mxu0 0
        %1080 = vmatprep.subr.bf16.mxu0 0
        %1081 = vmatpush1.bf16.msra.mxu0 %v1055
        %1082 = vmatprep.subr.bf16.mxu0 0
        %1083 = vmatpush1.bf16.msra.mxu0 %v1053
        %1084 = vmatprep.subr.bf16.mxu0 0
        %1085 = vmatpush1.bf16.msra.mxu0 %v1051
        %1086 = vmatprep.subr.bf16.mxu0 0
        %1087 = vmatpush1.bf16.msra.mxu0 %v1049
        %1088 = vmatprep.subr.bf16.mxu0 0
        %1089 = vmatpush2.bf16.msra.mxu0 0
        %1090 = vmatprep.subr.bf16.mxu0 0
        %1091 = vmatpush2.bf16.msra.mxu0 0
        %1092 = vmatprep.subr.bf16.mxu0 0
        %1093 = vmatpush2.bf16.msra.mxu0 0
        %1094 = vmatprep.subr.bf16.mxu0 0
        %1095 = vmatpush2.bf16.msra.mxu0 0
        %1096 = vmatprep.subr.bf16.mxu0 0
        %1097 = vmatpush2.bf16.msra.mxu0 0
        %1098 = vmatprep.subr.bf16.mxu0 0
        %1099 = vmatpush2.bf16.msra.mxu0 0
        %1100 = vmatprep.subr.bf16.mxu0 0
        %1101 = vmatpush2.bf16.msra.mxu0 0
        %1102 = vmatprep.subr.bf16.mxu0 0
        %1103 = vmatpush2.bf16.msra.mxu0 0
        %1104 = vmatprep.mubr.bf16.mxu0 0
        %1105 = vmatmul.mubr.bf16.gmra.mxu0 %v1061
        %v1106 = vpop.f32.mrf.mxu0
        %v1107 = vadd.f32 0.0, %v1106
        %v1108 = vpop.f32.mrf.mxu0
        %v1109 = vpop.f32.mrf.mxu0
        %v1110 = vadd.f32 0.0, %v1109
        %v1111 = vpop.f32.mrf.mxu0
        %1112 = vmatprep.mubr.bf16.mxu0 0
        %1113 = vmatmul.mubr.bf16.gmra.mxu0 %v1064
        %v1114 = vpop.f32.mrf.mxu0
        %v1115 = vadd.f32 0.0, %v1114
        %v1116 = vpop.f32.mrf.mxu0
        %v1117 = vpop.f32.mrf.mxu0
        %v1118 = vadd.f32 0.0, %v1117
        %v1119 = vpop.f32.mrf.mxu0
        %1120 = vmatprep.mubr.bf16.mxu0 0
        %1121 = vmatmul.mubr.bf16.gmra.mxu0 %v1067
        %v1122 = vpop.f32.mrf.mxu0
        %v1123 = vadd.f32 0.0, %v1122
        %v1124 = vpop.f32.mrf.mxu0
        %v1125 = vpop.f32.mrf.mxu0
        %v1126 = vadd.f32 0.0, %v1125
        %v1127 = vpop.f32.mrf.mxu0
        %1128 = vmatprep.mubr.bf16.mxu0 0
        %1129 = vmatmul.mubr.bf16.gmra.mxu0 %v1070
        %v1130 = vpop.f32.mrf.mxu0
        %v1131 = vadd.f32 0.0, %v1130
        %v1132 = vpop.f32.mrf.mxu0
        %v1133 = vpop.f32.mrf.mxu0
        %v1134 = vadd.f32 0.0, %v1133
        %v1135 = vpop.f32.mrf.mxu0
        %1136 = vdwg.mxu0
        %1137 = vrot.lane.b32.xlu0 %v849, 120
        %v1138 = vpop.permute.xlu0 %1137
        %1139 = vrot.lane.b32.xlu0 %v850, 120
        %v1140 = vpop.permute.xlu0 %1139
        %1141 = vrot.lane.b32.xlu0 %v851, 120
        %v1142 = vpop.permute.xlu0 %1141
        %1143 = vrot.lane.b32.xlu0 %v852, 120
        %v1144 = vpop.permute.xlu0 %1143
        %1145 = vrot.lane.b32.xlu0 %v849, 88
        %v1146 = vpop.permute.xlu0 %1145
        %1147 = vrot.lane.b32.xlu0 %v850, 88
        %v1148 = vpop.permute.xlu0 %1147
        %1149 = vrot.lane.b32.xlu0 %v851, 88
        %v1150 = vpop.permute.xlu0 %1149
        %1151 = vrot.lane.b32.xlu0 %v852, 88
        %v1152 = vpop.permute.xlu0 %1151
        %v1154 = vsel %vm865, %v1138, 0
        %v1157 = vsel %vm865, %v1140, 0
        %v1160 = vsel %vm865, %v1142, 0
        %v1163 = vsel %vm865, %v1144, 0
        %v1166 = vsel %vm865, %v1146, 0
        %v1169 = vsel %vm865, %v1148, 0
        %v1172 = vsel %vm865, %v1150, 0
        %v1175 = vsel %vm865, %v1152, 0
        %1177 = vmatprep.subr.bf16.mxu0 0
        %1178 = vmatpush1.bf16.xpose.msra.mxu0 0
        %1179 = vmatprep.subr.bf16.mxu0 0
        %1180 = vmatpush1.bf16.xpose.msra.mxu0 0
        %1181 = vmatprep.subr.bf16.mxu0 0
        %1182 = vmatpush1.bf16.xpose.msra.mxu0 0
        %1183 = vmatprep.subr.bf16.mxu0 0
        %1184 = vmatpush1.bf16.xpose.msra.mxu0 0
        %1185 = vmatprep.subr.bf16.mxu0 0
        %1186 = vmatpush1.bf16.xpose.msra.mxu0 %v1175
        %1187 = vmatprep.subr.bf16.mxu0 0
        %1188 = vmatpush1.bf16.xpose.msra.mxu0 %v1172
        %1189 = vmatprep.subr.bf16.mxu0 0
        %1190 = vmatpush1.bf16.xpose.msra.mxu0 %v1169
        %1191 = vmatprep.subr.bf16.mxu0 0
        %1192 = vmatpush1.bf16.xpose.msra.mxu0 %v1166
        %1193 = vmatprep.subr.bf16.mxu0 0
        %1194 = vmatpush2.bf16.xpose.msra.mxu0 0
        %1195 = vmatprep.subr.bf16.mxu0 0
        %1196 = vmatpush2.bf16.xpose.msra.mxu0 0
        %1197 = vmatprep.subr.bf16.mxu0 0
        %1198 = vmatpush2.bf16.xpose.msra.mxu0 0
        %1199 = vmatprep.subr.bf16.mxu0 0
        %1200 = vmatpush2.bf16.xpose.msra.mxu0 0
        %1201 = vmatprep.subr.bf16.mxu0 0
        %1202 = vmatpush2.bf16.xpose.msra.mxu0 0
        %1203 = vmatprep.subr.bf16.mxu0 0
        %1204 = vmatpush2.bf16.xpose.msra.mxu0 0
        %1205 = vmatprep.subr.bf16.mxu0 0
        %1206 = vmatpush2.bf16.xpose.msra.mxu0 0
        %1207 = vmatprep.subr.bf16.mxu0 0
        %1208 = vmatpush2.bf16.xpose.msra.mxu0 0
        %1209 = vmatprep.mubr.bf16.mxu0 0
        %1210 = vmatmul.mubr.bf16.gmra.mxu0 %v1154
        %v1211 = vpop.f32.mrf.mxu0
        %v1212 = vadd.f32 %v724, %v1211
        %v1213 = vpop.f32.mrf.mxu0
        %v1214 = vpop.f32.mrf.mxu0
        %v1215 = vadd.f32 %v725, %v1214
        %v1216 = vpop.f32.mrf.mxu0
        %1217 = vmatprep.mubr.bf16.mxu0 0
        %1218 = vmatmul.mubr.bf16.gmra.mxu0 %v1157
        %v1219 = vpop.f32.mrf.mxu0
        %v1220 = vadd.f32 %v726, %v1219
        %v1221 = vpop.f32.mrf.mxu0
        %v1222 = vpop.f32.mrf.mxu0
        %v1223 = vadd.f32 %v727, %v1222
        %v1224 = vpop.f32.mrf.mxu0
        %1225 = vmatprep.mubr.bf16.mxu0 0
        %1226 = vmatmul.mubr.bf16.gmra.mxu0 %v1160
        %v1227 = vpop.f32.mrf.mxu0
        %v1228 = vadd.f32 %v728, %v1227
        %v1229 = vpop.f32.mrf.mxu0
        %v1230 = vpop.f32.mrf.mxu0
        %v1231 = vadd.f32 %v729, %v1230
        %v1232 = vpop.f32.mrf.mxu0
        %1233 = vmatprep.mubr.bf16.mxu0 0
        %1234 = vmatmul.mubr.bf16.gmra.mxu0 %v1163
        %v1235 = vpop.f32.mrf.mxu0
        %v1236 = vadd.f32 %v730, %v1235
        %v1237 = vpop.f32.mrf.mxu0
        %v1238 = vpop.f32.mrf.mxu0
        %v1239 = vadd.f32 %v731, %v1238
        %v1240 = vpop.f32.mrf.mxu0
        %1241 = vdwg.mxu0
        %v1242 = vsel %vm955, %v1212, -inf
        %1243 = vmax.xlane.f32.xlu0 %v1242
        %v1244 = vpop.xlane.xlu0 %1243
        %v1245 = vsel %vm955, %v1215, -inf
        %1246 = vmax.xlane.f32.xlu0 %v1245
        %v1247 = vpop.xlane.xlu0 %1246
        %v1248 = vsel %vm955, %v1220, -inf
        %1249 = vmax.xlane.f32.xlu0 %v1248
        %v1250 = vpop.xlane.xlu0 %1249
        %v1251 = vsel %vm955, %v1223, -inf
        %1252 = vmax.xlane.f32.xlu0 %v1251
        %v1253 = vpop.xlane.xlu0 %1252
        %v1254 = vsel %vm955, %v1228, -inf
        %1255 = vmax.xlane.f32.xlu0 %v1254
        %v1256 = vpop.xlane.xlu0 %1255
        %v1257 = vsel %vm955, %v1231, -inf
        %1258 = vmax.xlane.f32.xlu0 %v1257
        %v1259 = vpop.xlane.xlu0 %1258
        %v1260 = vsel %vm955, %v1236, -inf
        %1261 = vmax.xlane.f32.xlu0 %v1260
        %v1262 = vpop.xlane.xlu0 %1261
        %v1263 = vsel %vm955, %v1239, -inf
        %1264 = vmax.xlane.f32.xlu0 %v1263
        %v1265 = vpop.xlane.xlu0 %1264
        %v1266 = vsub.f32 %v1212, %v1244
        %v1267 = vsub.f32 %v1215, %v1247
        %v1268 = vsub.f32 %v1220, %v1250
        %v1269 = vsub.f32 %v1223, %v1253
        %v1270 = vsub.f32 %v1228, %v1256
        %v1271 = vsub.f32 %v1231, %v1259
        %v1272 = vsub.f32 %v1236, %v1262
        %v1273 = vsub.f32 %v1239, %v1265
        %v1274 = vmul.f32 %v1266, 1.442695
        %v1275 = vpow.pop %v1274
        %v1276 = vmul.f32 %v1267, 1.442695
        %v1277 = vpow.pop %v1276
        %v1278 = vmul.f32 %v1268, 1.442695
        %v1279 = vpow.pop %v1278
        %v1280 = vmul.f32 %v1269, 1.442695
        %v1281 = vpow.pop %v1280
        %v1282 = vmul.f32 %v1270, 1.442695
        %v1283 = vpow.pop %v1282
        %v1284 = vmul.f32 %v1271, 1.442695
        %v1285 = vpow.pop %v1284
        %v1286 = vmul.f32 %v1272, 1.442695
        %v1287 = vpow.pop %v1286
        %v1288 = vmul.f32 %v1273, 1.442695
        %v1289 = vpow.pop %v1288
        %v1290 = vsel %vm955, %v1275, 0.0
        %1291 = vadd.xlane.f32.xlu0 %v1290
        %v1292 = vpop.xlane.xlu0 %1291
        %v1293 = vsel %vm955, %v1277, 0.0
        %1294 = vadd.xlane.f32.xlu0 %v1293
        %v1295 = vpop.xlane.xlu0 %1294
        %v1296 = vsel %vm955, %v1279, 0.0
        %1297 = vadd.xlane.f32.xlu0 %v1296
        %v1298 = vpop.xlane.xlu0 %1297
        %v1299 = vsel %vm955, %v1281, 0.0
        %1300 = vadd.xlane.f32.xlu0 %v1299
        %v1301 = vpop.xlane.xlu0 %1300
        %v1302 = vsel %vm955, %v1283, 0.0
        %1303 = vadd.xlane.f32.xlu0 %v1302
        %v1304 = vpop.xlane.xlu0 %1303
        %v1305 = vsel %vm955, %v1285, 0.0
        %1306 = vadd.xlane.f32.xlu0 %v1305
        %v1307 = vpop.xlane.xlu0 %1306
        %v1308 = vsel %vm955, %v1287, 0.0
        %1309 = vadd.xlane.f32.xlu0 %v1308
        %v1310 = vpop.xlane.xlu0 %1309
        %v1311 = vsel %vm955, %v1289, 0.0
        %1312 = vadd.xlane.f32.xlu0 %v1311
        %v1313 = vpop.xlane.xlu0 %1312
        %v1314 = vrcp.pop %v1292
        %v1315 = vrcp.pop %v1295
        %v1316 = vrcp.pop %v1298
        %v1317 = vrcp.pop %v1301
        %v1318 = vrcp.pop %v1304
        %v1319 = vrcp.pop %v1307
        %v1320 = vrcp.pop %v1310
        %v1321 = vrcp.pop %v1313
        %v1322 = vmul.f32 %v1275, %v1314
        %v1323 = vmul.f32 %v1277, %v1315
        %v1324 = vmul.f32 %v1279, %v1316
        %v1325 = vmul.f32 %v1281, %v1317
        %v1326 = vmul.f32 %v1283, %v1318
        %v1327 = vmul.f32 %v1285, %v1319
        %v1328 = vmul.f32 %v1287, %v1320
        %v1329 = vmul.f32 %v1289, %v1321
        %v1330 = vpack.c.bf16 %v1323, %v1322
        %v1331 = vpack.c.bf16 %v1325, %v1324
        %v1332 = vpack.c.bf16 %v1327, %v1326
        %v1333 = vpack.c.bf16 %v1329, %v1328
        %1334 = vrot.lane.b32.xlu0 %v849, 56
        %v1335 = vpop.permute.xlu0 %1334
        %1336 = vrot.lane.b32.xlu0 %v850, 56
        %v1337 = vpop.permute.xlu0 %1336
        %1338 = vrot.lane.b32.xlu0 %v851, 56
        %v1339 = vpop.permute.xlu0 %1338
        %1340 = vrot.lane.b32.xlu0 %v852, 56
        %v1341 = vpop.permute.xlu0 %1340
        %v1347 = vsel %vm955, %v1330, 0
        %v1350 = vsel %vm955, %v1331, 0
        %v1353 = vsel %vm955, %v1332, 0
        %v1356 = vsel %vm955, %v1333, 0
        %1358 = vmatprep.subr.bf16.mxu0 0
        %1359 = vmatpush1.bf16.msra.mxu0 0
        %1360 = vmatprep.subr.bf16.mxu0 0
        %1361 = vmatpush1.bf16.msra.mxu0 0
        %1362 = vmatprep.subr.bf16.mxu0 0
        %1363 = vmatpush1.bf16.msra.mxu0 0
        %1364 = vmatprep.subr.bf16.mxu0 0
        %1365 = vmatpush1.bf16.msra.mxu0 0
        %1366 = vmatprep.subr.bf16.mxu0 0
        %1367 = vmatpush1.bf16.msra.mxu0 %v1341
        %1368 = vmatprep.subr.bf16.mxu0 0
        %1369 = vmatpush1.bf16.msra.mxu0 %v1339
        %1370 = vmatprep.subr.bf16.mxu0 0
        %1371 = vmatpush1.bf16.msra.mxu0 %v1337
        %1372 = vmatprep.subr.bf16.mxu0 0
        %1373 = vmatpush1.bf16.msra.mxu0 %v1335
        %1374 = vmatprep.subr.bf16.mxu0 0
        %1375 = vmatpush2.bf16.msra.mxu0 0
        %1376 = vmatprep.subr.bf16.mxu0 0
        %1377 = vmatpush2.bf16.msra.mxu0 0
        %1378 = vmatprep.subr.bf16.mxu0 0
        %1379 = vmatpush2.bf16.msra.mxu0 0
        %1380 = vmatprep.subr.bf16.mxu0 0
        %1381 = vmatpush2.bf16.msra.mxu0 0
        %1382 = vmatprep.subr.bf16.mxu0 0
        %1383 = vmatpush2.bf16.msra.mxu0 0
        %1384 = vmatprep.subr.bf16.mxu0 0
        %1385 = vmatpush2.bf16.msra.mxu0 0
        %1386 = vmatprep.subr.bf16.mxu0 0
        %1387 = vmatpush2.bf16.msra.mxu0 0
        %1388 = vmatprep.subr.bf16.mxu0 0
        %1389 = vmatpush2.bf16.msra.mxu0 0
        %1390 = vmatprep.mubr.bf16.mxu0 0
        %1391 = vmatmul.mubr.bf16.gmra.mxu0 %v1347
        %v1392 = vpop.f32.mrf.mxu0
        %v1393 = vadd.f32 0.0, %v1392
        %v1394 = vpop.f32.mrf.mxu0
        %v1395 = vpop.f32.mrf.mxu0
        %v1396 = vadd.f32 0.0, %v1395
        %v1397 = vpop.f32.mrf.mxu0
        %1398 = vmatprep.mubr.bf16.mxu0 0
        %1399 = vmatmul.mubr.bf16.gmra.mxu0 %v1350
        %v1400 = vpop.f32.mrf.mxu0
        %v1401 = vadd.f32 0.0, %v1400
        %v1402 = vpop.f32.mrf.mxu0
        %v1403 = vpop.f32.mrf.mxu0
        %v1404 = vadd.f32 0.0, %v1403
        %v1405 = vpop.f32.mrf.mxu0
        %1406 = vmatprep.mubr.bf16.mxu0 0
        %1407 = vmatmul.mubr.bf16.gmra.mxu0 %v1353
        %v1408 = vpop.f32.mrf.mxu0
        %v1409 = vadd.f32 0.0, %v1408
        %v1410 = vpop.f32.mrf.mxu0
        %v1411 = vpop.f32.mrf.mxu0
        %v1412 = vadd.f32 0.0, %v1411
        %v1413 = vpop.f32.mrf.mxu0
        %1414 = vmatprep.mubr.bf16.mxu0 0
        %1415 = vmatmul.mubr.bf16.gmra.mxu0 %v1356
        %v1416 = vpop.f32.mrf.mxu0
        %v1417 = vadd.f32 0.0, %v1416
        %v1418 = vpop.f32.mrf.mxu0
        %v1419 = vpop.f32.mrf.mxu0
        %v1420 = vadd.f32 0.0, %v1419
        %v1421 = vpop.f32.mrf.mxu0
        %1422 = vdwg.mxu0
        %1423 = vrot.lane.b32.xlu0 %v849, 112
        %v1424 = vpop.permute.xlu0 %1423
        %1425 = vrot.lane.b32.xlu0 %v850, 112
        %v1426 = vpop.permute.xlu0 %1425
        %1427 = vrot.lane.b32.xlu0 %v851, 112
        %v1428 = vpop.permute.xlu0 %1427
        %1429 = vrot.lane.b32.xlu0 %v852, 112
        %v1430 = vpop.permute.xlu0 %1429
        %1431 = vrot.lane.b32.xlu0 %v849, 80
        %v1432 = vpop.permute.xlu0 %1431
        %1433 = vrot.lane.b32.xlu0 %v850, 80
        %v1434 = vpop.permute.xlu0 %1433
        %1435 = vrot.lane.b32.xlu0 %v851, 80
        %v1436 = vpop.permute.xlu0 %1435
        %1437 = vrot.lane.b32.xlu0 %v852, 80
        %v1438 = vpop.permute.xlu0 %1437
        %v1440 = vsel %vm865, %v1424, 0
        %v1443 = vsel %vm865, %v1426, 0
        %v1446 = vsel %vm865, %v1428, 0
        %v1449 = vsel %vm865, %v1430, 0
        %v1452 = vsel %vm865, %v1432, 0
        %v1455 = vsel %vm865, %v1434, 0
        %v1458 = vsel %vm865, %v1436, 0
        %v1461 = vsel %vm865, %v1438, 0
        %1463 = vmatprep.subr.bf16.mxu0 0
        %1464 = vmatpush1.bf16.xpose.msra.mxu0 0
        %1465 = vmatprep.subr.bf16.mxu0 0
        %1466 = vmatpush1.bf16.xpose.msra.mxu0 0
        %1467 = vmatprep.subr.bf16.mxu0 0
        %1468 = vmatpush1.bf16.xpose.msra.mxu0 0
        %1469 = vmatprep.subr.bf16.mxu0 0
        %1470 = vmatpush1.bf16.xpose.msra.mxu0 0
        %1471 = vmatprep.subr.bf16.mxu0 0
        %1472 = vmatpush1.bf16.xpose.msra.mxu0 %v1461
        %1473 = vmatprep.subr.bf16.mxu0 0
        %1474 = vmatpush1.bf16.xpose.msra.mxu0 %v1458
        %1475 = vmatprep.subr.bf16.mxu0 0
        %1476 = vmatpush1.bf16.xpose.msra.mxu0 %v1455
        %1477 = vmatprep.subr.bf16.mxu0 0
        %1478 = vmatpush1.bf16.xpose.msra.mxu0 %v1452
        %1479 = vmatprep.subr.bf16.mxu0 0
        %1480 = vmatpush2.bf16.xpose.msra.mxu0 0
        %1481 = vmatprep.subr.bf16.mxu0 0
        %1482 = vmatpush2.bf16.xpose.msra.mxu0 0
        %1483 = vmatprep.subr.bf16.mxu0 0
        %1484 = vmatpush2.bf16.xpose.msra.mxu0 0
        %1485 = vmatprep.subr.bf16.mxu0 0
        %1486 = vmatpush2.bf16.xpose.msra.mxu0 0
        %1487 = vmatprep.subr.bf16.mxu0 0
        %1488 = vmatpush2.bf16.xpose.msra.mxu0 0
        %1489 = vmatprep.subr.bf16.mxu0 0
        %1490 = vmatpush2.bf16.xpose.msra.mxu0 0
        %1491 = vmatprep.subr.bf16.mxu0 0
        %1492 = vmatpush2.bf16.xpose.msra.mxu0 0
        %1493 = vmatprep.subr.bf16.mxu0 0
        %1494 = vmatpush2.bf16.xpose.msra.mxu0 0
        %1495 = vmatprep.mubr.bf16.mxu0 0
        %1496 = vmatmul.mubr.bf16.gmra.mxu0 %v1440
        %v1497 = vpop.f32.mrf.mxu0
        %v1498 = vadd.f32 %v724, %v1497
        %v1499 = vpop.f32.mrf.mxu0
        %v1500 = vpop.f32.mrf.mxu0
        %v1501 = vadd.f32 %v725, %v1500
        %v1502 = vpop.f32.mrf.mxu0
        %1503 = vmatprep.mubr.bf16.mxu0 0
        %1504 = vmatmul.mubr.bf16.gmra.mxu0 %v1443
        %v1505 = vpop.f32.mrf.mxu0
        %v1506 = vadd.f32 %v726, %v1505
        %v1507 = vpop.f32.mrf.mxu0
        %v1508 = vpop.f32.mrf.mxu0
        %v1509 = vadd.f32 %v727, %v1508
        %v1510 = vpop.f32.mrf.mxu0
        %1511 = vmatprep.mubr.bf16.mxu0 0
        %1512 = vmatmul.mubr.bf16.gmra.mxu0 %v1446
        %v1513 = vpop.f32.mrf.mxu0
        %v1514 = vadd.f32 %v728, %v1513
        %v1515 = vpop.f32.mrf.mxu0
        %v1516 = vpop.f32.mrf.mxu0
        %v1517 = vadd.f32 %v729, %v1516
        %v1518 = vpop.f32.mrf.mxu0
        %1519 = vmatprep.mubr.bf16.mxu0 0
        %1520 = vmatmul.mubr.bf16.gmra.mxu0 %v1449
        %v1521 = vpop.f32.mrf.mxu0
        %v1522 = vadd.f32 %v730, %v1521
        %v1523 = vpop.f32.mrf.mxu0
        %v1524 = vpop.f32.mrf.mxu0
        %v1525 = vadd.f32 %v731, %v1524
        %v1526 = vpop.f32.mrf.mxu0
        %1527 = vdwg.mxu0
        %v1528 = vsel %vm955, %v1498, -inf
        %1529 = vmax.xlane.f32.xlu0 %v1528
        %v1530 = vpop.xlane.xlu0 %1529
        %v1531 = vsel %vm955, %v1501, -inf
        %1532 = vmax.xlane.f32.xlu0 %v1531
        %v1533 = vpop.xlane.xlu0 %1532
        %v1534 = vsel %vm955, %v1506, -inf
        %1535 = vmax.xlane.f32.xlu0 %v1534
        %v1536 = vpop.xlane.xlu0 %1535
        %v1537 = vsel %vm955, %v1509, -inf
        %1538 = vmax.xlane.f32.xlu0 %v1537
        %v1539 = vpop.xlane.xlu0 %1538
        %v1540 = vsel %vm955, %v1514, -inf
        %1541 = vmax.xlane.f32.xlu0 %v1540
        %v1542 = vpop.xlane.xlu0 %1541
        %v1543 = vsel %vm955, %v1517, -inf
        %1544 = vmax.xlane.f32.xlu0 %v1543
        %v1545 = vpop.xlane.xlu0 %1544
        %v1546 = vsel %vm955, %v1522, -inf
        %1547 = vmax.xlane.f32.xlu0 %v1546
        %v1548 = vpop.xlane.xlu0 %1547
        %v1549 = vsel %vm955, %v1525, -inf
        %1550 = vmax.xlane.f32.xlu0 %v1549
        %v1551 = vpop.xlane.xlu0 %1550
        %v1552 = vsub.f32 %v1498, %v1530
        %v1553 = vsub.f32 %v1501, %v1533
        %v1554 = vsub.f32 %v1506, %v1536
        %v1555 = vsub.f32 %v1509, %v1539
        %v1556 = vsub.f32 %v1514, %v1542
        %v1557 = vsub.f32 %v1517, %v1545
        %v1558 = vsub.f32 %v1522, %v1548
        %v1559 = vsub.f32 %v1525, %v1551
        %v1560 = vmul.f32 %v1552, 1.442695
        %v1561 = vpow.pop %v1560
        %v1562 = vmul.f32 %v1553, 1.442695
        %v1563 = vpow.pop %v1562
        %v1564 = vmul.f32 %v1554, 1.442695
        %v1565 = vpow.pop %v1564
        %v1566 = vmul.f32 %v1555, 1.442695
        %v1567 = vpow.pop %v1566
        %v1568 = vmul.f32 %v1556, 1.442695
        %v1569 = vpow.pop %v1568
        %v1570 = vmul.f32 %v1557, 1.442695
        %v1571 = vpow.pop %v1570
        %v1572 = vmul.f32 %v1558, 1.442695
        %v1573 = vpow.pop %v1572
        %v1574 = vmul.f32 %v1559, 1.442695
        %v1575 = vpow.pop %v1574
        %v1576 = vsel %vm955, %v1561, 0.0
        %1577 = vadd.xlane.f32.xlu0 %v1576
        %v1578 = vpop.xlane.xlu0 %1577
        %v1579 = vsel %vm955, %v1563, 0.0
        %1580 = vadd.xlane.f32.xlu0 %v1579
        %v1581 = vpop.xlane.xlu0 %1580
        %v1582 = vsel %vm955, %v1565, 0.0
        %1583 = vadd.xlane.f32.xlu0 %v1582
        %v1584 = vpop.xlane.xlu0 %1583
        %v1585 = vsel %vm955, %v1567, 0.0
        %1586 = vadd.xlane.f32.xlu0 %v1585
        %v1587 = vpop.xlane.xlu0 %1586
        %v1588 = vsel %vm955, %v1569, 0.0
        %1589 = vadd.xlane.f32.xlu0 %v1588
        %v1590 = vpop.xlane.xlu0 %1589
        %v1591 = vsel %vm955, %v1571, 0.0
        %1592 = vadd.xlane.f32.xlu0 %v1591
        %v1593 = vpop.xlane.xlu0 %1592
        %v1594 = vsel %vm955, %v1573, 0.0
        %1595 = vadd.xlane.f32.xlu0 %v1594
        %v1596 = vpop.xlane.xlu0 %1595
        %v1597 = vsel %vm955, %v1575, 0.0
        %1598 = vadd.xlane.f32.xlu0 %v1597
        %v1599 = vpop.xlane.xlu0 %1598
        %v1600 = vrcp.pop %v1578
        %v1601 = vrcp.pop %v1581
        %v1602 = vrcp.pop %v1584
        %v1603 = vrcp.pop %v1587
        %v1604 = vrcp.pop %v1590
        %v1605 = vrcp.pop %v1593
        %v1606 = vrcp.pop %v1596
        %v1607 = vrcp.pop %v1599
        %v1608 = vmul.f32 %v1561, %v1600
        %v1609 = vmul.f32 %v1563, %v1601
        %v1610 = vmul.f32 %v1565, %v1602
        %v1611 = vmul.f32 %v1567, %v1603
        %v1612 = vmul.f32 %v1569, %v1604
        %v1613 = vmul.f32 %v1571, %v1605
        %v1614 = vmul.f32 %v1573, %v1606
        %v1615 = vmul.f32 %v1575, %v1607
        %v1616 = vpack.c.bf16 %v1609, %v1608
        %v1617 = vpack.c.bf16 %v1611, %v1610
        %v1618 = vpack.c.bf16 %v1613, %v1612
        %v1619 = vpack.c.bf16 %v1615, %v1614
        %1620 = vrot.lane.b32.xlu0 %v849, 48
        %v1621 = vpop.permute.xlu0 %1620
        %1622 = vrot.lane.b32.xlu0 %v850, 48
        %v1623 = vpop.permute.xlu0 %1622
        %1624 = vrot.lane.b32.xlu0 %v851, 48
        %v1625 = vpop.permute.xlu0 %1624
        %1626 = vrot.lane.b32.xlu0 %v852, 48
        %v1627 = vpop.permute.xlu0 %1626
        %v1633 = vsel %vm955, %v1616, 0
        %v1636 = vsel %vm955, %v1617, 0
        %v1639 = vsel %vm955, %v1618, 0
        %v1642 = vsel %vm955, %v1619, 0
        %1644 = vmatprep.subr.bf16.mxu0 0
        %1645 = vmatpush1.bf16.msra.mxu0 0
        %1646 = vmatprep.subr.bf16.mxu0 0
        %1647 = vmatpush1.bf16.msra.mxu0 0
        %1648 = vmatprep.subr.bf16.mxu0 0
        %1649 = vmatpush1.bf16.msra.mxu0 0
        %1650 = vmatprep.subr.bf16.mxu0 0
        %1651 = vmatpush1.bf16.msra.mxu0 0
        %1652 = vmatprep.subr.bf16.mxu0 0
        %1653 = vmatpush1.bf16.msra.mxu0 %v1627
        %1654 = vmatprep.subr.bf16.mxu0 0
        %1655 = vmatpush1.bf16.msra.mxu0 %v1625
        %1656 = vmatprep.subr.bf16.mxu0 0
        %1657 = vmatpush1.bf16.msra.mxu0 %v1623
        %1658 = vmatprep.subr.bf16.mxu0 0
        %1659 = vmatpush1.bf16.msra.mxu0 %v1621
        %1660 = vmatprep.subr.bf16.mxu0 0
        %1661 = vmatpush2.bf16.msra.mxu0 0
        %1662 = vmatprep.subr.bf16.mxu0 0
        %1663 = vmatpush2.bf16.msra.mxu0 0
        %1664 = vmatprep.subr.bf16.mxu0 0
        %1665 = vmatpush2.bf16.msra.mxu0 0
        %1666 = vmatprep.subr.bf16.mxu0 0
        %1667 = vmatpush2.bf16.msra.mxu0 0
        %1668 = vmatprep.subr.bf16.mxu0 0
        %1669 = vmatpush2.bf16.msra.mxu0 0
        %1670 = vmatprep.subr.bf16.mxu0 0
        %1671 = vmatpush2.bf16.msra.mxu0 0
        %1672 = vmatprep.subr.bf16.mxu0 0
        %1673 = vmatpush2.bf16.msra.mxu0 0
        %1674 = vmatprep.subr.bf16.mxu0 0
        %1675 = vmatpush2.bf16.msra.mxu0 0
        %1676 = vmatprep.mubr.bf16.mxu0 0
        %1677 = vmatmul.mubr.bf16.gmra.mxu0 %v1633
        %v1678 = vpop.f32.mrf.mxu0
        %v1679 = vadd.f32 0.0, %v1678
        %v1680 = vpop.f32.mrf.mxu0
        %v1681 = vpop.f32.mrf.mxu0
        %v1682 = vadd.f32 0.0, %v1681
        %v1683 = vpop.f32.mrf.mxu0
        %1684 = vmatprep.mubr.bf16.mxu0 0
        %1685 = vmatmul.mubr.bf16.gmra.mxu0 %v1636
        %v1686 = vpop.f32.mrf.mxu0
        %v1687 = vadd.f32 0.0, %v1686
        %v1688 = vpop.f32.mrf.mxu0
        %v1689 = vpop.f32.mrf.mxu0
        %v1690 = vadd.f32 0.0, %v1689
        %v1691 = vpop.f32.mrf.mxu0
        %1692 = vmatprep.mubr.bf16.mxu0 0
        %1693 = vmatmul.mubr.bf16.gmra.mxu0 %v1639
        %v1694 = vpop.f32.mrf.mxu0
        %v1695 = vadd.f32 0.0, %v1694
        %v1696 = vpop.f32.mrf.mxu0
        %v1697 = vpop.f32.mrf.mxu0
        %v1698 = vadd.f32 0.0, %v1697
        %v1699 = vpop.f32.mrf.mxu0
        %1700 = vmatprep.mubr.bf16.mxu0 0
        %1701 = vmatmul.mubr.bf16.gmra.mxu0 %v1642
        %v1702 = vpop.f32.mrf.mxu0
        %v1703 = vadd.f32 0.0, %v1702
        %v1704 = vpop.f32.mrf.mxu0
        %v1705 = vpop.f32.mrf.mxu0
        %v1706 = vadd.f32 0.0, %v1705
        %v1707 = vpop.f32.mrf.mxu0
        %1708 = vdwg.mxu0
        %1709 = vrot.lane.b32.xlu0 %v849, 104
        %v1710 = vpop.permute.xlu0 %1709
        %1711 = vrot.lane.b32.xlu0 %v850, 104
        %v1712 = vpop.permute.xlu0 %1711
        %1713 = vrot.lane.b32.xlu0 %v851, 104
        %v1714 = vpop.permute.xlu0 %1713
        %1715 = vrot.lane.b32.xlu0 %v852, 104
        %v1716 = vpop.permute.xlu0 %1715
        %1717 = vrot.lane.b32.xlu0 %v849, 72
        %v1718 = vpop.permute.xlu0 %1717
        %1719 = vrot.lane.b32.xlu0 %v850, 72
        %v1720 = vpop.permute.xlu0 %1719
        %1721 = vrot.lane.b32.xlu0 %v851, 72
        %v1722 = vpop.permute.xlu0 %1721
        %1723 = vrot.lane.b32.xlu0 %v852, 72
        %v1724 = vpop.permute.xlu0 %1723
        %v1726 = vsel %vm865, %v1710, 0
        %v1729 = vsel %vm865, %v1712, 0
        %v1732 = vsel %vm865, %v1714, 0
        %v1735 = vsel %vm865, %v1716, 0
        %v1738 = vsel %vm865, %v1718, 0
        %v1741 = vsel %vm865, %v1720, 0
        %v1744 = vsel %vm865, %v1722, 0
        %v1747 = vsel %vm865, %v1724, 0
        %1749 = vmatprep.subr.bf16.mxu0 0
        %1750 = vmatpush1.bf16.xpose.msra.mxu0 0
        %1751 = vmatprep.subr.bf16.mxu0 0
        %1752 = vmatpush1.bf16.xpose.msra.mxu0 0
        %1753 = vmatprep.subr.bf16.mxu0 0
        %1754 = vmatpush1.bf16.xpose.msra.mxu0 0
        %1755 = vmatprep.subr.bf16.mxu0 0
        %1756 = vmatpush1.bf16.xpose.msra.mxu0 0
        %1757 = vmatprep.subr.bf16.mxu0 0
        %1758 = vmatpush1.bf16.xpose.msra.mxu0 %v1747
        %1759 = vmatprep.subr.bf16.mxu0 0
        %1760 = vmatpush1.bf16.xpose.msra.mxu0 %v1744
        %1761 = vmatprep.subr.bf16.mxu0 0
        %1762 = vmatpush1.bf16.xpose.msra.mxu0 %v1741
        %1763 = vmatprep.subr.bf16.mxu0 0
        %1764 = vmatpush1.bf16.xpose.msra.mxu0 %v1738
        %1765 = vmatprep.subr.bf16.mxu0 0
        %1766 = vmatpush2.bf16.xpose.msra.mxu0 0
        %1767 = vmatprep.subr.bf16.mxu0 0
        %1768 = vmatpush2.bf16.xpose.msra.mxu0 0
        %1769 = vmatprep.subr.bf16.mxu0 0
        %1770 = vmatpush2.bf16.xpose.msra.mxu0 0
        %1771 = vmatprep.subr.bf16.mxu0 0
        %1772 = vmatpush2.bf16.xpose.msra.mxu0 0
        %1773 = vmatprep.subr.bf16.mxu0 0
        %1774 = vmatpush2.bf16.xpose.msra.mxu0 0
        %1775 = vmatprep.subr.bf16.mxu0 0
        %1776 = vmatpush2.bf16.xpose.msra.mxu0 0
        %1777 = vmatprep.subr.bf16.mxu0 0
        %1778 = vmatpush2.bf16.xpose.msra.mxu0 0
        %1779 = vmatprep.subr.bf16.mxu0 0
        %1780 = vmatpush2.bf16.xpose.msra.mxu0 0
        %1781 = vmatprep.mubr.bf16.mxu0 0
        %1782 = vmatmul.mubr.bf16.gmra.mxu0 %v1726
        %v1783 = vpop.f32.mrf.mxu0
        %v1784 = vadd.f32 %v724, %v1783
        %v1785 = vpop.f32.mrf.mxu0
        %v1786 = vpop.f32.mrf.mxu0
        %v1787 = vadd.f32 %v725, %v1786
        %v1788 = vpop.f32.mrf.mxu0
        %1789 = vmatprep.mubr.bf16.mxu0 0
        %1790 = vmatmul.mubr.bf16.gmra.mxu0 %v1729
        %v1791 = vpop.f32.mrf.mxu0
        %v1792 = vadd.f32 %v726, %v1791
        %v1793 = vpop.f32.mrf.mxu0
        %v1794 = vpop.f32.mrf.mxu0
        %v1795 = vadd.f32 %v727, %v1794
        %v1796 = vpop.f32.mrf.mxu0
        %1797 = vmatprep.mubr.bf16.mxu0 0
        %1798 = vmatmul.mubr.bf16.gmra.mxu0 %v1732
        %v1799 = vpop.f32.mrf.mxu0
        %v1800 = vadd.f32 %v728, %v1799
        %v1801 = vpop.f32.mrf.mxu0
        %v1802 = vpop.f32.mrf.mxu0
        %v1803 = vadd.f32 %v729, %v1802
        %v1804 = vpop.f32.mrf.mxu0
        %1805 = vmatprep.mubr.bf16.mxu0 0
        %1806 = vmatmul.mubr.bf16.gmra.mxu0 %v1735
        %v1807 = vpop.f32.mrf.mxu0
        %v1808 = vadd.f32 %v730, %v1807
        %v1809 = vpop.f32.mrf.mxu0
        %v1810 = vpop.f32.mrf.mxu0
        %v1811 = vadd.f32 %v731, %v1810
        %v1812 = vpop.f32.mrf.mxu0
        %1813 = vdwg.mxu0
        %v1814 = vsel %vm955, %v1784, -inf
        %1815 = vmax.xlane.f32.xlu0 %v1814
        %v1816 = vpop.xlane.xlu0 %1815
        %v1817 = vsel %vm955, %v1787, -inf
        %1818 = vmax.xlane.f32.xlu0 %v1817
        %v1819 = vpop.xlane.xlu0 %1818
        %v1820 = vsel %vm955, %v1792, -inf
        %1821 = vmax.xlane.f32.xlu0 %v1820
        %v1822 = vpop.xlane.xlu0 %1821
        %v1823 = vsel %vm955, %v1795, -inf
        %1824 = vmax.xlane.f32.xlu0 %v1823
        %v1825 = vpop.xlane.xlu0 %1824
        %v1826 = vsel %vm955, %v1800, -inf
        %1827 = vmax.xlane.f32.xlu0 %v1826
        %v1828 = vpop.xlane.xlu0 %1827
        %v1829 = vsel %vm955, %v1803, -inf
        %1830 = vmax.xlane.f32.xlu0 %v1829
        %v1831 = vpop.xlane.xlu0 %1830
        %v1832 = vsel %vm955, %v1808, -inf
        %1833 = vmax.xlane.f32.xlu0 %v1832
        %v1834 = vpop.xlane.xlu0 %1833
        %v1835 = vsel %vm955, %v1811, -inf
        %1836 = vmax.xlane.f32.xlu0 %v1835
        %v1837 = vpop.xlane.xlu0 %1836
        %v1838 = vsub.f32 %v1784, %v1816
        %v1839 = vsub.f32 %v1787, %v1819
        %v1840 = vsub.f32 %v1792, %v1822
        %v1841 = vsub.f32 %v1795, %v1825
        %v1842 = vsub.f32 %v1800, %v1828
        %v1843 = vsub.f32 %v1803, %v1831
        %v1844 = vsub.f32 %v1808, %v1834
        %v1845 = vsub.f32 %v1811, %v1837
        %v1846 = vmul.f32 %v1838, 1.442695
        %v1847 = vpow.pop %v1846
        %v1848 = vmul.f32 %v1839, 1.442695
        %v1849 = vpow.pop %v1848
        %v1850 = vmul.f32 %v1840, 1.442695
        %v1851 = vpow.pop %v1850
        %v1852 = vmul.f32 %v1841, 1.442695
        %v1853 = vpow.pop %v1852
        %v1854 = vmul.f32 %v1842, 1.442695
        %v1855 = vpow.pop %v1854
        %v1856 = vmul.f32 %v1843, 1.442695
        %v1857 = vpow.pop %v1856
        %v1858 = vmul.f32 %v1844, 1.442695
        %v1859 = vpow.pop %v1858
        %v1860 = vmul.f32 %v1845, 1.442695
        %v1861 = vpow.pop %v1860
        %v1862 = vsel %vm955, %v1847, 0.0
        %1863 = vadd.xlane.f32.xlu0 %v1862
        %v1864 = vpop.xlane.xlu0 %1863
        %v1865 = vsel %vm955, %v1849, 0.0
        %1866 = vadd.xlane.f32.xlu0 %v1865
        %v1867 = vpop.xlane.xlu0 %1866
        %v1868 = vsel %vm955, %v1851, 0.0
        %1869 = vadd.xlane.f32.xlu0 %v1868
        %v1870 = vpop.xlane.xlu0 %1869
        %v1871 = vsel %vm955, %v1853, 0.0
        %1872 = vadd.xlane.f32.xlu0 %v1871
        %v1873 = vpop.xlane.xlu0 %1872
        %v1874 = vsel %vm955, %v1855, 0.0
        %1875 = vadd.xlane.f32.xlu0 %v1874
        %v1876 = vpop.xlane.xlu0 %1875
        %v1877 = vsel %vm955, %v1857, 0.0
        %1878 = vadd.xlane.f32.xlu0 %v1877
        %v1879 = vpop.xlane.xlu0 %1878
        %v1880 = vsel %vm955, %v1859, 0.0
        %1881 = vadd.xlane.f32.xlu0 %v1880
        %v1882 = vpop.xlane.xlu0 %1881
        %v1883 = vsel %vm955, %v1861, 0.0
        %1884 = vadd.xlane.f32.xlu0 %v1883
        %v1885 = vpop.xlane.xlu0 %1884
        %v1886 = vrcp.pop %v1864
        %v1887 = vrcp.pop %v1867
        %v1888 = vrcp.pop %v1870
        %v1889 = vrcp.pop %v1873
        %v1890 = vrcp.pop %v1876
        %v1891 = vrcp.pop %v1879
        %v1892 = vrcp.pop %v1882
        %v1893 = vrcp.pop %v1885
        %v1894 = vmul.f32 %v1847, %v1886
        %v1895 = vmul.f32 %v1849, %v1887
        %v1896 = vmul.f32 %v1851, %v1888
        %v1897 = vmul.f32 %v1853, %v1889
        %v1898 = vmul.f32 %v1855, %v1890
        %v1899 = vmul.f32 %v1857, %v1891
        %v1900 = vmul.f32 %v1859, %v1892
        %v1901 = vmul.f32 %v1861, %v1893
        %v1902 = vpack.c.bf16 %v1895, %v1894
        %v1903 = vpack.c.bf16 %v1897, %v1896
        %v1904 = vpack.c.bf16 %v1899, %v1898
        %v1905 = vpack.c.bf16 %v1901, %v1900
        %1906 = vrot.lane.b32.xlu0 %v849, 40
        %v1907 = vpop.permute.xlu0 %1906
        %1908 = vrot.lane.b32.xlu0 %v850, 40
        %v1909 = vpop.permute.xlu0 %1908
        %1910 = vrot.lane.b32.xlu0 %v851, 40
        %v1911 = vpop.permute.xlu0 %1910
        %1912 = vrot.lane.b32.xlu0 %v852, 40
        %v1913 = vpop.permute.xlu0 %1912
        %v1919 = vsel %vm955, %v1902, 0
        %v1922 = vsel %vm955, %v1903, 0
        %v1925 = vsel %vm955, %v1904, 0
        %v1928 = vsel %vm955, %v1905, 0
        %1930 = vmatprep.subr.bf16.mxu0 0
        %1931 = vmatpush1.bf16.msra.mxu0 0
        %1932 = vmatprep.subr.bf16.mxu0 0
        %1933 = vmatpush1.bf16.msra.mxu0 0
        %1934 = vmatprep.subr.bf16.mxu0 0
        %1935 = vmatpush1.bf16.msra.mxu0 0
        %1936 = vmatprep.subr.bf16.mxu0 0
        %1937 = vmatpush1.bf16.msra.mxu0 0
        %1938 = vmatprep.subr.bf16.mxu0 0
        %1939 = vmatpush1.bf16.msra.mxu0 %v1913
        %1940 = vmatprep.subr.bf16.mxu0 0
        %1941 = vmatpush1.bf16.msra.mxu0 %v1911
        %1942 = vmatprep.subr.bf16.mxu0 0
        %1943 = vmatpush1.bf16.msra.mxu0 %v1909
        %1944 = vmatprep.subr.bf16.mxu0 0
        %1945 = vmatpush1.bf16.msra.mxu0 %v1907
        %1946 = vmatprep.subr.bf16.mxu0 0
        %1947 = vmatpush2.bf16.msra.mxu0 0
        %1948 = vmatprep.subr.bf16.mxu0 0
        %1949 = vmatpush2.bf16.msra.mxu0 0
        %1950 = vmatprep.subr.bf16.mxu0 0
        %1951 = vmatpush2.bf16.msra.mxu0 0
        %1952 = vmatprep.subr.bf16.mxu0 0
        %1953 = vmatpush2.bf16.msra.mxu0 0
        %1954 = vmatprep.subr.bf16.mxu0 0
        %1955 = vmatpush2.bf16.msra.mxu0 0
        %1956 = vmatprep.subr.bf16.mxu0 0
        %1957 = vmatpush2.bf16.msra.mxu0 0
        %1958 = vmatprep.subr.bf16.mxu0 0
        %1959 = vmatpush2.bf16.msra.mxu0 0
        %1960 = vmatprep.subr.bf16.mxu0 0
        %1961 = vmatpush2.bf16.msra.mxu0 0
        %1962 = vmatprep.mubr.bf16.mxu0 0
        %1963 = vmatmul.mubr.bf16.gmra.mxu0 %v1919
        %v1964 = vpop.f32.mrf.mxu0
        %v1965 = vadd.f32 0.0, %v1964
        %v1966 = vpop.f32.mrf.mxu0
        %v1967 = vpop.f32.mrf.mxu0
        %v1968 = vadd.f32 0.0, %v1967
        %v1969 = vpop.f32.mrf.mxu0
        %1970 = vmatprep.mubr.bf16.mxu0 0
        %1971 = vmatmul.mubr.bf16.gmra.mxu0 %v1922
        %v1972 = vpop.f32.mrf.mxu0
        %v1973 = vadd.f32 0.0, %v1972
        %v1974 = vpop.f32.mrf.mxu0
        %v1975 = vpop.f32.mrf.mxu0
        %v1976 = vadd.f32 0.0, %v1975
        %v1977 = vpop.f32.mrf.mxu0
        %1978 = vmatprep.mubr.bf16.mxu0 0
        %1979 = vmatmul.mubr.bf16.gmra.mxu0 %v1925
        %v1980 = vpop.f32.mrf.mxu0
        %v1981 = vadd.f32 0.0, %v1980
        %v1982 = vpop.f32.mrf.mxu0
        %v1983 = vpop.f32.mrf.mxu0
        %v1984 = vadd.f32 0.0, %v1983
        %v1985 = vpop.f32.mrf.mxu0
        %1986 = vmatprep.mubr.bf16.mxu0 0
        %1987 = vmatmul.mubr.bf16.gmra.mxu0 %v1928
        %v1988 = vpop.f32.mrf.mxu0
        %v1989 = vadd.f32 0.0, %v1988
        %v1990 = vpop.f32.mrf.mxu0
        %v1991 = vpop.f32.mrf.mxu0
        %v1992 = vadd.f32 0.0, %v1991
        %v1993 = vpop.f32.mrf.mxu0
        %1994 = vdwg.mxu0
        %2003 = vrot.lane.b32.xlu0 %v1393, 8
        %v2004 = vpop.permute.xlu0 %2003
        %2005 = vrot.lane.b32.xlu0 %v1396, 8
        %v2006 = vpop.permute.xlu0 %2005
        %2007 = vrot.lane.b32.xlu0 %v1401, 8
        %v2008 = vpop.permute.xlu0 %2007
        %2009 = vrot.lane.b32.xlu0 %v1404, 8
        %v2010 = vpop.permute.xlu0 %2009
        %2011 = vrot.lane.b32.xlu0 %v1409, 8
        %v2012 = vpop.permute.xlu0 %2011
        %2013 = vrot.lane.b32.xlu0 %v1412, 8
        %v2014 = vpop.permute.xlu0 %2013
        %2015 = vrot.lane.b32.xlu0 %v1417, 8
        %v2016 = vpop.permute.xlu0 %2015
        %2017 = vrot.lane.b32.xlu0 %v1420, 8
        %v2018 = vpop.permute.xlu0 %2017
        %2035 = vrot.lane.b32.xlu0 %v1679, 16
        %v2036 = vpop.permute.xlu0 %2035
        %2037 = vrot.lane.b32.xlu0 %v1682, 16
        %v2038 = vpop.permute.xlu0 %2037
        %2039 = vrot.lane.b32.xlu0 %v1687, 16
        %v2040 = vpop.permute.xlu0 %2039
        %2041 = vrot.lane.b32.xlu0 %v1690, 16
        %v2042 = vpop.permute.xlu0 %2041
        %2043 = vrot.lane.b32.xlu0 %v1695, 16
        %v2044 = vpop.permute.xlu0 %2043
        %2045 = vrot.lane.b32.xlu0 %v1698, 16
        %v2046 = vpop.permute.xlu0 %2045
        %2047 = vrot.lane.b32.xlu0 %v1703, 16
        %v2048 = vpop.permute.xlu0 %2047
        %2049 = vrot.lane.b32.xlu0 %v1706, 16
        %v2050 = vpop.permute.xlu0 %2049
        %2067 = vrot.lane.b32.xlu0 %v1965, 24
        %v2068 = vpop.permute.xlu0 %2067
        %2069 = vrot.lane.b32.xlu0 %v1968, 24
        %v2070 = vpop.permute.xlu0 %2069
        %2071 = vrot.lane.b32.xlu0 %v1973, 24
        %v2072 = vpop.permute.xlu0 %2071
        %2073 = vrot.lane.b32.xlu0 %v1976, 24
        %v2074 = vpop.permute.xlu0 %2073
        %2075 = vrot.lane.b32.xlu0 %v1981, 24
        %v2076 = vpop.permute.xlu0 %2075
        %2077 = vrot.lane.b32.xlu0 %v1984, 24
        %v2078 = vpop.permute.xlu0 %2077
        %2079 = vrot.lane.b32.xlu0 %v1989, 24
        %v2080 = vpop.permute.xlu0 %2079
        %2081 = vrot.lane.b32.xlu0 %v1992, 24
        %v2082 = vpop.permute.xlu0 %2081
        %v2091 = vsel %vm865, %v1107, %v2004
        %v2092 = vsel %vm865, %v1110, %v2006
        %v2093 = vsel %vm865, %v1115, %v2008
        %v2094 = vsel %vm865, %v1118, %v2010
        %v2095 = vsel %vm865, %v1123, %v2012
        %v2096 = vsel %vm865, %v1126, %v2014
        %v2097 = vsel %vm865, %v1131, %v2016
        %v2098 = vsel %vm865, %v1134, %v2018
        %vm2099 = vcmask 130048
        %v2100 = vsel %vm2099, %v2091, %v2036
        %v2101 = vsel %vm2099, %v2092, %v2038
        %v2102 = vsel %vm2099, %v2093, %v2040
        %v2103 = vsel %vm2099, %v2094, %v2042
        %v2104 = vsel %vm2099, %v2095, %v2044
        %v2105 = vsel %vm2099, %v2096, %v2046
        %v2106 = vsel %vm2099, %v2097, %v2048
        %v2107 = vsel %vm2099, %v2098, %v2050
        %vm2108 = vcmask 195584
        %v2109 = vsel %vm2108, %v2100, %v2068
        %v2110 = vsel %vm2108, %v2101, %v2070
        %v2111 = vsel %vm2108, %v2102, %v2072
        %v2112 = vsel %vm2108, %v2103, %v2074
        %v2113 = vsel %vm2108, %v2104, %v2076
        %v2114 = vsel %vm2108, %v2105, %v2078
        %v2115 = vsel %vm2108, %v2106, %v2080
        %v2116 = vsel %vm2108, %v2107, %v2082
        %v2117 = vpack.c.bf16 %v2110, %v2109
        %v2118 = vpack.c.bf16 %v2112, %v2111
        %v2119 = vpack.c.bf16 %v2114, %v2113
        %v2120 = vpack.c.bf16 %v2116, %v2115
        %v2121 = vld [vmem:[%s6] sm:$0xf]
        %v2122 = vld [vmem:[%s6 + $0x4] sm:$0xf]
        %v2123 = vld [vmem:[%s6 + $0x8] sm:$0xf]
        %v2124 = vld [vmem:[%s6 + $0xc] sm:$0xf]
        %v2125 = vlaneseq
        %v2126 = vshrl.u32 %v2125, 7
        %v2127 = vsub.s32 0, %v2126
        %v2128 = vrot.slane %v741, %v2127
        %v2133 = vunpack.c.l.b16 %v2121
        %v2134 = vunpack.c.l.b16 %v2122
        %v2135 = vunpack.c.l.b16 %v2123
        %v2136 = vunpack.c.l.b16 %v2124
        %v2137 = vpack.c.b16 %v2134, %v2133
        %v2138 = vpack.c.b16 %v2136, %v2135
        %v2142 = vsel %vm771, %v2117, 0
        %v2145 = vsel %vm771, %v2118, 0
        %v2148 = vsel %vm771, %v2119, 0
        %v2151 = vsel %vm771, %v2120, 0
        %2153 = vmatprep.subr.bf16.mxu0 0
        %2154 = vmatpush1.bf16.msra.mxu0 0
        %2155 = vmatprep.subr.bf16.mxu0 0
        %2156 = vmatpush1.bf16.msra.mxu0 0
        %2157 = vmatprep.subr.bf16.mxu0 0
        %2158 = vmatpush1.bf16.msra.mxu0 0
        %2159 = vmatprep.subr.bf16.mxu0 0
        %2160 = vmatpush1.bf16.msra.mxu0 0
        %2161 = vmatprep.subr.bf16.mxu0 0
        %2162 = vmatpush1.bf16.msra.mxu0 0
        %2163 = vmatprep.subr.bf16.mxu0 0
        %2164 = vmatpush1.bf16.msra.mxu0 0
        %2165 = vmatprep.subr.bf16.mxu0 0
        %2166 = vmatpush1.bf16.msra.mxu0 %v2138
        %2167 = vmatprep.subr.bf16.mxu0 0
        %2168 = vmatpush1.bf16.msra.mxu0 %v2137
        %2169 = vmatprep.subr.bf16.mxu0 0
        %2170 = vmatpush2.bf16.msra.mxu0 0
        %2171 = vmatprep.subr.bf16.mxu0 0
        %2172 = vmatpush2.bf16.msra.mxu0 0
        %2173 = vmatprep.subr.bf16.mxu0 0
        %2174 = vmatpush2.bf16.msra.mxu0 0
        %2175 = vmatprep.subr.bf16.mxu0 0
        %2176 = vmatpush2.bf16.msra.mxu0 0
        %2177 = vmatprep.subr.bf16.mxu0 0
        %2178 = vmatpush2.bf16.msra.mxu0 0
        %2179 = vmatprep.subr.bf16.mxu0 0
        %2180 = vmatpush2.bf16.msra.mxu0 0
        %2181 = vmatprep.subr.bf16.mxu0 0
        %2182 = vmatpush2.bf16.msra.mxu0 0
        %2183 = vmatprep.subr.bf16.mxu0 0
        %2184 = vmatpush2.bf16.msra.mxu0 0
        %2185 = vmatprep.mubr.bf16.mxu0 0
        %2186 = vmatmul.mubr.bf16.gmra.mxu0 %v2142
        %v2187 = vpop.f32.mrf.mxu0
        %v2188 = vadd.f32 %v2128, %v2187
        %v2189 = vpop.f32.mrf.mxu0
        %v2190 = vpop.f32.mrf.mxu0
        %v2191 = vadd.f32 %v2128, %v2190
        %v2192 = vpop.f32.mrf.mxu0
        %2193 = vmatprep.mubr.bf16.mxu0 0
        %2194 = vmatmul.mubr.bf16.gmra.mxu0 %v2145
        %v2195 = vpop.f32.mrf.mxu0
        %v2196 = vadd.f32 %v2128, %v2195
        %v2197 = vpop.f32.mrf.mxu0
        %v2198 = vpop.f32.mrf.mxu0
        %v2199 = vadd.f32 %v2128, %v2198
        %v2200 = vpop.f32.mrf.mxu0
        %2201 = vmatprep.mubr.bf16.mxu0 0
        %2202 = vmatmul.mubr.bf16.gmra.mxu0 %v2148
        %v2203 = vpop.f32.mrf.mxu0
        %v2204 = vadd.f32 %v2128, %v2203
        %v2205 = vpop.f32.mrf.mxu0
        %v2206 = vpop.f32.mrf.mxu0
        %v2207 = vadd.f32 %v2128, %v2206
        %v2208 = vpop.f32.mrf.mxu0
        %2209 = vmatprep.mubr.bf16.mxu0 0
        %2210 = vmatmul.mubr.bf16.gmra.mxu0 %v2151
        %v2211 = vpop.f32.mrf.mxu0
        %v2212 = vadd.f32 %v2128, %v2211
        %v2213 = vpop.f32.mrf.mxu0
        %v2214 = vpop.f32.mrf.mxu0
        %v2215 = vadd.f32 %v2128, %v2214
        %v2216 = vpop.f32.mrf.mxu0
        %2217 = vdwg.mxu0
        %v2218 = vadd.f32 %v686, %v2188
        %v2219 = vadd.f32 %v691, %v2191
        %v2220 = vadd.f32 %v696, %v2196
        %v2221 = vadd.f32 %v701, %v2199
        %v2222 = vadd.f32 %v706, %v2204
        %v2223 = vadd.f32 %v711, %v2207
        %v2224 = vadd.f32 %v716, %v2212
        %v2225 = vadd.f32 %v721, %v2215
        %v2226 = vsel %vm771, %v2218, 0.0
        %2227 = vadd.xlane.f32.xlu0 %v2226
        %v2228 = vpop.xlane.xlu0 %2227
        %v2229 = vsel %vm771, %v2219, 0.0
        %2230 = vadd.xlane.f32.xlu0 %v2229
        %v2231 = vpop.xlane.xlu0 %2230
        %v2232 = vsel %vm771, %v2220, 0.0
        %2233 = vadd.xlane.f32.xlu0 %v2232
        %v2234 = vpop.xlane.xlu0 %2233
        %v2235 = vsel %vm771, %v2221, 0.0
        %2236 = vadd.xlane.f32.xlu0 %v2235
        %v2237 = vpop.xlane.xlu0 %2236
        %v2238 = vsel %vm771, %v2222, 0.0
        %2239 = vadd.xlane.f32.xlu0 %v2238
        %v2240 = vpop.xlane.xlu0 %2239
        %v2241 = vsel %vm771, %v2223, 0.0
        %2242 = vadd.xlane.f32.xlu0 %v2241
        %v2243 = vpop.xlane.xlu0 %2242
        %v2244 = vsel %vm771, %v2224, 0.0
        %2245 = vadd.xlane.f32.xlu0 %v2244
        %v2246 = vpop.xlane.xlu0 %2245
        %v2247 = vsel %vm771, %v2225, 0.0
        %2248 = vadd.xlane.f32.xlu0 %v2247
        %v2249 = vpop.xlane.xlu0 %2248
        %v2250 = vrcp.pop 32.0
        %v2251 = vmul.f32 %v2228, %v2250
        %v2252 = vmul.f32 %v2231, %v2250
        %v2253 = vmul.f32 %v2234, %v2250
        %v2254 = vmul.f32 %v2237, %v2250
        %v2255 = vmul.f32 %v2240, %v2250
        %v2256 = vmul.f32 %v2243, %v2250
        %v2257 = vmul.f32 %v2246, %v2250
        %v2258 = vmul.f32 %v2249, %v2250
        %v2259 = vsub.f32 %v2218, %v2251
        %v2260 = vsub.f32 %v2219, %v2252
        %v2261 = vsub.f32 %v2220, %v2253
        %v2262 = vsub.f32 %v2221, %v2254
        %v2263 = vsub.f32 %v2222, %v2255
        %v2264 = vsub.f32 %v2223, %v2256
        %v2265 = vsub.f32 %v2224, %v2257
        %v2266 = vsub.f32 %v2225, %v2258
        %v2267 = vmul.f32 %v2259, %v2259
        %v2268 = vmul.f32 %v2260, %v2260
        %v2269 = vmul.f32 %v2261, %v2261
        %v2270 = vmul.f32 %v2262, %v2262
        %v2271 = vmul.f32 %v2263, %v2263
        %v2272 = vmul.f32 %v2264, %v2264
        %v2273 = vmul.f32 %v2265, %v2265
        %v2274 = vmul.f32 %v2266, %v2266
        %v2275 = vsel %vm771, %v2267, 0.0
        %2276 = vadd.xlane.f32.xlu0 %v2275
        %v2277 = vpop.xlane.xlu0 %2276
        %v2278 = vsel %vm771, %v2268, 0.0
        %2279 = vadd.xlane.f32.xlu0 %v2278
        %v2280 = vpop.xlane.xlu0 %2279
        %v2281 = vsel %vm771, %v2269, 0.0
        %2282 = vadd.xlane.f32.xlu0 %v2281
        %v2283 = vpop.xlane.xlu0 %2282
        %v2284 = vsel %vm771, %v2270, 0.0
        %2285 = vadd.xlane.f32.xlu0 %v2284
        %v2286 = vpop.xlane.xlu0 %2285
        %v2287 = vsel %vm771, %v2271, 0.0
        %2288 = vadd.xlane.f32.xlu0 %v2287
        %v2289 = vpop.xlane.xlu0 %2288
        %v2290 = vsel %vm771, %v2272, 0.0
        %2291 = vadd.xlane.f32.xlu0 %v2290
        %v2292 = vpop.xlane.xlu0 %2291
        %v2293 = vsel %vm771, %v2273, 0.0
        %2294 = vadd.xlane.f32.xlu0 %v2293
        %v2295 = vpop.xlane.xlu0 %2294
        %v2296 = vsel %vm771, %v2274, 0.0
        %2297 = vadd.xlane.f32.xlu0 %v2296
        %v2298 = vpop.xlane.xlu0 %2297
        %v2299 = vmul.f32 %v2277, %v2250
        %v2300 = vmul.f32 %v2280, %v2250
        %v2301 = vmul.f32 %v2283, %v2250
        %v2302 = vmul.f32 %v2286, %v2250
        %v2303 = vmul.f32 %v2289, %v2250
        %v2304 = vmul.f32 %v2292, %v2250
        %v2305 = vmul.f32 %v2295, %v2250
        %v2306 = vmul.f32 %v2298, %v2250
        %v2307 = vadd.f32 %v2299, 1e-05
        %v2308 = vadd.f32 %v2300, 1e-05
        %v2309 = vadd.f32 %v2301, 1e-05
        %v2310 = vadd.f32 %v2302, 1e-05
        %v2311 = vadd.f32 %v2303, 1e-05
        %v2312 = vadd.f32 %v2304, 1e-05
        %v2313 = vadd.f32 %v2305, 1e-05
        %v2314 = vadd.f32 %v2306, 1e-05
        %v2315 = vrsqrt.pop %v2307
        %v2316 = vrsqrt.pop %v2308
        %v2317 = vrsqrt.pop %v2309
        %v2318 = vrsqrt.pop %v2310
        %v2319 = vrsqrt.pop %v2311
        %v2320 = vrsqrt.pop %v2312
        %v2321 = vrsqrt.pop %v2313
        %v2322 = vrsqrt.pop %v2314
        %v2323 = vmul.f32 %v2259, %v2315
        %v2324 = vmul.f32 %v2260, %v2316
        %v2325 = vmul.f32 %v2261, %v2317
        %v2326 = vmul.f32 %v2262, %v2318
        %v2327 = vmul.f32 %v2263, %v2319
        %v2328 = vmul.f32 %v2264, %v2320
        %v2329 = vmul.f32 %v2265, %v2321
        %v2330 = vmul.f32 %v2266, %v2322
        %v2331 = vlaneseq
        %v2332 = vshrl.u32 %v2331, 7
        %v2333 = vsub.s32 0, %v2332
        %v2334 = vrot.slane %v742, %v2333
        %v2335 = vmul.f32 %v2323, %v2334
        %v2336 = vmul.f32 %v2324, %v2334
        %v2337 = vmul.f32 %v2325, %v2334
        %v2338 = vmul.f32 %v2326, %v2334
        %v2339 = vmul.f32 %v2327, %v2334
        %v2340 = vmul.f32 %v2328, %v2334
        %v2341 = vmul.f32 %v2329, %v2334
        %v2342 = vmul.f32 %v2330, %v2334
        %v2343 = vlaneseq
        %v2344 = vshrl.u32 %v2343, 7
        %v2345 = vsub.s32 0, %v2344
        %v2346 = vrot.slane %v743, %v2345
        %v2347 = vadd.f32 %v2335, %v2346
        %v2348 = vadd.f32 %v2336, %v2346
        %v2349 = vadd.f32 %v2337, %v2346
        %v2350 = vadd.f32 %v2338, %v2346
        %v2351 = vadd.f32 %v2339, %v2346
        %v2352 = vadd.f32 %v2340, %v2346
        %v2353 = vadd.f32 %v2341, %v2346
        %v2354 = vadd.f32 %v2342, %v2346
        %v2355 = vpack.c.bf16 %v2348, %v2347
        %v2356 = vpack.c.bf16 %v2350, %v2349
        %v2357 = vpack.c.bf16 %v2352, %v2351
        %v2358 = vpack.c.bf16 %v2354, %v2353
        %v2359 = vlaneseq
        %v2360 = vshrl.u32 %v2359, 7
        %v2361 = vsub.s32 0, %v2360
        %v2362 = vrot.slane %v744, %v2361
        %v2363 = vadd.f32 %v2362, 0.0
        %v2364 = vld [vmem:[%s7] sm:$0xff]
        %v2365 = vld [vmem:[%s7 + $0x8] sm:$0xff]
        %v2366 = vld [vmem:[%s7 + $0x40] sm:$0xff]
        %v2367 = vld [vmem:[%s7 + $0x48] sm:$0xff]
        %v2368 = vld [vmem:[%s7 + $0x80] sm:$0xff]
        %v2369 = vld [vmem:[%s7 + $0x88] sm:$0xff]
        %v2370 = vld [vmem:[%s7 + $0xc0] sm:$0xff]
        %v2371 = vld [vmem:[%s7 + $0xc8] sm:$0xff]
        %v2372 = vld [vmem:[%s10] sm:$0xf]
        %v2374 = vlaneseq
        %v2375 = vshrl.u32 %v2374, 7
        %v2376 = vsub.s32 0, %v2375
        %v2377 = vrot.slane %v2372, %v2376
        %v2378 = vlaneseq
        %v2379 = vshrl.u32 %v2378, 7
        %v2380 = vsub.s32 1, %v2379
        %v2381 = vrot.slane %v2372, %v2380
        %v2382 = vlaneseq
        %v2383 = vshrl.u32 %v2382, 7
        %v2384 = vsub.s32 2, %v2383
        %v2385 = vrot.slane %v2372, %v2384
        %v2386 = vlaneseq
        %v2387 = vshrl.u32 %v2386, 7
        %v2388 = vsub.s32 3, %v2387
        %v2389 = vrot.slane %v2372, %v2388
        %v2402 = vunpack.c.l.b16 %v2364
        %v2403 = vunpack.c.h.b16 %v2364
        %v2404 = vunpack.c.l.b16 %v2365
        %v2405 = vunpack.c.h.b16 %v2365
        %v2406 = vunpack.c.l.b16 %v2366
        %v2407 = vunpack.c.h.b16 %v2366
        %v2408 = vunpack.c.l.b16 %v2367
        %v2409 = vunpack.c.h.b16 %v2367
        %v2410 = vunpack.c.l.b16 %v2368
        %v2411 = vunpack.c.h.b16 %v2368
        %v2412 = vunpack.c.l.b16 %v2369
        %v2413 = vunpack.c.h.b16 %v2369
        %v2414 = vunpack.c.l.b16 %v2370
        %v2415 = vunpack.c.h.b16 %v2370
        %v2416 = vunpack.c.l.b16 %v2371
        %v2417 = vunpack.c.h.b16 %v2371
        %v2418 = vpack.c.b16 %v2406, %v2402
        %v2419 = vpack.c.b16 %v2407, %v2403
        %v2420 = vpack.c.b16 %v2408, %v2404
        %v2421 = vpack.c.b16 %v2409, %v2405
        %v2422 = vpack.c.b16 %v2414, %v2410
        %v2423 = vpack.c.b16 %v2415, %v2411
        %v2424 = vpack.c.b16 %v2416, %v2412
        %v2425 = vpack.c.b16 %v2417, %v2413
        %v2435 = vsel %vm771, %v2355, 0
        %v2438 = vsel %vm771, %v2356, 0
        %v2441 = vsel %vm771, %v2357, 0
        %v2444 = vsel %vm771, %v2358, 0
        %2446 = vmatprep.subr.bf16.mxu0 0
        %2447 = vmatpush1.bf16.msra.mxu0 0
        %2448 = vmatprep.subr.bf16.mxu0 0
        %2449 = vmatpush1.bf16.msra.mxu0 0
        %2450 = vmatprep.subr.bf16.mxu0 0
        %2451 = vmatpush1.bf16.msra.mxu0 0
        %2452 = vmatprep.subr.bf16.mxu0 0
        %2453 = vmatpush1.bf16.msra.mxu0 0
        %2454 = vmatprep.subr.bf16.mxu0 0
        %2455 = vmatpush1.bf16.msra.mxu0 0
        %2456 = vmatprep.subr.bf16.mxu0 0
        %2457 = vmatpush1.bf16.msra.mxu0 0
        %2458 = vmatprep.subr.bf16.mxu0 %v2423
        %2459 = vmatpush1.bf16.msra.mxu0 %v2422
        %2460 = vmatprep.subr.bf16.mxu0 %v2419
        %2461 = vmatpush1.bf16.msra.mxu0 %v2418
        %2462 = vmatprep.subr.bf16.mxu0 0
        %2463 = vmatpush2.bf16.msra.mxu0 0
        %2464 = vmatprep.subr.bf16.mxu0 0
        %2465 = vmatpush2.bf16.msra.mxu0 0
        %2466 = vmatprep.subr.bf16.mxu0 0
        %2467 = vmatpush2.bf16.msra.mxu0 0
        %2468 = vmatprep.subr.bf16.mxu0 0
        %2469 = vmatpush2.bf16.msra.mxu0 0
        %2470 = vmatprep.subr.bf16.mxu0 0
        %2471 = vmatpush2.bf16.msra.mxu0 0
        %2472 = vmatprep.subr.bf16.mxu0 0
        %2473 = vmatpush2.bf16.msra.mxu0 0
        %2474 = vmatprep.subr.bf16.mxu0 0
        %2475 = vmatpush2.bf16.msra.mxu0 0
        %2476 = vmatprep.subr.bf16.mxu0 0
        %2477 = vmatpush2.bf16.msra.mxu0 0
        %2478 = vmatprep.mubr.bf16.mxu0 0
        %2479 = vmatmul.mubr.bf16.gmra.mxu0 %v2435
        %v2480 = vpop.f32.mrf.mxu0
        %v2481 = vadd.f32 %v2377, %v2480
        %v2482 = vpop.f32.mrf.mxu0
        %v2483 = vadd.f32 %v2381, %v2482
        %v2484 = vpop.f32.mrf.mxu0
        %v2485 = vadd.f32 %v2377, %v2484
        %v2486 = vpop.f32.mrf.mxu0
        %v2487 = vadd.f32 %v2381, %v2486
        %2488 = vmatprep.mubr.bf16.mxu0 0
        %2489 = vmatmul.mubr.bf16.gmra.mxu0 %v2438
        %v2490 = vpop.f32.mrf.mxu0
        %v2491 = vadd.f32 %v2377, %v2490
        %v2492 = vpop.f32.mrf.mxu0
        %v2493 = vadd.f32 %v2381, %v2492
        %v2494 = vpop.f32.mrf.mxu0
        %v2495 = vadd.f32 %v2377, %v2494
        %v2496 = vpop.f32.mrf.mxu0
        %v2497 = vadd.f32 %v2381, %v2496
        %2498 = vmatprep.mubr.bf16.mxu0 0
        %2499 = vmatmul.mubr.bf16.gmra.mxu0 %v2441
        %v2500 = vpop.f32.mrf.mxu0
        %v2501 = vadd.f32 %v2377, %v2500
        %v2502 = vpop.f32.mrf.mxu0
        %v2503 = vadd.f32 %v2381, %v2502
        %v2504 = vpop.f32.mrf.mxu0
        %v2505 = vadd.f32 %v2377, %v2504
        %v2506 = vpop.f32.mrf.mxu0
        %v2507 = vadd.f32 %v2381, %v2506
        %2508 = vmatprep.mubr.bf16.mxu0 0
        %2509 = vmatmul.mubr.bf16.gmra.mxu0 %v2444
        %v2510 = vpop.f32.mrf.mxu0
        %v2511 = vadd.f32 %v2377, %v2510
        %v2512 = vpop.f32.mrf.mxu0
        %v2513 = vadd.f32 %v2381, %v2512
        %v2514 = vpop.f32.mrf.mxu0
        %v2515 = vadd.f32 %v2377, %v2514
        %v2516 = vpop.f32.mrf.mxu0
        %v2517 = vadd.f32 %v2381, %v2516
        %2518 = vdwg.mxu0
        %2519 = vmatprep.subr.bf16.mxu0 0
        %2520 = vmatpush1.bf16.msra.mxu0 0
        %2521 = vmatprep.subr.bf16.mxu0 0
        %2522 = vmatpush1.bf16.msra.mxu0 0
        %2523 = vmatprep.subr.bf16.mxu0 0
        %2524 = vmatpush1.bf16.msra.mxu0 0
        %2525 = vmatprep.subr.bf16.mxu0 0
        %2526 = vmatpush1.bf16.msra.mxu0 0
        %2527 = vmatprep.subr.bf16.mxu0 0
        %2528 = vmatpush1.bf16.msra.mxu0 0
        %2529 = vmatprep.subr.bf16.mxu0 0
        %2530 = vmatpush1.bf16.msra.mxu0 0
        %2531 = vmatprep.subr.bf16.mxu0 %v2425
        %2532 = vmatpush1.bf16.msra.mxu0 %v2424
        %2533 = vmatprep.subr.bf16.mxu0 %v2421
        %2534 = vmatpush1.bf16.msra.mxu0 %v2420
        %2535 = vmatprep.subr.bf16.mxu0 0
        %2536 = vmatpush2.bf16.msra.mxu0 0
        %2537 = vmatprep.subr.bf16.mxu0 0
        %2538 = vmatpush2.bf16.msra.mxu0 0
        %2539 = vmatprep.subr.bf16.mxu0 0
        %2540 = vmatpush2.bf16.msra.mxu0 0
        %2541 = vmatprep.subr.bf16.mxu0 0
        %2542 = vmatpush2.bf16.msra.mxu0 0
        %2543 = vmatprep.subr.bf16.mxu0 0
        %2544 = vmatpush2.bf16.msra.mxu0 0
        %2545 = vmatprep.subr.bf16.mxu0 0
        %2546 = vmatpush2.bf16.msra.mxu0 0
        %2547 = vmatprep.subr.bf16.mxu0 0
        %2548 = vmatpush2.bf16.msra.mxu0 0
        %2549 = vmatprep.subr.bf16.mxu0 0
        %2550 = vmatpush2.bf16.msra.mxu0 0
        %2551 = vmatprep.mubr.bf16.mxu0 0
        %2552 = vmatmul.mubr.bf16.gmra.mxu0 %v2435
        %v2553 = vpop.f32.mrf.mxu0
        %v2554 = vadd.f32 %v2385, %v2553
        %v2555 = vpop.f32.mrf.mxu0
        %v2556 = vadd.f32 %v2389, %v2555
        %v2557 = vpop.f32.mrf.mxu0
        %v2558 = vadd.f32 %v2385, %v2557
        %v2559 = vpop.f32.mrf.mxu0
        %v2560 = vadd.f32 %v2389, %v2559
        %2561 = vmatprep.mubr.bf16.mxu0 0
        %2562 = vmatmul.mubr.bf16.gmra.mxu0 %v2438
        %v2563 = vpop.f32.mrf.mxu0
        %v2564 = vadd.f32 %v2385, %v2563
        %v2565 = vpop.f32.mrf.mxu0
        %v2566 = vadd.f32 %v2389, %v2565
        %v2567 = vpop.f32.mrf.mxu0
        %v2568 = vadd.f32 %v2385, %v2567
        %v2569 = vpop.f32.mrf.mxu0
        %v2570 = vadd.f32 %v2389, %v2569
        %2571 = vmatprep.mubr.bf16.mxu0 0
        %2572 = vmatmul.mubr.bf16.gmra.mxu0 %v2441
        %v2573 = vpop.f32.mrf.mxu0
        %v2574 = vadd.f32 %v2385, %v2573
        %v2575 = vpop.f32.mrf.mxu0
        %v2576 = vadd.f32 %v2389, %v2575
        %v2577 = vpop.f32.mrf.mxu0
        %v2578 = vadd.f32 %v2385, %v2577
        %v2579 = vpop.f32.mrf.mxu0
        %v2580 = vadd.f32 %v2389, %v2579
        %2581 = vmatprep.mubr.bf16.mxu0 0
        %2582 = vmatmul.mubr.bf16.gmra.mxu0 %v2444
        %v2583 = vpop.f32.mrf.mxu0
        %v2584 = vadd.f32 %v2385, %v2583
        %v2585 = vpop.f32.mrf.mxu0
        %v2586 = vadd.f32 %v2389, %v2585
        %v2587 = vpop.f32.mrf.mxu0
        %v2588 = vadd.f32 %v2385, %v2587
        %v2589 = vpop.f32.mrf.mxu0
        %v2590 = vadd.f32 %v2389, %v2589
        %2591 = vdwg.mxu0
        %v2592 = vmax.f32 %v2481, 0.0
        %v2593 = vmax.f32 %v2483, 0.0
        %v2594 = vmax.f32 %v2554, 0.0
        %v2595 = vmax.f32 %v2556, 0.0
        %v2596 = vmax.f32 %v2485, 0.0
        %v2597 = vmax.f32 %v2487, 0.0
        %v2598 = vmax.f32 %v2558, 0.0
        %v2599 = vmax.f32 %v2560, 0.0
        %v2600 = vmax.f32 %v2491, 0.0
        %v2601 = vmax.f32 %v2493, 0.0
        %v2602 = vmax.f32 %v2564, 0.0
        %v2603 = vmax.f32 %v2566, 0.0
        %v2604 = vmax.f32 %v2495, 0.0
        %v2605 = vmax.f32 %v2497, 0.0
        %v2606 = vmax.f32 %v2568, 0.0
        %v2607 = vmax.f32 %v2570, 0.0
        %v2608 = vmax.f32 %v2501, 0.0
        %v2609 = vmax.f32 %v2503, 0.0
        %v2610 = vmax.f32 %v2574, 0.0
        %v2611 = vmax.f32 %v2576, 0.0
        %v2612 = vmax.f32 %v2505, 0.0
        %v2613 = vmax.f32 %v2507, 0.0
        %v2614 = vmax.f32 %v2578, 0.0
        %v2615 = vmax.f32 %v2580, 0.0
        %v2616 = vmax.f32 %v2511, 0.0
        %v2617 = vmax.f32 %v2513, 0.0
        %v2618 = vmax.f32 %v2584, 0.0
        %v2619 = vmax.f32 %v2586, 0.0
        %v2620 = vmax.f32 %v2515, 0.0
        %v2621 = vmax.f32 %v2517, 0.0
        %v2622 = vmax.f32 %v2588, 0.0
        %v2623 = vmax.f32 %v2590, 0.0
        %v2624 = vpack.c.bf16 %v2596, %v2592
        %v2625 = vpack.c.bf16 %v2597, %v2593
        %v2626 = vpack.c.bf16 %v2598, %v2594
        %v2627 = vpack.c.bf16 %v2599, %v2595
        %v2628 = vpack.c.bf16 %v2604, %v2600
        %v2629 = vpack.c.bf16 %v2605, %v2601
        %v2630 = vpack.c.bf16 %v2606, %v2602
        %v2631 = vpack.c.bf16 %v2607, %v2603
        %v2632 = vpack.c.bf16 %v2612, %v2608
        %v2633 = vpack.c.bf16 %v2613, %v2609
        %v2634 = vpack.c.bf16 %v2614, %v2610
        %v2635 = vpack.c.bf16 %v2615, %v2611
        %v2636 = vpack.c.bf16 %v2620, %v2616
        %v2637 = vpack.c.bf16 %v2621, %v2617
        %v2638 = vpack.c.bf16 %v2622, %v2618
        %v2639 = vpack.c.bf16 %v2623, %v2619
        %v2640 = vld [vmem:[%s8] sm:$0xf]
        %v2641 = vld [vmem:[%s8 + $0x4] sm:$0xf]
        %v2642 = vld [vmem:[%s8 + $0x8] sm:$0xf]
        %v2643 = vld [vmem:[%s8 + $0xc] sm:$0xf]
        %v2644 = vld [vmem:[%s8 + $0x10] sm:$0xf]
        %v2645 = vld [vmem:[%s8 + $0x14] sm:$0xf]
        %v2646 = vld [vmem:[%s8 + $0x18] sm:$0xf]
        %v2647 = vld [vmem:[%s8 + $0x1c] sm:$0xf]
        %v2648 = vld [vmem:[%s8 + $0x20] sm:$0xf]
        %v2649 = vld [vmem:[%s8 + $0x24] sm:$0xf]
        %v2650 = vld [vmem:[%s8 + $0x28] sm:$0xf]
        %v2651 = vld [vmem:[%s8 + $0x2c] sm:$0xf]
        %v2652 = vld [vmem:[%s8 + $0x30] sm:$0xf]
        %v2653 = vld [vmem:[%s8 + $0x34] sm:$0xf]
        %v2654 = vld [vmem:[%s8 + $0x38] sm:$0xf]
        %v2655 = vld [vmem:[%s8 + $0x3c] sm:$0xf]
        %v2656 = vld [vmem:[%s8 + $0x40] sm:$0xf]
        %v2657 = vld [vmem:[%s8 + $0x44] sm:$0xf]
        %v2658 = vld [vmem:[%s8 + $0x48] sm:$0xf]
        %v2659 = vld [vmem:[%s8 + $0x4c] sm:$0xf]
        %v2660 = vld [vmem:[%s8 + $0x50] sm:$0xf]
        %v2661 = vld [vmem:[%s8 + $0x54] sm:$0xf]
        %v2662 = vld [vmem:[%s8 + $0x58] sm:$0xf]
        %v2663 = vld [vmem:[%s8 + $0x5c] sm:$0xf]
        %v2664 = vld [vmem:[%s8 + $0x60] sm:$0xf]
        %v2665 = vld [vmem:[%s8 + $0x64] sm:$0xf]
        %v2666 = vld [vmem:[%s8 + $0x68] sm:$0xf]
        %v2667 = vld [vmem:[%s8 + $0x6c] sm:$0xf]
        %v2668 = vld [vmem:[%s8 + $0x70] sm:$0xf]
        %v2669 = vld [vmem:[%s8 + $0x74] sm:$0xf]
        %v2670 = vld [vmem:[%s8 + $0x78] sm:$0xf]
        %v2671 = vld [vmem:[%s8 + $0x7c] sm:$0xf]
        %v2672 = vld [vmem:[%s8 + $0x80] sm:$0xf]
        %v2673 = vld [vmem:[%s8 + $0x84] sm:$0xf]
        %v2674 = vld [vmem:[%s8 + $0x88] sm:$0xf]
        %v2675 = vld [vmem:[%s8 + $0x8c] sm:$0xf]
        %v2676 = vld [vmem:[%s8 + $0x90] sm:$0xf]
        %v2677 = vld [vmem:[%s8 + $0x94] sm:$0xf]
        %v2678 = vld [vmem:[%s8 + $0x98] sm:$0xf]
        %v2679 = vld [vmem:[%s8 + $0x9c] sm:$0xf]
        %v2680 = vld [vmem:[%s8 + $0xa0] sm:$0xf]
        %v2681 = vld [vmem:[%s8 + $0xa4] sm:$0xf]
        %v2682 = vld [vmem:[%s8 + $0xa8] sm:$0xf]
        %v2683 = vld [vmem:[%s8 + $0xac] sm:$0xf]
        %v2684 = vld [vmem:[%s8 + $0xb0] sm:$0xf]
        %v2685 = vld [vmem:[%s8 + $0xb4] sm:$0xf]
        %v2686 = vld [vmem:[%s8 + $0xb8] sm:$0xf]
        %v2687 = vld [vmem:[%s8 + $0xbc] sm:$0xf]
        %v2688 = vld [vmem:[%s8 + $0xc0] sm:$0xf]
        %v2689 = vld [vmem:[%s8 + $0xc4] sm:$0xf]
        %v2690 = vld [vmem:[%s8 + $0xc8] sm:$0xf]
        %v2691 = vld [vmem:[%s8 + $0xcc] sm:$0xf]
        %v2692 = vld [vmem:[%s8 + $0xd0] sm:$0xf]
        %v2693 = vld [vmem:[%s8 + $0xd4] sm:$0xf]
        %v2694 = vld [vmem:[%s8 + $0xd8] sm:$0xf]
        %v2695 = vld [vmem:[%s8 + $0xdc] sm:$0xf]
        %v2696 = vld [vmem:[%s8 + $0xe0] sm:$0xf]
        %v2697 = vld [vmem:[%s8 + $0xe4] sm:$0xf]
        %v2698 = vld [vmem:[%s8 + $0xe8] sm:$0xf]
        %v2699 = vld [vmem:[%s8 + $0xec] sm:$0xf]
        %v2700 = vld [vmem:[%s8 + $0xf0] sm:$0xf]
        %v2701 = vld [vmem:[%s8 + $0xf4] sm:$0xf]
        %v2702 = vld [vmem:[%s8 + $0xf8] sm:$0xf]
        %v2703 = vld [vmem:[%s8 + $0xfc] sm:$0xf]
        %v2768 = vunpack.c.l.b16 %v2640
        %v2769 = vunpack.c.l.b16 %v2641
        %v2770 = vunpack.c.l.b16 %v2642
        %v2771 = vunpack.c.l.b16 %v2643
        %v2772 = vunpack.c.l.b16 %v2644
        %v2773 = vunpack.c.l.b16 %v2645
        %v2774 = vunpack.c.l.b16 %v2646
        %v2775 = vunpack.c.l.b16 %v2647
        %v2776 = vunpack.c.l.b16 %v2648
        %v2777 = vunpack.c.l.b16 %v2649
        %v2778 = vunpack.c.l.b16 %v2650
        %v2779 = vunpack.c.l.b16 %v2651
        %v2780 = vunpack.c.l.b16 %v2652
        %v2781 = vunpack.c.l.b16 %v2653
        %v2782 = vunpack.c.l.b16 %v2654
        %v2783 = vunpack.c.l.b16 %v2655
        %v2784 = vunpack.c.l.b16 %v2656
        %v2785 = vunpack.c.l.b16 %v2657
        %v2786 = vunpack.c.l.b16 %v2658
        %v2787 = vunpack.c.l.b16 %v2659
        %v2788 = vunpack.c.l.b16 %v2660
        %v2789 = vunpack.c.l.b16 %v2661
        %v2790 = vunpack.c.l.b16 %v2662
        %v2791 = vunpack.c.l.b16 %v2663
        %v2792 = vunpack.c.l.b16 %v2664
        %v2793 = vunpack.c.l.b16 %v2665
        %v2794 = vunpack.c.l.b16 %v2666
        %v2795 = vunpack.c.l.b16 %v2667
        %v2796 = vunpack.c.l.b16 %v2668
        %v2797 = vunpack.c.l.b16 %v2669
        %v2798 = vunpack.c.l.b16 %v2670
        %v2799 = vunpack.c.l.b16 %v2671
        %v2800 = vunpack.c.l.b16 %v2672
        %v2801 = vunpack.c.l.b16 %v2673
        %v2802 = vunpack.c.l.b16 %v2674
        %v2803 = vunpack.c.l.b16 %v2675
        %v2804 = vunpack.c.l.b16 %v2676
        %v2805 = vunpack.c.l.b16 %v2677
        %v2806 = vunpack.c.l.b16 %v2678
        %v2807 = vunpack.c.l.b16 %v2679
        %v2808 = vunpack.c.l.b16 %v2680
        %v2809 = vunpack.c.l.b16 %v2681
        %v2810 = vunpack.c.l.b16 %v2682
        %v2811 = vunpack.c.l.b16 %v2683
        %v2812 = vunpack.c.l.b16 %v2684
        %v2813 = vunpack.c.l.b16 %v2685
        %v2814 = vunpack.c.l.b16 %v2686
        %v2815 = vunpack.c.l.b16 %v2687
        %v2816 = vunpack.c.l.b16 %v2688
        %v2817 = vunpack.c.l.b16 %v2689
        %v2818 = vunpack.c.l.b16 %v2690
        %v2819 = vunpack.c.l.b16 %v2691
        %v2820 = vunpack.c.l.b16 %v2692
        %v2821 = vunpack.c.l.b16 %v2693
        %v2822 = vunpack.c.l.b16 %v2694
        %v2823 = vunpack.c.l.b16 %v2695
        %v2824 = vunpack.c.l.b16 %v2696
        %v2825 = vunpack.c.l.b16 %v2697
        %v2826 = vunpack.c.l.b16 %v2698
        %v2827 = vunpack.c.l.b16 %v2699
        %v2828 = vunpack.c.l.b16 %v2700
        %v2829 = vunpack.c.l.b16 %v2701
        %v2830 = vunpack.c.l.b16 %v2702
        %v2831 = vunpack.c.l.b16 %v2703
        %v2832 = vpack.c.b16 %v2769, %v2768
        %v2833 = vpack.c.b16 %v2771, %v2770
        %v2834 = vpack.c.b16 %v2773, %v2772
        %v2835 = vpack.c.b16 %v2775, %v2774
        %v2836 = vpack.c.b16 %v2777, %v2776
        %v2837 = vpack.c.b16 %v2779, %v2778
        %v2838 = vpack.c.b16 %v2781, %v2780
        %v2839 = vpack.c.b16 %v2783, %v2782
        %v2840 = vpack.c.b16 %v2785, %v2784
        %v2841 = vpack.c.b16 %v2787, %v2786
        %v2842 = vpack.c.b16 %v2789, %v2788
        %v2843 = vpack.c.b16 %v2791, %v2790
        %v2844 = vpack.c.b16 %v2793, %v2792
        %v2845 = vpack.c.b16 %v2795, %v2794
        %v2846 = vpack.c.b16 %v2797, %v2796
        %v2847 = vpack.c.b16 %v2799, %v2798
        %v2848 = vpack.c.b16 %v2801, %v2800
        %v2849 = vpack.c.b16 %v2803, %v2802
        %v2850 = vpack.c.b16 %v2805, %v2804
        %v2851 = vpack.c.b16 %v2807, %v2806
        %v2852 = vpack.c.b16 %v2809, %v2808
        %v2853 = vpack.c.b16 %v2811, %v2810
        %v2854 = vpack.c.b16 %v2813, %v2812
        %v2855 = vpack.c.b16 %v2815, %v2814
        %v2856 = vpack.c.b16 %v2817, %v2816
        %v2857 = vpack.c.b16 %v2819, %v2818
        %v2858 = vpack.c.b16 %v2821, %v2820
        %v2859 = vpack.c.b16 %v2823, %v2822
        %v2860 = vpack.c.b16 %v2825, %v2824
        %v2861 = vpack.c.b16 %v2827, %v2826
        %v2862 = vpack.c.b16 %v2829, %v2828
        %v2863 = vpack.c.b16 %v2831, %v2830
        %2896 = vmatprep.subr.bf16.mxu0 0
        %2897 = vmatpush1.bf16.msra.mxu0 %v2839
        %2898 = vmatprep.subr.bf16.mxu0 0
        %2899 = vmatpush1.bf16.msra.mxu0 %v2838
        %2900 = vmatprep.subr.bf16.mxu0 0
        %2901 = vmatpush1.bf16.msra.mxu0 %v2837
        %2902 = vmatprep.subr.bf16.mxu0 0
        %2903 = vmatpush1.bf16.msra.mxu0 %v2836
        %2904 = vmatprep.subr.bf16.mxu0 0
        %2905 = vmatpush1.bf16.msra.mxu0 %v2835
        %2906 = vmatprep.subr.bf16.mxu0 0
        %2907 = vmatpush1.bf16.msra.mxu0 %v2834
        %2908 = vmatprep.subr.bf16.mxu0 0
        %2909 = vmatpush1.bf16.msra.mxu0 %v2833
        %2910 = vmatprep.subr.bf16.mxu0 0
        %2911 = vmatpush1.bf16.msra.mxu0 %v2832
        %2912 = vmatprep.subr.bf16.mxu0 0
        %2913 = vmatpush2.bf16.msra.mxu0 %v2847
        %2914 = vmatprep.subr.bf16.mxu0 0
        %2915 = vmatpush2.bf16.msra.mxu0 %v2846
        %2916 = vmatprep.subr.bf16.mxu0 0
        %2917 = vmatpush2.bf16.msra.mxu0 %v2845
        %2918 = vmatprep.subr.bf16.mxu0 0
        %2919 = vmatpush2.bf16.msra.mxu0 %v2844
        %2920 = vmatprep.subr.bf16.mxu0 0
        %2921 = vmatpush2.bf16.msra.mxu0 %v2843
        %2922 = vmatprep.subr.bf16.mxu0 0
        %2923 = vmatpush2.bf16.msra.mxu0 %v2842
        %2924 = vmatprep.subr.bf16.mxu0 0
        %2925 = vmatpush2.bf16.msra.mxu0 %v2841
        %2926 = vmatprep.subr.bf16.mxu0 0
        %2927 = vmatpush2.bf16.msra.mxu0 %v2840
        %2928 = vmatprep.mubr.bf16.mxu0 %v2625
        %2929 = vmatmul.mubr.bf16.gmra.mxu0 %v2624
        %v2930 = vpop.f32.mrf.mxu0
        %v2931 = vadd.f32 0.0, %v2930
        %v2932 = vpop.f32.mrf.mxu0
        %v2933 = vpop.f32.mrf.mxu0
        %v2934 = vadd.f32 0.0, %v2933
        %v2935 = vpop.f32.mrf.mxu0
        %2936 = vmatprep.mubr.bf16.mxu0 %v2629
        %2937 = vmatmul.mubr.bf16.gmra.mxu0 %v2628
        %v2938 = vpop.f32.mrf.mxu0
        %v2939 = vadd.f32 0.0, %v2938
        %v2940 = vpop.f32.mrf.mxu0
        %v2941 = vpop.f32.mrf.mxu0
        %v2942 = vadd.f32 0.0, %v2941
        %v2943 = vpop.f32.mrf.mxu0
        %2944 = vmatprep.mubr.bf16.mxu0 %v2633
        %2945 = vmatmul.mubr.bf16.gmra.mxu0 %v2632
        %v2946 = vpop.f32.mrf.mxu0
        %v2947 = vadd.f32 0.0, %v2946
        %v2948 = vpop.f32.mrf.mxu0
        %v2949 = vpop.f32.mrf.mxu0
        %v2950 = vadd.f32 0.0, %v2949
        %v2951 = vpop.f32.mrf.mxu0
        %2952 = vmatprep.mubr.bf16.mxu0 %v2637
        %2953 = vmatmul.mubr.bf16.gmra.mxu0 %v2636
        %v2954 = vpop.f32.mrf.mxu0
        %v2955 = vadd.f32 0.0, %v2954
        %v2956 = vpop.f32.mrf.mxu0
        %v2957 = vpop.f32.mrf.mxu0
        %v2958 = vadd.f32 0.0, %v2957
        %v2959 = vpop.f32.mrf.mxu0
        %2960 = vdwg.mxu0
        %2961 = vmatprep.subr.bf16.mxu0 0
        %2962 = vmatpush1.bf16.msra.mxu0 %v2855
        %2963 = vmatprep.subr.bf16.mxu0 0
        %2964 = vmatpush1.bf16.msra.mxu0 %v2854
        %2965 = vmatprep.subr.bf16.mxu0 0
        %2966 = vmatpush1.bf16.msra.mxu0 %v2853
        %2967 = vmatprep.subr.bf16.mxu0 0
        %2968 = vmatpush1.bf16.msra.mxu0 %v2852
        %2969 = vmatprep.subr.bf16.mxu0 0
        %2970 = vmatpush1.bf16.msra.mxu0 %v2851
        %2971 = vmatprep.subr.bf16.mxu0 0
        %2972 = vmatpush1.bf16.msra.mxu0 %v2850
        %2973 = vmatprep.subr.bf16.mxu0 0
        %2974 = vmatpush1.bf16.msra.mxu0 %v2849
        %2975 = vmatprep.subr.bf16.mxu0 0
        %2976 = vmatpush1.bf16.msra.mxu0 %v2848
        %2977 = vmatprep.subr.bf16.mxu0 0
        %2978 = vmatpush2.bf16.msra.mxu0 %v2863
        %2979 = vmatprep.subr.bf16.mxu0 0
        %2980 = vmatpush2.bf16.msra.mxu0 %v2862
        %2981 = vmatprep.subr.bf16.mxu0 0
        %2982 = vmatpush2.bf16.msra.mxu0 %v2861
        %2983 = vmatprep.subr.bf16.mxu0 0
        %2984 = vmatpush2.bf16.msra.mxu0 %v2860
        %2985 = vmatprep.subr.bf16.mxu0 0
        %2986 = vmatpush2.bf16.msra.mxu0 %v2859
        %2987 = vmatprep.subr.bf16.mxu0 0
        %2988 = vmatpush2.bf16.msra.mxu0 %v2858
        %2989 = vmatprep.subr.bf16.mxu0 0
        %2990 = vmatpush2.bf16.msra.mxu0 %v2857
        %2991 = vmatprep.subr.bf16.mxu0 0
        %2992 = vmatpush2.bf16.msra.mxu0 %v2856
        %2993 = vmatprep.mubr.bf16.mxu0 %v2627
        %2994 = vmatmul.mubr.bf16.gmra.mxu0 %v2626
        %v2995 = vpop.f32.mrf.mxu0
        %v2996 = vadd.f32 %v2931, %v2995
        %v2997 = vpop.f32.mrf.mxu0
        %v2998 = vpop.f32.mrf.mxu0
        %v2999 = vadd.f32 %v2934, %v2998
        %v3000 = vpop.f32.mrf.mxu0
        %3001 = vmatprep.mubr.bf16.mxu0 %v2631
        %3002 = vmatmul.mubr.bf16.gmra.mxu0 %v2630
        %v3003 = vpop.f32.mrf.mxu0
        %v3004 = vadd.f32 %v2939, %v3003
        %v3005 = vpop.f32.mrf.mxu0
        %v3006 = vpop.f32.mrf.mxu0
        %v3007 = vadd.f32 %v2942, %v3006
        %v3008 = vpop.f32.mrf.mxu0
        %3009 = vmatprep.mubr.bf16.mxu0 %v2635
        %3010 = vmatmul.mubr.bf16.gmra.mxu0 %v2634
        %v3011 = vpop.f32.mrf.mxu0
        %v3012 = vadd.f32 %v2947, %v3011
        %v3013 = vpop.f32.mrf.mxu0
        %v3014 = vpop.f32.mrf.mxu0
        %v3015 = vadd.f32 %v2950, %v3014
        %v3016 = vpop.f32.mrf.mxu0
        %3017 = vmatprep.mubr.bf16.mxu0 %v2639
        %3018 = vmatmul.mubr.bf16.gmra.mxu0 %v2638
        %v3019 = vpop.f32.mrf.mxu0
        %v3020 = vadd.f32 %v2955, %v3019
        %v3021 = vpop.f32.mrf.mxu0
        %v3022 = vpop.f32.mrf.mxu0
        %v3023 = vadd.f32 %v2958, %v3022
        %v3024 = vpop.f32.mrf.mxu0
        %3025 = vdwg.mxu0
        %v3026 = vadd.f32 %v2363, %v2996
        %v3027 = vadd.f32 %v2363, %v2999
        %v3028 = vadd.f32 %v2363, %v3004
        %v3029 = vadd.f32 %v2363, %v3007
        %v3030 = vadd.f32 %v2363, %v3012
        %v3031 = vadd.f32 %v2363, %v3015
        %v3032 = vadd.f32 %v2363, %v3020
        %v3033 = vadd.f32 %v2363, %v3023
        %v3034 = vld [vmem:[%s7 + $0x10] sm:$0xff]
        %v3035 = vld [vmem:[%s7 + $0x18] sm:$0xff]
        %v3036 = vld [vmem:[%s7 + $0x50] sm:$0xff]
        %v3037 = vld [vmem:[%s7 + $0x58] sm:$0xff]
        %v3038 = vld [vmem:[%s7 + $0x90] sm:$0xff]
        %v3039 = vld [vmem:[%s7 + $0x98] sm:$0xff]
        %v3040 = vld [vmem:[%s7 + $0xd0] sm:$0xff]
        %v3041 = vld [vmem:[%s7 + $0xd8] sm:$0xff]
        %v3042 = vld [vmem:[%s10 + $0x4] sm:$0xf]
        %v3044 = vlaneseq
        %v3045 = vshrl.u32 %v3044, 7
        %v3046 = vsub.s32 0, %v3045
        %v3047 = vrot.slane %v3042, %v3046
        %v3048 = vlaneseq
        %v3049 = vshrl.u32 %v3048, 7
        %v3050 = vsub.s32 1, %v3049
        %v3051 = vrot.slane %v3042, %v3050
        %v3052 = vlaneseq
        %v3053 = vshrl.u32 %v3052, 7
        %v3054 = vsub.s32 2, %v3053
        %v3055 = vrot.slane %v3042, %v3054
        %v3056 = vlaneseq
        %v3057 = vshrl.u32 %v3056, 7
        %v3058 = vsub.s32 3, %v3057
        %v3059 = vrot.slane %v3042, %v3058
        %v3072 = vunpack.c.l.b16 %v3034
        %v3073 = vunpack.c.h.b16 %v3034
        %v3074 = vunpack.c.l.b16 %v3035
        %v3075 = vunpack.c.h.b16 %v3035
        %v3076 = vunpack.c.l.b16 %v3036
        %v3077 = vunpack.c.h.b16 %v3036
        %v3078 = vunpack.c.l.b16 %v3037
        %v3079 = vunpack.c.h.b16 %v3037
        %v3080 = vunpack.c.l.b16 %v3038
        %v3081 = vunpack.c.h.b16 %v3038
        %v3082 = vunpack.c.l.b16 %v3039
        %v3083 = vunpack.c.h.b16 %v3039
        %v3084 = vunpack.c.l.b16 %v3040
        %v3085 = vunpack.c.h.b16 %v3040
        %v3086 = vunpack.c.l.b16 %v3041
        %v3087 = vunpack.c.h.b16 %v3041
        %v3088 = vpack.c.b16 %v3076, %v3072
        %v3089 = vpack.c.b16 %v3077, %v3073
        %v3090 = vpack.c.b16 %v3078, %v3074
        %v3091 = vpack.c.b16 %v3079, %v3075
        %v3092 = vpack.c.b16 %v3084, %v3080
        %v3093 = vpack.c.b16 %v3085, %v3081
        %v3094 = vpack.c.b16 %v3086, %v3082
        %v3095 = vpack.c.b16 %v3087, %v3083
        %3104 = vmatprep.subr.bf16.mxu0 0
        %3105 = vmatpush1.bf16.msra.mxu0 0
        %3106 = vmatprep.subr.bf16.mxu0 0
        %3107 = vmatpush1.bf16.msra.mxu0 0
        %3108 = vmatprep.subr.bf16.mxu0 0
        %3109 = vmatpush1.bf16.msra.mxu0 0
        %3110 = vmatprep.subr.bf16.mxu0 0
        %3111 = vmatpush1.bf16.msra.mxu0 0
        %3112 = vmatprep.subr.bf16.mxu0 0
        %3113 = vmatpush1.bf16.msra.mxu0 0
        %3114 = vmatprep.subr.bf16.mxu0 0
        %3115 = vmatpush1.bf16.msra.mxu0 0
        %3116 = vmatprep.subr.bf16.mxu0 %v3093
        %3117 = vmatpush1.bf16.msra.mxu0 %v3092
        %3118 = vmatprep.subr.bf16.mxu0 %v3089
        %3119 = vmatpush1.bf16.msra.mxu0 %v3088
        %3120 = vmatprep.subr.bf16.mxu0 0
        %3121 = vmatpush2.bf16.msra.mxu0 0
        %3122 = vmatprep.subr.bf16.mxu0 0
        %3123 = vmatpush2.bf16.msra.mxu0 0
        %3124 = vmatprep.subr.bf16.mxu0 0
        %3125 = vmatpush2.bf16.msra.mxu0 0
        %3126 = vmatprep.subr.bf16.mxu0 0
        %3127 = vmatpush2.bf16.msra.mxu0 0
        %3128 = vmatprep.subr.bf16.mxu0 0
        %3129 = vmatpush2.bf16.msra.mxu0 0
        %3130 = vmatprep.subr.bf16.mxu0 0
        %3131 = vmatpush2.bf16.msra.mxu0 0
        %3132 = vmatprep.subr.bf16.mxu0 0
        %3133 = vmatpush2.bf16.msra.mxu0 0
        %3134 = vmatprep.subr.bf16.mxu0 0
        %3135 = vmatpush2.bf16.msra.mxu0 0
        %3136 = vmatprep.mubr.bf16.mxu0 0
        %3137 = vmatmul.mubr.bf16.gmra.mxu0 %v2435
        %v3138 = vpop.f32.mrf.mxu0
        %v3139 = vadd.f32 %v3047, %v3138
        %v3140 = vpop.f32.mrf.mxu0
        %v3141 = vadd.f32 %v3051, %v3140
        %v3142 = vpop.f32.mrf.mxu0
        %v3143 = vadd.f32 %v3047, %v3142
        %v3144 = vpop.f32.mrf.mxu0
        %v3145 = vadd.f32 %v3051, %v3144
        %3146 = vmatprep.mubr.bf16.mxu0 0
        %3147 = vmatmul.mubr.bf16.gmra.mxu0 %v2438
        %v3148 = vpop.f32.mrf.mxu0
        %v3149 = vadd.f32 %v3047, %v3148
        %v3150 = vpop.f32.mrf.mxu0
        %v3151 = vadd.f32 %v3051, %v3150
        %v3152 = vpop.f32.mrf.mxu0
        %v3153 = vadd.f32 %v3047, %v3152
        %v3154 = vpop.f32.mrf.mxu0
        %v3155 = vadd.f32 %v3051, %v3154
        %3156 = vmatprep.mubr.bf16.mxu0 0
        %3157 = vmatmul.mubr.bf16.gmra.mxu0 %v2441
        %v3158 = vpop.f32.mrf.mxu0
        %v3159 = vadd.f32 %v3047, %v3158
        %v3160 = vpop.f32.mrf.mxu0
        %v3161 = vadd.f32 %v3051, %v3160
        %v3162 = vpop.f32.mrf.mxu0
        %v3163 = vadd.f32 %v3047, %v3162
        %v3164 = vpop.f32.mrf.mxu0
        %v3165 = vadd.f32 %v3051, %v3164
        %3166 = vmatprep.mubr.bf16.mxu0 0
        %3167 = vmatmul.mubr.bf16.gmra.mxu0 %v2444
        %v3168 = vpop.f32.mrf.mxu0
        %v3169 = vadd.f32 %v3047, %v3168
        %v3170 = vpop.f32.mrf.mxu0
        %v3171 = vadd.f32 %v3051, %v3170
        %v3172 = vpop.f32.mrf.mxu0
        %v3173 = vadd.f32 %v3047, %v3172
        %v3174 = vpop.f32.mrf.mxu0
        %v3175 = vadd.f32 %v3051, %v3174
        %3176 = vdwg.mxu0
        %3177 = vmatprep.subr.bf16.mxu0 0
        %3178 = vmatpush1.bf16.msra.mxu0 0
        %3179 = vmatprep.subr.bf16.mxu0 0
        %3180 = vmatpush1.bf16.msra.mxu0 0
        %3181 = vmatprep.subr.bf16.mxu0 0
        %3182 = vmatpush1.bf16.msra.mxu0 0
        %3183 = vmatprep.subr.bf16.mxu0 0
        %3184 = vmatpush1.bf16.msra.mxu0 0
        %3185 = vmatprep.subr.bf16.mxu0 0
        %3186 = vmatpush1.bf16.msra.mxu0 0
        %3187 = vmatprep.subr.bf16.mxu0 0
        %3188 = vmatpush1.bf16.msra.mxu0 0
        %3189 = vmatprep.subr.bf16.mxu0 %v3095
        %3190 = vmatpush1.bf16.msra.mxu0 %v3094
        %3191 = vmatprep.subr.bf16.mxu0 %v3091
        %3192 = vmatpush1.bf16.msra.mxu0 %v3090
        %3193 = vmatprep.subr.bf16.mxu0 0
        %3194 = vmatpush2.bf16.msra.mxu0 0
        %3195 = vmatprep.subr.bf16.mxu0 0
        %3196 = vmatpush2.bf16.msra.mxu0 0
        %3197 = vmatprep.subr.bf16.mxu0 0
        %3198 = vmatpush2.bf16.msra.mxu0 0
        %3199 = vmatprep.subr.bf16.mxu0 0
        %3200 = vmatpush2.bf16.msra.mxu0 0
        %3201 = vmatprep.subr.bf16.mxu0 0
        %3202 = vmatpush2.bf16.msra.mxu0 0
        %3203 = vmatprep.subr.bf16.mxu0 0
        %3204 = vmatpush2.bf16.msra.mxu0 0
        %3205 = vmatprep.subr.bf16.mxu0 0
        %3206 = vmatpush2.bf16.msra.mxu0 0
        %3207 = vmatprep.subr.bf16.mxu0 0
        %3208 = vmatpush2.bf16.msra.mxu0 0
        %3209 = vmatprep.mubr.bf16.mxu0 0
        %3210 = vmatmul.mubr.bf16.gmra.mxu0 %v2435
        %v3211 = vpop.f32.mrf.mxu0
        %v3212 = vadd.f32 %v3055, %v3211
        %v3213 = vpop.f32.mrf.mxu0
        %v3214 = vadd.f32 %v3059, %v3213
        %v3215 = vpop.f32.mrf.mxu0
        %v3216 = vadd.f32 %v3055, %v3215
        %v3217 = vpop.f32.mrf.mxu0
        %v3218 = vadd.f32 %v3059, %v3217
        %3219 = vmatprep.mubr.bf16.mxu0 0
        %3220 = vmatmul.mubr.bf16.gmra.mxu0 %v2438
        %v3221 = vpop.f32.mrf.mxu0
        %v3222 = vadd.f32 %v3055, %v3221
        %v3223 = vpop.f32.mrf.mxu0
        %v3224 = vadd.f32 %v3059, %v3223
        %v3225 = vpop.f32.mrf.mxu0
        %v3226 = vadd.f32 %v3055, %v3225
        %v3227 = vpop.f32.mrf.mxu0
        %v3228 = vadd.f32 %v3059, %v3227
        %3229 = vmatprep.mubr.bf16.mxu0 0
        %3230 = vmatmul.mubr.bf16.gmra.mxu0 %v2441
        %v3231 = vpop.f32.mrf.mxu0
        %v3232 = vadd.f32 %v3055, %v3231
        %v3233 = vpop.f32.mrf.mxu0
        %v3234 = vadd.f32 %v3059, %v3233
        %v3235 = vpop.f32.mrf.mxu0
        %v3236 = vadd.f32 %v3055, %v3235
        %v3237 = vpop.f32.mrf.mxu0
        %v3238 = vadd.f32 %v3059, %v3237
        %3239 = vmatprep.mubr.bf16.mxu0 0
        %3240 = vmatmul.mubr.bf16.gmra.mxu0 %v2444
        %v3241 = vpop.f32.mrf.mxu0
        %v3242 = vadd.f32 %v3055, %v3241
        %v3243 = vpop.f32.mrf.mxu0
        %v3244 = vadd.f32 %v3059, %v3243
        %v3245 = vpop.f32.mrf.mxu0
        %v3246 = vadd.f32 %v3055, %v3245
        %v3247 = vpop.f32.mrf.mxu0
        %v3248 = vadd.f32 %v3059, %v3247
        %3249 = vdwg.mxu0
        %v3250 = vmax.f32 %v3139, 0.0
        %v3251 = vmax.f32 %v3141, 0.0
        %v3252 = vmax.f32 %v3212, 0.0
        %v3253 = vmax.f32 %v3214, 0.0
        %v3254 = vmax.f32 %v3143, 0.0
        %v3255 = vmax.f32 %v3145, 0.0
        %v3256 = vmax.f32 %v3216, 0.0
        %v3257 = vmax.f32 %v3218, 0.0
        %v3258 = vmax.f32 %v3149, 0.0
        %v3259 = vmax.f32 %v3151, 0.0
        %v3260 = vmax.f32 %v3222, 0.0
        %v3261 = vmax.f32 %v3224, 0.0
        %v3262 = vmax.f32 %v3153, 0.0
        %v3263 = vmax.f32 %v3155, 0.0
        %v3264 = vmax.f32 %v3226, 0.0
        %v3265 = vmax.f32 %v3228, 0.0
        %v3266 = vmax.f32 %v3159, 0.0
        %v3267 = vmax.f32 %v3161, 0.0
        %v3268 = vmax.f32 %v3232, 0.0
        %v3269 = vmax.f32 %v3234, 0.0
        %v3270 = vmax.f32 %v3163, 0.0
        %v3271 = vmax.f32 %v3165, 0.0
        %v3272 = vmax.f32 %v3236, 0.0
        %v3273 = vmax.f32 %v3238, 0.0
        %v3274 = vmax.f32 %v3169, 0.0
        %v3275 = vmax.f32 %v3171, 0.0
        %v3276 = vmax.f32 %v3242, 0.0
        %v3277 = vmax.f32 %v3244, 0.0
        %v3278 = vmax.f32 %v3173, 0.0
        %v3279 = vmax.f32 %v3175, 0.0
        %v3280 = vmax.f32 %v3246, 0.0
        %v3281 = vmax.f32 %v3248, 0.0
        %v3282 = vpack.c.bf16 %v3254, %v3250
        %v3283 = vpack.c.bf16 %v3255, %v3251
        %v3284 = vpack.c.bf16 %v3256, %v3252
        %v3285 = vpack.c.bf16 %v3257, %v3253
        %v3286 = vpack.c.bf16 %v3262, %v3258
        %v3287 = vpack.c.bf16 %v3263, %v3259
        %v3288 = vpack.c.bf16 %v3264, %v3260
        %v3289 = vpack.c.bf16 %v3265, %v3261
        %v3290 = vpack.c.bf16 %v3270, %v3266
        %v3291 = vpack.c.bf16 %v3271, %v3267
        %v3292 = vpack.c.bf16 %v3272, %v3268
        %v3293 = vpack.c.bf16 %v3273, %v3269
        %v3294 = vpack.c.bf16 %v3278, %v3274
        %v3295 = vpack.c.bf16 %v3279, %v3275
        %v3296 = vpack.c.bf16 %v3280, %v3276
        %v3297 = vpack.c.bf16 %v3281, %v3277
        %v3298 = vld [vmem:[%s8 + $0x100] sm:$0xf]
        %v3299 = vld [vmem:[%s8 + $0x104] sm:$0xf]
        %v3300 = vld [vmem:[%s8 + $0x108] sm:$0xf]
        %v3301 = vld [vmem:[%s8 + $0x10c] sm:$0xf]
        %v3302 = vld [vmem:[%s8 + $0x110] sm:$0xf]
        %v3303 = vld [vmem:[%s8 + $0x114] sm:$0xf]
        %v3304 = vld [vmem:[%s8 + $0x118] sm:$0xf]
        %v3305 = vld [vmem:[%s8 + $0x11c] sm:$0xf]
        %v3306 = vld [vmem:[%s8 + $0x120] sm:$0xf]
        %v3307 = vld [vmem:[%s8 + $0x124] sm:$0xf]
        %v3308 = vld [vmem:[%s8 + $0x128] sm:$0xf]
        %v3309 = vld [vmem:[%s8 + $0x12c] sm:$0xf]
        %v3310 = vld [vmem:[%s8 + $0x130] sm:$0xf]
        %v3311 = vld [vmem:[%s8 + $0x134] sm:$0xf]
        %v3312 = vld [vmem:[%s8 + $0x138] sm:$0xf]
        %v3313 = vld [vmem:[%s8 + $0x13c] sm:$0xf]
        %v3314 = vld [vmem:[%s8 + $0x140] sm:$0xf]
        %v3315 = vld [vmem:[%s8 + $0x144] sm:$0xf]
        %v3316 = vld [vmem:[%s8 + $0x148] sm:$0xf]
        %v3317 = vld [vmem:[%s8 + $0x14c] sm:$0xf]
        %v3318 = vld [vmem:[%s8 + $0x150] sm:$0xf]
        %v3319 = vld [vmem:[%s8 + $0x154] sm:$0xf]
        %v3320 = vld [vmem:[%s8 + $0x158] sm:$0xf]
        %v3321 = vld [vmem:[%s8 + $0x15c] sm:$0xf]
        %v3322 = vld [vmem:[%s8 + $0x160] sm:$0xf]
        %v3323 = vld [vmem:[%s8 + $0x164] sm:$0xf]
        %v3324 = vld [vmem:[%s8 + $0x168] sm:$0xf]
        %v3325 = vld [vmem:[%s8 + $0x16c] sm:$0xf]
        %v3326 = vld [vmem:[%s8 + $0x170] sm:$0xf]
        %v3327 = vld [vmem:[%s8 + $0x174] sm:$0xf]
        %v3328 = vld [vmem:[%s8 + $0x178] sm:$0xf]
        %v3329 = vld [vmem:[%s8 + $0x17c] sm:$0xf]
        %v3330 = vld [vmem:[%s8 + $0x180] sm:$0xf]
        %v3331 = vld [vmem:[%s8 + $0x184] sm:$0xf]
        %v3332 = vld [vmem:[%s8 + $0x188] sm:$0xf]
        %v3333 = vld [vmem:[%s8 + $0x18c] sm:$0xf]
        %v3334 = vld [vmem:[%s8 + $0x190] sm:$0xf]
        %v3335 = vld [vmem:[%s8 + $0x194] sm:$0xf]
        %v3336 = vld [vmem:[%s8 + $0x198] sm:$0xf]
        %v3337 = vld [vmem:[%s8 + $0x19c] sm:$0xf]
        %v3338 = vld [vmem:[%s8 + $0x1a0] sm:$0xf]
        %v3339 = vld [vmem:[%s8 + $0x1a4] sm:$0xf]
        %v3340 = vld [vmem:[%s8 + $0x1a8] sm:$0xf]
        %v3341 = vld [vmem:[%s8 + $0x1ac] sm:$0xf]
        %v3342 = vld [vmem:[%s8 + $0x1b0] sm:$0xf]
        %v3343 = vld [vmem:[%s8 + $0x1b4] sm:$0xf]
        %v3344 = vld [vmem:[%s8 + $0x1b8] sm:$0xf]
        %v3345 = vld [vmem:[%s8 + $0x1bc] sm:$0xf]
        %v3346 = vld [vmem:[%s8 + $0x1c0] sm:$0xf]
        %v3347 = vld [vmem:[%s8 + $0x1c4] sm:$0xf]
        %v3348 = vld [vmem:[%s8 + $0x1c8] sm:$0xf]
        %v3349 = vld [vmem:[%s8 + $0x1cc] sm:$0xf]
        %v3350 = vld [vmem:[%s8 + $0x1d0] sm:$0xf]
        %v3351 = vld [vmem:[%s8 + $0x1d4] sm:$0xf]
        %v3352 = vld [vmem:[%s8 + $0x1d8] sm:$0xf]
        %v3353 = vld [vmem:[%s8 + $0x1dc] sm:$0xf]
        %v3354 = vld [vmem:[%s8 + $0x1e0] sm:$0xf]
        %v3355 = vld [vmem:[%s8 + $0x1e4] sm:$0xf]
        %v3356 = vld [vmem:[%s8 + $0x1e8] sm:$0xf]
        %v3357 = vld [vmem:[%s8 + $0x1ec] sm:$0xf]
        %v3358 = vld [vmem:[%s8 + $0x1f0] sm:$0xf]
        %v3359 = vld [vmem:[%s8 + $0x1f4] sm:$0xf]
        %v3360 = vld [vmem:[%s8 + $0x1f8] sm:$0xf]
        %v3361 = vld [vmem:[%s8 + $0x1fc] sm:$0xf]
        %v3426 = vunpack.c.l.b16 %v3298
        %v3427 = vunpack.c.l.b16 %v3299
        %v3428 = vunpack.c.l.b16 %v3300
        %v3429 = vunpack.c.l.b16 %v3301
        %v3430 = vunpack.c.l.b16 %v3302
        %v3431 = vunpack.c.l.b16 %v3303
        %v3432 = vunpack.c.l.b16 %v3304
        %v3433 = vunpack.c.l.b16 %v3305
        %v3434 = vunpack.c.l.b16 %v3306
        %v3435 = vunpack.c.l.b16 %v3307
        %v3436 = vunpack.c.l.b16 %v3308
        %v3437 = vunpack.c.l.b16 %v3309
        %v3438 = vunpack.c.l.b16 %v3310
        %v3439 = vunpack.c.l.b16 %v3311
        %v3440 = vunpack.c.l.b16 %v3312
        %v3441 = vunpack.c.l.b16 %v3313
        %v3442 = vunpack.c.l.b16 %v3314
        %v3443 = vunpack.c.l.b16 %v3315
        %v3444 = vunpack.c.l.b16 %v3316
        %v3445 = vunpack.c.l.b16 %v3317
        %v3446 = vunpack.c.l.b16 %v3318
        %v3447 = vunpack.c.l.b16 %v3319
        %v3448 = vunpack.c.l.b16 %v3320
        %v3449 = vunpack.c.l.b16 %v3321
        %v3450 = vunpack.c.l.b16 %v3322
        %v3451 = vunpack.c.l.b16 %v3323
        %v3452 = vunpack.c.l.b16 %v3324
        %v3453 = vunpack.c.l.b16 %v3325
        %v3454 = vunpack.c.l.b16 %v3326
        %v3455 = vunpack.c.l.b16 %v3327
        %v3456 = vunpack.c.l.b16 %v3328
        %v3457 = vunpack.c.l.b16 %v3329
        %v3458 = vunpack.c.l.b16 %v3330
        %v3459 = vunpack.c.l.b16 %v3331
        %v3460 = vunpack.c.l.b16 %v3332
        %v3461 = vunpack.c.l.b16 %v3333
        %v3462 = vunpack.c.l.b16 %v3334
        %v3463 = vunpack.c.l.b16 %v3335
        %v3464 = vunpack.c.l.b16 %v3336
        %v3465 = vunpack.c.l.b16 %v3337
        %v3466 = vunpack.c.l.b16 %v3338
        %v3467 = vunpack.c.l.b16 %v3339
        %v3468 = vunpack.c.l.b16 %v3340
        %v3469 = vunpack.c.l.b16 %v3341
        %v3470 = vunpack.c.l.b16 %v3342
        %v3471 = vunpack.c.l.b16 %v3343
        %v3472 = vunpack.c.l.b16 %v3344
        %v3473 = vunpack.c.l.b16 %v3345
        %v3474 = vunpack.c.l.b16 %v3346
        %v3475 = vunpack.c.l.b16 %v3347
        %v3476 = vunpack.c.l.b16 %v3348
        %v3477 = vunpack.c.l.b16 %v3349
        %v3478 = vunpack.c.l.b16 %v3350
        %v3479 = vunpack.c.l.b16 %v3351
        %v3480 = vunpack.c.l.b16 %v3352
        %v3481 = vunpack.c.l.b16 %v3353
        %v3482 = vunpack.c.l.b16 %v3354
        %v3483 = vunpack.c.l.b16 %v3355
        %v3484 = vunpack.c.l.b16 %v3356
        %v3485 = vunpack.c.l.b16 %v3357
        %v3486 = vunpack.c.l.b16 %v3358
        %v3487 = vunpack.c.l.b16 %v3359
        %v3488 = vunpack.c.l.b16 %v3360
        %v3489 = vunpack.c.l.b16 %v3361
        %v3490 = vpack.c.b16 %v3427, %v3426
        %v3491 = vpack.c.b16 %v3429, %v3428
        %v3492 = vpack.c.b16 %v3431, %v3430
        %v3493 = vpack.c.b16 %v3433, %v3432
        %v3494 = vpack.c.b16 %v3435, %v3434
        %v3495 = vpack.c.b16 %v3437, %v3436
        %v3496 = vpack.c.b16 %v3439, %v3438
        %v3497 = vpack.c.b16 %v3441, %v3440
        %v3498 = vpack.c.b16 %v3443, %v3442
        %v3499 = vpack.c.b16 %v3445, %v3444
        %v3500 = vpack.c.b16 %v3447, %v3446
        %v3501 = vpack.c.b16 %v3449, %v3448
        %v3502 = vpack.c.b16 %v3451, %v3450
        %v3503 = vpack.c.b16 %v3453, %v3452
        %v3504 = vpack.c.b16 %v3455, %v3454
        %v3505 = vpack.c.b16 %v3457, %v3456
        %v3506 = vpack.c.b16 %v3459, %v3458
        %v3507 = vpack.c.b16 %v3461, %v3460
        %v3508 = vpack.c.b16 %v3463, %v3462
        %v3509 = vpack.c.b16 %v3465, %v3464
        %v3510 = vpack.c.b16 %v3467, %v3466
        %v3511 = vpack.c.b16 %v3469, %v3468
        %v3512 = vpack.c.b16 %v3471, %v3470
        %v3513 = vpack.c.b16 %v3473, %v3472
        %v3514 = vpack.c.b16 %v3475, %v3474
        %v3515 = vpack.c.b16 %v3477, %v3476
        %v3516 = vpack.c.b16 %v3479, %v3478
        %v3517 = vpack.c.b16 %v3481, %v3480
        %v3518 = vpack.c.b16 %v3483, %v3482
        %v3519 = vpack.c.b16 %v3485, %v3484
        %v3520 = vpack.c.b16 %v3487, %v3486
        %v3521 = vpack.c.b16 %v3489, %v3488
        %3554 = vmatprep.subr.bf16.mxu0 0
        %3555 = vmatpush1.bf16.msra.mxu0 %v3497
        %3556 = vmatprep.subr.bf16.mxu0 0
        %3557 = vmatpush1.bf16.msra.mxu0 %v3496
        %3558 = vmatprep.subr.bf16.mxu0 0
        %3559 = vmatpush1.bf16.msra.mxu0 %v3495
        %3560 = vmatprep.subr.bf16.mxu0 0
        %3561 = vmatpush1.bf16.msra.mxu0 %v3494
        %3562 = vmatprep.subr.bf16.mxu0 0
        %3563 = vmatpush1.bf16.msra.mxu0 %v3493
        %3564 = vmatprep.subr.bf16.mxu0 0
        %3565 = vmatpush1.bf16.msra.mxu0 %v3492
        %3566 = vmatprep.subr.bf16.mxu0 0
        %3567 = vmatpush1.bf16.msra.mxu0 %v3491
        %3568 = vmatprep.subr.bf16.mxu0 0
        %3569 = vmatpush1.bf16.msra.mxu0 %v3490
        %3570 = vmatprep.subr.bf16.mxu0 0
        %3571 = vmatpush2.bf16.msra.mxu0 %v3505
        %3572 = vmatprep.subr.bf16.mxu0 0
        %3573 = vmatpush2.bf16.msra.mxu0 %v3504
        %3574 = vmatprep.subr.bf16.mxu0 0
        %3575 = vmatpush2.bf16.msra.mxu0 %v3503
        %3576 = vmatprep.subr.bf16.mxu0 0
        %3577 = vmatpush2.bf16.msra.mxu0 %v3502
        %3578 = vmatprep.subr.bf16.mxu0 0
        %3579 = vmatpush2.bf16.msra.mxu0 %v3501
        %3580 = vmatprep.subr.bf16.mxu0 0
        %3581 = vmatpush2.bf16.msra.mxu0 %v3500
        %3582 = vmatprep.subr.bf16.mxu0 0
        %3583 = vmatpush2.bf16.msra.mxu0 %v3499
        %3584 = vmatprep.subr.bf16.mxu0 0
        %3585 = vmatpush2.bf16.msra.mxu0 %v3498
        %3586 = vmatprep.mubr.bf16.mxu0 %v3283
        %3587 = vmatmul.mubr.bf16.gmra.mxu0 %v3282
        %v3588 = vpop.f32.mrf.mxu0
        %v3589 = vadd.f32 0.0, %v3588
        %v3590 = vpop.f32.mrf.mxu0
        %v3591 = vpop.f32.mrf.mxu0
        %v3592 = vadd.f32 0.0, %v3591
        %v3593 = vpop.f32.mrf.mxu0
        %3594 = vmatprep.mubr.bf16.mxu0 %v3287
        %3595 = vmatmul.mubr.bf16.gmra.mxu0 %v3286
        %v3596 = vpop.f32.mrf.mxu0
        %v3597 = vadd.f32 0.0, %v3596
        %v3598 = vpop.f32.mrf.mxu0
        %v3599 = vpop.f32.mrf.mxu0
        %v3600 = vadd.f32 0.0, %v3599
        %v3601 = vpop.f32.mrf.mxu0
        %3602 = vmatprep.mubr.bf16.mxu0 %v3291
        %3603 = vmatmul.mubr.bf16.gmra.mxu0 %v3290
        %v3604 = vpop.f32.mrf.mxu0
        %v3605 = vadd.f32 0.0, %v3604
        %v3606 = vpop.f32.mrf.mxu0
        %v3607 = vpop.f32.mrf.mxu0
        %v3608 = vadd.f32 0.0, %v3607
        %v3609 = vpop.f32.mrf.mxu0
        %3610 = vmatprep.mubr.bf16.mxu0 %v3295
        %3611 = vmatmul.mubr.bf16.gmra.mxu0 %v3294
        %v3612 = vpop.f32.mrf.mxu0
        %v3613 = vadd.f32 0.0, %v3612
        %v3614 = vpop.f32.mrf.mxu0
        %v3615 = vpop.f32.mrf.mxu0
        %v3616 = vadd.f32 0.0, %v3615
        %v3617 = vpop.f32.mrf.mxu0
        %3618 = vdwg.mxu0
        %3619 = vmatprep.subr.bf16.mxu0 0
        %3620 = vmatpush1.bf16.msra.mxu0 %v3513
        %3621 = vmatprep.subr.bf16.mxu0 0
        %3622 = vmatpush1.bf16.msra.mxu0 %v3512
        %3623 = vmatprep.subr.bf16.mxu0 0
        %3624 = vmatpush1.bf16.msra.mxu0 %v3511
        %3625 = vmatprep.subr.bf16.mxu0 0
        %3626 = vmatpush1.bf16.msra.mxu0 %v3510
        %3627 = vmatprep.subr.bf16.mxu0 0
        %3628 = vmatpush1.bf16.msra.mxu0 %v3509
        %3629 = vmatprep.subr.bf16.mxu0 0
        %3630 = vmatpush1.bf16.msra.mxu0 %v3508
        %3631 = vmatprep.subr.bf16.mxu0 0
        %3632 = vmatpush1.bf16.msra.mxu0 %v3507
        %3633 = vmatprep.subr.bf16.mxu0 0
        %3634 = vmatpush1.bf16.msra.mxu0 %v3506
        %3635 = vmatprep.subr.bf16.mxu0 0
        %3636 = vmatpush2.bf16.msra.mxu0 %v3521
        %3637 = vmatprep.subr.bf16.mxu0 0
        %3638 = vmatpush2.bf16.msra.mxu0 %v3520
        %3639 = vmatprep.subr.bf16.mxu0 0
        %3640 = vmatpush2.bf16.msra.mxu0 %v3519
        %3641 = vmatprep.subr.bf16.mxu0 0
        %3642 = vmatpush2.bf16.msra.mxu0 %v3518
        %3643 = vmatprep.subr.bf16.mxu0 0
        %3644 = vmatpush2.bf16.msra.mxu0 %v3517
        %3645 = vmatprep.subr.bf16.mxu0 0
        %3646 = vmatpush2.bf16.msra.mxu0 %v3516
        %3647 = vmatprep.subr.bf16.mxu0 0
        %3648 = vmatpush2.bf16.msra.mxu0 %v3515
        %3649 = vmatprep.subr.bf16.mxu0 0
        %3650 = vmatpush2.bf16.msra.mxu0 %v3514
        %3651 = vmatprep.mubr.bf16.mxu0 %v3285
        %3652 = vmatmul.mubr.bf16.gmra.mxu0 %v3284
        %v3653 = vpop.f32.mrf.mxu0
        %v3654 = vadd.f32 %v3589, %v3653
        %v3655 = vpop.f32.mrf.mxu0
        %v3656 = vpop.f32.mrf.mxu0
        %v3657 = vadd.f32 %v3592, %v3656
        %v3658 = vpop.f32.mrf.mxu0
        %3659 = vmatprep.mubr.bf16.mxu0 %v3289
        %3660 = vmatmul.mubr.bf16.gmra.mxu0 %v3288
        %v3661 = vpop.f32.mrf.mxu0
        %v3662 = vadd.f32 %v3597, %v3661
        %v3663 = vpop.f32.mrf.mxu0
        %v3664 = vpop.f32.mrf.mxu0
        %v3665 = vadd.f32 %v3600, %v3664
        %v3666 = vpop.f32.mrf.mxu0
        %3667 = vmatprep.mubr.bf16.mxu0 %v3293
        %3668 = vmatmul.mubr.bf16.gmra.mxu0 %v3292
        %v3669 = vpop.f32.mrf.mxu0
        %v3670 = vadd.f32 %v3605, %v3669
        %v3671 = vpop.f32.mrf.mxu0
        %v3672 = vpop.f32.mrf.mxu0
        %v3673 = vadd.f32 %v3608, %v3672
        %v3674 = vpop.f32.mrf.mxu0
        %3675 = vmatprep.mubr.bf16.mxu0 %v3297
        %3676 = vmatmul.mubr.bf16.gmra.mxu0 %v3296
        %v3677 = vpop.f32.mrf.mxu0
        %v3678 = vadd.f32 %v3613, %v3677
        %v3679 = vpop.f32.mrf.mxu0
        %v3680 = vpop.f32.mrf.mxu0
        %v3681 = vadd.f32 %v3616, %v3680
        %v3682 = vpop.f32.mrf.mxu0
        %3683 = vdwg.mxu0
        %v3684 = vadd.f32 %v3026, %v3654
        %v3685 = vadd.f32 %v3027, %v3657
        %v3686 = vadd.f32 %v3028, %v3662
        %v3687 = vadd.f32 %v3029, %v3665
        %v3688 = vadd.f32 %v3030, %v3670
        %v3689 = vadd.f32 %v3031, %v3673
        %v3690 = vadd.f32 %v3032, %v3678
        %v3691 = vadd.f32 %v3033, %v3681
        %v3692 = vld [vmem:[%s7 + $0x20] sm:$0xff]
        %v3693 = vld [vmem:[%s7 + $0x28] sm:$0xff]
        %v3694 = vld [vmem:[%s7 + $0x60] sm:$0xff]
        %v3695 = vld [vmem:[%s7 + $0x68] sm:$0xff]
        %v3696 = vld [vmem:[%s7 + $0xa0] sm:$0xff]
        %v3697 = vld [vmem:[%s7 + $0xa8] sm:$0xff]
        %v3698 = vld [vmem:[%s7 + $0xe0] sm:$0xff]
        %v3699 = vld [vmem:[%s7 + $0xe8] sm:$0xff]
        %v3700 = vld [vmem:[%s10 + $0x8] sm:$0xf]
        %v3702 = vlaneseq
        %v3703 = vshrl.u32 %v3702, 7
        %v3704 = vsub.s32 0, %v3703
        %v3705 = vrot.slane %v3700, %v3704
        %v3706 = vlaneseq
        %v3707 = vshrl.u32 %v3706, 7
        %v3708 = vsub.s32 1, %v3707
        %v3709 = vrot.slane %v3700, %v3708
        %v3710 = vlaneseq
        %v3711 = vshrl.u32 %v3710, 7
        %v3712 = vsub.s32 2, %v3711
        %v3713 = vrot.slane %v3700, %v3712
        %v3714 = vlaneseq
        %v3715 = vshrl.u32 %v3714, 7
        %v3716 = vsub.s32 3, %v3715
        %v3717 = vrot.slane %v3700, %v3716
        %v3730 = vunpack.c.l.b16 %v3692
        %v3731 = vunpack.c.h.b16 %v3692
        %v3732 = vunpack.c.l.b16 %v3693
        %v3733 = vunpack.c.h.b16 %v3693
        %v3734 = vunpack.c.l.b16 %v3694
        %v3735 = vunpack.c.h.b16 %v3694
        %v3736 = vunpack.c.l.b16 %v3695
        %v3737 = vunpack.c.h.b16 %v3695
        %v3738 = vunpack.c.l.b16 %v3696
        %v3739 = vunpack.c.h.b16 %v3696
        %v3740 = vunpack.c.l.b16 %v3697
        %v3741 = vunpack.c.h.b16 %v3697
        %v3742 = vunpack.c.l.b16 %v3698
        %v3743 = vunpack.c.h.b16 %v3698
        %v3744 = vunpack.c.l.b16 %v3699
        %v3745 = vunpack.c.h.b16 %v3699
        %v3746 = vpack.c.b16 %v3734, %v3730
        %v3747 = vpack.c.b16 %v3735, %v3731
        %v3748 = vpack.c.b16 %v3736, %v3732
        %v3749 = vpack.c.b16 %v3737, %v3733
        %v3750 = vpack.c.b16 %v3742, %v3738
        %v3751 = vpack.c.b16 %v3743, %v3739
        %v3752 = vpack.c.b16 %v3744, %v3740
        %v3753 = vpack.c.b16 %v3745, %v3741
        %3762 = vmatprep.subr.bf16.mxu0 0
        %3763 = vmatpush1.bf16.msra.mxu0 0
        %3764 = vmatprep.subr.bf16.mxu0 0
        %3765 = vmatpush1.bf16.msra.mxu0 0
        %3766 = vmatprep.subr.bf16.mxu0 0
        %3767 = vmatpush1.bf16.msra.mxu0 0
        %3768 = vmatprep.subr.bf16.mxu0 0
        %3769 = vmatpush1.bf16.msra.mxu0 0
        %3770 = vmatprep.subr.bf16.mxu0 0
        %3771 = vmatpush1.bf16.msra.mxu0 0
        %3772 = vmatprep.subr.bf16.mxu0 0
        %3773 = vmatpush1.bf16.msra.mxu0 0
        %3774 = vmatprep.subr.bf16.mxu0 %v3751
        %3775 = vmatpush1.bf16.msra.mxu0 %v3750
        %3776 = vmatprep.subr.bf16.mxu0 %v3747
        %3777 = vmatpush1.bf16.msra.mxu0 %v3746
        %3778 = vmatprep.subr.bf16.mxu0 0
        %3779 = vmatpush2.bf16.msra.mxu0 0
        %3780 = vmatprep.subr.bf16.mxu0 0
        %3781 = vmatpush2.bf16.msra.mxu0 0
        %3782 = vmatprep.subr.bf16.mxu0 0
        %3783 = vmatpush2.bf16.msra.mxu0 0
        %3784 = vmatprep.subr.bf16.mxu0 0
        %3785 = vmatpush2.bf16.msra.mxu0 0
        %3786 = vmatprep.subr.bf16.mxu0 0
        %3787 = vmatpush2.bf16.msra.mxu0 0
        %3788 = vmatprep.subr.bf16.mxu0 0
        %3789 = vmatpush2.bf16.msra.mxu0 0
        %3790 = vmatprep.subr.bf16.mxu0 0
        %3791 = vmatpush2.bf16.msra.mxu0 0
        %3792 = vmatprep.subr.bf16.mxu0 0
        %3793 = vmatpush2.bf16.msra.mxu0 0
        %3794 = vmatprep.mubr.bf16.mxu0 0
        %3795 = vmatmul.mubr.bf16.gmra.mxu0 %v2435
        %v3796 = vpop.f32.mrf.mxu0
        %v3797 = vadd.f32 %v3705, %v3796
        %v3798 = vpop.f32.mrf.mxu0
        %v3799 = vadd.f32 %v3709, %v3798
        %v3800 = vpop.f32.mrf.mxu0
        %v3801 = vadd.f32 %v3705, %v3800
        %v3802 = vpop.f32.mrf.mxu0
        %v3803 = vadd.f32 %v3709, %v3802
        %3804 = vmatprep.mubr.bf16.mxu0 0
        %3805 = vmatmul.mubr.bf16.gmra.mxu0 %v2438
        %v3806 = vpop.f32.mrf.mxu0
        %v3807 = vadd.f32 %v3705, %v3806
        %v3808 = vpop.f32.mrf.mxu0
        %v3809 = vadd.f32 %v3709, %v3808
        %v3810 = vpop.f32.mrf.mxu0
        %v3811 = vadd.f32 %v3705, %v3810
        %v3812 = vpop.f32.mrf.mxu0
        %v3813 = vadd.f32 %v3709, %v3812
        %3814 = vmatprep.mubr.bf16.mxu0 0
        %3815 = vmatmul.mubr.bf16.gmra.mxu0 %v2441
        %v3816 = vpop.f32.mrf.mxu0
        %v3817 = vadd.f32 %v3705, %v3816
        %v3818 = vpop.f32.mrf.mxu0
        %v3819 = vadd.f32 %v3709, %v3818
        %v3820 = vpop.f32.mrf.mxu0
        %v3821 = vadd.f32 %v3705, %v3820
        %v3822 = vpop.f32.mrf.mxu0
        %v3823 = vadd.f32 %v3709, %v3822
        %3824 = vmatprep.mubr.bf16.mxu0 0
        %3825 = vmatmul.mubr.bf16.gmra.mxu0 %v2444
        %v3826 = vpop.f32.mrf.mxu0
        %v3827 = vadd.f32 %v3705, %v3826
        %v3828 = vpop.f32.mrf.mxu0
        %v3829 = vadd.f32 %v3709, %v3828
        %v3830 = vpop.f32.mrf.mxu0
        %v3831 = vadd.f32 %v3705, %v3830
        %v3832 = vpop.f32.mrf.mxu0
        %v3833 = vadd.f32 %v3709, %v3832
        %3834 = vdwg.mxu0
        %3835 = vmatprep.subr.bf16.mxu0 0
        %3836 = vmatpush1.bf16.msra.mxu0 0
        %3837 = vmatprep.subr.bf16.mxu0 0
        %3838 = vmatpush1.bf16.msra.mxu0 0
        %3839 = vmatprep.subr.bf16.mxu0 0
        %3840 = vmatpush1.bf16.msra.mxu0 0
        %3841 = vmatprep.subr.bf16.mxu0 0
        %3842 = vmatpush1.bf16.msra.mxu0 0
        %3843 = vmatprep.subr.bf16.mxu0 0
        %3844 = vmatpush1.bf16.msra.mxu0 0
        %3845 = vmatprep.subr.bf16.mxu0 0
        %3846 = vmatpush1.bf16.msra.mxu0 0
        %3847 = vmatprep.subr.bf16.mxu0 %v3753
        %3848 = vmatpush1.bf16.msra.mxu0 %v3752
        %3849 = vmatprep.subr.bf16.mxu0 %v3749
        %3850 = vmatpush1.bf16.msra.mxu0 %v3748
        %3851 = vmatprep.subr.bf16.mxu0 0
        %3852 = vmatpush2.bf16.msra.mxu0 0
        %3853 = vmatprep.subr.bf16.mxu0 0
        %3854 = vmatpush2.bf16.msra.mxu0 0
        %3855 = vmatprep.subr.bf16.mxu0 0
        %3856 = vmatpush2.bf16.msra.mxu0 0
        %3857 = vmatprep.subr.bf16.mxu0 0
        %3858 = vmatpush2.bf16.msra.mxu0 0
        %3859 = vmatprep.subr.bf16.mxu0 0
        %3860 = vmatpush2.bf16.msra.mxu0 0
        %3861 = vmatprep.subr.bf16.mxu0 0
        %3862 = vmatpush2.bf16.msra.mxu0 0
        %3863 = vmatprep.subr.bf16.mxu0 0
        %3864 = vmatpush2.bf16.msra.mxu0 0
        %3865 = vmatprep.subr.bf16.mxu0 0
        %3866 = vmatpush2.bf16.msra.mxu0 0
        %3867 = vmatprep.mubr.bf16.mxu0 0
        %3868 = vmatmul.mubr.bf16.gmra.mxu0 %v2435
        %v3869 = vpop.f32.mrf.mxu0
        %v3870 = vadd.f32 %v3713, %v3869
        %v3871 = vpop.f32.mrf.mxu0
        %v3872 = vadd.f32 %v3717, %v3871
        %v3873 = vpop.f32.mrf.mxu0
        %v3874 = vadd.f32 %v3713, %v3873
        %v3875 = vpop.f32.mrf.mxu0
        %v3876 = vadd.f32 %v3717, %v3875
        %3877 = vmatprep.mubr.bf16.mxu0 0
        %3878 = vmatmul.mubr.bf16.gmra.mxu0 %v2438
        %v3879 = vpop.f32.mrf.mxu0
        %v3880 = vadd.f32 %v3713, %v3879
        %v3881 = vpop.f32.mrf.mxu0
        %v3882 = vadd.f32 %v3717, %v3881
        %v3883 = vpop.f32.mrf.mxu0
        %v3884 = vadd.f32 %v3713, %v3883
        %v3885 = vpop.f32.mrf.mxu0
        %v3886 = vadd.f32 %v3717, %v3885
        %3887 = vmatprep.mubr.bf16.mxu0 0
        %3888 = vmatmul.mubr.bf16.gmra.mxu0 %v2441
        %v3889 = vpop.f32.mrf.mxu0
        %v3890 = vadd.f32 %v3713, %v3889
        %v3891 = vpop.f32.mrf.mxu0
        %v3892 = vadd.f32 %v3717, %v3891
        %v3893 = vpop.f32.mrf.mxu0
        %v3894 = vadd.f32 %v3713, %v3893
        %v3895 = vpop.f32.mrf.mxu0
        %v3896 = vadd.f32 %v3717, %v3895
        %3897 = vmatprep.mubr.bf16.mxu0 0
        %3898 = vmatmul.mubr.bf16.gmra.mxu0 %v2444
        %v3899 = vpop.f32.mrf.mxu0
        %v3900 = vadd.f32 %v3713, %v3899
        %v3901 = vpop.f32.mrf.mxu0
        %v3902 = vadd.f32 %v3717, %v3901
        %v3903 = vpop.f32.mrf.mxu0
        %v3904 = vadd.f32 %v3713, %v3903
        %v3905 = vpop.f32.mrf.mxu0
        %v3906 = vadd.f32 %v3717, %v3905
        %3907 = vdwg.mxu0
        %v3908 = vmax.f32 %v3797, 0.0
        %v3909 = vmax.f32 %v3799, 0.0
        %v3910 = vmax.f32 %v3870, 0.0
        %v3911 = vmax.f32 %v3872, 0.0
        %v3912 = vmax.f32 %v3801, 0.0
        %v3913 = vmax.f32 %v3803, 0.0
        %v3914 = vmax.f32 %v3874, 0.0
        %v3915 = vmax.f32 %v3876, 0.0
        %v3916 = vmax.f32 %v3807, 0.0
        %v3917 = vmax.f32 %v3809, 0.0
        %v3918 = vmax.f32 %v3880, 0.0
        %v3919 = vmax.f32 %v3882, 0.0
        %v3920 = vmax.f32 %v3811, 0.0
        %v3921 = vmax.f32 %v3813, 0.0
        %v3922 = vmax.f32 %v3884, 0.0
        %v3923 = vmax.f32 %v3886, 0.0
        %v3924 = vmax.f32 %v3817, 0.0
        %v3925 = vmax.f32 %v3819, 0.0
        %v3926 = vmax.f32 %v3890, 0.0
        %v3927 = vmax.f32 %v3892, 0.0
        %v3928 = vmax.f32 %v3821, 0.0
        %v3929 = vmax.f32 %v3823, 0.0
        %v3930 = vmax.f32 %v3894, 0.0
        %v3931 = vmax.f32 %v3896, 0.0
        %v3932 = vmax.f32 %v3827, 0.0
        %v3933 = vmax.f32 %v3829, 0.0
        %v3934 = vmax.f32 %v3900, 0.0
        %v3935 = vmax.f32 %v3902, 0.0
        %v3936 = vmax.f32 %v3831, 0.0
        %v3937 = vmax.f32 %v3833, 0.0
        %v3938 = vmax.f32 %v3904, 0.0
        %v3939 = vmax.f32 %v3906, 0.0
        %v3940 = vpack.c.bf16 %v3912, %v3908
        %v3941 = vpack.c.bf16 %v3913, %v3909
        %v3942 = vpack.c.bf16 %v3914, %v3910
        %v3943 = vpack.c.bf16 %v3915, %v3911
        %v3944 = vpack.c.bf16 %v3920, %v3916
        %v3945 = vpack.c.bf16 %v3921, %v3917
        %v3946 = vpack.c.bf16 %v3922, %v3918
        %v3947 = vpack.c.bf16 %v3923, %v3919
        %v3948 = vpack.c.bf16 %v3928, %v3924
        %v3949 = vpack.c.bf16 %v3929, %v3925
        %v3950 = vpack.c.bf16 %v3930, %v3926
        %v3951 = vpack.c.bf16 %v3931, %v3927
        %v3952 = vpack.c.bf16 %v3936, %v3932
        %v3953 = vpack.c.bf16 %v3937, %v3933
        %v3954 = vpack.c.bf16 %v3938, %v3934
        %v3955 = vpack.c.bf16 %v3939, %v3935
        %v3956 = vld [vmem:[%s8 + $0x200] sm:$0xf]
        %v3957 = vld [vmem:[%s8 + $0x204] sm:$0xf]
        %v3958 = vld [vmem:[%s8 + $0x208] sm:$0xf]
        %v3959 = vld [vmem:[%s8 + $0x20c] sm:$0xf]
        %v3960 = vld [vmem:[%s8 + $0x210] sm:$0xf]
        %v3961 = vld [vmem:[%s8 + $0x214] sm:$0xf]
        %v3962 = vld [vmem:[%s8 + $0x218] sm:$0xf]
        %v3963 = vld [vmem:[%s8 + $0x21c] sm:$0xf]
        %v3964 = vld [vmem:[%s8 + $0x220] sm:$0xf]
        %v3965 = vld [vmem:[%s8 + $0x224] sm:$0xf]
        %v3966 = vld [vmem:[%s8 + $0x228] sm:$0xf]
        %v3967 = vld [vmem:[%s8 + $0x22c] sm:$0xf]
        %v3968 = vld [vmem:[%s8 + $0x230] sm:$0xf]
        %v3969 = vld [vmem:[%s8 + $0x234] sm:$0xf]
        %v3970 = vld [vmem:[%s8 + $0x238] sm:$0xf]
        %v3971 = vld [vmem:[%s8 + $0x23c] sm:$0xf]
        %v3972 = vld [vmem:[%s8 + $0x240] sm:$0xf]
        %v3973 = vld [vmem:[%s8 + $0x244] sm:$0xf]
        %v3974 = vld [vmem:[%s8 + $0x248] sm:$0xf]
        %v3975 = vld [vmem:[%s8 + $0x24c] sm:$0xf]
        %v3976 = vld [vmem:[%s8 + $0x250] sm:$0xf]
        %v3977 = vld [vmem:[%s8 + $0x254] sm:$0xf]
        %v3978 = vld [vmem:[%s8 + $0x258] sm:$0xf]
        %v3979 = vld [vmem:[%s8 + $0x25c] sm:$0xf]
        %v3980 = vld [vmem:[%s8 + $0x260] sm:$0xf]
        %v3981 = vld [vmem:[%s8 + $0x264] sm:$0xf]
        %v3982 = vld [vmem:[%s8 + $0x268] sm:$0xf]
        %v3983 = vld [vmem:[%s8 + $0x26c] sm:$0xf]
        %v3984 = vld [vmem:[%s8 + $0x270] sm:$0xf]
        %v3985 = vld [vmem:[%s8 + $0x274] sm:$0xf]
        %v3986 = vld [vmem:[%s8 + $0x278] sm:$0xf]
        %v3987 = vld [vmem:[%s8 + $0x27c] sm:$0xf]
        %v3988 = vld [vmem:[%s8 + $0x280] sm:$0xf]
        %v3989 = vld [vmem:[%s8 + $0x284] sm:$0xf]
        %v3990 = vld [vmem:[%s8 + $0x288] sm:$0xf]
        %v3991 = vld [vmem:[%s8 + $0x28c] sm:$0xf]
        %v3992 = vld [vmem:[%s8 + $0x290] sm:$0xf]
        %v3993 = vld [vmem:[%s8 + $0x294] sm:$0xf]
        %v3994 = vld [vmem:[%s8 + $0x298] sm:$0xf]
        %v3995 = vld [vmem:[%s8 + $0x29c] sm:$0xf]
        %v3996 = vld [vmem:[%s8 + $0x2a0] sm:$0xf]
        %v3997 = vld [vmem:[%s8 + $0x2a4] sm:$0xf]
        %v3998 = vld [vmem:[%s8 + $0x2a8] sm:$0xf]
        %v3999 = vld [vmem:[%s8 + $0x2ac] sm:$0xf]
        %v4000 = vld [vmem:[%s8 + $0x2b0] sm:$0xf]
        %v4001 = vld [vmem:[%s8 + $0x2b4] sm:$0xf]
        %v4002 = vld [vmem:[%s8 + $0x2b8] sm:$0xf]
        %v4003 = vld [vmem:[%s8 + $0x2bc] sm:$0xf]
        %v4004 = vld [vmem:[%s8 + $0x2c0] sm:$0xf]
        %v4005 = vld [vmem:[%s8 + $0x2c4] sm:$0xf]
        %v4006 = vld [vmem:[%s8 + $0x2c8] sm:$0xf]
        %v4007 = vld [vmem:[%s8 + $0x2cc] sm:$0xf]
        %v4008 = vld [vmem:[%s8 + $0x2d0] sm:$0xf]
        %v4009 = vld [vmem:[%s8 + $0x2d4] sm:$0xf]
        %v4010 = vld [vmem:[%s8 + $0x2d8] sm:$0xf]
        %v4011 = vld [vmem:[%s8 + $0x2dc] sm:$0xf]
        %v4012 = vld [vmem:[%s8 + $0x2e0] sm:$0xf]
        %v4013 = vld [vmem:[%s8 + $0x2e4] sm:$0xf]
        %v4014 = vld [vmem:[%s8 + $0x2e8] sm:$0xf]
        %v4015 = vld [vmem:[%s8 + $0x2ec] sm:$0xf]
        %v4016 = vld [vmem:[%s8 + $0x2f0] sm:$0xf]
        %v4017 = vld [vmem:[%s8 + $0x2f4] sm:$0xf]
        %v4018 = vld [vmem:[%s8 + $0x2f8] sm:$0xf]
        %v4019 = vld [vmem:[%s8 + $0x2fc] sm:$0xf]
        %v4084 = vunpack.c.l.b16 %v3956
        %v4085 = vunpack.c.l.b16 %v3957
        %v4086 = vunpack.c.l.b16 %v3958
        %v4087 = vunpack.c.l.b16 %v3959
        %v4088 = vunpack.c.l.b16 %v3960
        %v4089 = vunpack.c.l.b16 %v3961
        %v4090 = vunpack.c.l.b16 %v3962
        %v4091 = vunpack.c.l.b16 %v3963
        %v4092 = vunpack.c.l.b16 %v3964
        %v4093 = vunpack.c.l.b16 %v3965
        %v4094 = vunpack.c.l.b16 %v3966
        %v4095 = vunpack.c.l.b16 %v3967
        %v4096 = vunpack.c.l.b16 %v3968
        %v4097 = vunpack.c.l.b16 %v3969
        %v4098 = vunpack.c.l.b16 %v3970
        %v4099 = vunpack.c.l.b16 %v3971
        %v4100 = vunpack.c.l.b16 %v3972
        %v4101 = vunpack.c.l.b16 %v3973
        %v4102 = vunpack.c.l.b16 %v3974
        %v4103 = vunpack.c.l.b16 %v3975
        %v4104 = vunpack.c.l.b16 %v3976
        %v4105 = vunpack.c.l.b16 %v3977
        %v4106 = vunpack.c.l.b16 %v3978
        %v4107 = vunpack.c.l.b16 %v3979
        %v4108 = vunpack.c.l.b16 %v3980
        %v4109 = vunpack.c.l.b16 %v3981
        %v4110 = vunpack.c.l.b16 %v3982
        %v4111 = vunpack.c.l.b16 %v3983
        %v4112 = vunpack.c.l.b16 %v3984
        %v4113 = vunpack.c.l.b16 %v3985
        %v4114 = vunpack.c.l.b16 %v3986
        %v4115 = vunpack.c.l.b16 %v3987
        %v4116 = vunpack.c.l.b16 %v3988
        %v4117 = vunpack.c.l.b16 %v3989
        %v4118 = vunpack.c.l.b16 %v3990
        %v4119 = vunpack.c.l.b16 %v3991
        %v4120 = vunpack.c.l.b16 %v3992
        %v4121 = vunpack.c.l.b16 %v3993
        %v4122 = vunpack.c.l.b16 %v3994
        %v4123 = vunpack.c.l.b16 %v3995
        %v4124 = vunpack.c.l.b16 %v3996
        %v4125 = vunpack.c.l.b16 %v3997
        %v4126 = vunpack.c.l.b16 %v3998
        %v4127 = vunpack.c.l.b16 %v3999
        %v4128 = vunpack.c.l.b16 %v4000
        %v4129 = vunpack.c.l.b16 %v4001
        %v4130 = vunpack.c.l.b16 %v4002
        %v4131 = vunpack.c.l.b16 %v4003
        %v4132 = vunpack.c.l.b16 %v4004
        %v4133 = vunpack.c.l.b16 %v4005
        %v4134 = vunpack.c.l.b16 %v4006
        %v4135 = vunpack.c.l.b16 %v4007
        %v4136 = vunpack.c.l.b16 %v4008
        %v4137 = vunpack.c.l.b16 %v4009
        %v4138 = vunpack.c.l.b16 %v4010
        %v4139 = vunpack.c.l.b16 %v4011
        %v4140 = vunpack.c.l.b16 %v4012
        %v4141 = vunpack.c.l.b16 %v4013
        %v4142 = vunpack.c.l.b16 %v4014
        %v4143 = vunpack.c.l.b16 %v4015
        %v4144 = vunpack.c.l.b16 %v4016
        %v4145 = vunpack.c.l.b16 %v4017
        %v4146 = vunpack.c.l.b16 %v4018
        %v4147 = vunpack.c.l.b16 %v4019
        %v4148 = vpack.c.b16 %v4085, %v4084
        %v4149 = vpack.c.b16 %v4087, %v4086
        %v4150 = vpack.c.b16 %v4089, %v4088
        %v4151 = vpack.c.b16 %v4091, %v4090
        %v4152 = vpack.c.b16 %v4093, %v4092
        %v4153 = vpack.c.b16 %v4095, %v4094
        %v4154 = vpack.c.b16 %v4097, %v4096
        %v4155 = vpack.c.b16 %v4099, %v4098
        %v4156 = vpack.c.b16 %v4101, %v4100
        %v4157 = vpack.c.b16 %v4103, %v4102
        %v4158 = vpack.c.b16 %v4105, %v4104
        %v4159 = vpack.c.b16 %v4107, %v4106
        %v4160 = vpack.c.b16 %v4109, %v4108
        %v4161 = vpack.c.b16 %v4111, %v4110
        %v4162 = vpack.c.b16 %v4113, %v4112
        %v4163 = vpack.c.b16 %v4115, %v4114
        %v4164 = vpack.c.b16 %v4117, %v4116
        %v4165 = vpack.c.b16 %v4119, %v4118
        %v4166 = vpack.c.b16 %v4121, %v4120
        %v4167 = vpack.c.b16 %v4123, %v4122
        %v4168 = vpack.c.b16 %v4125, %v4124
        %v4169 = vpack.c.b16 %v4127, %v4126
        %v4170 = vpack.c.b16 %v4129, %v4128
        %v4171 = vpack.c.b16 %v4131, %v4130
        %v4172 = vpack.c.b16 %v4133, %v4132
        %v4173 = vpack.c.b16 %v4135, %v4134
        %v4174 = vpack.c.b16 %v4137, %v4136
        %v4175 = vpack.c.b16 %v4139, %v4138
        %v4176 = vpack.c.b16 %v4141, %v4140
        %v4177 = vpack.c.b16 %v4143, %v4142
        %v4178 = vpack.c.b16 %v4145, %v4144
        %v4179 = vpack.c.b16 %v4147, %v4146
        %4212 = vmatprep.subr.bf16.mxu0 0
        %4213 = vmatpush1.bf16.msra.mxu0 %v4155
        %4214 = vmatprep.subr.bf16.mxu0 0
        %4215 = vmatpush1.bf16.msra.mxu0 %v4154
        %4216 = vmatprep.subr.bf16.mxu0 0
        %4217 = vmatpush1.bf16.msra.mxu0 %v4153
        %4218 = vmatprep.subr.bf16.mxu0 0
        %4219 = vmatpush1.bf16.msra.mxu0 %v4152
        %4220 = vmatprep.subr.bf16.mxu0 0
        %4221 = vmatpush1.bf16.msra.mxu0 %v4151
        %4222 = vmatprep.subr.bf16.mxu0 0
        %4223 = vmatpush1.bf16.msra.mxu0 %v4150
        %4224 = vmatprep.subr.bf16.mxu0 0
        %4225 = vmatpush1.bf16.msra.mxu0 %v4149
        %4226 = vmatprep.subr.bf16.mxu0 0
        %4227 = vmatpush1.bf16.msra.mxu0 %v4148
        %4228 = vmatprep.subr.bf16.mxu0 0
        %4229 = vmatpush2.bf16.msra.mxu0 %v4163
        %4230 = vmatprep.subr.bf16.mxu0 0
        %4231 = vmatpush2.bf16.msra.mxu0 %v4162
        %4232 = vmatprep.subr.bf16.mxu0 0
        %4233 = vmatpush2.bf16.msra.mxu0 %v4161
        %4234 = vmatprep.subr.bf16.mxu0 0
        %4235 = vmatpush2.bf16.msra.mxu0 %v4160
        %4236 = vmatprep.subr.bf16.mxu0 0
        %4237 = vmatpush2.bf16.msra.mxu0 %v4159
        %4238 = vmatprep.subr.bf16.mxu0 0
        %4239 = vmatpush2.bf16.msra.mxu0 %v4158
        %4240 = vmatprep.subr.bf16.mxu0 0
        %4241 = vmatpush2.bf16.msra.mxu0 %v4157
        %4242 = vmatprep.subr.bf16.mxu0 0
        %4243 = vmatpush2.bf16.msra.mxu0 %v4156
        %4244 = vmatprep.mubr.bf16.mxu0 %v3941
        %4245 = vmatmul.mubr.bf16.gmra.mxu0 %v3940
        %v4246 = vpop.f32.mrf.mxu0
        %v4247 = vadd.f32 0.0, %v4246
        %v4248 = vpop.f32.mrf.mxu0
        %v4249 = vpop.f32.mrf.mxu0
        %v4250 = vadd.f32 0.0, %v4249
        %v4251 = vpop.f32.mrf.mxu0
        %4252 = vmatprep.mubr.bf16.mxu0 %v3945
        %4253 = vmatmul.mubr.bf16.gmra.mxu0 %v3944
        %v4254 = vpop.f32.mrf.mxu0
        %v4255 = vadd.f32 0.0, %v4254
        %v4256 = vpop.f32.mrf.mxu0
        %v4257 = vpop.f32.mrf.mxu0
        %v4258 = vadd.f32 0.0, %v4257
        %v4259 = vpop.f32.mrf.mxu0
        %4260 = vmatprep.mubr.bf16.mxu0 %v3949
        %4261 = vmatmul.mubr.bf16.gmra.mxu0 %v3948
        %v4262 = vpop.f32.mrf.mxu0
        %v4263 = vadd.f32 0.0, %v4262
        %v4264 = vpop.f32.mrf.mxu0
        %v4265 = vpop.f32.mrf.mxu0
        %v4266 = vadd.f32 0.0, %v4265
        %v4267 = vpop.f32.mrf.mxu0
        %4268 = vmatprep.mubr.bf16.mxu0 %v3953
        %4269 = vmatmul.mubr.bf16.gmra.mxu0 %v3952
        %v4270 = vpop.f32.mrf.mxu0
        %v4271 = vadd.f32 0.0, %v4270
        %v4272 = vpop.f32.mrf.mxu0
        %v4273 = vpop.f32.mrf.mxu0
        %v4274 = vadd.f32 0.0, %v4273
        %v4275 = vpop.f32.mrf.mxu0
        %4276 = vdwg.mxu0
        %4277 = vmatprep.subr.bf16.mxu0 0
        %4278 = vmatpush1.bf16.msra.mxu0 %v4171
        %4279 = vmatprep.subr.bf16.mxu0 0
        %4280 = vmatpush1.bf16.msra.mxu0 %v4170
        %4281 = vmatprep.subr.bf16.mxu0 0
        %4282 = vmatpush1.bf16.msra.mxu0 %v4169
        %4283 = vmatprep.subr.bf16.mxu0 0
        %4284 = vmatpush1.bf16.msra.mxu0 %v4168
        %4285 = vmatprep.subr.bf16.mxu0 0
        %4286 = vmatpush1.bf16.msra.mxu0 %v4167
        %4287 = vmatprep.subr.bf16.mxu0 0
        %4288 = vmatpush1.bf16.msra.mxu0 %v4166
        %4289 = vmatprep.subr.bf16.mxu0 0
        %4290 = vmatpush1.bf16.msra.mxu0 %v4165
        %4291 = vmatprep.subr.bf16.mxu0 0
        %4292 = vmatpush1.bf16.msra.mxu0 %v4164
        %4293 = vmatprep.subr.bf16.mxu0 0
        %4294 = vmatpush2.bf16.msra.mxu0 %v4179
        %4295 = vmatprep.subr.bf16.mxu0 0
        %4296 = vmatpush2.bf16.msra.mxu0 %v4178
        %4297 = vmatprep.subr.bf16.mxu0 0
        %4298 = vmatpush2.bf16.msra.mxu0 %v4177
        %4299 = vmatprep.subr.bf16.mxu0 0
        %4300 = vmatpush2.bf16.msra.mxu0 %v4176
        %4301 = vmatprep.subr.bf16.mxu0 0
        %4302 = vmatpush2.bf16.msra.mxu0 %v4175
        %4303 = vmatprep.subr.bf16.mxu0 0
        %4304 = vmatpush2.bf16.msra.mxu0 %v4174
        %4305 = vmatprep.subr.bf16.mxu0 0
        %4306 = vmatpush2.bf16.msra.mxu0 %v4173
        %4307 = vmatprep.subr.bf16.mxu0 0
        %4308 = vmatpush2.bf16.msra.mxu0 %v4172
        %4309 = vmatprep.mubr.bf16.mxu0 %v3943
        %4310 = vmatmul.mubr.bf16.gmra.mxu0 %v3942
        %v4311 = vpop.f32.mrf.mxu0
        %v4312 = vadd.f32 %v4247, %v4311
        %v4313 = vpop.f32.mrf.mxu0
        %v4314 = vpop.f32.mrf.mxu0
        %v4315 = vadd.f32 %v4250, %v4314
        %v4316 = vpop.f32.mrf.mxu0
        %4317 = vmatprep.mubr.bf16.mxu0 %v3947
        %4318 = vmatmul.mubr.bf16.gmra.mxu0 %v3946
        %v4319 = vpop.f32.mrf.mxu0
        %v4320 = vadd.f32 %v4255, %v4319
        %v4321 = vpop.f32.mrf.mxu0
        %v4322 = vpop.f32.mrf.mxu0
        %v4323 = vadd.f32 %v4258, %v4322
        %v4324 = vpop.f32.mrf.mxu0
        %4325 = vmatprep.mubr.bf16.mxu0 %v3951
        %4326 = vmatmul.mubr.bf16.gmra.mxu0 %v3950
        %v4327 = vpop.f32.mrf.mxu0
        %v4328 = vadd.f32 %v4263, %v4327
        %v4329 = vpop.f32.mrf.mxu0
        %v4330 = vpop.f32.mrf.mxu0
        %v4331 = vadd.f32 %v4266, %v4330
        %v4332 = vpop.f32.mrf.mxu0
        %4333 = vmatprep.mubr.bf16.mxu0 %v3955
        %4334 = vmatmul.mubr.bf16.gmra.mxu0 %v3954
        %v4335 = vpop.f32.mrf.mxu0
        %v4336 = vadd.f32 %v4271, %v4335
        %v4337 = vpop.f32.mrf.mxu0
        %v4338 = vpop.f32.mrf.mxu0
        %v4339 = vadd.f32 %v4274, %v4338
        %v4340 = vpop.f32.mrf.mxu0
        %4341 = vdwg.mxu0
        %v4342 = vadd.f32 %v3684, %v4312
        %v4343 = vadd.f32 %v3685, %v4315
        %v4344 = vadd.f32 %v3686, %v4320
        %v4345 = vadd.f32 %v3687, %v4323
        %v4346 = vadd.f32 %v3688, %v4328
        %v4347 = vadd.f32 %v3689, %v4331
        %v4348 = vadd.f32 %v3690, %v4336
        %v4349 = vadd.f32 %v3691, %v4339
        %v4350 = vld [vmem:[%s7 + $0x30] sm:$0xff]
        %v4351 = vld [vmem:[%s7 + $0x38] sm:$0xff]
        %v4352 = vld [vmem:[%s7 + $0x70] sm:$0xff]
        %v4353 = vld [vmem:[%s7 + $0x78] sm:$0xff]
        %v4354 = vld [vmem:[%s7 + $0xb0] sm:$0xff]
        %v4355 = vld [vmem:[%s7 + $0xb8] sm:$0xff]
        %v4356 = vld [vmem:[%s7 + $0xf0] sm:$0xff]
        %v4357 = vld [vmem:[%s7 + $0xf8] sm:$0xff]
        %v4358 = vld [vmem:[%s10 + $0xc] sm:$0xf]
        %v4360 = vlaneseq
        %v4361 = vshrl.u32 %v4360, 7
        %v4362 = vsub.s32 0, %v4361
        %v4363 = vrot.slane %v4358, %v4362
        %v4364 = vlaneseq
        %v4365 = vshrl.u32 %v4364, 7
        %v4366 = vsub.s32 1, %v4365
        %v4367 = vrot.slane %v4358, %v4366
        %v4368 = vlaneseq
        %v4369 = vshrl.u32 %v4368, 7
        %v4370 = vsub.s32 2, %v4369
        %v4371 = vrot.slane %v4358, %v4370
        %v4372 = vlaneseq
        %v4373 = vshrl.u32 %v4372, 7
        %v4374 = vsub.s32 3, %v4373
        %v4375 = vrot.slane %v4358, %v4374
        %v4388 = vunpack.c.l.b16 %v4350
        %v4389 = vunpack.c.h.b16 %v4350
        %v4390 = vunpack.c.l.b16 %v4351
        %v4391 = vunpack.c.h.b16 %v4351
        %v4392 = vunpack.c.l.b16 %v4352
        %v4393 = vunpack.c.h.b16 %v4352
        %v4394 = vunpack.c.l.b16 %v4353
        %v4395 = vunpack.c.h.b16 %v4353
        %v4396 = vunpack.c.l.b16 %v4354
        %v4397 = vunpack.c.h.b16 %v4354
        %v4398 = vunpack.c.l.b16 %v4355
        %v4399 = vunpack.c.h.b16 %v4355
        %v4400 = vunpack.c.l.b16 %v4356
        %v4401 = vunpack.c.h.b16 %v4356
        %v4402 = vunpack.c.l.b16 %v4357
        %v4403 = vunpack.c.h.b16 %v4357
        %v4404 = vpack.c.b16 %v4392, %v4388
        %v4405 = vpack.c.b16 %v4393, %v4389
        %v4406 = vpack.c.b16 %v4394, %v4390
        %v4407 = vpack.c.b16 %v4395, %v4391
        %v4408 = vpack.c.b16 %v4400, %v4396
        %v4409 = vpack.c.b16 %v4401, %v4397
        %v4410 = vpack.c.b16 %v4402, %v4398
        %v4411 = vpack.c.b16 %v4403, %v4399
        %4420 = vmatprep.subr.bf16.mxu0 0
        %4421 = vmatpush1.bf16.msra.mxu0 0
        %4422 = vmatprep.subr.bf16.mxu0 0
        %4423 = vmatpush1.bf16.msra.mxu0 0
        %4424 = vmatprep.subr.bf16.mxu0 0
        %4425 = vmatpush1.bf16.msra.mxu0 0
        %4426 = vmatprep.subr.bf16.mxu0 0
        %4427 = vmatpush1.bf16.msra.mxu0 0
        %4428 = vmatprep.subr.bf16.mxu0 0
        %4429 = vmatpush1.bf16.msra.mxu0 0
        %4430 = vmatprep.subr.bf16.mxu0 0
        %4431 = vmatpush1.bf16.msra.mxu0 0
        %4432 = vmatprep.subr.bf16.mxu0 %v4409
        %4433 = vmatpush1.bf16.msra.mxu0 %v4408
        %4434 = vmatprep.subr.bf16.mxu0 %v4405
        %4435 = vmatpush1.bf16.msra.mxu0 %v4404
        %4436 = vmatprep.subr.bf16.mxu0 0
        %4437 = vmatpush2.bf16.msra.mxu0 0
        %4438 = vmatprep.subr.bf16.mxu0 0
        %4439 = vmatpush2.bf16.msra.mxu0 0
        %4440 = vmatprep.subr.bf16.mxu0 0
        %4441 = vmatpush2.bf16.msra.mxu0 0
        %4442 = vmatprep.subr.bf16.mxu0 0
        %4443 = vmatpush2.bf16.msra.mxu0 0
        %4444 = vmatprep.subr.bf16.mxu0 0
        %4445 = vmatpush2.bf16.msra.mxu0 0
        %4446 = vmatprep.subr.bf16.mxu0 0
        %4447 = vmatpush2.bf16.msra.mxu0 0
        %4448 = vmatprep.subr.bf16.mxu0 0
        %4449 = vmatpush2.bf16.msra.mxu0 0
        %4450 = vmatprep.subr.bf16.mxu0 0
        %4451 = vmatpush2.bf16.msra.mxu0 0
        %4452 = vmatprep.mubr.bf16.mxu0 0
        %4453 = vmatmul.mubr.bf16.gmra.mxu0 %v2435
        %v4454 = vpop.f32.mrf.mxu0
        %v4455 = vadd.f32 %v4363, %v4454
        %v4456 = vpop.f32.mrf.mxu0
        %v4457 = vadd.f32 %v4367, %v4456
        %v4458 = vpop.f32.mrf.mxu0
        %v4459 = vadd.f32 %v4363, %v4458
        %v4460 = vpop.f32.mrf.mxu0
        %v4461 = vadd.f32 %v4367, %v4460
        %4462 = vmatprep.mubr.bf16.mxu0 0
        %4463 = vmatmul.mubr.bf16.gmra.mxu0 %v2438
        %v4464 = vpop.f32.mrf.mxu0
        %v4465 = vadd.f32 %v4363, %v4464
        %v4466 = vpop.f32.mrf.mxu0
        %v4467 = vadd.f32 %v4367, %v4466
        %v4468 = vpop.f32.mrf.mxu0
        %v4469 = vadd.f32 %v4363, %v4468
        %v4470 = vpop.f32.mrf.mxu0
        %v4471 = vadd.f32 %v4367, %v4470
        %4472 = vmatprep.mubr.bf16.mxu0 0
        %4473 = vmatmul.mubr.bf16.gmra.mxu0 %v2441
        %v4474 = vpop.f32.mrf.mxu0
        %v4475 = vadd.f32 %v4363, %v4474
        %v4476 = vpop.f32.mrf.mxu0
        %v4477 = vadd.f32 %v4367, %v4476
        %v4478 = vpop.f32.mrf.mxu0
        %v4479 = vadd.f32 %v4363, %v4478
        %v4480 = vpop.f32.mrf.mxu0
        %v4481 = vadd.f32 %v4367, %v4480
        %4482 = vmatprep.mubr.bf16.mxu0 0
        %4483 = vmatmul.mubr.bf16.gmra.mxu0 %v2444
        %v4484 = vpop.f32.mrf.mxu0
        %v4485 = vadd.f32 %v4363, %v4484
        %v4486 = vpop.f32.mrf.mxu0
        %v4487 = vadd.f32 %v4367, %v4486
        %v4488 = vpop.f32.mrf.mxu0
        %v4489 = vadd.f32 %v4363, %v4488
        %v4490 = vpop.f32.mrf.mxu0
        %v4491 = vadd.f32 %v4367, %v4490
        %4492 = vdwg.mxu0
        %4493 = vmatprep.subr.bf16.mxu0 0
        %4494 = vmatpush1.bf16.msra.mxu0 0
        %4495 = vmatprep.subr.bf16.mxu0 0
        %4496 = vmatpush1.bf16.msra.mxu0 0
        %4497 = vmatprep.subr.bf16.mxu0 0
        %4498 = vmatpush1.bf16.msra.mxu0 0
        %4499 = vmatprep.subr.bf16.mxu0 0
        %4500 = vmatpush1.bf16.msra.mxu0 0
        %4501 = vmatprep.subr.bf16.mxu0 0
        %4502 = vmatpush1.bf16.msra.mxu0 0
        %4503 = vmatprep.subr.bf16.mxu0 0
        %4504 = vmatpush1.bf16.msra.mxu0 0
        %4505 = vmatprep.subr.bf16.mxu0 %v4411
        %4506 = vmatpush1.bf16.msra.mxu0 %v4410
        %4507 = vmatprep.subr.bf16.mxu0 %v4407
        %4508 = vmatpush1.bf16.msra.mxu0 %v4406
        %4509 = vmatprep.subr.bf16.mxu0 0
        %4510 = vmatpush2.bf16.msra.mxu0 0
        %4511 = vmatprep.subr.bf16.mxu0 0
        %4512 = vmatpush2.bf16.msra.mxu0 0
        %4513 = vmatprep.subr.bf16.mxu0 0
        %4514 = vmatpush2.bf16.msra.mxu0 0
        %4515 = vmatprep.subr.bf16.mxu0 0
        %4516 = vmatpush2.bf16.msra.mxu0 0
        %4517 = vmatprep.subr.bf16.mxu0 0
        %4518 = vmatpush2.bf16.msra.mxu0 0
        %4519 = vmatprep.subr.bf16.mxu0 0
        %4520 = vmatpush2.bf16.msra.mxu0 0
        %4521 = vmatprep.subr.bf16.mxu0 0
        %4522 = vmatpush2.bf16.msra.mxu0 0
        %4523 = vmatprep.subr.bf16.mxu0 0
        %4524 = vmatpush2.bf16.msra.mxu0 0
        %4525 = vmatprep.mubr.bf16.mxu0 0
        %4526 = vmatmul.mubr.bf16.gmra.mxu0 %v2435
        %v4527 = vpop.f32.mrf.mxu0
        %v4528 = vadd.f32 %v4371, %v4527
        %v4529 = vpop.f32.mrf.mxu0
        %v4530 = vadd.f32 %v4375, %v4529
        %v4531 = vpop.f32.mrf.mxu0
        %v4532 = vadd.f32 %v4371, %v4531
        %v4533 = vpop.f32.mrf.mxu0
        %v4534 = vadd.f32 %v4375, %v4533
        %4535 = vmatprep.mubr.bf16.mxu0 0
        %4536 = vmatmul.mubr.bf16.gmra.mxu0 %v2438
        %v4537 = vpop.f32.mrf.mxu0
        %v4538 = vadd.f32 %v4371, %v4537
        %v4539 = vpop.f32.mrf.mxu0
        %v4540 = vadd.f32 %v4375, %v4539
        %v4541 = vpop.f32.mrf.mxu0
        %v4542 = vadd.f32 %v4371, %v4541
        %v4543 = vpop.f32.mrf.mxu0
        %v4544 = vadd.f32 %v4375, %v4543
        %4545 = vmatprep.mubr.bf16.mxu0 0
        %4546 = vmatmul.mubr.bf16.gmra.mxu0 %v2441
        %v4547 = vpop.f32.mrf.mxu0
        %v4548 = vadd.f32 %v4371, %v4547
        %v4549 = vpop.f32.mrf.mxu0
        %v4550 = vadd.f32 %v4375, %v4549
        %v4551 = vpop.f32.mrf.mxu0
        %v4552 = vadd.f32 %v4371, %v4551
        %v4553 = vpop.f32.mrf.mxu0
        %v4554 = vadd.f32 %v4375, %v4553
        %4555 = vmatprep.mubr.bf16.mxu0 0
        %4556 = vmatmul.mubr.bf16.gmra.mxu0 %v2444
        %v4557 = vpop.f32.mrf.mxu0
        %v4558 = vadd.f32 %v4371, %v4557
        %v4559 = vpop.f32.mrf.mxu0
        %v4560 = vadd.f32 %v4375, %v4559
        %v4561 = vpop.f32.mrf.mxu0
        %v4562 = vadd.f32 %v4371, %v4561
        %v4563 = vpop.f32.mrf.mxu0
        %v4564 = vadd.f32 %v4375, %v4563
        %4565 = vdwg.mxu0
        %v4566 = vmax.f32 %v4455, 0.0
        %v4567 = vmax.f32 %v4457, 0.0
        %v4568 = vmax.f32 %v4528, 0.0
        %v4569 = vmax.f32 %v4530, 0.0
        %v4570 = vmax.f32 %v4459, 0.0
        %v4571 = vmax.f32 %v4461, 0.0
        %v4572 = vmax.f32 %v4532, 0.0
        %v4573 = vmax.f32 %v4534, 0.0
        %v4574 = vmax.f32 %v4465, 0.0
        %v4575 = vmax.f32 %v4467, 0.0
        %v4576 = vmax.f32 %v4538, 0.0
        %v4577 = vmax.f32 %v4540, 0.0
        %v4578 = vmax.f32 %v4469, 0.0
        %v4579 = vmax.f32 %v4471, 0.0
        %v4580 = vmax.f32 %v4542, 0.0
        %v4581 = vmax.f32 %v4544, 0.0
        %v4582 = vmax.f32 %v4475, 0.0
        %v4583 = vmax.f32 %v4477, 0.0
        %v4584 = vmax.f32 %v4548, 0.0
        %v4585 = vmax.f32 %v4550, 0.0
        %v4586 = vmax.f32 %v4479, 0.0
        %v4587 = vmax.f32 %v4481, 0.0
        %v4588 = vmax.f32 %v4552, 0.0
        %v4589 = vmax.f32 %v4554, 0.0
        %v4590 = vmax.f32 %v4485, 0.0
        %v4591 = vmax.f32 %v4487, 0.0
        %v4592 = vmax.f32 %v4558, 0.0
        %v4593 = vmax.f32 %v4560, 0.0
        %v4594 = vmax.f32 %v4489, 0.0
        %v4595 = vmax.f32 %v4491, 0.0
        %v4596 = vmax.f32 %v4562, 0.0
        %v4597 = vmax.f32 %v4564, 0.0
        %v4598 = vpack.c.bf16 %v4570, %v4566
        %v4599 = vpack.c.bf16 %v4571, %v4567
        %v4600 = vpack.c.bf16 %v4572, %v4568
        %v4601 = vpack.c.bf16 %v4573, %v4569
        %v4602 = vpack.c.bf16 %v4578, %v4574
        %v4603 = vpack.c.bf16 %v4579, %v4575
        %v4604 = vpack.c.bf16 %v4580, %v4576
        %v4605 = vpack.c.bf16 %v4581, %v4577
        %v4606 = vpack.c.bf16 %v4586, %v4582
        %v4607 = vpack.c.bf16 %v4587, %v4583
        %v4608 = vpack.c.bf16 %v4588, %v4584
        %v4609 = vpack.c.bf16 %v4589, %v4585
        %v4610 = vpack.c.bf16 %v4594, %v4590
        %v4611 = vpack.c.bf16 %v4595, %v4591
        %v4612 = vpack.c.bf16 %v4596, %v4592
        %v4613 = vpack.c.bf16 %v4597, %v4593
        %v4614 = vld [vmem:[%s8 + $0x300] sm:$0xf]
        %v4615 = vld [vmem:[%s8 + $0x304] sm:$0xf]
        %v4616 = vld [vmem:[%s8 + $0x308] sm:$0xf]
        %v4617 = vld [vmem:[%s8 + $0x30c] sm:$0xf]
        %v4618 = vld [vmem:[%s8 + $0x310] sm:$0xf]
        %v4619 = vld [vmem:[%s8 + $0x314] sm:$0xf]
        %v4620 = vld [vmem:[%s8 + $0x318] sm:$0xf]
        %v4621 = vld [vmem:[%s8 + $0x31c] sm:$0xf]
        %v4622 = vld [vmem:[%s8 + $0x320] sm:$0xf]
        %v4623 = vld [vmem:[%s8 + $0x324] sm:$0xf]
        %v4624 = vld [vmem:[%s8 + $0x328] sm:$0xf]
        %v4625 = vld [vmem:[%s8 + $0x32c] sm:$0xf]
        %v4626 = vld [vmem:[%s8 + $0x330] sm:$0xf]
        %v4627 = vld [vmem:[%s8 + $0x334] sm:$0xf]
        %v4628 = vld [vmem:[%s8 + $0x338] sm:$0xf]
        %v4629 = vld [vmem:[%s8 + $0x33c] sm:$0xf]
        %v4630 = vld [vmem:[%s8 + $0x340] sm:$0xf]
        %v4631 = vld [vmem:[%s8 + $0x344] sm:$0xf]
        %v4632 = vld [vmem:[%s8 + $0x348] sm:$0xf]
        %v4633 = vld [vmem:[%s8 + $0x34c] sm:$0xf]
        %v4634 = vld [vmem:[%s8 + $0x350] sm:$0xf]
        %v4635 = vld [vmem:[%s8 + $0x354] sm:$0xf]
        %v4636 = vld [vmem:[%s8 + $0x358] sm:$0xf]
        %v4637 = vld [vmem:[%s8 + $0x35c] sm:$0xf]
        %v4638 = vld [vmem:[%s8 + $0x360] sm:$0xf]
        %v4639 = vld [vmem:[%s8 + $0x364] sm:$0xf]
        %v4640 = vld [vmem:[%s8 + $0x368] sm:$0xf]
        %v4641 = vld [vmem:[%s8 + $0x36c] sm:$0xf]
        %v4642 = vld [vmem:[%s8 + $0x370] sm:$0xf]
        %v4643 = vld [vmem:[%s8 + $0x374] sm:$0xf]
        %v4644 = vld [vmem:[%s8 + $0x378] sm:$0xf]
        %v4645 = vld [vmem:[%s8 + $0x37c] sm:$0xf]
        %v4646 = vld [vmem:[%s8 + $0x380] sm:$0xf]
        %v4647 = vld [vmem:[%s8 + $0x384] sm:$0xf]
        %v4648 = vld [vmem:[%s8 + $0x388] sm:$0xf]
        %v4649 = vld [vmem:[%s8 + $0x38c] sm:$0xf]
        %v4650 = vld [vmem:[%s8 + $0x390] sm:$0xf]
        %v4651 = vld [vmem:[%s8 + $0x394] sm:$0xf]
        %v4652 = vld [vmem:[%s8 + $0x398] sm:$0xf]
        %v4653 = vld [vmem:[%s8 + $0x39c] sm:$0xf]
        %v4654 = vld [vmem:[%s8 + $0x3a0] sm:$0xf]
        %v4655 = vld [vmem:[%s8 + $0x3a4] sm:$0xf]
        %v4656 = vld [vmem:[%s8 + $0x3a8] sm:$0xf]
        %v4657 = vld [vmem:[%s8 + $0x3ac] sm:$0xf]
        %v4658 = vld [vmem:[%s8 + $0x3b0] sm:$0xf]
        %v4659 = vld [vmem:[%s8 + $0x3b4] sm:$0xf]
        %v4660 = vld [vmem:[%s8 + $0x3b8] sm:$0xf]
        %v4661 = vld [vmem:[%s8 + $0x3bc] sm:$0xf]
        %v4662 = vld [vmem:[%s8 + $0x3c0] sm:$0xf]
        %v4663 = vld [vmem:[%s8 + $0x3c4] sm:$0xf]
        %v4664 = vld [vmem:[%s8 + $0x3c8] sm:$0xf]
        %v4665 = vld [vmem:[%s8 + $0x3cc] sm:$0xf]
        %v4666 = vld [vmem:[%s8 + $0x3d0] sm:$0xf]
        %v4667 = vld [vmem:[%s8 + $0x3d4] sm:$0xf]
        %v4668 = vld [vmem:[%s8 + $0x3d8] sm:$0xf]
        %v4669 = vld [vmem:[%s8 + $0x3dc] sm:$0xf]
        %v4670 = vld [vmem:[%s8 + $0x3e0] sm:$0xf]
        %v4671 = vld [vmem:[%s8 + $0x3e4] sm:$0xf]
        %v4672 = vld [vmem:[%s8 + $0x3e8] sm:$0xf]
        %v4673 = vld [vmem:[%s8 + $0x3ec] sm:$0xf]
        %v4674 = vld [vmem:[%s8 + $0x3f0] sm:$0xf]
        %v4675 = vld [vmem:[%s8 + $0x3f4] sm:$0xf]
        %v4676 = vld [vmem:[%s8 + $0x3f8] sm:$0xf]
        %v4677 = vld [vmem:[%s8 + $0x3fc] sm:$0xf]
        %v4742 = vunpack.c.l.b16 %v4614
        %v4743 = vunpack.c.l.b16 %v4615
        %v4744 = vunpack.c.l.b16 %v4616
        %v4745 = vunpack.c.l.b16 %v4617
        %v4746 = vunpack.c.l.b16 %v4618
        %v4747 = vunpack.c.l.b16 %v4619
        %v4748 = vunpack.c.l.b16 %v4620
        %v4749 = vunpack.c.l.b16 %v4621
        %v4750 = vunpack.c.l.b16 %v4622
        %v4751 = vunpack.c.l.b16 %v4623
        %v4752 = vunpack.c.l.b16 %v4624
        %v4753 = vunpack.c.l.b16 %v4625
        %v4754 = vunpack.c.l.b16 %v4626
        %v4755 = vunpack.c.l.b16 %v4627
        %v4756 = vunpack.c.l.b16 %v4628
        %v4757 = vunpack.c.l.b16 %v4629
        %v4758 = vunpack.c.l.b16 %v4630
        %v4759 = vunpack.c.l.b16 %v4631
        %v4760 = vunpack.c.l.b16 %v4632
        %v4761 = vunpack.c.l.b16 %v4633
        %v4762 = vunpack.c.l.b16 %v4634
        %v4763 = vunpack.c.l.b16 %v4635
        %v4764 = vunpack.c.l.b16 %v4636
        %v4765 = vunpack.c.l.b16 %v4637
        %v4766 = vunpack.c.l.b16 %v4638
        %v4767 = vunpack.c.l.b16 %v4639
        %v4768 = vunpack.c.l.b16 %v4640
        %v4769 = vunpack.c.l.b16 %v4641
        %v4770 = vunpack.c.l.b16 %v4642
        %v4771 = vunpack.c.l.b16 %v4643
        %v4772 = vunpack.c.l.b16 %v4644
        %v4773 = vunpack.c.l.b16 %v4645
        %v4774 = vunpack.c.l.b16 %v4646
        %v4775 = vunpack.c.l.b16 %v4647
        %v4776 = vunpack.c.l.b16 %v4648
        %v4777 = vunpack.c.l.b16 %v4649
        %v4778 = vunpack.c.l.b16 %v4650
        %v4779 = vunpack.c.l.b16 %v4651
        %v4780 = vunpack.c.l.b16 %v4652
        %v4781 = vunpack.c.l.b16 %v4653
        %v4782 = vunpack.c.l.b16 %v4654
        %v4783 = vunpack.c.l.b16 %v4655
        %v4784 = vunpack.c.l.b16 %v4656
        %v4785 = vunpack.c.l.b16 %v4657
        %v4786 = vunpack.c.l.b16 %v4658
        %v4787 = vunpack.c.l.b16 %v4659
        %v4788 = vunpack.c.l.b16 %v4660
        %v4789 = vunpack.c.l.b16 %v4661
        %v4790 = vunpack.c.l.b16 %v4662
        %v4791 = vunpack.c.l.b16 %v4663
        %v4792 = vunpack.c.l.b16 %v4664
        %v4793 = vunpack.c.l.b16 %v4665
        %v4794 = vunpack.c.l.b16 %v4666
        %v4795 = vunpack.c.l.b16 %v4667
        %v4796 = vunpack.c.l.b16 %v4668
        %v4797 = vunpack.c.l.b16 %v4669
        %v4798 = vunpack.c.l.b16 %v4670
        %v4799 = vunpack.c.l.b16 %v4671
        %v4800 = vunpack.c.l.b16 %v4672
        %v4801 = vunpack.c.l.b16 %v4673
        %v4802 = vunpack.c.l.b16 %v4674
        %v4803 = vunpack.c.l.b16 %v4675
        %v4804 = vunpack.c.l.b16 %v4676
        %v4805 = vunpack.c.l.b16 %v4677
        %v4806 = vpack.c.b16 %v4743, %v4742
        %v4807 = vpack.c.b16 %v4745, %v4744
        %v4808 = vpack.c.b16 %v4747, %v4746
        %v4809 = vpack.c.b16 %v4749, %v4748
        %v4810 = vpack.c.b16 %v4751, %v4750
        %v4811 = vpack.c.b16 %v4753, %v4752
        %v4812 = vpack.c.b16 %v4755, %v4754
        %v4813 = vpack.c.b16 %v4757, %v4756
        %v4814 = vpack.c.b16 %v4759, %v4758
        %v4815 = vpack.c.b16 %v4761, %v4760
        %v4816 = vpack.c.b16 %v4763, %v4762
        %v4817 = vpack.c.b16 %v4765, %v4764
        %v4818 = vpack.c.b16 %v4767, %v4766
        %v4819 = vpack.c.b16 %v4769, %v4768
        %v4820 = vpack.c.b16 %v4771, %v4770
        %v4821 = vpack.c.b16 %v4773, %v4772
        %v4822 = vpack.c.b16 %v4775, %v4774
        %v4823 = vpack.c.b16 %v4777, %v4776
        %v4824 = vpack.c.b16 %v4779, %v4778
        %v4825 = vpack.c.b16 %v4781, %v4780
        %v4826 = vpack.c.b16 %v4783, %v4782
        %v4827 = vpack.c.b16 %v4785, %v4784
        %v4828 = vpack.c.b16 %v4787, %v4786
        %v4829 = vpack.c.b16 %v4789, %v4788
        %v4830 = vpack.c.b16 %v4791, %v4790
        %v4831 = vpack.c.b16 %v4793, %v4792
        %v4832 = vpack.c.b16 %v4795, %v4794
        %v4833 = vpack.c.b16 %v4797, %v4796
        %v4834 = vpack.c.b16 %v4799, %v4798
        %v4835 = vpack.c.b16 %v4801, %v4800
        %v4836 = vpack.c.b16 %v4803, %v4802
        %v4837 = vpack.c.b16 %v4805, %v4804
        %4870 = vmatprep.subr.bf16.mxu0 0
        %4871 = vmatpush1.bf16.msra.mxu0 %v4813
        %4872 = vmatprep.subr.bf16.mxu0 0
        %4873 = vmatpush1.bf16.msra.mxu0 %v4812
        %4874 = vmatprep.subr.bf16.mxu0 0
        %4875 = vmatpush1.bf16.msra.mxu0 %v4811
        %4876 = vmatprep.subr.bf16.mxu0 0
        %4877 = vmatpush1.bf16.msra.mxu0 %v4810
        %4878 = vmatprep.subr.bf16.mxu0 0
        %4879 = vmatpush1.bf16.msra.mxu0 %v4809
        %4880 = vmatprep.subr.bf16.mxu0 0
        %4881 = vmatpush1.bf16.msra.mxu0 %v4808
        %4882 = vmatprep.subr.bf16.mxu0 0
        %4883 = vmatpush1.bf16.msra.mxu0 %v4807
        %4884 = vmatprep.subr.bf16.mxu0 0
        %4885 = vmatpush1.bf16.msra.mxu0 %v4806
        %4886 = vmatprep.subr.bf16.mxu0 0
        %4887 = vmatpush2.bf16.msra.mxu0 %v4821
        %4888 = vmatprep.subr.bf16.mxu0 0
        %4889 = vmatpush2.bf16.msra.mxu0 %v4820
        %4890 = vmatprep.subr.bf16.mxu0 0
        %4891 = vmatpush2.bf16.msra.mxu0 %v4819
        %4892 = vmatprep.subr.bf16.mxu0 0
        %4893 = vmatpush2.bf16.msra.mxu0 %v4818
        %4894 = vmatprep.subr.bf16.mxu0 0
        %4895 = vmatpush2.bf16.msra.mxu0 %v4817
        %4896 = vmatprep.subr.bf16.mxu0 0
        %4897 = vmatpush2.bf16.msra.mxu0 %v4816
        %4898 = vmatprep.subr.bf16.mxu0 0
        %4899 = vmatpush2.bf16.msra.mxu0 %v4815
        %4900 = vmatprep.subr.bf16.mxu0 0
        %4901 = vmatpush2.bf16.msra.mxu0 %v4814
        %4902 = vmatprep.mubr.bf16.mxu0 %v4599
        %4903 = vmatmul.mubr.bf16.gmra.mxu0 %v4598
        %v4904 = vpop.f32.mrf.mxu0
        %v4905 = vadd.f32 0.0, %v4904
        %v4906 = vpop.f32.mrf.mxu0
        %v4907 = vpop.f32.mrf.mxu0
        %v4908 = vadd.f32 0.0, %v4907
        %v4909 = vpop.f32.mrf.mxu0
        %4910 = vmatprep.mubr.bf16.mxu0 %v4603
        %4911 = vmatmul.mubr.bf16.gmra.mxu0 %v4602
        %v4912 = vpop.f32.mrf.mxu0
        %v4913 = vadd.f32 0.0, %v4912
        %v4914 = vpop.f32.mrf.mxu0
        %v4915 = vpop.f32.mrf.mxu0
        %v4916 = vadd.f32 0.0, %v4915
        %v4917 = vpop.f32.mrf.mxu0
        %4918 = vmatprep.mubr.bf16.mxu0 %v4607
        %4919 = vmatmul.mubr.bf16.gmra.mxu0 %v4606
        %v4920 = vpop.f32.mrf.mxu0
        %v4921 = vadd.f32 0.0, %v4920
        %v4922 = vpop.f32.mrf.mxu0
        %v4923 = vpop.f32.mrf.mxu0
        %v4924 = vadd.f32 0.0, %v4923
        %v4925 = vpop.f32.mrf.mxu0
        %4926 = vmatprep.mubr.bf16.mxu0 %v4611
        %4927 = vmatmul.mubr.bf16.gmra.mxu0 %v4610
        %v4928 = vpop.f32.mrf.mxu0
        %v4929 = vadd.f32 0.0, %v4928
        %v4930 = vpop.f32.mrf.mxu0
        %v4931 = vpop.f32.mrf.mxu0
        %v4932 = vadd.f32 0.0, %v4931
        %v4933 = vpop.f32.mrf.mxu0
        %4934 = vdwg.mxu0
        %4935 = vmatprep.subr.bf16.mxu0 0
        %4936 = vmatpush1.bf16.msra.mxu0 %v4829
        %4937 = vmatprep.subr.bf16.mxu0 0
        %4938 = vmatpush1.bf16.msra.mxu0 %v4828
        %4939 = vmatprep.subr.bf16.mxu0 0
        %4940 = vmatpush1.bf16.msra.mxu0 %v4827
        %4941 = vmatprep.subr.bf16.mxu0 0
        %4942 = vmatpush1.bf16.msra.mxu0 %v4826
        %4943 = vmatprep.subr.bf16.mxu0 0
        %4944 = vmatpush1.bf16.msra.mxu0 %v4825
        %4945 = vmatprep.subr.bf16.mxu0 0
        %4946 = vmatpush1.bf16.msra.mxu0 %v4824
        %4947 = vmatprep.subr.bf16.mxu0 0
        %4948 = vmatpush1.bf16.msra.mxu0 %v4823
        %4949 = vmatprep.subr.bf16.mxu0 0
        %4950 = vmatpush1.bf16.msra.mxu0 %v4822
        %4951 = vmatprep.subr.bf16.mxu0 0
        %4952 = vmatpush2.bf16.msra.mxu0 %v4837
        %4953 = vmatprep.subr.bf16.mxu0 0
        %4954 = vmatpush2.bf16.msra.mxu0 %v4836
        %4955 = vmatprep.subr.bf16.mxu0 0
        %4956 = vmatpush2.bf16.msra.mxu0 %v4835
        %4957 = vmatprep.subr.bf16.mxu0 0
        %4958 = vmatpush2.bf16.msra.mxu0 %v4834
        %4959 = vmatprep.subr.bf16.mxu0 0
        %4960 = vmatpush2.bf16.msra.mxu0 %v4833
        %4961 = vmatprep.subr.bf16.mxu0 0
        %4962 = vmatpush2.bf16.msra.mxu0 %v4832
        %4963 = vmatprep.subr.bf16.mxu0 0
        %4964 = vmatpush2.bf16.msra.mxu0 %v4831
        %4965 = vmatprep.subr.bf16.mxu0 0
        %4966 = vmatpush2.bf16.msra.mxu0 %v4830
        %4967 = vmatprep.mubr.bf16.mxu0 %v4601
        %4968 = vmatmul.mubr.bf16.gmra.mxu0 %v4600
        %v4969 = vpop.f32.mrf.mxu0
        %v4970 = vadd.f32 %v4905, %v4969
        %v4971 = vpop.f32.mrf.mxu0
        %v4972 = vpop.f32.mrf.mxu0
        %v4973 = vadd.f32 %v4908, %v4972
        %v4974 = vpop.f32.mrf.mxu0
        %4975 = vmatprep.mubr.bf16.mxu0 %v4605
        %4976 = vmatmul.mubr.bf16.gmra.mxu0 %v4604
        %v4977 = vpop.f32.mrf.mxu0
        %v4978 = vadd.f32 %v4913, %v4977
        %v4979 = vpop.f32.mrf.mxu0
        %v4980 = vpop.f32.mrf.mxu0
        %v4981 = vadd.f32 %v4916, %v4980
        %v4982 = vpop.f32.mrf.mxu0
        %4983 = vmatprep.mubr.bf16.mxu0 %v4609
        %4984 = vmatmul.mubr.bf16.gmra.mxu0 %v4608
        %v4985 = vpop.f32.mrf.mxu0
        %v4986 = vadd.f32 %v4921, %v4985
        %v4987 = vpop.f32.mrf.mxu0
        %v4988 = vpop.f32.mrf.mxu0
        %v4989 = vadd.f32 %v4924, %v4988
        %v4990 = vpop.f32.mrf.mxu0
        %4991 = vmatprep.mubr.bf16.mxu0 %v4613
        %4992 = vmatmul.mubr.bf16.gmra.mxu0 %v4612
        %v4993 = vpop.f32.mrf.mxu0
        %v4994 = vadd.f32 %v4929, %v4993
        %v4995 = vpop.f32.mrf.mxu0
        %v4996 = vpop.f32.mrf.mxu0
        %v4997 = vadd.f32 %v4932, %v4996
        %v4998 = vpop.f32.mrf.mxu0
        %4999 = vdwg.mxu0
        %v5000 = vadd.f32 %v4342, %v4970
        %v5001 = vadd.f32 %v4343, %v4973
        %v5002 = vadd.f32 %v4344, %v4978
        %v5003 = vadd.f32 %v4345, %v4981
        %v5004 = vadd.f32 %v4346, %v4986
        %v5005 = vadd.f32 %v4347, %v4989
        %v5006 = vadd.f32 %v4348, %v4994
        %v5007 = vadd.f32 %v4349, %v4997
        %v5008 = vadd.f32 %v2347, %v5000
        %v5009 = vadd.f32 %v2348, %v5001
        %v5010 = vadd.f32 %v2349, %v5002
        %v5011 = vadd.f32 %v2350, %v5003
        %v5012 = vadd.f32 %v2351, %v5004
        %v5013 = vadd.f32 %v2352, %v5005
        %v5014 = vadd.f32 %v2353, %v5006
        %v5015 = vadd.f32 %v2354, %v5007
        %v5016 = vsel %vm771, %v5008, 0.0
        %5017 = vadd.xlane.f32.xlu0 %v5016
        %v5018 = vpop.xlane.xlu0 %5017
        %v5019 = vsel %vm771, %v5009, 0.0
        %5020 = vadd.xlane.f32.xlu0 %v5019
        %v5021 = vpop.xlane.xlu0 %5020
        %v5022 = vsel %vm771, %v5010, 0.0
        %5023 = vadd.xlane.f32.xlu0 %v5022
        %v5024 = vpop.xlane.xlu0 %5023
        %v5025 = vsel %vm771, %v5011, 0.0
        %5026 = vadd.xlane.f32.xlu0 %v5025
        %v5027 = vpop.xlane.xlu0 %5026
        %v5028 = vsel %vm771, %v5012, 0.0
        %5029 = vadd.xlane.f32.xlu0 %v5028
        %v5030 = vpop.xlane.xlu0 %5029
        %v5031 = vsel %vm771, %v5013, 0.0
        %5032 = vadd.xlane.f32.xlu0 %v5031
        %v5033 = vpop.xlane.xlu0 %5032
        %v5034 = vsel %vm771, %v5014, 0.0
        %5035 = vadd.xlane.f32.xlu0 %v5034
        %v5036 = vpop.xlane.xlu0 %5035
        %v5037 = vsel %vm771, %v5015, 0.0
        %5038 = vadd.xlane.f32.xlu0 %v5037
        %v5039 = vpop.xlane.xlu0 %5038
        %v5040 = vmul.f32 %v5018, %v2250
        %v5041 = vmul.f32 %v5021, %v2250
        %v5042 = vmul.f32 %v5024, %v2250
        %v5043 = vmul.f32 %v5027, %v2250
        %v5044 = vmul.f32 %v5030, %v2250
        %v5045 = vmul.f32 %v5033, %v2250
        %v5046 = vmul.f32 %v5036, %v2250
        %v5047 = vmul.f32 %v5039, %v2250
        %v5048 = vsub.f32 %v5008, %v5040
        %v5049 = vsub.f32 %v5009, %v5041
        %v5050 = vsub.f32 %v5010, %v5042
        %v5051 = vsub.f32 %v5011, %v5043
        %v5052 = vsub.f32 %v5012, %v5044
        %v5053 = vsub.f32 %v5013, %v5045
        %v5054 = vsub.f32 %v5014, %v5046
        %v5055 = vsub.f32 %v5015, %v5047
        %v5056 = vmul.f32 %v5048, %v5048
        %v5057 = vmul.f32 %v5049, %v5049
        %v5058 = vmul.f32 %v5050, %v5050
        %v5059 = vmul.f32 %v5051, %v5051
        %v5060 = vmul.f32 %v5052, %v5052
        %v5061 = vmul.f32 %v5053, %v5053
        %v5062 = vmul.f32 %v5054, %v5054
        %v5063 = vmul.f32 %v5055, %v5055
        %v5064 = vsel %vm771, %v5056, 0.0
        %5065 = vadd.xlane.f32.xlu0 %v5064
        %v5066 = vpop.xlane.xlu0 %5065
        %v5067 = vsel %vm771, %v5057, 0.0
        %5068 = vadd.xlane.f32.xlu0 %v5067
        %v5069 = vpop.xlane.xlu0 %5068
        %v5070 = vsel %vm771, %v5058, 0.0
        %5071 = vadd.xlane.f32.xlu0 %v5070
        %v5072 = vpop.xlane.xlu0 %5071
        %v5073 = vsel %vm771, %v5059, 0.0
        %5074 = vadd.xlane.f32.xlu0 %v5073
        %v5075 = vpop.xlane.xlu0 %5074
        %v5076 = vsel %vm771, %v5060, 0.0
        %5077 = vadd.xlane.f32.xlu0 %v5076
        %v5078 = vpop.xlane.xlu0 %5077
        %v5079 = vsel %vm771, %v5061, 0.0
        %5080 = vadd.xlane.f32.xlu0 %v5079
        %v5081 = vpop.xlane.xlu0 %5080
        %v5082 = vsel %vm771, %v5062, 0.0
        %5083 = vadd.xlane.f32.xlu0 %v5082
        %v5084 = vpop.xlane.xlu0 %5083
        %v5085 = vsel %vm771, %v5063, 0.0
        %5086 = vadd.xlane.f32.xlu0 %v5085
        %v5087 = vpop.xlane.xlu0 %5086
        %v5088 = vmul.f32 %v5066, %v2250
        %v5089 = vmul.f32 %v5069, %v2250
        %v5090 = vmul.f32 %v5072, %v2250
        %v5091 = vmul.f32 %v5075, %v2250
        %v5092 = vmul.f32 %v5078, %v2250
        %v5093 = vmul.f32 %v5081, %v2250
        %v5094 = vmul.f32 %v5084, %v2250
        %v5095 = vmul.f32 %v5087, %v2250
        %v5096 = vadd.f32 %v5088, 1e-05
        %v5097 = vadd.f32 %v5089, 1e-05
        %v5098 = vadd.f32 %v5090, 1e-05
        %v5099 = vadd.f32 %v5091, 1e-05
        %v5100 = vadd.f32 %v5092, 1e-05
        %v5101 = vadd.f32 %v5093, 1e-05
        %v5102 = vadd.f32 %v5094, 1e-05
        %v5103 = vadd.f32 %v5095, 1e-05
        %v5104 = vrsqrt.pop %v5096
        %v5105 = vrsqrt.pop %v5097
        %v5106 = vrsqrt.pop %v5098
        %v5107 = vrsqrt.pop %v5099
        %v5108 = vrsqrt.pop %v5100
        %v5109 = vrsqrt.pop %v5101
        %v5110 = vrsqrt.pop %v5102
        %v5111 = vrsqrt.pop %v5103
        %v5112 = vmul.f32 %v5048, %v5104
        %v5113 = vmul.f32 %v5049, %v5105
        %v5114 = vmul.f32 %v5050, %v5106
        %v5115 = vmul.f32 %v5051, %v5107
        %v5116 = vmul.f32 %v5052, %v5108
        %v5117 = vmul.f32 %v5053, %v5109
        %v5118 = vmul.f32 %v5054, %v5110
        %v5119 = vmul.f32 %v5055, %v5111
        %v5120 = vlaneseq
        %v5121 = vshrl.u32 %v5120, 7
        %v5122 = vsub.s32 0, %v5121
        %v5123 = vrot.slane %v745, %v5122
        %v5124 = vmul.f32 %v5112, %v5123
        %v5125 = vmul.f32 %v5113, %v5123
        %v5126 = vmul.f32 %v5114, %v5123
        %v5127 = vmul.f32 %v5115, %v5123
        %v5128 = vmul.f32 %v5116, %v5123
        %v5129 = vmul.f32 %v5117, %v5123
        %v5130 = vmul.f32 %v5118, %v5123
        %v5131 = vmul.f32 %v5119, %v5123
        %v5132 = vlaneseq
        %v5133 = vshrl.u32 %v5132, 7
        %v5134 = vsub.s32 0, %v5133
        %v5135 = vrot.slane %v746, %v5134
        %v5136 = vadd.f32 %v5124, %v5135
        %v5137 = vadd.f32 %v5125, %v5135
        %v5138 = vadd.f32 %v5126, %v5135
        %v5139 = vadd.f32 %v5127, %v5135
        %v5140 = vadd.f32 %v5128, %v5135
        %v5141 = vadd.f32 %v5129, %v5135
        %v5142 = vadd.f32 %v5130, %v5135
        %v5143 = vadd.f32 %v5131, %v5135
        %v5144 = vld [vmem:[%s15] sm:$0x1]
        %v5145 = vld [vmem:[%s15 + $0x1] sm:$0x1]
        %v5146 = vld [vmem:[%s15 + $0x2] sm:$0x1]
        %v5147 = vld [vmem:[%s15 + $0x3] sm:$0x1]
        %v5148 = vld [vmem:[%s15 + $0x4] sm:$0x1]
        %v5149 = vld [vmem:[%s15 + $0x5] sm:$0x1]
        %v5150 = vld [vmem:[%s15 + $0x6] sm:$0x1]
        %v5151 = vpack.c.bf16 %v5137, %v5136
        %v5152 = vpack.c.bf16 %v5139, %v5138
        %v5153 = vpack.c.bf16 %v5141, %v5140
        %v5154 = vpack.c.bf16 %v5143, %v5142
        %v5155 = vld [vmem:[%s11] sm:$0xf]
        %v5156 = vld [vmem:[%s11 + $0x4] sm:$0xf]
        %v5157 = vld [vmem:[%s11 + $0x8] sm:$0xf]
        %v5158 = vld [vmem:[%s11 + $0xc] sm:$0xf]
        %v5159 = vlaneseq
        %v5160 = vshrl.u32 %v5159, 7
        %v5161 = vsub.s32 0, %v5160
        %v5162 = vrot.slane %v5144, %v5161
        %v5167 = vunpack.c.l.b16 %v5155
        %v5168 = vunpack.c.l.b16 %v5156
        %v5169 = vunpack.c.l.b16 %v5157
        %v5170 = vunpack.c.l.b16 %v5158
        %v5171 = vpack.c.b16 %v5168, %v5167
        %v5172 = vpack.c.b16 %v5170, %v5169
        %v5176 = vsel %vm771, %v5151, 0
        %v5179 = vsel %vm771, %v5152, 0
        %v5182 = vsel %vm771, %v5153, 0
        %v5185 = vsel %vm771, %v5154, 0
        %5187 = vmatprep.subr.bf16.mxu0 0
        %5188 = vmatpush1.bf16.msra.mxu0 0
        %5189 = vmatprep.subr.bf16.mxu0 0
        %5190 = vmatpush1.bf16.msra.mxu0 0
        %5191 = vmatprep.subr.bf16.mxu0 0
        %5192 = vmatpush1.bf16.msra.mxu0 0
        %5193 = vmatprep.subr.bf16.mxu0 0
        %5194 = vmatpush1.bf16.msra.mxu0 0
        %5195 = vmatprep.subr.bf16.mxu0 0
        %5196 = vmatpush1.bf16.msra.mxu0 0
        %5197 = vmatprep.subr.bf16.mxu0 0
        %5198 = vmatpush1.bf16.msra.mxu0 0
        %5199 = vmatprep.subr.bf16.mxu0 0
        %5200 = vmatpush1.bf16.msra.mxu0 %v5172
        %5201 = vmatprep.subr.bf16.mxu0 0
        %5202 = vmatpush1.bf16.msra.mxu0 %v5171
        %5203 = vmatprep.subr.bf16.mxu0 0
        %5204 = vmatpush2.bf16.msra.mxu0 0
        %5205 = vmatprep.subr.bf16.mxu0 0
        %5206 = vmatpush2.bf16.msra.mxu0 0
        %5207 = vmatprep.subr.bf16.mxu0 0
        %5208 = vmatpush2.bf16.msra.mxu0 0
        %5209 = vmatprep.subr.bf16.mxu0 0
        %5210 = vmatpush2.bf16.msra.mxu0 0
        %5211 = vmatprep.subr.bf16.mxu0 0
        %5212 = vmatpush2.bf16.msra.mxu0 0
        %5213 = vmatprep.subr.bf16.mxu0 0
        %5214 = vmatpush2.bf16.msra.mxu0 0
        %5215 = vmatprep.subr.bf16.mxu0 0
        %5216 = vmatpush2.bf16.msra.mxu0 0
        %5217 = vmatprep.subr.bf16.mxu0 0
        %5218 = vmatpush2.bf16.msra.mxu0 0
        %5219 = vmatprep.mubr.bf16.mxu0 0
        %5220 = vmatmul.mubr.bf16.gmra.mxu0 %v5176
        %v5221 = vpop.f32.mrf.mxu0
        %v5222 = vadd.f32 %v5162, %v5221
        %v5223 = vpop.f32.mrf.mxu0
        %v5224 = vpop.f32.mrf.mxu0
        %v5225 = vadd.f32 %v5162, %v5224
        %v5226 = vpop.f32.mrf.mxu0
        %5227 = vmatprep.mubr.bf16.mxu0 0
        %5228 = vmatmul.mubr.bf16.gmra.mxu0 %v5179
        %v5229 = vpop.f32.mrf.mxu0
        %v5230 = vadd.f32 %v5162, %v5229
        %v5231 = vpop.f32.mrf.mxu0
        %v5232 = vpop.f32.mrf.mxu0
        %v5233 = vadd.f32 %v5162, %v5232
        %v5234 = vpop.f32.mrf.mxu0
        %5235 = vmatprep.mubr.bf16.mxu0 0
        %5236 = vmatmul.mubr.bf16.gmra.mxu0 %v5182
        %v5237 = vpop.f32.mrf.mxu0
        %v5238 = vadd.f32 %v5162, %v5237
        %v5239 = vpop.f32.mrf.mxu0
        %v5240 = vpop.f32.mrf.mxu0
        %v5241 = vadd.f32 %v5162, %v5240
        %v5242 = vpop.f32.mrf.mxu0
        %5243 = vmatprep.mubr.bf16.mxu0 0
        %5244 = vmatmul.mubr.bf16.gmra.mxu0 %v5185
        %v5245 = vpop.f32.mrf.mxu0
        %v5246 = vadd.f32 %v5162, %v5245
        %v5247 = vpop.f32.mrf.mxu0
        %v5248 = vpop.f32.mrf.mxu0
        %v5249 = vadd.f32 %v5162, %v5248
        %v5250 = vpop.f32.mrf.mxu0
        %5251 = vdwg.mxu0
        %v5252 = vpack.c.bf16 %v5225, %v5222
        %v5253 = vpack.c.bf16 %v5233, %v5230
        %v5254 = vpack.c.bf16 %v5241, %v5238
        %v5255 = vpack.c.bf16 %v5249, %v5246
        %5260 = vrot.lane.b32.xlu0 %v5252, 96
        %v5261 = vpop.permute.xlu0 %5260
        %5262 = vrot.lane.b32.xlu0 %v5253, 96
        %v5263 = vpop.permute.xlu0 %5262
        %5264 = vrot.lane.b32.xlu0 %v5254, 96
        %v5265 = vpop.permute.xlu0 %5264
        %5266 = vrot.lane.b32.xlu0 %v5255, 96
        %v5267 = vpop.permute.xlu0 %5266
        %v5269 = vsel %vm865, %v5252, 0
        %v5272 = vsel %vm865, %v5253, 0
        %v5275 = vsel %vm865, %v5254, 0
        %v5278 = vsel %vm865, %v5255, 0
        %v5281 = vsel %vm865, %v5261, 0
        %v5284 = vsel %vm865, %v5263, 0
        %v5287 = vsel %vm865, %v5265, 0
        %v5290 = vsel %vm865, %v5267, 0
        %5292 = vmatprep.subr.bf16.mxu0 0
        %5293 = vmatpush1.bf16.xpose.msra.mxu0 0
        %5294 = vmatprep.subr.bf16.mxu0 0
        %5295 = vmatpush1.bf16.xpose.msra.mxu0 0
        %5296 = vmatprep.subr.bf16.mxu0 0
        %5297 = vmatpush1.bf16.xpose.msra.mxu0 0
        %5298 = vmatprep.subr.bf16.mxu0 0
        %5299 = vmatpush1.bf16.xpose.msra.mxu0 0
        %5300 = vmatprep.subr.bf16.mxu0 0
        %5301 = vmatpush1.bf16.xpose.msra.mxu0 %v5290
        %5302 = vmatprep.subr.bf16.mxu0 0
        %5303 = vmatpush1.bf16.xpose.msra.mxu0 %v5287
        %5304 = vmatprep.subr.bf16.mxu0 0
        %5305 = vmatpush1.bf16.xpose.msra.mxu0 %v5284
        %5306 = vmatprep.subr.bf16.mxu0 0
        %5307 = vmatpush1.bf16.xpose.msra.mxu0 %v5281
        %5308 = vmatprep.subr.bf16.mxu0 0
        %5309 = vmatpush2.bf16.xpose.msra.mxu0 0
        %5310 = vmatprep.subr.bf16.mxu0 0
        %5311 = vmatpush2.bf16.xpose.msra.mxu0 0
        %5312 = vmatprep.subr.bf16.mxu0 0
        %5313 = vmatpush2.bf16.xpose.msra.mxu0 0
        %5314 = vmatprep.subr.bf16.mxu0 0
        %5315 = vmatpush2.bf16.xpose.msra.mxu0 0
        %5316 = vmatprep.subr.bf16.mxu0 0
        %5317 = vmatpush2.bf16.xpose.msra.mxu0 0
        %5318 = vmatprep.subr.bf16.mxu0 0
        %5319 = vmatpush2.bf16.xpose.msra.mxu0 0
        %5320 = vmatprep.subr.bf16.mxu0 0
        %5321 = vmatpush2.bf16.xpose.msra.mxu0 0
        %5322 = vmatprep.subr.bf16.mxu0 0
        %5323 = vmatpush2.bf16.xpose.msra.mxu0 0
        %5324 = vmatprep.mubr.bf16.mxu0 0
        %5325 = vmatmul.mubr.bf16.gmra.mxu0 %v5269
        %v5326 = vpop.f32.mrf.mxu0
        %v5327 = vadd.f32 %v732, %v5326
        %v5328 = vpop.f32.mrf.mxu0
        %v5329 = vpop.f32.mrf.mxu0
        %v5330 = vadd.f32 %v733, %v5329
        %v5331 = vpop.f32.mrf.mxu0
        %5332 = vmatprep.mubr.bf16.mxu0 0
        %5333 = vmatmul.mubr.bf16.gmra.mxu0 %v5272
        %v5334 = vpop.f32.mrf.mxu0
        %v5335 = vadd.f32 %v734, %v5334
        %v5336 = vpop.f32.mrf.mxu0
        %v5337 = vpop.f32.mrf.mxu0
        %v5338 = vadd.f32 %v735, %v5337
        %v5339 = vpop.f32.mrf.mxu0
        %5340 = vmatprep.mubr.bf16.mxu0 0
        %5341 = vmatmul.mubr.bf16.gmra.mxu0 %v5275
        %v5342 = vpop.f32.mrf.mxu0
        %v5343 = vadd.f32 %v736, %v5342
        %v5344 = vpop.f32.mrf.mxu0
        %v5345 = vpop.f32.mrf.mxu0
        %v5346 = vadd.f32 %v737, %v5345
        %v5347 = vpop.f32.mrf.mxu0
        %5348 = vmatprep.mubr.bf16.mxu0 0
        %5349 = vmatmul.mubr.bf16.gmra.mxu0 %v5278
        %v5350 = vpop.f32.mrf.mxu0
        %v5351 = vadd.f32 %v738, %v5350
        %v5352 = vpop.f32.mrf.mxu0
        %v5353 = vpop.f32.mrf.mxu0
        %v5354 = vadd.f32 %v739, %v5353
        %v5355 = vpop.f32.mrf.mxu0
        %5356 = vdwg.mxu0
        %v5357 = vsel %vm955, %v5327, -inf
        %5358 = vmax.xlane.f32.xlu0 %v5357
        %v5359 = vpop.xlane.xlu0 %5358
        %v5360 = vsel %vm955, %v5330, -inf
        %5361 = vmax.xlane.f32.xlu0 %v5360
        %v5362 = vpop.xlane.xlu0 %5361
        %v5363 = vsel %vm955, %v5335, -inf
        %5364 = vmax.xlane.f32.xlu0 %v5363
        %v5365 = vpop.xlane.xlu0 %5364
        %v5366 = vsel %vm955, %v5338, -inf
        %5367 = vmax.xlane.f32.xlu0 %v5366
        %v5368 = vpop.xlane.xlu0 %5367
        %v5369 = vsel %vm955, %v5343, -inf
        %5370 = vmax.xlane.f32.xlu0 %v5369
        %v5371 = vpop.xlane.xlu0 %5370
        %v5372 = vsel %vm955, %v5346, -inf
        %5373 = vmax.xlane.f32.xlu0 %v5372
        %v5374 = vpop.xlane.xlu0 %5373
        %v5375 = vsel %vm955, %v5351, -inf
        %5376 = vmax.xlane.f32.xlu0 %v5375
        %v5377 = vpop.xlane.xlu0 %5376
        %v5378 = vsel %vm955, %v5354, -inf
        %5379 = vmax.xlane.f32.xlu0 %v5378
        %v5380 = vpop.xlane.xlu0 %5379
        %v5381 = vsub.f32 %v5327, %v5359
        %v5382 = vsub.f32 %v5330, %v5362
        %v5383 = vsub.f32 %v5335, %v5365
        %v5384 = vsub.f32 %v5338, %v5368
        %v5385 = vsub.f32 %v5343, %v5371
        %v5386 = vsub.f32 %v5346, %v5374
        %v5387 = vsub.f32 %v5351, %v5377
        %v5388 = vsub.f32 %v5354, %v5380
        %v5389 = vmul.f32 %v5381, 1.442695
        %v5390 = vpow.pop %v5389
        %v5391 = vmul.f32 %v5382, 1.442695
        %v5392 = vpow.pop %v5391
        %v5393 = vmul.f32 %v5383, 1.442695
        %v5394 = vpow.pop %v5393
        %v5395 = vmul.f32 %v5384, 1.442695
        %v5396 = vpow.pop %v5395
        %v5397 = vmul.f32 %v5385, 1.442695
        %v5398 = vpow.pop %v5397
        %v5399 = vmul.f32 %v5386, 1.442695
        %v5400 = vpow.pop %v5399
        %v5401 = vmul.f32 %v5387, 1.442695
        %v5402 = vpow.pop %v5401
        %v5403 = vmul.f32 %v5388, 1.442695
        %v5404 = vpow.pop %v5403
        %v5405 = vsel %vm955, %v5390, 0.0
        %5406 = vadd.xlane.f32.xlu0 %v5405
        %v5407 = vpop.xlane.xlu0 %5406
        %v5408 = vsel %vm955, %v5392, 0.0
        %5409 = vadd.xlane.f32.xlu0 %v5408
        %v5410 = vpop.xlane.xlu0 %5409
        %v5411 = vsel %vm955, %v5394, 0.0
        %5412 = vadd.xlane.f32.xlu0 %v5411
        %v5413 = vpop.xlane.xlu0 %5412
        %v5414 = vsel %vm955, %v5396, 0.0
        %5415 = vadd.xlane.f32.xlu0 %v5414
        %v5416 = vpop.xlane.xlu0 %5415
        %v5417 = vsel %vm955, %v5398, 0.0
        %5418 = vadd.xlane.f32.xlu0 %v5417
        %v5419 = vpop.xlane.xlu0 %5418
        %v5420 = vsel %vm955, %v5400, 0.0
        %5421 = vadd.xlane.f32.xlu0 %v5420
        %v5422 = vpop.xlane.xlu0 %5421
        %v5423 = vsel %vm955, %v5402, 0.0
        %5424 = vadd.xlane.f32.xlu0 %v5423
        %v5425 = vpop.xlane.xlu0 %5424
        %v5426 = vsel %vm955, %v5404, 0.0
        %5427 = vadd.xlane.f32.xlu0 %v5426
        %v5428 = vpop.xlane.xlu0 %5427
        %v5429 = vrcp.pop %v5407
        %v5430 = vrcp.pop %v5410
        %v5431 = vrcp.pop %v5413
        %v5432 = vrcp.pop %v5416
        %v5433 = vrcp.pop %v5419
        %v5434 = vrcp.pop %v5422
        %v5435 = vrcp.pop %v5425
        %v5436 = vrcp.pop %v5428
        %v5437 = vmul.f32 %v5390, %v5429
        %v5438 = vmul.f32 %v5392, %v5430
        %v5439 = vmul.f32 %v5394, %v5431
        %v5440 = vmul.f32 %v5396, %v5432
        %v5441 = vmul.f32 %v5398, %v5433
        %v5442 = vmul.f32 %v5400, %v5434
        %v5443 = vmul.f32 %v5402, %v5435
        %v5444 = vmul.f32 %v5404, %v5436
        %v5445 = vpack.c.bf16 %v5438, %v5437
        %v5446 = vpack.c.bf16 %v5440, %v5439
        %v5447 = vpack.c.bf16 %v5442, %v5441
        %v5448 = vpack.c.bf16 %v5444, %v5443
        %5449 = vrot.lane.b32.xlu0 %v5252, 64
        %v5450 = vpop.permute.xlu0 %5449
        %5451 = vrot.lane.b32.xlu0 %v5253, 64
        %v5452 = vpop.permute.xlu0 %5451
        %5453 = vrot.lane.b32.xlu0 %v5254, 64
        %v5454 = vpop.permute.xlu0 %5453
        %5455 = vrot.lane.b32.xlu0 %v5255, 64
        %v5456 = vpop.permute.xlu0 %5455
        %v5462 = vsel %vm955, %v5445, 0
        %v5465 = vsel %vm955, %v5446, 0
        %v5468 = vsel %vm955, %v5447, 0
        %v5471 = vsel %vm955, %v5448, 0
        %5473 = vmatprep.subr.bf16.mxu0 0
        %5474 = vmatpush1.bf16.msra.mxu0 0
        %5475 = vmatprep.subr.bf16.mxu0 0
        %5476 = vmatpush1.bf16.msra.mxu0 0
        %5477 = vmatprep.subr.bf16.mxu0 0
        %5478 = vmatpush1.bf16.msra.mxu0 0
        %5479 = vmatprep.subr.bf16.mxu0 0
        %5480 = vmatpush1.bf16.msra.mxu0 0
        %5481 = vmatprep.subr.bf16.mxu0 0
        %5482 = vmatpush1.bf16.msra.mxu0 %v5456
        %5483 = vmatprep.subr.bf16.mxu0 0
        %5484 = vmatpush1.bf16.msra.mxu0 %v5454
        %5485 = vmatprep.subr.bf16.mxu0 0
        %5486 = vmatpush1.bf16.msra.mxu0 %v5452
        %5487 = vmatprep.subr.bf16.mxu0 0
        %5488 = vmatpush1.bf16.msra.mxu0 %v5450
        %5489 = vmatprep.subr.bf16.mxu0 0
        %5490 = vmatpush2.bf16.msra.mxu0 0
        %5491 = vmatprep.subr.bf16.mxu0 0
        %5492 = vmatpush2.bf16.msra.mxu0 0
        %5493 = vmatprep.subr.bf16.mxu0 0
        %5494 = vmatpush2.bf16.msra.mxu0 0
        %5495 = vmatprep.subr.bf16.mxu0 0
        %5496 = vmatpush2.bf16.msra.mxu0 0
        %5497 = vmatprep.subr.bf16.mxu0 0
        %5498 = vmatpush2.bf16.msra.mxu0 0
        %5499 = vmatprep.subr.bf16.mxu0 0
        %5500 = vmatpush2.bf16.msra.mxu0 0
        %5501 = vmatprep.subr.bf16.mxu0 0
        %5502 = vmatpush2.bf16.msra.mxu0 0
        %5503 = vmatprep.subr.bf16.mxu0 0
        %5504 = vmatpush2.bf16.msra.mxu0 0
        %5505 = vmatprep.mubr.bf16.mxu0 0
        %5506 = vmatmul.mubr.bf16.gmra.mxu0 %v5462
        %v5507 = vpop.f32.mrf.mxu0
        %v5508 = vadd.f32 0.0, %v5507
        %v5509 = vpop.f32.mrf.mxu0
        %v5510 = vpop.f32.mrf.mxu0
        %v5511 = vadd.f32 0.0, %v5510
        %v5512 = vpop.f32.mrf.mxu0
        %5513 = vmatprep.mubr.bf16.mxu0 0
        %5514 = vmatmul.mubr.bf16.gmra.mxu0 %v5465
        %v5515 = vpop.f32.mrf.mxu0
        %v5516 = vadd.f32 0.0, %v5515
        %v5517 = vpop.f32.mrf.mxu0
        %v5518 = vpop.f32.mrf.mxu0
        %v5519 = vadd.f32 0.0, %v5518
        %v5520 = vpop.f32.mrf.mxu0
        %5521 = vmatprep.mubr.bf16.mxu0 0
        %5522 = vmatmul.mubr.bf16.gmra.mxu0 %v5468
        %v5523 = vpop.f32.mrf.mxu0
        %v5524 = vadd.f32 0.0, %v5523
        %v5525 = vpop.f32.mrf.mxu0
        %v5526 = vpop.f32.mrf.mxu0
        %v5527 = vadd.f32 0.0, %v5526
        %v5528 = vpop.f32.mrf.mxu0
        %5529 = vmatprep.mubr.bf16.mxu0 0
        %5530 = vmatmul.mubr.bf16.gmra.mxu0 %v5471
        %v5531 = vpop.f32.mrf.mxu0
        %v5532 = vadd.f32 0.0, %v5531
        %v5533 = vpop.f32.mrf.mxu0
        %v5534 = vpop.f32.mrf.mxu0
        %v5535 = vadd.f32 0.0, %v5534
        %v5536 = vpop.f32.mrf.mxu0
        %5537 = vdwg.mxu0
        %5538 = vrot.lane.b32.xlu0 %v5252, 120
        %v5539 = vpop.permute.xlu0 %5538
        %5540 = vrot.lane.b32.xlu0 %v5253, 120
        %v5541 = vpop.permute.xlu0 %5540
        %5542 = vrot.lane.b32.xlu0 %v5254, 120
        %v5543 = vpop.permute.xlu0 %5542
        %5544 = vrot.lane.b32.xlu0 %v5255, 120
        %v5545 = vpop.permute.xlu0 %5544
        %5546 = vrot.lane.b32.xlu0 %v5252, 88
        %v5547 = vpop.permute.xlu0 %5546
        %5548 = vrot.lane.b32.xlu0 %v5253, 88
        %v5549 = vpop.permute.xlu0 %5548
        %5550 = vrot.lane.b32.xlu0 %v5254, 88
        %v5551 = vpop.permute.xlu0 %5550
        %5552 = vrot.lane.b32.xlu0 %v5255, 88
        %v5553 = vpop.permute.xlu0 %5552
        %v5555 = vsel %vm865, %v5539, 0
        %v5558 = vsel %vm865, %v5541, 0
        %v5561 = vsel %vm865, %v5543, 0
        %v5564 = vsel %vm865, %v5545, 0
        %v5567 = vsel %vm865, %v5547, 0
        %v5570 = vsel %vm865, %v5549, 0
        %v5573 = vsel %vm865, %v5551, 0
        %v5576 = vsel %vm865, %v5553, 0
        %5578 = vmatprep.subr.bf16.mxu0 0
        %5579 = vmatpush1.bf16.xpose.msra.mxu0 0
        %5580 = vmatprep.subr.bf16.mxu0 0
        %5581 = vmatpush1.bf16.xpose.msra.mxu0 0
        %5582 = vmatprep.subr.bf16.mxu0 0
        %5583 = vmatpush1.bf16.xpose.msra.mxu0 0
        %5584 = vmatprep.subr.bf16.mxu0 0
        %5585 = vmatpush1.bf16.xpose.msra.mxu0 0
        %5586 = vmatprep.subr.bf16.mxu0 0
        %5587 = vmatpush1.bf16.xpose.msra.mxu0 %v5576
        %5588 = vmatprep.subr.bf16.mxu0 0
        %5589 = vmatpush1.bf16.xpose.msra.mxu0 %v5573
        %5590 = vmatprep.subr.bf16.mxu0 0
        %5591 = vmatpush1.bf16.xpose.msra.mxu0 %v5570
        %5592 = vmatprep.subr.bf16.mxu0 0
        %5593 = vmatpush1.bf16.xpose.msra.mxu0 %v5567
        %5594 = vmatprep.subr.bf16.mxu0 0
        %5595 = vmatpush2.bf16.xpose.msra.mxu0 0
        %5596 = vmatprep.subr.bf16.mxu0 0
        %5597 = vmatpush2.bf16.xpose.msra.mxu0 0
        %5598 = vmatprep.subr.bf16.mxu0 0
        %5599 = vmatpush2.bf16.xpose.msra.mxu0 0
        %5600 = vmatprep.subr.bf16.mxu0 0
        %5601 = vmatpush2.bf16.xpose.msra.mxu0 0
        %5602 = vmatprep.subr.bf16.mxu0 0
        %5603 = vmatpush2.bf16.xpose.msra.mxu0 0
        %5604 = vmatprep.subr.bf16.mxu0 0
        %5605 = vmatpush2.bf16.xpose.msra.mxu0 0
        %5606 = vmatprep.subr.bf16.mxu0 0
        %5607 = vmatpush2.bf16.xpose.msra.mxu0 0
        %5608 = vmatprep.subr.bf16.mxu0 0
        %5609 = vmatpush2.bf16.xpose.msra.mxu0 0
        %5610 = vmatprep.mubr.bf16.mxu0 0
        %5611 = vmatmul.mubr.bf16.gmra.mxu0 %v5555
        %v5612 = vpop.f32.mrf.mxu0
        %v5613 = vadd.f32 %v732, %v5612
        %v5614 = vpop.f32.mrf.mxu0
        %v5615 = vpop.f32.mrf.mxu0
        %v5616 = vadd.f32 %v733, %v5615
        %v5617 = vpop.f32.mrf.mxu0
        %5618 = vmatprep.mubr.bf16.mxu0 0
        %5619 = vmatmul.mubr.bf16.gmra.mxu0 %v5558
        %v5620 = vpop.f32.mrf.mxu0
        %v5621 = vadd.f32 %v734, %v5620
        %v5622 = vpop.f32.mrf.mxu0
        %v5623 = vpop.f32.mrf.mxu0
        %v5624 = vadd.f32 %v735, %v5623
        %v5625 = vpop.f32.mrf.mxu0
        %5626 = vmatprep.mubr.bf16.mxu0 0
        %5627 = vmatmul.mubr.bf16.gmra.mxu0 %v5561
        %v5628 = vpop.f32.mrf.mxu0
        %v5629 = vadd.f32 %v736, %v5628
        %v5630 = vpop.f32.mrf.mxu0
        %v5631 = vpop.f32.mrf.mxu0
        %v5632 = vadd.f32 %v737, %v5631
        %v5633 = vpop.f32.mrf.mxu0
        %5634 = vmatprep.mubr.bf16.mxu0 0
        %5635 = vmatmul.mubr.bf16.gmra.mxu0 %v5564
        %v5636 = vpop.f32.mrf.mxu0
        %v5637 = vadd.f32 %v738, %v5636
        %v5638 = vpop.f32.mrf.mxu0
        %v5639 = vpop.f32.mrf.mxu0
        %v5640 = vadd.f32 %v739, %v5639
        %v5641 = vpop.f32.mrf.mxu0
        %5642 = vdwg.mxu0
        %v5643 = vsel %vm955, %v5613, -inf
        %5644 = vmax.xlane.f32.xlu0 %v5643
        %v5645 = vpop.xlane.xlu0 %5644
        %v5646 = vsel %vm955, %v5616, -inf
        %5647 = vmax.xlane.f32.xlu0 %v5646
        %v5648 = vpop.xlane.xlu0 %5647
        %v5649 = vsel %vm955, %v5621, -inf
        %5650 = vmax.xlane.f32.xlu0 %v5649
        %v5651 = vpop.xlane.xlu0 %5650
        %v5652 = vsel %vm955, %v5624, -inf
        %5653 = vmax.xlane.f32.xlu0 %v5652
        %v5654 = vpop.xlane.xlu0 %5653
        %v5655 = vsel %vm955, %v5629, -inf
        %5656 = vmax.xlane.f32.xlu0 %v5655
        %v5657 = vpop.xlane.xlu0 %5656
        %v5658 = vsel %vm955, %v5632, -inf
        %5659 = vmax.xlane.f32.xlu0 %v5658
        %v5660 = vpop.xlane.xlu0 %5659
        %v5661 = vsel %vm955, %v5637, -inf
        %5662 = vmax.xlane.f32.xlu0 %v5661
        %v5663 = vpop.xlane.xlu0 %5662
        %v5664 = vsel %vm955, %v5640, -inf
        %5665 = vmax.xlane.f32.xlu0 %v5664
        %v5666 = vpop.xlane.xlu0 %5665
        %v5667 = vsub.f32 %v5613, %v5645
        %v5668 = vsub.f32 %v5616, %v5648
        %v5669 = vsub.f32 %v5621, %v5651
        %v5670 = vsub.f32 %v5624, %v5654
        %v5671 = vsub.f32 %v5629, %v5657
        %v5672 = vsub.f32 %v5632, %v5660
        %v5673 = vsub.f32 %v5637, %v5663
        %v5674 = vsub.f32 %v5640, %v5666
        %v5675 = vmul.f32 %v5667, 1.442695
        %v5676 = vpow.pop %v5675
        %v5677 = vmul.f32 %v5668, 1.442695
        %v5678 = vpow.pop %v5677
        %v5679 = vmul.f32 %v5669, 1.442695
        %v5680 = vpow.pop %v5679
        %v5681 = vmul.f32 %v5670, 1.442695
        %v5682 = vpow.pop %v5681
        %v5683 = vmul.f32 %v5671, 1.442695
        %v5684 = vpow.pop %v5683
        %v5685 = vmul.f32 %v5672, 1.442695
        %v5686 = vpow.pop %v5685
        %v5687 = vmul.f32 %v5673, 1.442695
        %v5688 = vpow.pop %v5687
        %v5689 = vmul.f32 %v5674, 1.442695
        %v5690 = vpow.pop %v5689
        %v5691 = vsel %vm955, %v5676, 0.0
        %5692 = vadd.xlane.f32.xlu0 %v5691
        %v5693 = vpop.xlane.xlu0 %5692
        %v5694 = vsel %vm955, %v5678, 0.0
        %5695 = vadd.xlane.f32.xlu0 %v5694
        %v5696 = vpop.xlane.xlu0 %5695
        %v5697 = vsel %vm955, %v5680, 0.0
        %5698 = vadd.xlane.f32.xlu0 %v5697
        %v5699 = vpop.xlane.xlu0 %5698
        %v5700 = vsel %vm955, %v5682, 0.0
        %5701 = vadd.xlane.f32.xlu0 %v5700
        %v5702 = vpop.xlane.xlu0 %5701
        %v5703 = vsel %vm955, %v5684, 0.0
        %5704 = vadd.xlane.f32.xlu0 %v5703
        %v5705 = vpop.xlane.xlu0 %5704
        %v5706 = vsel %vm955, %v5686, 0.0
        %5707 = vadd.xlane.f32.xlu0 %v5706
        %v5708 = vpop.xlane.xlu0 %5707
        %v5709 = vsel %vm955, %v5688, 0.0
        %5710 = vadd.xlane.f32.xlu0 %v5709
        %v5711 = vpop.xlane.xlu0 %5710
        %v5712 = vsel %vm955, %v5690, 0.0
        %5713 = vadd.xlane.f32.xlu0 %v5712
        %v5714 = vpop.xlane.xlu0 %5713
        %v5715 = vrcp.pop %v5693
        %v5716 = vrcp.pop %v5696
        %v5717 = vrcp.pop %v5699
        %v5718 = vrcp.pop %v5702
        %v5719 = vrcp.pop %v5705
        %v5720 = vrcp.pop %v5708
        %v5721 = vrcp.pop %v5711
        %v5722 = vrcp.pop %v5714
        %v5723 = vmul.f32 %v5676, %v5715
        %v5724 = vmul.f32 %v5678, %v5716
        %v5725 = vmul.f32 %v5680, %v5717
        %v5726 = vmul.f32 %v5682, %v5718
        %v5727 = vmul.f32 %v5684, %v5719
        %v5728 = vmul.f32 %v5686, %v5720
        %v5729 = vmul.f32 %v5688, %v5721
        %v5730 = vmul.f32 %v5690, %v5722
        %v5731 = vpack.c.bf16 %v5724, %v5723
        %v5732 = vpack.c.bf16 %v5726, %v5725
        %v5733 = vpack.c.bf16 %v5728, %v5727
        %v5734 = vpack.c.bf16 %v5730, %v5729
        %5735 = vrot.lane.b32.xlu0 %v5252, 56
        %v5736 = vpop.permute.xlu0 %5735
        %5737 = vrot.lane.b32.xlu0 %v5253, 56
        %v5738 = vpop.permute.xlu0 %5737
        %5739 = vrot.lane.b32.xlu0 %v5254, 56
        %v5740 = vpop.permute.xlu0 %5739
        %5741 = vrot.lane.b32.xlu0 %v5255, 56
        %v5742 = vpop.permute.xlu0 %5741
        %v5748 = vsel %vm955, %v5731, 0
        %v5751 = vsel %vm955, %v5732, 0
        %v5754 = vsel %vm955, %v5733, 0
        %v5757 = vsel %vm955, %v5734, 0
        %5759 = vmatprep.subr.bf16.mxu0 0
        %5760 = vmatpush1.bf16.msra.mxu0 0
        %5761 = vmatprep.subr.bf16.mxu0 0
        %5762 = vmatpush1.bf16.msra.mxu0 0
        %5763 = vmatprep.subr.bf16.mxu0 0
        %5764 = vmatpush1.bf16.msra.mxu0 0
        %5765 = vmatprep.subr.bf16.mxu0 0
        %5766 = vmatpush1.bf16.msra.mxu0 0
        %5767 = vmatprep.subr.bf16.mxu0 0
        %5768 = vmatpush1.bf16.msra.mxu0 %v5742
        %5769 = vmatprep.subr.bf16.mxu0 0
        %5770 = vmatpush1.bf16.msra.mxu0 %v5740
        %5771 = vmatprep.subr.bf16.mxu0 0
        %5772 = vmatpush1.bf16.msra.mxu0 %v5738
        %5773 = vmatprep.subr.bf16.mxu0 0
        %5774 = vmatpush1.bf16.msra.mxu0 %v5736
        %5775 = vmatprep.subr.bf16.mxu0 0
        %5776 = vmatpush2.bf16.msra.mxu0 0
        %5777 = vmatprep.subr.bf16.mxu0 0
        %5778 = vmatpush2.bf16.msra.mxu0 0
        %5779 = vmatprep.subr.bf16.mxu0 0
        %5780 = vmatpush2.bf16.msra.mxu0 0
        %5781 = vmatprep.subr.bf16.mxu0 0
        %5782 = vmatpush2.bf16.msra.mxu0 0
        %5783 = vmatprep.subr.bf16.mxu0 0
        %5784 = vmatpush2.bf16.msra.mxu0 0
        %5785 = vmatprep.subr.bf16.mxu0 0
        %5786 = vmatpush2.bf16.msra.mxu0 0
        %5787 = vmatprep.subr.bf16.mxu0 0
        %5788 = vmatpush2.bf16.msra.mxu0 0
        %5789 = vmatprep.subr.bf16.mxu0 0
        %5790 = vmatpush2.bf16.msra.mxu0 0
        %5791 = vmatprep.mubr.bf16.mxu0 0
        %5792 = vmatmul.mubr.bf16.gmra.mxu0 %v5748
        %v5793 = vpop.f32.mrf.mxu0
        %v5794 = vadd.f32 0.0, %v5793
        %v5795 = vpop.f32.mrf.mxu0
        %v5796 = vpop.f32.mrf.mxu0
        %v5797 = vadd.f32 0.0, %v5796
        %v5798 = vpop.f32.mrf.mxu0
        %5799 = vmatprep.mubr.bf16.mxu0 0
        %5800 = vmatmul.mubr.bf16.gmra.mxu0 %v5751
        %v5801 = vpop.f32.mrf.mxu0
        %v5802 = vadd.f32 0.0, %v5801
        %v5803 = vpop.f32.mrf.mxu0
        %v5804 = vpop.f32.mrf.mxu0
        %v5805 = vadd.f32 0.0, %v5804
        %v5806 = vpop.f32.mrf.mxu0
        %5807 = vmatprep.mubr.bf16.mxu0 0
        %5808 = vmatmul.mubr.bf16.gmra.mxu0 %v5754
        %v5809 = vpop.f32.mrf.mxu0
        %v5810 = vadd.f32 0.0, %v5809
        %v5811 = vpop.f32.mrf.mxu0
        %v5812 = vpop.f32.mrf.mxu0
        %v5813 = vadd.f32 0.0, %v5812
        %v5814 = vpop.f32.mrf.mxu0
        %5815 = vmatprep.mubr.bf16.mxu0 0
        %5816 = vmatmul.mubr.bf16.gmra.mxu0 %v5757
        %v5817 = vpop.f32.mrf.mxu0
        %v5818 = vadd.f32 0.0, %v5817
        %v5819 = vpop.f32.mrf.mxu0
        %v5820 = vpop.f32.mrf.mxu0
        %v5821 = vadd.f32 0.0, %v5820
        %v5822 = vpop.f32.mrf.mxu0
        %5823 = vdwg.mxu0
        %5824 = vrot.lane.b32.xlu0 %v5252, 112
        %v5825 = vpop.permute.xlu0 %5824
        %5826 = vrot.lane.b32.xlu0 %v5253, 112
        %v5827 = vpop.permute.xlu0 %5826
        %5828 = vrot.lane.b32.xlu0 %v5254, 112
        %v5829 = vpop.permute.xlu0 %5828
        %5830 = vrot.lane.b32.xlu0 %v5255, 112
        %v5831 = vpop.permute.xlu0 %5830
        %5832 = vrot.lane.b32.xlu0 %v5252, 80
        %v5833 = vpop.permute.xlu0 %5832
        %5834 = vrot.lane.b32.xlu0 %v5253, 80
        %v5835 = vpop.permute.xlu0 %5834
        %5836 = vrot.lane.b32.xlu0 %v5254, 80
        %v5837 = vpop.permute.xlu0 %5836
        %5838 = vrot.lane.b32.xlu0 %v5255, 80
        %v5839 = vpop.permute.xlu0 %5838
        %v5841 = vsel %vm865, %v5825, 0
        %v5844 = vsel %vm865, %v5827, 0
        %v5847 = vsel %vm865, %v5829, 0
        %v5850 = vsel %vm865, %v5831, 0
        %v5853 = vsel %vm865, %v5833, 0
        %v5856 = vsel %vm865, %v5835, 0
        %v5859 = vsel %vm865, %v5837, 0
        %v5862 = vsel %vm865, %v5839, 0
        %5864 = vmatprep.subr.bf16.mxu0 0
        %5865 = vmatpush1.bf16.xpose.msra.mxu0 0
        %5866 = vmatprep.subr.bf16.mxu0 0
        %5867 = vmatpush1.bf16.xpose.msra.mxu0 0
        %5868 = vmatprep.subr.bf16.mxu0 0
        %5869 = vmatpush1.bf16.xpose.msra.mxu0 0
        %5870 = vmatprep.subr.bf16.mxu0 0
        %5871 = vmatpush1.bf16.xpose.msra.mxu0 0
        %5872 = vmatprep.subr.bf16.mxu0 0
        %5873 = vmatpush1.bf16.xpose.msra.mxu0 %v5862
        %5874 = vmatprep.subr.bf16.mxu0 0
        %5875 = vmatpush1.bf16.xpose.msra.mxu0 %v5859
        %5876 = vmatprep.subr.bf16.mxu0 0
        %5877 = vmatpush1.bf16.xpose.msra.mxu0 %v5856
        %5878 = vmatprep.subr.bf16.mxu0 0
        %5879 = vmatpush1.bf16.xpose.msra.mxu0 %v5853
        %5880 = vmatprep.subr.bf16.mxu0 0
        %5881 = vmatpush2.bf16.xpose.msra.mxu0 0
        %5882 = vmatprep.subr.bf16.mxu0 0
        %5883 = vmatpush2.bf16.xpose.msra.mxu0 0
        %5884 = vmatprep.subr.bf16.mxu0 0
        %5885 = vmatpush2.bf16.xpose.msra.mxu0 0
        %5886 = vmatprep.subr.bf16.mxu0 0
        %5887 = vmatpush2.bf16.xpose.msra.mxu0 0
        %5888 = vmatprep.subr.bf16.mxu0 0
        %5889 = vmatpush2.bf16.xpose.msra.mxu0 0
        %5890 = vmatprep.subr.bf16.mxu0 0
        %5891 = vmatpush2.bf16.xpose.msra.mxu0 0
        %5892 = vmatprep.subr.bf16.mxu0 0
        %5893 = vmatpush2.bf16.xpose.msra.mxu0 0
        %5894 = vmatprep.subr.bf16.mxu0 0
        %5895 = vmatpush2.bf16.xpose.msra.mxu0 0
        %5896 = vmatprep.mubr.bf16.mxu0 0
        %5897 = vmatmul.mubr.bf16.gmra.mxu0 %v5841
        %v5898 = vpop.f32.mrf.mxu0
        %v5899 = vadd.f32 %v732, %v5898
        %v5900 = vpop.f32.mrf.mxu0
        %v5901 = vpop.f32.mrf.mxu0
        %v5902 = vadd.f32 %v733, %v5901
        %v5903 = vpop.f32.mrf.mxu0
        %5904 = vmatprep.mubr.bf16.mxu0 0
        %5905 = vmatmul.mubr.bf16.gmra.mxu0 %v5844
        %v5906 = vpop.f32.mrf.mxu0
        %v5907 = vadd.f32 %v734, %v5906
        %v5908 = vpop.f32.mrf.mxu0
        %v5909 = vpop.f32.mrf.mxu0
        %v5910 = vadd.f32 %v735, %v5909
        %v5911 = vpop.f32.mrf.mxu0
        %5912 = vmatprep.mubr.bf16.mxu0 0
        %5913 = vmatmul.mubr.bf16.gmra.mxu0 %v5847
        %v5914 = vpop.f32.mrf.mxu0
        %v5915 = vadd.f32 %v736, %v5914
        %v5916 = vpop.f32.mrf.mxu0
        %v5917 = vpop.f32.mrf.mxu0
        %v5918 = vadd.f32 %v737, %v5917
        %v5919 = vpop.f32.mrf.mxu0
        %5920 = vmatprep.mubr.bf16.mxu0 0
        %5921 = vmatmul.mubr.bf16.gmra.mxu0 %v5850
        %v5922 = vpop.f32.mrf.mxu0
        %v5923 = vadd.f32 %v738, %v5922
        %v5924 = vpop.f32.mrf.mxu0
        %v5925 = vpop.f32.mrf.mxu0
        %v5926 = vadd.f32 %v739, %v5925
        %v5927 = vpop.f32.mrf.mxu0
        %5928 = vdwg.mxu0
        %v5929 = vsel %vm955, %v5899, -inf
        %5930 = vmax.xlane.f32.xlu0 %v5929
        %v5931 = vpop.xlane.xlu0 %5930
        %v5932 = vsel %vm955, %v5902, -inf
        %5933 = vmax.xlane.f32.xlu0 %v5932
        %v5934 = vpop.xlane.xlu0 %5933
        %v5935 = vsel %vm955, %v5907, -inf
        %5936 = vmax.xlane.f32.xlu0 %v5935
        %v5937 = vpop.xlane.xlu0 %5936
        %v5938 = vsel %vm955, %v5910, -inf
        %5939 = vmax.xlane.f32.xlu0 %v5938
        %v5940 = vpop.xlane.xlu0 %5939
        %v5941 = vsel %vm955, %v5915, -inf
        %5942 = vmax.xlane.f32.xlu0 %v5941
        %v5943 = vpop.xlane.xlu0 %5942
        %v5944 = vsel %vm955, %v5918, -inf
        %5945 = vmax.xlane.f32.xlu0 %v5944
        %v5946 = vpop.xlane.xlu0 %5945
        %v5947 = vsel %vm955, %v5923, -inf
        %5948 = vmax.xlane.f32.xlu0 %v5947
        %v5949 = vpop.xlane.xlu0 %5948
        %v5950 = vsel %vm955, %v5926, -inf
        %5951 = vmax.xlane.f32.xlu0 %v5950
        %v5952 = vpop.xlane.xlu0 %5951
        %v5953 = vsub.f32 %v5899, %v5931
        %v5954 = vsub.f32 %v5902, %v5934
        %v5955 = vsub.f32 %v5907, %v5937
        %v5956 = vsub.f32 %v5910, %v5940
        %v5957 = vsub.f32 %v5915, %v5943
        %v5958 = vsub.f32 %v5918, %v5946
        %v5959 = vsub.f32 %v5923, %v5949
        %v5960 = vsub.f32 %v5926, %v5952
        %v5961 = vmul.f32 %v5953, 1.442695
        %v5962 = vpow.pop %v5961
        %v5963 = vmul.f32 %v5954, 1.442695
        %v5964 = vpow.pop %v5963
        %v5965 = vmul.f32 %v5955, 1.442695
        %v5966 = vpow.pop %v5965
        %v5967 = vmul.f32 %v5956, 1.442695
        %v5968 = vpow.pop %v5967
        %v5969 = vmul.f32 %v5957, 1.442695
        %v5970 = vpow.pop %v5969
        %v5971 = vmul.f32 %v5958, 1.442695
        %v5972 = vpow.pop %v5971
        %v5973 = vmul.f32 %v5959, 1.442695
        %v5974 = vpow.pop %v5973
        %v5975 = vmul.f32 %v5960, 1.442695
        %v5976 = vpow.pop %v5975
        %v5977 = vsel %vm955, %v5962, 0.0
        %5978 = vadd.xlane.f32.xlu0 %v5977
        %v5979 = vpop.xlane.xlu0 %5978
        %v5980 = vsel %vm955, %v5964, 0.0
        %5981 = vadd.xlane.f32.xlu0 %v5980
        %v5982 = vpop.xlane.xlu0 %5981
        %v5983 = vsel %vm955, %v5966, 0.0
        %5984 = vadd.xlane.f32.xlu0 %v5983
        %v5985 = vpop.xlane.xlu0 %5984
        %v5986 = vsel %vm955, %v5968, 0.0
        %5987 = vadd.xlane.f32.xlu0 %v5986
        %v5988 = vpop.xlane.xlu0 %5987
        %v5989 = vsel %vm955, %v5970, 0.0
        %5990 = vadd.xlane.f32.xlu0 %v5989
        %v5991 = vpop.xlane.xlu0 %5990
        %v5992 = vsel %vm955, %v5972, 0.0
        %5993 = vadd.xlane.f32.xlu0 %v5992
        %v5994 = vpop.xlane.xlu0 %5993
        %v5995 = vsel %vm955, %v5974, 0.0
        %5996 = vadd.xlane.f32.xlu0 %v5995
        %v5997 = vpop.xlane.xlu0 %5996
        %v5998 = vsel %vm955, %v5976, 0.0
        %5999 = vadd.xlane.f32.xlu0 %v5998
        %v6000 = vpop.xlane.xlu0 %5999
        %v6001 = vrcp.pop %v5979
        %v6002 = vrcp.pop %v5982
        %v6003 = vrcp.pop %v5985
        %v6004 = vrcp.pop %v5988
        %v6005 = vrcp.pop %v5991
        %v6006 = vrcp.pop %v5994
        %v6007 = vrcp.pop %v5997
        %v6008 = vrcp.pop %v6000
        %v6009 = vmul.f32 %v5962, %v6001
        %v6010 = vmul.f32 %v5964, %v6002
        %v6011 = vmul.f32 %v5966, %v6003
        %v6012 = vmul.f32 %v5968, %v6004
        %v6013 = vmul.f32 %v5970, %v6005
        %v6014 = vmul.f32 %v5972, %v6006
        %v6015 = vmul.f32 %v5974, %v6007
        %v6016 = vmul.f32 %v5976, %v6008
        %v6017 = vpack.c.bf16 %v6010, %v6009
        %v6018 = vpack.c.bf16 %v6012, %v6011
        %v6019 = vpack.c.bf16 %v6014, %v6013
        %v6020 = vpack.c.bf16 %v6016, %v6015
        %6021 = vrot.lane.b32.xlu0 %v5252, 48
        %v6022 = vpop.permute.xlu0 %6021
        %6023 = vrot.lane.b32.xlu0 %v5253, 48
        %v6024 = vpop.permute.xlu0 %6023
        %6025 = vrot.lane.b32.xlu0 %v5254, 48
        %v6026 = vpop.permute.xlu0 %6025
        %6027 = vrot.lane.b32.xlu0 %v5255, 48
        %v6028 = vpop.permute.xlu0 %6027
        %v6034 = vsel %vm955, %v6017, 0
        %v6037 = vsel %vm955, %v6018, 0
        %v6040 = vsel %vm955, %v6019, 0
        %v6043 = vsel %vm955, %v6020, 0
        %6045 = vmatprep.subr.bf16.mxu0 0
        %6046 = vmatpush1.bf16.msra.mxu0 0
        %6047 = vmatprep.subr.bf16.mxu0 0
        %6048 = vmatpush1.bf16.msra.mxu0 0
        %6049 = vmatprep.subr.bf16.mxu0 0
        %6050 = vmatpush1.bf16.msra.mxu0 0
        %6051 = vmatprep.subr.bf16.mxu0 0
        %6052 = vmatpush1.bf16.msra.mxu0 0
        %6053 = vmatprep.subr.bf16.mxu0 0
        %6054 = vmatpush1.bf16.msra.mxu0 %v6028
        %6055 = vmatprep.subr.bf16.mxu0 0
        %6056 = vmatpush1.bf16.msra.mxu0 %v6026
        %6057 = vmatprep.subr.bf16.mxu0 0
        %6058 = vmatpush1.bf16.msra.mxu0 %v6024
        %6059 = vmatprep.subr.bf16.mxu0 0
        %6060 = vmatpush1.bf16.msra.mxu0 %v6022
        %6061 = vmatprep.subr.bf16.mxu0 0
        %6062 = vmatpush2.bf16.msra.mxu0 0
        %6063 = vmatprep.subr.bf16.mxu0 0
        %6064 = vmatpush2.bf16.msra.mxu0 0
        %6065 = vmatprep.subr.bf16.mxu0 0
        %6066 = vmatpush2.bf16.msra.mxu0 0
        %6067 = vmatprep.subr.bf16.mxu0 0
        %6068 = vmatpush2.bf16.msra.mxu0 0
        %6069 = vmatprep.subr.bf16.mxu0 0
        %6070 = vmatpush2.bf16.msra.mxu0 0
        %6071 = vmatprep.subr.bf16.mxu0 0
        %6072 = vmatpush2.bf16.msra.mxu0 0
        %6073 = vmatprep.subr.bf16.mxu0 0
        %6074 = vmatpush2.bf16.msra.mxu0 0
        %6075 = vmatprep.subr.bf16.mxu0 0
        %6076 = vmatpush2.bf16.msra.mxu0 0
        %6077 = vmatprep.mubr.bf16.mxu0 0
        %6078 = vmatmul.mubr.bf16.gmra.mxu0 %v6034
        %v6079 = vpop.f32.mrf.mxu0
        %v6080 = vadd.f32 0.0, %v6079
        %v6081 = vpop.f32.mrf.mxu0
        %v6082 = vpop.f32.mrf.mxu0
        %v6083 = vadd.f32 0.0, %v6082
        %v6084 = vpop.f32.mrf.mxu0
        %6085 = vmatprep.mubr.bf16.mxu0 0
        %6086 = vmatmul.mubr.bf16.gmra.mxu0 %v6037
        %v6087 = vpop.f32.mrf.mxu0
        %v6088 = vadd.f32 0.0, %v6087
        %v6089 = vpop.f32.mrf.mxu0
        %v6090 = vpop.f32.mrf.mxu0
        %v6091 = vadd.f32 0.0, %v6090
        %v6092 = vpop.f32.mrf.mxu0
        %6093 = vmatprep.mubr.bf16.mxu0 0
        %6094 = vmatmul.mubr.bf16.gmra.mxu0 %v6040
        %v6095 = vpop.f32.mrf.mxu0
        %v6096 = vadd.f32 0.0, %v6095
        %v6097 = vpop.f32.mrf.mxu0
        %v6098 = vpop.f32.mrf.mxu0
        %v6099 = vadd.f32 0.0, %v6098
        %v6100 = vpop.f32.mrf.mxu0
        %6101 = vmatprep.mubr.bf16.mxu0 0
        %6102 = vmatmul.mubr.bf16.gmra.mxu0 %v6043
        %v6103 = vpop.f32.mrf.mxu0
        %v6104 = vadd.f32 0.0, %v6103
        %v6105 = vpop.f32.mrf.mxu0
        %v6106 = vpop.f32.mrf.mxu0
        %v6107 = vadd.f32 0.0, %v6106
        %v6108 = vpop.f32.mrf.mxu0
        %6109 = vdwg.mxu0
        %6110 = vrot.lane.b32.xlu0 %v5252, 104
        %v6111 = vpop.permute.xlu0 %6110
        %6112 = vrot.lane.b32.xlu0 %v5253, 104
        %v6113 = vpop.permute.xlu0 %6112
        %6114 = vrot.lane.b32.xlu0 %v5254, 104
        %v6115 = vpop.permute.xlu0 %6114
        %6116 = vrot.lane.b32.xlu0 %v5255, 104
        %v6117 = vpop.permute.xlu0 %6116
        %6118 = vrot.lane.b32.xlu0 %v5252, 72
        %v6119 = vpop.permute.xlu0 %6118
        %6120 = vrot.lane.b32.xlu0 %v5253, 72
        %v6121 = vpop.permute.xlu0 %6120
        %6122 = vrot.lane.b32.xlu0 %v5254, 72
        %v6123 = vpop.permute.xlu0 %6122
        %6124 = vrot.lane.b32.xlu0 %v5255, 72
        %v6125 = vpop.permute.xlu0 %6124
        %v6127 = vsel %vm865, %v6111, 0
        %v6130 = vsel %vm865, %v6113, 0
        %v6133 = vsel %vm865, %v6115, 0
        %v6136 = vsel %vm865, %v6117, 0
        %v6139 = vsel %vm865, %v6119, 0
        %v6142 = vsel %vm865, %v6121, 0
        %v6145 = vsel %vm865, %v6123, 0
        %v6148 = vsel %vm865, %v6125, 0
        %6150 = vmatprep.subr.bf16.mxu0 0
        %6151 = vmatpush1.bf16.xpose.msra.mxu0 0
        %6152 = vmatprep.subr.bf16.mxu0 0
        %6153 = vmatpush1.bf16.xpose.msra.mxu0 0
        %6154 = vmatprep.subr.bf16.mxu0 0
        %6155 = vmatpush1.bf16.xpose.msra.mxu0 0
        %6156 = vmatprep.subr.bf16.mxu0 0
        %6157 = vmatpush1.bf16.xpose.msra.mxu0 0
        %6158 = vmatprep.subr.bf16.mxu0 0
        %6159 = vmatpush1.bf16.xpose.msra.mxu0 %v6148
        %6160 = vmatprep.subr.bf16.mxu0 0
        %6161 = vmatpush1.bf16.xpose.msra.mxu0 %v6145
        %6162 = vmatprep.subr.bf16.mxu0 0
        %6163 = vmatpush1.bf16.xpose.msra.mxu0 %v6142
        %6164 = vmatprep.subr.bf16.mxu0 0
        %6165 = vmatpush1.bf16.xpose.msra.mxu0 %v6139
        %6166 = vmatprep.subr.bf16.mxu0 0
        %6167 = vmatpush2.bf16.xpose.msra.mxu0 0
        %6168 = vmatprep.subr.bf16.mxu0 0
        %6169 = vmatpush2.bf16.xpose.msra.mxu0 0
        %6170 = vmatprep.subr.bf16.mxu0 0
        %6171 = vmatpush2.bf16.xpose.msra.mxu0 0
        %6172 = vmatprep.subr.bf16.mxu0 0
        %6173 = vmatpush2.bf16.xpose.msra.mxu0 0
        %6174 = vmatprep.subr.bf16.mxu0 0
        %6175 = vmatpush2.bf16.xpose.msra.mxu0 0
        %6176 = vmatprep.subr.bf16.mxu0 0
        %6177 = vmatpush2.bf16.xpose.msra.mxu0 0
        %6178 = vmatprep.subr.bf16.mxu0 0
        %6179 = vmatpush2.bf16.xpose.msra.mxu0 0
        %6180 = vmatprep.subr.bf16.mxu0 0
        %6181 = vmatpush2.bf16.xpose.msra.mxu0 0
        %6182 = vmatprep.mubr.bf16.mxu0 0
        %6183 = vmatmul.mubr.bf16.gmra.mxu0 %v6127
        %v6184 = vpop.f32.mrf.mxu0
        %v6185 = vadd.f32 %v732, %v6184
        %v6186 = vpop.f32.mrf.mxu0
        %v6187 = vpop.f32.mrf.mxu0
        %v6188 = vadd.f32 %v733, %v6187
        %v6189 = vpop.f32.mrf.mxu0
        %6190 = vmatprep.mubr.bf16.mxu0 0
        %6191 = vmatmul.mubr.bf16.gmra.mxu0 %v6130
        %v6192 = vpop.f32.mrf.mxu0
        %v6193 = vadd.f32 %v734, %v6192
        %v6194 = vpop.f32.mrf.mxu0
        %v6195 = vpop.f32.mrf.mxu0
        %v6196 = vadd.f32 %v735, %v6195
        %v6197 = vpop.f32.mrf.mxu0
        %6198 = vmatprep.mubr.bf16.mxu0 0
        %6199 = vmatmul.mubr.bf16.gmra.mxu0 %v6133
        %v6200 = vpop.f32.mrf.mxu0
        %v6201 = vadd.f32 %v736, %v6200
        %v6202 = vpop.f32.mrf.mxu0
        %v6203 = vpop.f32.mrf.mxu0
        %v6204 = vadd.f32 %v737, %v6203
        %v6205 = vpop.f32.mrf.mxu0
        %6206 = vmatprep.mubr.bf16.mxu0 0
        %6207 = vmatmul.mubr.bf16.gmra.mxu0 %v6136
        %v6208 = vpop.f32.mrf.mxu0
        %v6209 = vadd.f32 %v738, %v6208
        %v6210 = vpop.f32.mrf.mxu0
        %v6211 = vpop.f32.mrf.mxu0
        %v6212 = vadd.f32 %v739, %v6211
        %v6213 = vpop.f32.mrf.mxu0
        %6214 = vdwg.mxu0
        %v6215 = vsel %vm955, %v6185, -inf
        %6216 = vmax.xlane.f32.xlu0 %v6215
        %v6217 = vpop.xlane.xlu0 %6216
        %v6218 = vsel %vm955, %v6188, -inf
        %6219 = vmax.xlane.f32.xlu0 %v6218
        %v6220 = vpop.xlane.xlu0 %6219
        %v6221 = vsel %vm955, %v6193, -inf
        %6222 = vmax.xlane.f32.xlu0 %v6221
        %v6223 = vpop.xlane.xlu0 %6222
        %v6224 = vsel %vm955, %v6196, -inf
        %6225 = vmax.xlane.f32.xlu0 %v6224
        %v6226 = vpop.xlane.xlu0 %6225
        %v6227 = vsel %vm955, %v6201, -inf
        %6228 = vmax.xlane.f32.xlu0 %v6227
        %v6229 = vpop.xlane.xlu0 %6228
        %v6230 = vsel %vm955, %v6204, -inf
        %6231 = vmax.xlane.f32.xlu0 %v6230
        %v6232 = vpop.xlane.xlu0 %6231
        %v6233 = vsel %vm955, %v6209, -inf
        %6234 = vmax.xlane.f32.xlu0 %v6233
        %v6235 = vpop.xlane.xlu0 %6234
        %v6236 = vsel %vm955, %v6212, -inf
        %6237 = vmax.xlane.f32.xlu0 %v6236
        %v6238 = vpop.xlane.xlu0 %6237
        %v6239 = vsub.f32 %v6185, %v6217
        %v6240 = vsub.f32 %v6188, %v6220
        %v6241 = vsub.f32 %v6193, %v6223
        %v6242 = vsub.f32 %v6196, %v6226
        %v6243 = vsub.f32 %v6201, %v6229
        %v6244 = vsub.f32 %v6204, %v6232
        %v6245 = vsub.f32 %v6209, %v6235
        %v6246 = vsub.f32 %v6212, %v6238
        %v6247 = vmul.f32 %v6239, 1.442695
        %v6248 = vpow.pop %v6247
        %v6249 = vmul.f32 %v6240, 1.442695
        %v6250 = vpow.pop %v6249
        %v6251 = vmul.f32 %v6241, 1.442695
        %v6252 = vpow.pop %v6251
        %v6253 = vmul.f32 %v6242, 1.442695
        %v6254 = vpow.pop %v6253
        %v6255 = vmul.f32 %v6243, 1.442695
        %v6256 = vpow.pop %v6255
        %v6257 = vmul.f32 %v6244, 1.442695
        %v6258 = vpow.pop %v6257
        %v6259 = vmul.f32 %v6245, 1.442695
        %v6260 = vpow.pop %v6259
        %v6261 = vmul.f32 %v6246, 1.442695
        %v6262 = vpow.pop %v6261
        %v6263 = vsel %vm955, %v6248, 0.0
        %6264 = vadd.xlane.f32.xlu0 %v6263
        %v6265 = vpop.xlane.xlu0 %6264
        %v6266 = vsel %vm955, %v6250, 0.0
        %6267 = vadd.xlane.f32.xlu0 %v6266
        %v6268 = vpop.xlane.xlu0 %6267
        %v6269 = vsel %vm955, %v6252, 0.0
        %6270 = vadd.xlane.f32.xlu0 %v6269
        %v6271 = vpop.xlane.xlu0 %6270
        %v6272 = vsel %vm955, %v6254, 0.0
        %6273 = vadd.xlane.f32.xlu0 %v6272
        %v6274 = vpop.xlane.xlu0 %6273
        %v6275 = vsel %vm955, %v6256, 0.0
        %6276 = vadd.xlane.f32.xlu0 %v6275
        %v6277 = vpop.xlane.xlu0 %6276
        %v6278 = vsel %vm955, %v6258, 0.0
        %6279 = vadd.xlane.f32.xlu0 %v6278
        %v6280 = vpop.xlane.xlu0 %6279
        %v6281 = vsel %vm955, %v6260, 0.0
        %6282 = vadd.xlane.f32.xlu0 %v6281
        %v6283 = vpop.xlane.xlu0 %6282
        %v6284 = vsel %vm955, %v6262, 0.0
        %6285 = vadd.xlane.f32.xlu0 %v6284
        %v6286 = vpop.xlane.xlu0 %6285
        %v6287 = vrcp.pop %v6265
        %v6288 = vrcp.pop %v6268
        %v6289 = vrcp.pop %v6271
        %v6290 = vrcp.pop %v6274
        %v6291 = vrcp.pop %v6277
        %v6292 = vrcp.pop %v6280
        %v6293 = vrcp.pop %v6283
        %v6294 = vrcp.pop %v6286
        %v6295 = vmul.f32 %v6248, %v6287
        %v6296 = vmul.f32 %v6250, %v6288
        %v6297 = vmul.f32 %v6252, %v6289
        %v6298 = vmul.f32 %v6254, %v6290
        %v6299 = vmul.f32 %v6256, %v6291
        %v6300 = vmul.f32 %v6258, %v6292
        %v6301 = vmul.f32 %v6260, %v6293
        %v6302 = vmul.f32 %v6262, %v6294
        %v6303 = vpack.c.bf16 %v6296, %v6295
        %v6304 = vpack.c.bf16 %v6298, %v6297
        %v6305 = vpack.c.bf16 %v6300, %v6299
        %v6306 = vpack.c.bf16 %v6302, %v6301
        %6307 = vrot.lane.b32.xlu0 %v5252, 40
        %v6308 = vpop.permute.xlu0 %6307
        %6309 = vrot.lane.b32.xlu0 %v5253, 40
        %v6310 = vpop.permute.xlu0 %6309
        %6311 = vrot.lane.b32.xlu0 %v5254, 40
        %v6312 = vpop.permute.xlu0 %6311
        %6313 = vrot.lane.b32.xlu0 %v5255, 40
        %v6314 = vpop.permute.xlu0 %6313
        %v6320 = vsel %vm955, %v6303, 0
        %v6323 = vsel %vm955, %v6304, 0
        %v6326 = vsel %vm955, %v6305, 0
        %v6329 = vsel %vm955, %v6306, 0
        %6331 = vmatprep.subr.bf16.mxu0 0
        %6332 = vmatpush1.bf16.msra.mxu0 0
        %6333 = vmatprep.subr.bf16.mxu0 0
        %6334 = vmatpush1.bf16.msra.mxu0 0
        %6335 = vmatprep.subr.bf16.mxu0 0
        %6336 = vmatpush1.bf16.msra.mxu0 0
        %6337 = vmatprep.subr.bf16.mxu0 0
        %6338 = vmatpush1.bf16.msra.mxu0 0
        %6339 = vmatprep.subr.bf16.mxu0 0
        %6340 = vmatpush1.bf16.msra.mxu0 %v6314
        %6341 = vmatprep.subr.bf16.mxu0 0
        %6342 = vmatpush1.bf16.msra.mxu0 %v6312
        %6343 = vmatprep.subr.bf16.mxu0 0
        %6344 = vmatpush1.bf16.msra.mxu0 %v6310
        %6345 = vmatprep.subr.bf16.mxu0 0
        %6346 = vmatpush1.bf16.msra.mxu0 %v6308
        %6347 = vmatprep.subr.bf16.mxu0 0
        %6348 = vmatpush2.bf16.msra.mxu0 0
        %6349 = vmatprep.subr.bf16.mxu0 0
        %6350 = vmatpush2.bf16.msra.mxu0 0
        %6351 = vmatprep.subr.bf16.mxu0 0
        %6352 = vmatpush2.bf16.msra.mxu0 0
        %6353 = vmatprep.subr.bf16.mxu0 0
        %6354 = vmatpush2.bf16.msra.mxu0 0
        %6355 = vmatprep.subr.bf16.mxu0 0
        %6356 = vmatpush2.bf16.msra.mxu0 0
        %6357 = vmatprep.subr.bf16.mxu0 0
        %6358 = vmatpush2.bf16.msra.mxu0 0
        %6359 = vmatprep.subr.bf16.mxu0 0
        %6360 = vmatpush2.bf16.msra.mxu0 0
        %6361 = vmatprep.subr.bf16.mxu0 0
        %6362 = vmatpush2.bf16.msra.mxu0 0
        %6363 = vmatprep.mubr.bf16.mxu0 0
        %6364 = vmatmul.mubr.bf16.gmra.mxu0 %v6320
        %v6365 = vpop.f32.mrf.mxu0
        %v6366 = vadd.f32 0.0, %v6365
        %v6367 = vpop.f32.mrf.mxu0
        %v6368 = vpop.f32.mrf.mxu0
        %v6369 = vadd.f32 0.0, %v6368
        %v6370 = vpop.f32.mrf.mxu0
        %6371 = vmatprep.mubr.bf16.mxu0 0
        %6372 = vmatmul.mubr.bf16.gmra.mxu0 %v6323
        %v6373 = vpop.f32.mrf.mxu0
        %v6374 = vadd.f32 0.0, %v6373
        %v6375 = vpop.f32.mrf.mxu0
        %v6376 = vpop.f32.mrf.mxu0
        %v6377 = vadd.f32 0.0, %v6376
        %v6378 = vpop.f32.mrf.mxu0
        %6379 = vmatprep.mubr.bf16.mxu0 0
        %6380 = vmatmul.mubr.bf16.gmra.mxu0 %v6326
        %v6381 = vpop.f32.mrf.mxu0
        %v6382 = vadd.f32 0.0, %v6381
        %v6383 = vpop.f32.mrf.mxu0
        %v6384 = vpop.f32.mrf.mxu0
        %v6385 = vadd.f32 0.0, %v6384
        %v6386 = vpop.f32.mrf.mxu0
        %6387 = vmatprep.mubr.bf16.mxu0 0
        %6388 = vmatmul.mubr.bf16.gmra.mxu0 %v6329
        %v6389 = vpop.f32.mrf.mxu0
        %v6390 = vadd.f32 0.0, %v6389
        %v6391 = vpop.f32.mrf.mxu0
        %v6392 = vpop.f32.mrf.mxu0
        %v6393 = vadd.f32 0.0, %v6392
        %v6394 = vpop.f32.mrf.mxu0
        %6395 = vdwg.mxu0
        %6404 = vrot.lane.b32.xlu0 %v5794, 8
        %v6405 = vpop.permute.xlu0 %6404
        %6406 = vrot.lane.b32.xlu0 %v5797, 8
        %v6407 = vpop.permute.xlu0 %6406
        %6408 = vrot.lane.b32.xlu0 %v5802, 8
        %v6409 = vpop.permute.xlu0 %6408
        %6410 = vrot.lane.b32.xlu0 %v5805, 8
        %v6411 = vpop.permute.xlu0 %6410
        %6412 = vrot.lane.b32.xlu0 %v5810, 8
        %v6413 = vpop.permute.xlu0 %6412
        %6414 = vrot.lane.b32.xlu0 %v5813, 8
        %v6415 = vpop.permute.xlu0 %6414
        %6416 = vrot.lane.b32.xlu0 %v5818, 8
        %v6417 = vpop.permute.xlu0 %6416
        %6418 = vrot.lane.b32.xlu0 %v5821, 8
        %v6419 = vpop.permute.xlu0 %6418
        %6436 = vrot.lane.b32.xlu0 %v6080, 16
        %v6437 = vpop.permute.xlu0 %6436
        %6438 = vrot.lane.b32.xlu0 %v6083, 16
        %v6439 = vpop.permute.xlu0 %6438
        %6440 = vrot.lane.b32.xlu0 %v6088, 16
        %v6441 = vpop.permute.xlu0 %6440
        %6442 = vrot.lane.b32.xlu0 %v6091, 16
        %v6443 = vpop.permute.xlu0 %6442
        %6444 = vrot.lane.b32.xlu0 %v6096, 16
        %v6445 = vpop.permute.xlu0 %6444
        %6446 = vrot.lane.b32.xlu0 %v6099, 16
        %v6447 = vpop.permute.xlu0 %6446
        %6448 = vrot.lane.b32.xlu0 %v6104, 16
        %v6449 = vpop.permute.xlu0 %6448
        %6450 = vrot.lane.b32.xlu0 %v6107, 16
        %v6451 = vpop.permute.xlu0 %6450
        %6468 = vrot.lane.b32.xlu0 %v6366, 24
        %v6469 = vpop.permute.xlu0 %6468
        %6470 = vrot.lane.b32.xlu0 %v6369, 24
        %v6471 = vpop.permute.xlu0 %6470
        %6472 = vrot.lane.b32.xlu0 %v6374, 24
        %v6473 = vpop.permute.xlu0 %6472
        %6474 = vrot.lane.b32.xlu0 %v6377, 24
        %v6475 = vpop.permute.xlu0 %6474
        %6476 = vrot.lane.b32.xlu0 %v6382, 24
        %v6477 = vpop.permute.xlu0 %6476
        %6478 = vrot.lane.b32.xlu0 %v6385, 24
        %v6479 = vpop.permute.xlu0 %6478
        %6480 = vrot.lane.b32.xlu0 %v6390, 24
        %v6481 = vpop.permute.xlu0 %6480
        %6482 = vrot.lane.b32.xlu0 %v6393, 24
        %v6483 = vpop.permute.xlu0 %6482
        %v6492 = vsel %vm865, %v5508, %v6405
        %v6493 = vsel %vm865, %v5511, %v6407
        %v6494 = vsel %vm865, %v5516, %v6409
        %v6495 = vsel %vm865, %v5519, %v6411
        %v6496 = vsel %vm865, %v5524, %v6413
        %v6497 = vsel %vm865, %v5527, %v6415
        %v6498 = vsel %vm865, %v5532, %v6417
        %v6499 = vsel %vm865, %v5535, %v6419
        %v6500 = vsel %vm2099, %v6492, %v6437
        %v6501 = vsel %vm2099, %v6493, %v6439
        %v6502 = vsel %vm2099, %v6494, %v6441
        %v6503 = vsel %vm2099, %v6495, %v6443
        %v6504 = vsel %vm2099, %v6496, %v6445
        %v6505 = vsel %vm2099, %v6497, %v6447
        %v6506 = vsel %vm2099, %v6498, %v6449
        %v6507 = vsel %vm2099, %v6499, %v6451
        %v6508 = vsel %vm2108, %v6500, %v6469
        %v6509 = vsel %vm2108, %v6501, %v6471
        %v6510 = vsel %vm2108, %v6502, %v6473
        %v6511 = vsel %vm2108, %v6503, %v6475
        %v6512 = vsel %vm2108, %v6504, %v6477
        %v6513 = vsel %vm2108, %v6505, %v6479
        %v6514 = vsel %vm2108, %v6506, %v6481
        %v6515 = vsel %vm2108, %v6507, %v6483
        %v6516 = vpack.c.bf16 %v6509, %v6508
        %v6517 = vpack.c.bf16 %v6511, %v6510
        %v6518 = vpack.c.bf16 %v6513, %v6512
        %v6519 = vpack.c.bf16 %v6515, %v6514
        %v6520 = vld [vmem:[%s12] sm:$0xf]
        %v6521 = vld [vmem:[%s12 + $0x4] sm:$0xf]
        %v6522 = vld [vmem:[%s12 + $0x8] sm:$0xf]
        %v6523 = vld [vmem:[%s12 + $0xc] sm:$0xf]
        %v6524 = vlaneseq
        %v6525 = vshrl.u32 %v6524, 7
        %v6526 = vsub.s32 0, %v6525
        %v6527 = vrot.slane %v5145, %v6526
        %v6532 = vunpack.c.l.b16 %v6520
        %v6533 = vunpack.c.l.b16 %v6521
        %v6534 = vunpack.c.l.b16 %v6522
        %v6535 = vunpack.c.l.b16 %v6523
        %v6536 = vpack.c.b16 %v6533, %v6532
        %v6537 = vpack.c.b16 %v6535, %v6534
        %v6541 = vsel %vm771, %v6516, 0
        %v6544 = vsel %vm771, %v6517, 0
        %v6547 = vsel %vm771, %v6518, 0
        %v6550 = vsel %vm771, %v6519, 0
        %6552 = vmatprep.subr.bf16.mxu0 0
        %6553 = vmatpush1.bf16.msra.mxu0 0
        %6554 = vmatprep.subr.bf16.mxu0 0
        %6555 = vmatpush1.bf16.msra.mxu0 0
        %6556 = vmatprep.subr.bf16.mxu0 0
        %6557 = vmatpush1.bf16.msra.mxu0 0
        %6558 = vmatprep.subr.bf16.mxu0 0
        %6559 = vmatpush1.bf16.msra.mxu0 0
        %6560 = vmatprep.subr.bf16.mxu0 0
        %6561 = vmatpush1.bf16.msra.mxu0 0
        %6562 = vmatprep.subr.bf16.mxu0 0
        %6563 = vmatpush1.bf16.msra.mxu0 0
        %6564 = vmatprep.subr.bf16.mxu0 0
        %6565 = vmatpush1.bf16.msra.mxu0 %v6537
        %6566 = vmatprep.subr.bf16.mxu0 0
        %6567 = vmatpush1.bf16.msra.mxu0 %v6536
        %6568 = vmatprep.subr.bf16.mxu0 0
        %6569 = vmatpush2.bf16.msra.mxu0 0
        %6570 = vmatprep.subr.bf16.mxu0 0
        %6571 = vmatpush2.bf16.msra.mxu0 0
        %6572 = vmatprep.subr.bf16.mxu0 0
        %6573 = vmatpush2.bf16.msra.mxu0 0
        %6574 = vmatprep.subr.bf16.mxu0 0
        %6575 = vmatpush2.bf16.msra.mxu0 0
        %6576 = vmatprep.subr.bf16.mxu0 0
        %6577 = vmatpush2.bf16.msra.mxu0 0
        %6578 = vmatprep.subr.bf16.mxu0 0
        %6579 = vmatpush2.bf16.msra.mxu0 0
        %6580 = vmatprep.subr.bf16.mxu0 0
        %6581 = vmatpush2.bf16.msra.mxu0 0
        %6582 = vmatprep.subr.bf16.mxu0 0
        %6583 = vmatpush2.bf16.msra.mxu0 0
        %6584 = vmatprep.mubr.bf16.mxu0 0
        %6585 = vmatmul.mubr.bf16.gmra.mxu0 %v6541
        %v6586 = vpop.f32.mrf.mxu0
        %v6587 = vadd.f32 %v6527, %v6586
        %v6588 = vpop.f32.mrf.mxu0
        %v6589 = vpop.f32.mrf.mxu0
        %v6590 = vadd.f32 %v6527, %v6589
        %v6591 = vpop.f32.mrf.mxu0
        %6592 = vmatprep.mubr.bf16.mxu0 0
        %6593 = vmatmul.mubr.bf16.gmra.mxu0 %v6544
        %v6594 = vpop.f32.mrf.mxu0
        %v6595 = vadd.f32 %v6527, %v6594
        %v6596 = vpop.f32.mrf.mxu0
        %v6597 = vpop.f32.mrf.mxu0
        %v6598 = vadd.f32 %v6527, %v6597
        %v6599 = vpop.f32.mrf.mxu0
        %6600 = vmatprep.mubr.bf16.mxu0 0
        %6601 = vmatmul.mubr.bf16.gmra.mxu0 %v6547
        %v6602 = vpop.f32.mrf.mxu0
        %v6603 = vadd.f32 %v6527, %v6602
        %v6604 = vpop.f32.mrf.mxu0
        %v6605 = vpop.f32.mrf.mxu0
        %v6606 = vadd.f32 %v6527, %v6605
        %v6607 = vpop.f32.mrf.mxu0
        %6608 = vmatprep.mubr.bf16.mxu0 0
        %6609 = vmatmul.mubr.bf16.gmra.mxu0 %v6550
        %v6610 = vpop.f32.mrf.mxu0
        %v6611 = vadd.f32 %v6527, %v6610
        %v6612 = vpop.f32.mrf.mxu0
        %v6613 = vpop.f32.mrf.mxu0
        %v6614 = vadd.f32 %v6527, %v6613
        %v6615 = vpop.f32.mrf.mxu0
        %6616 = vdwg.mxu0
        %v6617 = vadd.f32 %v5136, %v6587
        %v6618 = vadd.f32 %v5137, %v6590
        %v6619 = vadd.f32 %v5138, %v6595
        %v6620 = vadd.f32 %v5139, %v6598
        %v6621 = vadd.f32 %v5140, %v6603
        %v6622 = vadd.f32 %v5141, %v6606
        %v6623 = vadd.f32 %v5142, %v6611
        %v6624 = vadd.f32 %v5143, %v6614
        %v6625 = vsel %vm771, %v6617, 0.0
        %6626 = vadd.xlane.f32.xlu0 %v6625
        %v6627 = vpop.xlane.xlu0 %6626
        %v6628 = vsel %vm771, %v6618, 0.0
        %6629 = vadd.xlane.f32.xlu0 %v6628
        %v6630 = vpop.xlane.xlu0 %6629
        %v6631 = vsel %vm771, %v6619, 0.0
        %6632 = vadd.xlane.f32.xlu0 %v6631
        %v6633 = vpop.xlane.xlu0 %6632
        %v6634 = vsel %vm771, %v6620, 0.0
        %6635 = vadd.xlane.f32.xlu0 %v6634
        %v6636 = vpop.xlane.xlu0 %6635
        %v6637 = vsel %vm771, %v6621, 0.0
        %6638 = vadd.xlane.f32.xlu0 %v6637
        %v6639 = vpop.xlane.xlu0 %6638
        %v6640 = vsel %vm771, %v6622, 0.0
        %6641 = vadd.xlane.f32.xlu0 %v6640
        %v6642 = vpop.xlane.xlu0 %6641
        %v6643 = vsel %vm771, %v6623, 0.0
        %6644 = vadd.xlane.f32.xlu0 %v6643
        %v6645 = vpop.xlane.xlu0 %6644
        %v6646 = vsel %vm771, %v6624, 0.0
        %6647 = vadd.xlane.f32.xlu0 %v6646
        %v6648 = vpop.xlane.xlu0 %6647
        %v6649 = vmul.f32 %v6627, %v2250
        %v6650 = vmul.f32 %v6630, %v2250
        %v6651 = vmul.f32 %v6633, %v2250
        %v6652 = vmul.f32 %v6636, %v2250
        %v6653 = vmul.f32 %v6639, %v2250
        %v6654 = vmul.f32 %v6642, %v2250
        %v6655 = vmul.f32 %v6645, %v2250
        %v6656 = vmul.f32 %v6648, %v2250
        %v6657 = vsub.f32 %v6617, %v6649
        %v6658 = vsub.f32 %v6618, %v6650
        %v6659 = vsub.f32 %v6619, %v6651
        %v6660 = vsub.f32 %v6620, %v6652
        %v6661 = vsub.f32 %v6621, %v6653
        %v6662 = vsub.f32 %v6622, %v6654
        %v6663 = vsub.f32 %v6623, %v6655
        %v6664 = vsub.f32 %v6624, %v6656
        %v6665 = vmul.f32 %v6657, %v6657
        %v6666 = vmul.f32 %v6658, %v6658
        %v6667 = vmul.f32 %v6659, %v6659
        %v6668 = vmul.f32 %v6660, %v6660
        %v6669 = vmul.f32 %v6661, %v6661
        %v6670 = vmul.f32 %v6662, %v6662
        %v6671 = vmul.f32 %v6663, %v6663
        %v6672 = vmul.f32 %v6664, %v6664
        %v6673 = vsel %vm771, %v6665, 0.0
        %6674 = vadd.xlane.f32.xlu0 %v6673
        %v6675 = vpop.xlane.xlu0 %6674
        %v6676 = vsel %vm771, %v6666, 0.0
        %6677 = vadd.xlane.f32.xlu0 %v6676
        %v6678 = vpop.xlane.xlu0 %6677
        %v6679 = vsel %vm771, %v6667, 0.0
        %6680 = vadd.xlane.f32.xlu0 %v6679
        %v6681 = vpop.xlane.xlu0 %6680
        %v6682 = vsel %vm771, %v6668, 0.0
        %6683 = vadd.xlane.f32.xlu0 %v6682
        %v6684 = vpop.xlane.xlu0 %6683
        %v6685 = vsel %vm771, %v6669, 0.0
        %6686 = vadd.xlane.f32.xlu0 %v6685
        %v6687 = vpop.xlane.xlu0 %6686
        %v6688 = vsel %vm771, %v6670, 0.0
        %6689 = vadd.xlane.f32.xlu0 %v6688
        %v6690 = vpop.xlane.xlu0 %6689
        %v6691 = vsel %vm771, %v6671, 0.0
        %6692 = vadd.xlane.f32.xlu0 %v6691
        %v6693 = vpop.xlane.xlu0 %6692
        %v6694 = vsel %vm771, %v6672, 0.0
        %6695 = vadd.xlane.f32.xlu0 %v6694
        %v6696 = vpop.xlane.xlu0 %6695
        %v6697 = vmul.f32 %v6675, %v2250
        %v6698 = vmul.f32 %v6678, %v2250
        %v6699 = vmul.f32 %v6681, %v2250
        %v6700 = vmul.f32 %v6684, %v2250
        %v6701 = vmul.f32 %v6687, %v2250
        %v6702 = vmul.f32 %v6690, %v2250
        %v6703 = vmul.f32 %v6693, %v2250
        %v6704 = vmul.f32 %v6696, %v2250
        %v6705 = vadd.f32 %v6697, 1e-05
        %v6706 = vadd.f32 %v6698, 1e-05
        %v6707 = vadd.f32 %v6699, 1e-05
        %v6708 = vadd.f32 %v6700, 1e-05
        %v6709 = vadd.f32 %v6701, 1e-05
        %v6710 = vadd.f32 %v6702, 1e-05
        %v6711 = vadd.f32 %v6703, 1e-05
        %v6712 = vadd.f32 %v6704, 1e-05
        %v6713 = vrsqrt.pop %v6705
        %v6714 = vrsqrt.pop %v6706
        %v6715 = vrsqrt.pop %v6707
        %v6716 = vrsqrt.pop %v6708
        %v6717 = vrsqrt.pop %v6709
        %v6718 = vrsqrt.pop %v6710
        %v6719 = vrsqrt.pop %v6711
        %v6720 = vrsqrt.pop %v6712
        %v6721 = vmul.f32 %v6657, %v6713
        %v6722 = vmul.f32 %v6658, %v6714
        %v6723 = vmul.f32 %v6659, %v6715
        %v6724 = vmul.f32 %v6660, %v6716
        %v6725 = vmul.f32 %v6661, %v6717
        %v6726 = vmul.f32 %v6662, %v6718
        %v6727 = vmul.f32 %v6663, %v6719
        %v6728 = vmul.f32 %v6664, %v6720
        %v6729 = vlaneseq
        %v6730 = vshrl.u32 %v6729, 7
        %v6731 = vsub.s32 0, %v6730
        %v6732 = vrot.slane %v5146, %v6731
        %v6733 = vmul.f32 %v6721, %v6732
        %v6734 = vmul.f32 %v6722, %v6732
        %v6735 = vmul.f32 %v6723, %v6732
        %v6736 = vmul.f32 %v6724, %v6732
        %v6737 = vmul.f32 %v6725, %v6732
        %v6738 = vmul.f32 %v6726, %v6732
        %v6739 = vmul.f32 %v6727, %v6732
        %v6740 = vmul.f32 %v6728, %v6732
        %v6741 = vlaneseq
        %v6742 = vshrl.u32 %v6741, 7
        %v6743 = vsub.s32 0, %v6742
        %v6744 = vrot.slane %v5147, %v6743
        %v6745 = vadd.f32 %v6733, %v6744
        %v6746 = vadd.f32 %v6734, %v6744
        %v6747 = vadd.f32 %v6735, %v6744
        %v6748 = vadd.f32 %v6736, %v6744
        %v6749 = vadd.f32 %v6737, %v6744
        %v6750 = vadd.f32 %v6738, %v6744
        %v6751 = vadd.f32 %v6739, %v6744
        %v6752 = vadd.f32 %v6740, %v6744
        %v6753 = vpack.c.bf16 %v6746, %v6745
        %v6754 = vpack.c.bf16 %v6748, %v6747
        %v6755 = vpack.c.bf16 %v6750, %v6749
        %v6756 = vpack.c.bf16 %v6752, %v6751
        %v6757 = vlaneseq
        %v6758 = vshrl.u32 %v6757, 7
        %v6759 = vsub.s32 0, %v6758
        %v6760 = vrot.slane %v5148, %v6759
        %v6761 = vadd.f32 %v6760, 0.0
        %v6762 = vld [vmem:[%s13] sm:$0xff]
        %v6763 = vld [vmem:[%s13 + $0x8] sm:$0xff]
        %v6764 = vld [vmem:[%s13 + $0x40] sm:$0xff]
        %v6765 = vld [vmem:[%s13 + $0x48] sm:$0xff]
        %v6766 = vld [vmem:[%s13 + $0x80] sm:$0xff]
        %v6767 = vld [vmem:[%s13 + $0x88] sm:$0xff]
        %v6768 = vld [vmem:[%s13 + $0xc0] sm:$0xff]
        %v6769 = vld [vmem:[%s13 + $0xc8] sm:$0xff]
        %v6770 = vld [vmem:[%s16] sm:$0xf]
        %v6772 = vlaneseq
        %v6773 = vshrl.u32 %v6772, 7
        %v6774 = vsub.s32 0, %v6773
        %v6775 = vrot.slane %v6770, %v6774
        %v6776 = vlaneseq
        %v6777 = vshrl.u32 %v6776, 7
        %v6778 = vsub.s32 1, %v6777
        %v6779 = vrot.slane %v6770, %v6778
        %v6780 = vlaneseq
        %v6781 = vshrl.u32 %v6780, 7
        %v6782 = vsub.s32 2, %v6781
        %v6783 = vrot.slane %v6770, %v6782
        %v6784 = vlaneseq
        %v6785 = vshrl.u32 %v6784, 7
        %v6786 = vsub.s32 3, %v6785
        %v6787 = vrot.slane %v6770, %v6786
        %v6800 = vunpack.c.l.b16 %v6762
        %v6801 = vunpack.c.h.b16 %v6762
        %v6802 = vunpack.c.l.b16 %v6763
        %v6803 = vunpack.c.h.b16 %v6763
        %v6804 = vunpack.c.l.b16 %v6764
        %v6805 = vunpack.c.h.b16 %v6764
        %v6806 = vunpack.c.l.b16 %v6765
        %v6807 = vunpack.c.h.b16 %v6765
        %v6808 = vunpack.c.l.b16 %v6766
        %v6809 = vunpack.c.h.b16 %v6766
        %v6810 = vunpack.c.l.b16 %v6767
        %v6811 = vunpack.c.h.b16 %v6767
        %v6812 = vunpack.c.l.b16 %v6768
        %v6813 = vunpack.c.h.b16 %v6768
        %v6814 = vunpack.c.l.b16 %v6769
        %v6815 = vunpack.c.h.b16 %v6769
        %v6816 = vpack.c.b16 %v6804, %v6800
        %v6817 = vpack.c.b16 %v6805, %v6801
        %v6818 = vpack.c.b16 %v6806, %v6802
        %v6819 = vpack.c.b16 %v6807, %v6803
        %v6820 = vpack.c.b16 %v6812, %v6808
        %v6821 = vpack.c.b16 %v6813, %v6809
        %v6822 = vpack.c.b16 %v6814, %v6810
        %v6823 = vpack.c.b16 %v6815, %v6811
        %v6833 = vsel %vm771, %v6753, 0
        %v6836 = vsel %vm771, %v6754, 0
        %v6839 = vsel %vm771, %v6755, 0
        %v6842 = vsel %vm771, %v6756, 0
        %6844 = vmatprep.subr.bf16.mxu0 0
        %6845 = vmatpush1.bf16.msra.mxu0 0
        %6846 = vmatprep.subr.bf16.mxu0 0
        %6847 = vmatpush1.bf16.msra.mxu0 0
        %6848 = vmatprep.subr.bf16.mxu0 0
        %6849 = vmatpush1.bf16.msra.mxu0 0
        %6850 = vmatprep.subr.bf16.mxu0 0
        %6851 = vmatpush1.bf16.msra.mxu0 0
        %6852 = vmatprep.subr.bf16.mxu0 0
        %6853 = vmatpush1.bf16.msra.mxu0 0
        %6854 = vmatprep.subr.bf16.mxu0 0
        %6855 = vmatpush1.bf16.msra.mxu0 0
        %6856 = vmatprep.subr.bf16.mxu0 %v6821
        %6857 = vmatpush1.bf16.msra.mxu0 %v6820
        %6858 = vmatprep.subr.bf16.mxu0 %v6817
        %6859 = vmatpush1.bf16.msra.mxu0 %v6816
        %6860 = vmatprep.subr.bf16.mxu0 0
        %6861 = vmatpush2.bf16.msra.mxu0 0
        %6862 = vmatprep.subr.bf16.mxu0 0
        %6863 = vmatpush2.bf16.msra.mxu0 0
        %6864 = vmatprep.subr.bf16.mxu0 0
        %6865 = vmatpush2.bf16.msra.mxu0 0
        %6866 = vmatprep.subr.bf16.mxu0 0
        %6867 = vmatpush2.bf16.msra.mxu0 0
        %6868 = vmatprep.subr.bf16.mxu0 0
        %6869 = vmatpush2.bf16.msra.mxu0 0
        %6870 = vmatprep.subr.bf16.mxu0 0
        %6871 = vmatpush2.bf16.msra.mxu0 0
        %6872 = vmatprep.subr.bf16.mxu0 0
        %6873 = vmatpush2.bf16.msra.mxu0 0
        %6874 = vmatprep.subr.bf16.mxu0 0
        %6875 = vmatpush2.bf16.msra.mxu0 0
        %6876 = vmatprep.mubr.bf16.mxu0 0
        %6877 = vmatmul.mubr.bf16.gmra.mxu0 %v6833
        %v6878 = vpop.f32.mrf.mxu0
        %v6879 = vadd.f32 %v6775, %v6878
        %v6880 = vpop.f32.mrf.mxu0
        %v6881 = vadd.f32 %v6779, %v6880
        %v6882 = vpop.f32.mrf.mxu0
        %v6883 = vadd.f32 %v6775, %v6882
        %v6884 = vpop.f32.mrf.mxu0
        %v6885 = vadd.f32 %v6779, %v6884
        %6886 = vmatprep.mubr.bf16.mxu0 0
        %6887 = vmatmul.mubr.bf16.gmra.mxu0 %v6836
        %v6888 = vpop.f32.mrf.mxu0
        %v6889 = vadd.f32 %v6775, %v6888
        %v6890 = vpop.f32.mrf.mxu0
        %v6891 = vadd.f32 %v6779, %v6890
        %v6892 = vpop.f32.mrf.mxu0
        %v6893 = vadd.f32 %v6775, %v6892
        %v6894 = vpop.f32.mrf.mxu0
        %v6895 = vadd.f32 %v6779, %v6894
        %6896 = vmatprep.mubr.bf16.mxu0 0
        %6897 = vmatmul.mubr.bf16.gmra.mxu0 %v6839
        %v6898 = vpop.f32.mrf.mxu0
        %v6899 = vadd.f32 %v6775, %v6898
        %v6900 = vpop.f32.mrf.mxu0
        %v6901 = vadd.f32 %v6779, %v6900
        %v6902 = vpop.f32.mrf.mxu0
        %v6903 = vadd.f32 %v6775, %v6902
        %v6904 = vpop.f32.mrf.mxu0
        %v6905 = vadd.f32 %v6779, %v6904
        %6906 = vmatprep.mubr.bf16.mxu0 0
        %6907 = vmatmul.mubr.bf16.gmra.mxu0 %v6842
        %v6908 = vpop.f32.mrf.mxu0
        %v6909 = vadd.f32 %v6775, %v6908
        %v6910 = vpop.f32.mrf.mxu0
        %v6911 = vadd.f32 %v6779, %v6910
        %v6912 = vpop.f32.mrf.mxu0
        %v6913 = vadd.f32 %v6775, %v6912
        %v6914 = vpop.f32.mrf.mxu0
        %v6915 = vadd.f32 %v6779, %v6914
        %6916 = vdwg.mxu0
        %6917 = vmatprep.subr.bf16.mxu0 0
        %6918 = vmatpush1.bf16.msra.mxu0 0
        %6919 = vmatprep.subr.bf16.mxu0 0
        %6920 = vmatpush1.bf16.msra.mxu0 0
        %6921 = vmatprep.subr.bf16.mxu0 0
        %6922 = vmatpush1.bf16.msra.mxu0 0
        %6923 = vmatprep.subr.bf16.mxu0 0
        %6924 = vmatpush1.bf16.msra.mxu0 0
        %6925 = vmatprep.subr.bf16.mxu0 0
        %6926 = vmatpush1.bf16.msra.mxu0 0
        %6927 = vmatprep.subr.bf16.mxu0 0
        %6928 = vmatpush1.bf16.msra.mxu0 0
        %6929 = vmatprep.subr.bf16.mxu0 %v6823
        %6930 = vmatpush1.bf16.msra.mxu0 %v6822
        %6931 = vmatprep.subr.bf16.mxu0 %v6819
        %6932 = vmatpush1.bf16.msra.mxu0 %v6818
        %6933 = vmatprep.subr.bf16.mxu0 0
        %6934 = vmatpush2.bf16.msra.mxu0 0
        %6935 = vmatprep.subr.bf16.mxu0 0
        %6936 = vmatpush2.bf16.msra.mxu0 0
        %6937 = vmatprep.subr.bf16.mxu0 0
        %6938 = vmatpush2.bf16.msra.mxu0 0
        %6939 = vmatprep.subr.bf16.mxu0 0
        %6940 = vmatpush2.bf16.msra.mxu0 0
        %6941 = vmatprep.subr.bf16.mxu0 0
        %6942 = vmatpush2.bf16.msra.mxu0 0
        %6943 = vmatprep.subr.bf16.mxu0 0
        %6944 = vmatpush2.bf16.msra.mxu0 0
        %6945 = vmatprep.subr.bf16.mxu0 0
        %6946 = vmatpush2.bf16.msra.mxu0 0
        %6947 = vmatprep.subr.bf16.mxu0 0
        %6948 = vmatpush2.bf16.msra.mxu0 0
        %6949 = vmatprep.mubr.bf16.mxu0 0
        %6950 = vmatmul.mubr.bf16.gmra.mxu0 %v6833
        %v6951 = vpop.f32.mrf.mxu0
        %v6952 = vadd.f32 %v6783, %v6951
        %v6953 = vpop.f32.mrf.mxu0
        %v6954 = vadd.f32 %v6787, %v6953
        %v6955 = vpop.f32.mrf.mxu0
        %v6956 = vadd.f32 %v6783, %v6955
        %v6957 = vpop.f32.mrf.mxu0
        %v6958 = vadd.f32 %v6787, %v6957
        %6959 = vmatprep.mubr.bf16.mxu0 0
        %6960 = vmatmul.mubr.bf16.gmra.mxu0 %v6836
        %v6961 = vpop.f32.mrf.mxu0
        %v6962 = vadd.f32 %v6783, %v6961
        %v6963 = vpop.f32.mrf.mxu0
        %v6964 = vadd.f32 %v6787, %v6963
        %v6965 = vpop.f32.mrf.mxu0
        %v6966 = vadd.f32 %v6783, %v6965
        %v6967 = vpop.f32.mrf.mxu0
        %v6968 = vadd.f32 %v6787, %v6967
        %6969 = vmatprep.mubr.bf16.mxu0 0
        %6970 = vmatmul.mubr.bf16.gmra.mxu0 %v6839
        %v6971 = vpop.f32.mrf.mxu0
        %v6972 = vadd.f32 %v6783, %v6971
        %v6973 = vpop.f32.mrf.mxu0
        %v6974 = vadd.f32 %v6787, %v6973
        %v6975 = vpop.f32.mrf.mxu0
        %v6976 = vadd.f32 %v6783, %v6975
        %v6977 = vpop.f32.mrf.mxu0
        %v6978 = vadd.f32 %v6787, %v6977
        %6979 = vmatprep.mubr.bf16.mxu0 0
        %6980 = vmatmul.mubr.bf16.gmra.mxu0 %v6842
        %v6981 = vpop.f32.mrf.mxu0
        %v6982 = vadd.f32 %v6783, %v6981
        %v6983 = vpop.f32.mrf.mxu0
        %v6984 = vadd.f32 %v6787, %v6983
        %v6985 = vpop.f32.mrf.mxu0
        %v6986 = vadd.f32 %v6783, %v6985
        %v6987 = vpop.f32.mrf.mxu0
        %v6988 = vadd.f32 %v6787, %v6987
        %6989 = vdwg.mxu0
        %v6990 = vmax.f32 %v6879, 0.0
        %v6991 = vmax.f32 %v6881, 0.0
        %v6992 = vmax.f32 %v6952, 0.0
        %v6993 = vmax.f32 %v6954, 0.0
        %v6994 = vmax.f32 %v6883, 0.0
        %v6995 = vmax.f32 %v6885, 0.0
        %v6996 = vmax.f32 %v6956, 0.0
        %v6997 = vmax.f32 %v6958, 0.0
        %v6998 = vmax.f32 %v6889, 0.0
        %v6999 = vmax.f32 %v6891, 0.0
        %v7000 = vmax.f32 %v6962, 0.0
        %v7001 = vmax.f32 %v6964, 0.0
        %v7002 = vmax.f32 %v6893, 0.0
        %v7003 = vmax.f32 %v6895, 0.0
        %v7004 = vmax.f32 %v6966, 0.0
        %v7005 = vmax.f32 %v6968, 0.0
        %v7006 = vmax.f32 %v6899, 0.0
        %v7007 = vmax.f32 %v6901, 0.0
        %v7008 = vmax.f32 %v6972, 0.0
        %v7009 = vmax.f32 %v6974, 0.0
        %v7010 = vmax.f32 %v6903, 0.0
        %v7011 = vmax.f32 %v6905, 0.0
        %v7012 = vmax.f32 %v6976, 0.0
        %v7013 = vmax.f32 %v6978, 0.0
        %v7014 = vmax.f32 %v6909, 0.0
        %v7015 = vmax.f32 %v6911, 0.0
        %v7016 = vmax.f32 %v6982, 0.0
        %v7017 = vmax.f32 %v6984, 0.0
        %v7018 = vmax.f32 %v6913, 0.0
        %v7019 = vmax.f32 %v6915, 0.0
        %v7020 = vmax.f32 %v6986, 0.0
        %v7021 = vmax.f32 %v6988, 0.0
        %v7022 = vpack.c.bf16 %v6994, %v6990
        %v7023 = vpack.c.bf16 %v6995, %v6991
        %v7024 = vpack.c.bf16 %v6996, %v6992
        %v7025 = vpack.c.bf16 %v6997, %v6993
        %v7026 = vpack.c.bf16 %v7002, %v6998
        %v7027 = vpack.c.bf16 %v7003, %v6999
        %v7028 = vpack.c.bf16 %v7004, %v7000
        %v7029 = vpack.c.bf16 %v7005, %v7001
        %v7030 = vpack.c.bf16 %v7010, %v7006
        %v7031 = vpack.c.bf16 %v7011, %v7007
        %v7032 = vpack.c.bf16 %v7012, %v7008
        %v7033 = vpack.c.bf16 %v7013, %v7009
        %v7034 = vpack.c.bf16 %v7018, %v7014
        %v7035 = vpack.c.bf16 %v7019, %v7015
        %v7036 = vpack.c.bf16 %v7020, %v7016
        %v7037 = vpack.c.bf16 %v7021, %v7017
        %v7038 = vld [vmem:[%s14] sm:$0xf]
        %v7039 = vld [vmem:[%s14 + $0x4] sm:$0xf]
        %v7040 = vld [vmem:[%s14 + $0x8] sm:$0xf]
        %v7041 = vld [vmem:[%s14 + $0xc] sm:$0xf]
        %v7042 = vld [vmem:[%s14 + $0x10] sm:$0xf]
        %v7043 = vld [vmem:[%s14 + $0x14] sm:$0xf]
        %v7044 = vld [vmem:[%s14 + $0x18] sm:$0xf]
        %v7045 = vld [vmem:[%s14 + $0x1c] sm:$0xf]
        %v7046 = vld [vmem:[%s14 + $0x20] sm:$0xf]
        %v7047 = vld [vmem:[%s14 + $0x24] sm:$0xf]
        %v7048 = vld [vmem:[%s14 + $0x28] sm:$0xf]
        %v7049 = vld [vmem:[%s14 + $0x2c] sm:$0xf]
        %v7050 = vld [vmem:[%s14 + $0x30] sm:$0xf]
        %v7051 = vld [vmem:[%s14 + $0x34] sm:$0xf]
        %v7052 = vld [vmem:[%s14 + $0x38] sm:$0xf]
        %v7053 = vld [vmem:[%s14 + $0x3c] sm:$0xf]
        %v7054 = vld [vmem:[%s14 + $0x40] sm:$0xf]
        %v7055 = vld [vmem:[%s14 + $0x44] sm:$0xf]
        %v7056 = vld [vmem:[%s14 + $0x48] sm:$0xf]
        %v7057 = vld [vmem:[%s14 + $0x4c] sm:$0xf]
        %v7058 = vld [vmem:[%s14 + $0x50] sm:$0xf]
        %v7059 = vld [vmem:[%s14 + $0x54] sm:$0xf]
        %v7060 = vld [vmem:[%s14 + $0x58] sm:$0xf]
        %v7061 = vld [vmem:[%s14 + $0x5c] sm:$0xf]
        %v7062 = vld [vmem:[%s14 + $0x60] sm:$0xf]
        %v7063 = vld [vmem:[%s14 + $0x64] sm:$0xf]
        %v7064 = vld [vmem:[%s14 + $0x68] sm:$0xf]
        %v7065 = vld [vmem:[%s14 + $0x6c] sm:$0xf]
        %v7066 = vld [vmem:[%s14 + $0x70] sm:$0xf]
        %v7067 = vld [vmem:[%s14 + $0x74] sm:$0xf]
        %v7068 = vld [vmem:[%s14 + $0x78] sm:$0xf]
        %v7069 = vld [vmem:[%s14 + $0x7c] sm:$0xf]
        %v7070 = vld [vmem:[%s14 + $0x80] sm:$0xf]
        %v7071 = vld [vmem:[%s14 + $0x84] sm:$0xf]
        %v7072 = vld [vmem:[%s14 + $0x88] sm:$0xf]
        %v7073 = vld [vmem:[%s14 + $0x8c] sm:$0xf]
        %v7074 = vld [vmem:[%s14 + $0x90] sm:$0xf]
        %v7075 = vld [vmem:[%s14 + $0x94] sm:$0xf]
        %v7076 = vld [vmem:[%s14 + $0x98] sm:$0xf]
        %v7077 = vld [vmem:[%s14 + $0x9c] sm:$0xf]
        %v7078 = vld [vmem:[%s14 + $0xa0] sm:$0xf]
        %v7079 = vld [vmem:[%s14 + $0xa4] sm:$0xf]
        %v7080 = vld [vmem:[%s14 + $0xa8] sm:$0xf]
        %v7081 = vld [vmem:[%s14 + $0xac] sm:$0xf]
        %v7082 = vld [vmem:[%s14 + $0xb0] sm:$0xf]
        %v7083 = vld [vmem:[%s14 + $0xb4] sm:$0xf]
        %v7084 = vld [vmem:[%s14 + $0xb8] sm:$0xf]
        %v7085 = vld [vmem:[%s14 + $0xbc] sm:$0xf]
        %v7086 = vld [vmem:[%s14 + $0xc0] sm:$0xf]
        %v7087 = vld [vmem:[%s14 + $0xc4] sm:$0xf]
        %v7088 = vld [vmem:[%s14 + $0xc8] sm:$0xf]
        %v7089 = vld [vmem:[%s14 + $0xcc] sm:$0xf]
        %v7090 = vld [vmem:[%s14 + $0xd0] sm:$0xf]
        %v7091 = vld [vmem:[%s14 + $0xd4] sm:$0xf]
        %v7092 = vld [vmem:[%s14 + $0xd8] sm:$0xf]
        %v7093 = vld [vmem:[%s14 + $0xdc] sm:$0xf]
        %v7094 = vld [vmem:[%s14 + $0xe0] sm:$0xf]
        %v7095 = vld [vmem:[%s14 + $0xe4] sm:$0xf]
        %v7096 = vld [vmem:[%s14 + $0xe8] sm:$0xf]
        %v7097 = vld [vmem:[%s14 + $0xec] sm:$0xf]
        %v7098 = vld [vmem:[%s14 + $0xf0] sm:$0xf]
        %v7099 = vld [vmem:[%s14 + $0xf4] sm:$0xf]
        %v7100 = vld [vmem:[%s14 + $0xf8] sm:$0xf]
        %v7101 = vld [vmem:[%s14 + $0xfc] sm:$0xf]
        %v7166 = vunpack.c.l.b16 %v7038
        %v7167 = vunpack.c.l.b16 %v7039
        %v7168 = vunpack.c.l.b16 %v7040
        %v7169 = vunpack.c.l.b16 %v7041
        %v7170 = vunpack.c.l.b16 %v7042
        %v7171 = vunpack.c.l.b16 %v7043
        %v7172 = vunpack.c.l.b16 %v7044
        %v7173 = vunpack.c.l.b16 %v7045
        %v7174 = vunpack.c.l.b16 %v7046
        %v7175 = vunpack.c.l.b16 %v7047
        %v7176 = vunpack.c.l.b16 %v7048
        %v7177 = vunpack.c.l.b16 %v7049
        %v7178 = vunpack.c.l.b16 %v7050
        %v7179 = vunpack.c.l.b16 %v7051
        %v7180 = vunpack.c.l.b16 %v7052
        %v7181 = vunpack.c.l.b16 %v7053
        %v7182 = vunpack.c.l.b16 %v7054
        %v7183 = vunpack.c.l.b16 %v7055
        %v7184 = vunpack.c.l.b16 %v7056
        %v7185 = vunpack.c.l.b16 %v7057
        %v7186 = vunpack.c.l.b16 %v7058
        %v7187 = vunpack.c.l.b16 %v7059
        %v7188 = vunpack.c.l.b16 %v7060
        %v7189 = vunpack.c.l.b16 %v7061
        %v7190 = vunpack.c.l.b16 %v7062
        %v7191 = vunpack.c.l.b16 %v7063
        %v7192 = vunpack.c.l.b16 %v7064
        %v7193 = vunpack.c.l.b16 %v7065
        %v7194 = vunpack.c.l.b16 %v7066
        %v7195 = vunpack.c.l.b16 %v7067
        %v7196 = vunpack.c.l.b16 %v7068
        %v7197 = vunpack.c.l.b16 %v7069
        %v7198 = vunpack.c.l.b16 %v7070
        %v7199 = vunpack.c.l.b16 %v7071
        %v7200 = vunpack.c.l.b16 %v7072
        %v7201 = vunpack.c.l.b16 %v7073
        %v7202 = vunpack.c.l.b16 %v7074
        %v7203 = vunpack.c.l.b16 %v7075
        %v7204 = vunpack.c.l.b16 %v7076
        %v7205 = vunpack.c.l.b16 %v7077
        %v7206 = vunpack.c.l.b16 %v7078
        %v7207 = vunpack.c.l.b16 %v7079
        %v7208 = vunpack.c.l.b16 %v7080
        %v7209 = vunpack.c.l.b16 %v7081
        %v7210 = vunpack.c.l.b16 %v7082
        %v7211 = vunpack.c.l.b16 %v7083
        %v7212 = vunpack.c.l.b16 %v7084
        %v7213 = vunpack.c.l.b16 %v7085
        %v7214 = vunpack.c.l.b16 %v7086
        %v7215 = vunpack.c.l.b16 %v7087
        %v7216 = vunpack.c.l.b16 %v7088
        %v7217 = vunpack.c.l.b16 %v7089
        %v7218 = vunpack.c.l.b16 %v7090
        %v7219 = vunpack.c.l.b16 %v7091
        %v7220 = vunpack.c.l.b16 %v7092
        %v7221 = vunpack.c.l.b16 %v7093
        %v7222 = vunpack.c.l.b16 %v7094
        %v7223 = vunpack.c.l.b16 %v7095
        %v7224 = vunpack.c.l.b16 %v7096
        %v7225 = vunpack.c.l.b16 %v7097
        %v7226 = vunpack.c.l.b16 %v7098
        %v7227 = vunpack.c.l.b16 %v7099
        %v7228 = vunpack.c.l.b16 %v7100
        %v7229 = vunpack.c.l.b16 %v7101
        %v7230 = vpack.c.b16 %v7167, %v7166
        %v7231 = vpack.c.b16 %v7169, %v7168
        %v7232 = vpack.c.b16 %v7171, %v7170
        %v7233 = vpack.c.b16 %v7173, %v7172
        %v7234 = vpack.c.b16 %v7175, %v7174
        %v7235 = vpack.c.b16 %v7177, %v7176
        %v7236 = vpack.c.b16 %v7179, %v7178
        %v7237 = vpack.c.b16 %v7181, %v7180
        %v7238 = vpack.c.b16 %v7183, %v7182
        %v7239 = vpack.c.b16 %v7185, %v7184
        %v7240 = vpack.c.b16 %v7187, %v7186
        %v7241 = vpack.c.b16 %v7189, %v7188
        %v7242 = vpack.c.b16 %v7191, %v7190
        %v7243 = vpack.c.b16 %v7193, %v7192
        %v7244 = vpack.c.b16 %v7195, %v7194
        %v7245 = vpack.c.b16 %v7197, %v7196
        %v7246 = vpack.c.b16 %v7199, %v7198
        %v7247 = vpack.c.b16 %v7201, %v7200
        %v7248 = vpack.c.b16 %v7203, %v7202
        %v7249 = vpack.c.b16 %v7205, %v7204
        %v7250 = vpack.c.b16 %v7207, %v7206
        %v7251 = vpack.c.b16 %v7209, %v7208
        %v7252 = vpack.c.b16 %v7211, %v7210
        %v7253 = vpack.c.b16 %v7213, %v7212
        %v7254 = vpack.c.b16 %v7215, %v7214
        %v7255 = vpack.c.b16 %v7217, %v7216
        %v7256 = vpack.c.b16 %v7219, %v7218
        %v7257 = vpack.c.b16 %v7221, %v7220
        %v7258 = vpack.c.b16 %v7223, %v7222
        %v7259 = vpack.c.b16 %v7225, %v7224
        %v7260 = vpack.c.b16 %v7227, %v7226
        %v7261 = vpack.c.b16 %v7229, %v7228
        %7294 = vmatprep.subr.bf16.mxu0 0
        %7295 = vmatpush1.bf16.msra.mxu0 %v7237
        %7296 = vmatprep.subr.bf16.mxu0 0
        %7297 = vmatpush1.bf16.msra.mxu0 %v7236
        %7298 = vmatprep.subr.bf16.mxu0 0
        %7299 = vmatpush1.bf16.msra.mxu0 %v7235
        %7300 = vmatprep.subr.bf16.mxu0 0
        %7301 = vmatpush1.bf16.msra.mxu0 %v7234
        %7302 = vmatprep.subr.bf16.mxu0 0
        %7303 = vmatpush1.bf16.msra.mxu0 %v7233
        %7304 = vmatprep.subr.bf16.mxu0 0
        %7305 = vmatpush1.bf16.msra.mxu0 %v7232
        %7306 = vmatprep.subr.bf16.mxu0 0
        %7307 = vmatpush1.bf16.msra.mxu0 %v7231
        %7308 = vmatprep.subr.bf16.mxu0 0
        %7309 = vmatpush1.bf16.msra.mxu0 %v7230
        %7310 = vmatprep.subr.bf16.mxu0 0
        %7311 = vmatpush2.bf16.msra.mxu0 %v7245
        %7312 = vmatprep.subr.bf16.mxu0 0
        %7313 = vmatpush2.bf16.msra.mxu0 %v7244
        %7314 = vmatprep.subr.bf16.mxu0 0
        %7315 = vmatpush2.bf16.msra.mxu0 %v7243
        %7316 = vmatprep.subr.bf16.mxu0 0
        %7317 = vmatpush2.bf16.msra.mxu0 %v7242
        %7318 = vmatprep.subr.bf16.mxu0 0
        %7319 = vmatpush2.bf16.msra.mxu0 %v7241
        %7320 = vmatprep.subr.bf16.mxu0 0
        %7321 = vmatpush2.bf16.msra.mxu0 %v7240
        %7322 = vmatprep.subr.bf16.mxu0 0
        %7323 = vmatpush2.bf16.msra.mxu0 %v7239
        %7324 = vmatprep.subr.bf16.mxu0 0
        %7325 = vmatpush2.bf16.msra.mxu0 %v7238
        %7326 = vmatprep.mubr.bf16.mxu0 %v7023
        %7327 = vmatmul.mubr.bf16.gmra.mxu0 %v7022
        %v7328 = vpop.f32.mrf.mxu0
        %v7329 = vadd.f32 0.0, %v7328
        %v7330 = vpop.f32.mrf.mxu0
        %v7331 = vpop.f32.mrf.mxu0
        %v7332 = vadd.f32 0.0, %v7331
        %v7333 = vpop.f32.mrf.mxu0
        %7334 = vmatprep.mubr.bf16.mxu0 %v7027
        %7335 = vmatmul.mubr.bf16.gmra.mxu0 %v7026
        %v7336 = vpop.f32.mrf.mxu0
        %v7337 = vadd.f32 0.0, %v7336
        %v7338 = vpop.f32.mrf.mxu0
        %v7339 = vpop.f32.mrf.mxu0
        %v7340 = vadd.f32 0.0, %v7339
        %v7341 = vpop.f32.mrf.mxu0
        %7342 = vmatprep.mubr.bf16.mxu0 %v7031
        %7343 = vmatmul.mubr.bf16.gmra.mxu0 %v7030
        %v7344 = vpop.f32.mrf.mxu0
        %v7345 = vadd.f32 0.0, %v7344
        %v7346 = vpop.f32.mrf.mxu0
        %v7347 = vpop.f32.mrf.mxu0
        %v7348 = vadd.f32 0.0, %v7347
        %v7349 = vpop.f32.mrf.mxu0
        %7350 = vmatprep.mubr.bf16.mxu0 %v7035
        %7351 = vmatmul.mubr.bf16.gmra.mxu0 %v7034
        %v7352 = vpop.f32.mrf.mxu0
        %v7353 = vadd.f32 0.0, %v7352
        %v7354 = vpop.f32.mrf.mxu0
        %v7355 = vpop.f32.mrf.mxu0
        %v7356 = vadd.f32 0.0, %v7355
        %v7357 = vpop.f32.mrf.mxu0
        %7358 = vdwg.mxu0
        %7359 = vmatprep.subr.bf16.mxu0 0
        %7360 = vmatpush1.bf16.msra.mxu0 %v7253
        %7361 = vmatprep.subr.bf16.mxu0 0
        %7362 = vmatpush1.bf16.msra.mxu0 %v7252
        %7363 = vmatprep.subr.bf16.mxu0 0
        %7364 = vmatpush1.bf16.msra.mxu0 %v7251
        %7365 = vmatprep.subr.bf16.mxu0 0
        %7366 = vmatpush1.bf16.msra.mxu0 %v7250
        %7367 = vmatprep.subr.bf16.mxu0 0
        %7368 = vmatpush1.bf16.msra.mxu0 %v7249
        %7369 = vmatprep.subr.bf16.mxu0 0
        %7370 = vmatpush1.bf16.msra.mxu0 %v7248
        %7371 = vmatprep.subr.bf16.mxu0 0
        %7372 = vmatpush1.bf16.msra.mxu0 %v7247
        %7373 = vmatprep.subr.bf16.mxu0 0
        %7374 = vmatpush1.bf16.msra.mxu0 %v7246
        %7375 = vmatprep.subr.bf16.mxu0 0
        %7376 = vmatpush2.bf16.msra.mxu0 %v7261
        %7377 = vmatprep.subr.bf16.mxu0 0
        %7378 = vmatpush2.bf16.msra.mxu0 %v7260
        %7379 = vmatprep.subr.bf16.mxu0 0
        %7380 = vmatpush2.bf16.msra.mxu0 %v7259
        %7381 = vmatprep.subr.bf16.mxu0 0
        %7382 = vmatpush2.bf16.msra.mxu0 %v7258
        %7383 = vmatprep.subr.bf16.mxu0 0
        %7384 = vmatpush2.bf16.msra.mxu0 %v7257
        %7385 = vmatprep.subr.bf16.mxu0 0
        %7386 = vmatpush2.bf16.msra.mxu0 %v7256
        %7387 = vmatprep.subr.bf16.mxu0 0
        %7388 = vmatpush2.bf16.msra.mxu0 %v7255
        %7389 = vmatprep.subr.bf16.mxu0 0
        %7390 = vmatpush2.bf16.msra.mxu0 %v7254
        %7391 = vmatprep.mubr.bf16.mxu0 %v7025
        %7392 = vmatmul.mubr.bf16.gmra.mxu0 %v7024
        %v7393 = vpop.f32.mrf.mxu0
        %v7394 = vadd.f32 %v7329, %v7393
        %v7395 = vpop.f32.mrf.mxu0
        %v7396 = vpop.f32.mrf.mxu0
        %v7397 = vadd.f32 %v7332, %v7396
        %v7398 = vpop.f32.mrf.mxu0
        %7399 = vmatprep.mubr.bf16.mxu0 %v7029
        %7400 = vmatmul.mubr.bf16.gmra.mxu0 %v7028
        %v7401 = vpop.f32.mrf.mxu0
        %v7402 = vadd.f32 %v7337, %v7401
        %v7403 = vpop.f32.mrf.mxu0
        %v7404 = vpop.f32.mrf.mxu0
        %v7405 = vadd.f32 %v7340, %v7404
        %v7406 = vpop.f32.mrf.mxu0
        %7407 = vmatprep.mubr.bf16.mxu0 %v7033
        %7408 = vmatmul.mubr.bf16.gmra.mxu0 %v7032
        %v7409 = vpop.f32.mrf.mxu0
        %v7410 = vadd.f32 %v7345, %v7409
        %v7411 = vpop.f32.mrf.mxu0
        %v7412 = vpop.f32.mrf.mxu0
        %v7413 = vadd.f32 %v7348, %v7412
        %v7414 = vpop.f32.mrf.mxu0
        %7415 = vmatprep.mubr.bf16.mxu0 %v7037
        %7416 = vmatmul.mubr.bf16.gmra.mxu0 %v7036
        %v7417 = vpop.f32.mrf.mxu0
        %v7418 = vadd.f32 %v7353, %v7417
        %v7419 = vpop.f32.mrf.mxu0
        %v7420 = vpop.f32.mrf.mxu0
        %v7421 = vadd.f32 %v7356, %v7420
        %v7422 = vpop.f32.mrf.mxu0
        %7423 = vdwg.mxu0
        %v7424 = vadd.f32 %v6761, %v7394
        %v7425 = vadd.f32 %v6761, %v7397
        %v7426 = vadd.f32 %v6761, %v7402
        %v7427 = vadd.f32 %v6761, %v7405
        %v7428 = vadd.f32 %v6761, %v7410
        %v7429 = vadd.f32 %v6761, %v7413
        %v7430 = vadd.f32 %v6761, %v7418
        %v7431 = vadd.f32 %v6761, %v7421
        %v7432 = vld [vmem:[%s13 + $0x10] sm:$0xff]
        %v7433 = vld [vmem:[%s13 + $0x18] sm:$0xff]
        %v7434 = vld [vmem:[%s13 + $0x50] sm:$0xff]
        %v7435 = vld [vmem:[%s13 + $0x58] sm:$0xff]
        %v7436 = vld [vmem:[%s13 + $0x90] sm:$0xff]
        %v7437 = vld [vmem:[%s13 + $0x98] sm:$0xff]
        %v7438 = vld [vmem:[%s13 + $0xd0] sm:$0xff]
        %v7439 = vld [vmem:[%s13 + $0xd8] sm:$0xff]
        %v7440 = vld [vmem:[%s16 + $0x4] sm:$0xf]
        %v7442 = vlaneseq
        %v7443 = vshrl.u32 %v7442, 7
        %v7444 = vsub.s32 0, %v7443
        %v7445 = vrot.slane %v7440, %v7444
        %v7446 = vlaneseq
        %v7447 = vshrl.u32 %v7446, 7
        %v7448 = vsub.s32 1, %v7447
        %v7449 = vrot.slane %v7440, %v7448
        %v7450 = vlaneseq
        %v7451 = vshrl.u32 %v7450, 7
        %v7452 = vsub.s32 2, %v7451
        %v7453 = vrot.slane %v7440, %v7452
        %v7454 = vlaneseq
        %v7455 = vshrl.u32 %v7454, 7
        %v7456 = vsub.s32 3, %v7455
        %v7457 = vrot.slane %v7440, %v7456
        %v7470 = vunpack.c.l.b16 %v7432
        %v7471 = vunpack.c.h.b16 %v7432
        %v7472 = vunpack.c.l.b16 %v7433
        %v7473 = vunpack.c.h.b16 %v7433
        %v7474 = vunpack.c.l.b16 %v7434
        %v7475 = vunpack.c.h.b16 %v7434
        %v7476 = vunpack.c.l.b16 %v7435
        %v7477 = vunpack.c.h.b16 %v7435
        %v7478 = vunpack.c.l.b16 %v7436
        %v7479 = vunpack.c.h.b16 %v7436
        %v7480 = vunpack.c.l.b16 %v7437
        %v7481 = vunpack.c.h.b16 %v7437
        %v7482 = vunpack.c.l.b16 %v7438
        %v7483 = vunpack.c.h.b16 %v7438
        %v7484 = vunpack.c.l.b16 %v7439
        %v7485 = vunpack.c.h.b16 %v7439
        %v7486 = vpack.c.b16 %v7474, %v7470
        %v7487 = vpack.c.b16 %v7475, %v7471
        %v7488 = vpack.c.b16 %v7476, %v7472
        %v7489 = vpack.c.b16 %v7477, %v7473
        %v7490 = vpack.c.b16 %v7482, %v7478
        %v7491 = vpack.c.b16 %v7483, %v7479
        %v7492 = vpack.c.b16 %v7484, %v7480
        %v7493 = vpack.c.b16 %v7485, %v7481
        %7502 = vmatprep.subr.bf16.mxu0 0
        %7503 = vmatpush1.bf16.msra.mxu0 0
        %7504 = vmatprep.subr.bf16.mxu0 0
        %7505 = vmatpush1.bf16.msra.mxu0 0
        %7506 = vmatprep.subr.bf16.mxu0 0
        %7507 = vmatpush1.bf16.msra.mxu0 0
        %7508 = vmatprep.subr.bf16.mxu0 0
        %7509 = vmatpush1.bf16.msra.mxu0 0
        %7510 = vmatprep.subr.bf16.mxu0 0
        %7511 = vmatpush1.bf16.msra.mxu0 0
        %7512 = vmatprep.subr.bf16.mxu0 0
        %7513 = vmatpush1.bf16.msra.mxu0 0
        %7514 = vmatprep.subr.bf16.mxu0 %v7491
        %7515 = vmatpush1.bf16.msra.mxu0 %v7490
        %7516 = vmatprep.subr.bf16.mxu0 %v7487
        %7517 = vmatpush1.bf16.msra.mxu0 %v7486
        %7518 = vmatprep.subr.bf16.mxu0 0
        %7519 = vmatpush2.bf16.msra.mxu0 0
        %7520 = vmatprep.subr.bf16.mxu0 0
        %7521 = vmatpush2.bf16.msra.mxu0 0
        %7522 = vmatprep.subr.bf16.mxu0 0
        %7523 = vmatpush2.bf16.msra.mxu0 0
        %7524 = vmatprep.subr.bf16.mxu0 0
        %7525 = vmatpush2.bf16.msra.mxu0 0
        %7526 = vmatprep.subr.bf16.mxu0 0
        %7527 = vmatpush2.bf16.msra.mxu0 0
        %7528 = vmatprep.subr.bf16.mxu0 0
        %7529 = vmatpush2.bf16.msra.mxu0 0
        %7530 = vmatprep.subr.bf16.mxu0 0
        %7531 = vmatpush2.bf16.msra.mxu0 0
        %7532 = vmatprep.subr.bf16.mxu0 0
        %7533 = vmatpush2.bf16.msra.mxu0 0
        %7534 = vmatprep.mubr.bf16.mxu0 0
        %7535 = vmatmul.mubr.bf16.gmra.mxu0 %v6833
        %v7536 = vpop.f32.mrf.mxu0
        %v7537 = vadd.f32 %v7445, %v7536
        %v7538 = vpop.f32.mrf.mxu0
        %v7539 = vadd.f32 %v7449, %v7538
        %v7540 = vpop.f32.mrf.mxu0
        %v7541 = vadd.f32 %v7445, %v7540
        %v7542 = vpop.f32.mrf.mxu0
        %v7543 = vadd.f32 %v7449, %v7542
        %7544 = vmatprep.mubr.bf16.mxu0 0
        %7545 = vmatmul.mubr.bf16.gmra.mxu0 %v6836
        %v7546 = vpop.f32.mrf.mxu0
        %v7547 = vadd.f32 %v7445, %v7546
        %v7548 = vpop.f32.mrf.mxu0
        %v7549 = vadd.f32 %v7449, %v7548
        %v7550 = vpop.f32.mrf.mxu0
        %v7551 = vadd.f32 %v7445, %v7550
        %v7552 = vpop.f32.mrf.mxu0
        %v7553 = vadd.f32 %v7449, %v7552
        %7554 = vmatprep.mubr.bf16.mxu0 0
        %7555 = vmatmul.mubr.bf16.gmra.mxu0 %v6839
        %v7556 = vpop.f32.mrf.mxu0
        %v7557 = vadd.f32 %v7445, %v7556
        %v7558 = vpop.f32.mrf.mxu0
        %v7559 = vadd.f32 %v7449, %v7558
        %v7560 = vpop.f32.mrf.mxu0
        %v7561 = vadd.f32 %v7445, %v7560
        %v7562 = vpop.f32.mrf.mxu0
        %v7563 = vadd.f32 %v7449, %v7562
        %7564 = vmatprep.mubr.bf16.mxu0 0
        %7565 = vmatmul.mubr.bf16.gmra.mxu0 %v6842
        %v7566 = vpop.f32.mrf.mxu0
        %v7567 = vadd.f32 %v7445, %v7566
        %v7568 = vpop.f32.mrf.mxu0
        %v7569 = vadd.f32 %v7449, %v7568
        %v7570 = vpop.f32.mrf.mxu0
        %v7571 = vadd.f32 %v7445, %v7570
        %v7572 = vpop.f32.mrf.mxu0
        %v7573 = vadd.f32 %v7449, %v7572
        %7574 = vdwg.mxu0
        %7575 = vmatprep.subr.bf16.mxu0 0
        %7576 = vmatpush1.bf16.msra.mxu0 0
        %7577 = vmatprep.subr.bf16.mxu0 0
        %7578 = vmatpush1.bf16.msra.mxu0 0
        %7579 = vmatprep.subr.bf16.mxu0 0
        %7580 = vmatpush1.bf16.msra.mxu0 0
        %7581 = vmatprep.subr.bf16.mxu0 0
        %7582 = vmatpush1.bf16.msra.mxu0 0
        %7583 = vmatprep.subr.bf16.mxu0 0
        %7584 = vmatpush1.bf16.msra.mxu0 0
        %7585 = vmatprep.subr.bf16.mxu0 0
        %7586 = vmatpush1.bf16.msra.mxu0 0
        %7587 = vmatprep.subr.bf16.mxu0 %v7493
        %7588 = vmatpush1.bf16.msra.mxu0 %v7492
        %7589 = vmatprep.subr.bf16.mxu0 %v7489
        %7590 = vmatpush1.bf16.msra.mxu0 %v7488
        %7591 = vmatprep.subr.bf16.mxu0 0
        %7592 = vmatpush2.bf16.msra.mxu0 0
        %7593 = vmatprep.subr.bf16.mxu0 0
        %7594 = vmatpush2.bf16.msra.mxu0 0
        %7595 = vmatprep.subr.bf16.mxu0 0
        %7596 = vmatpush2.bf16.msra.mxu0 0
        %7597 = vmatprep.subr.bf16.mxu0 0
        %7598 = vmatpush2.bf16.msra.mxu0 0
        %7599 = vmatprep.subr.bf16.mxu0 0
        %7600 = vmatpush2.bf16.msra.mxu0 0
        %7601 = vmatprep.subr.bf16.mxu0 0
        %7602 = vmatpush2.bf16.msra.mxu0 0
        %7603 = vmatprep.subr.bf16.mxu0 0
        %7604 = vmatpush2.bf16.msra.mxu0 0
        %7605 = vmatprep.subr.bf16.mxu0 0
        %7606 = vmatpush2.bf16.msra.mxu0 0
        %7607 = vmatprep.mubr.bf16.mxu0 0
        %7608 = vmatmul.mubr.bf16.gmra.mxu0 %v6833
        %v7609 = vpop.f32.mrf.mxu0
        %v7610 = vadd.f32 %v7453, %v7609
        %v7611 = vpop.f32.mrf.mxu0
        %v7612 = vadd.f32 %v7457, %v7611
        %v7613 = vpop.f32.mrf.mxu0
        %v7614 = vadd.f32 %v7453, %v7613
        %v7615 = vpop.f32.mrf.mxu0
        %v7616 = vadd.f32 %v7457, %v7615
        %7617 = vmatprep.mubr.bf16.mxu0 0
        %7618 = vmatmul.mubr.bf16.gmra.mxu0 %v6836
        %v7619 = vpop.f32.mrf.mxu0
        %v7620 = vadd.f32 %v7453, %v7619
        %v7621 = vpop.f32.mrf.mxu0
        %v7622 = vadd.f32 %v7457, %v7621
        %v7623 = vpop.f32.mrf.mxu0
        %v7624 = vadd.f32 %v7453, %v7623
        %v7625 = vpop.f32.mrf.mxu0
        %v7626 = vadd.f32 %v7457, %v7625
        %7627 = vmatprep.mubr.bf16.mxu0 0
        %7628 = vmatmul.mubr.bf16.gmra.mxu0 %v6839
        %v7629 = vpop.f32.mrf.mxu0
        %v7630 = vadd.f32 %v7453, %v7629
        %v7631 = vpop.f32.mrf.mxu0
        %v7632 = vadd.f32 %v7457, %v7631
        %v7633 = vpop.f32.mrf.mxu0
        %v7634 = vadd.f32 %v7453, %v7633
        %v7635 = vpop.f32.mrf.mxu0
        %v7636 = vadd.f32 %v7457, %v7635
        %7637 = vmatprep.mubr.bf16.mxu0 0
        %7638 = vmatmul.mubr.bf16.gmra.mxu0 %v6842
        %v7639 = vpop.f32.mrf.mxu0
        %v7640 = vadd.f32 %v7453, %v7639
        %v7641 = vpop.f32.mrf.mxu0
        %v7642 = vadd.f32 %v7457, %v7641
        %v7643 = vpop.f32.mrf.mxu0
        %v7644 = vadd.f32 %v7453, %v7643
        %v7645 = vpop.f32.mrf.mxu0
        %v7646 = vadd.f32 %v7457, %v7645
        %7647 = vdwg.mxu0
        %v7648 = vmax.f32 %v7537, 0.0
        %v7649 = vmax.f32 %v7539, 0.0
        %v7650 = vmax.f32 %v7610, 0.0
        %v7651 = vmax.f32 %v7612, 0.0
        %v7652 = vmax.f32 %v7541, 0.0
        %v7653 = vmax.f32 %v7543, 0.0
        %v7654 = vmax.f32 %v7614, 0.0
        %v7655 = vmax.f32 %v7616, 0.0
        %v7656 = vmax.f32 %v7547, 0.0
        %v7657 = vmax.f32 %v7549, 0.0
        %v7658 = vmax.f32 %v7620, 0.0
        %v7659 = vmax.f32 %v7622, 0.0
        %v7660 = vmax.f32 %v7551, 0.0
        %v7661 = vmax.f32 %v7553, 0.0
        %v7662 = vmax.f32 %v7624, 0.0
        %v7663 = vmax.f32 %v7626, 0.0
        %v7664 = vmax.f32 %v7557, 0.0
        %v7665 = vmax.f32 %v7559, 0.0
        %v7666 = vmax.f32 %v7630, 0.0
        %v7667 = vmax.f32 %v7632, 0.0
        %v7668 = vmax.f32 %v7561, 0.0
        %v7669 = vmax.f32 %v7563, 0.0
        %v7670 = vmax.f32 %v7634, 0.0
        %v7671 = vmax.f32 %v7636, 0.0
        %v7672 = vmax.f32 %v7567, 0.0
        %v7673 = vmax.f32 %v7569, 0.0
        %v7674 = vmax.f32 %v7640, 0.0
        %v7675 = vmax.f32 %v7642, 0.0
        %v7676 = vmax.f32 %v7571, 0.0
        %v7677 = vmax.f32 %v7573, 0.0
        %v7678 = vmax.f32 %v7644, 0.0
        %v7679 = vmax.f32 %v7646, 0.0
        %v7680 = vpack.c.bf16 %v7652, %v7648
        %v7681 = vpack.c.bf16 %v7653, %v7649
        %v7682 = vpack.c.bf16 %v7654, %v7650
        %v7683 = vpack.c.bf16 %v7655, %v7651
        %v7684 = vpack.c.bf16 %v7660, %v7656
        %v7685 = vpack.c.bf16 %v7661, %v7657
        %v7686 = vpack.c.bf16 %v7662, %v7658
        %v7687 = vpack.c.bf16 %v7663, %v7659
        %v7688 = vpack.c.bf16 %v7668, %v7664
        %v7689 = vpack.c.bf16 %v7669, %v7665
        %v7690 = vpack.c.bf16 %v7670, %v7666
        %v7691 = vpack.c.bf16 %v7671, %v7667
        %v7692 = vpack.c.bf16 %v7676, %v7672
        %v7693 = vpack.c.bf16 %v7677, %v7673
        %v7694 = vpack.c.bf16 %v7678, %v7674
        %v7695 = vpack.c.bf16 %v7679, %v7675
        %v7696 = vld [vmem:[%s14 + $0x100] sm:$0xf]
        %v7697 = vld [vmem:[%s14 + $0x104] sm:$0xf]
        %v7698 = vld [vmem:[%s14 + $0x108] sm:$0xf]
        %v7699 = vld [vmem:[%s14 + $0x10c] sm:$0xf]
        %v7700 = vld [vmem:[%s14 + $0x110] sm:$0xf]
        %v7701 = vld [vmem:[%s14 + $0x114] sm:$0xf]
        %v7702 = vld [vmem:[%s14 + $0x118] sm:$0xf]
        %v7703 = vld [vmem:[%s14 + $0x11c] sm:$0xf]
        %v7704 = vld [vmem:[%s14 + $0x120] sm:$0xf]
        %v7705 = vld [vmem:[%s14 + $0x124] sm:$0xf]
        %v7706 = vld [vmem:[%s14 + $0x128] sm:$0xf]
        %v7707 = vld [vmem:[%s14 + $0x12c] sm:$0xf]
        %v7708 = vld [vmem:[%s14 + $0x130] sm:$0xf]
        %v7709 = vld [vmem:[%s14 + $0x134] sm:$0xf]
        %v7710 = vld [vmem:[%s14 + $0x138] sm:$0xf]
        %v7711 = vld [vmem:[%s14 + $0x13c] sm:$0xf]
        %v7712 = vld [vmem:[%s14 + $0x140] sm:$0xf]
        %v7713 = vld [vmem:[%s14 + $0x144] sm:$0xf]
        %v7714 = vld [vmem:[%s14 + $0x148] sm:$0xf]
        %v7715 = vld [vmem:[%s14 + $0x14c] sm:$0xf]
        %v7716 = vld [vmem:[%s14 + $0x150] sm:$0xf]
        %v7717 = vld [vmem:[%s14 + $0x154] sm:$0xf]
        %v7718 = vld [vmem:[%s14 + $0x158] sm:$0xf]
        %v7719 = vld [vmem:[%s14 + $0x15c] sm:$0xf]
        %v7720 = vld [vmem:[%s14 + $0x160] sm:$0xf]
        %v7721 = vld [vmem:[%s14 + $0x164] sm:$0xf]
        %v7722 = vld [vmem:[%s14 + $0x168] sm:$0xf]
        %v7723 = vld [vmem:[%s14 + $0x16c] sm:$0xf]
        %v7724 = vld [vmem:[%s14 + $0x170] sm:$0xf]
        %v7725 = vld [vmem:[%s14 + $0x174] sm:$0xf]
        %v7726 = vld [vmem:[%s14 + $0x178] sm:$0xf]
        %v7727 = vld [vmem:[%s14 + $0x17c] sm:$0xf]
        %v7728 = vld [vmem:[%s14 + $0x180] sm:$0xf]
        %v7729 = vld [vmem:[%s14 + $0x184] sm:$0xf]
        %v7730 = vld [vmem:[%s14 + $0x188] sm:$0xf]
        %v7731 = vld [vmem:[%s14 + $0x18c] sm:$0xf]
        %v7732 = vld [vmem:[%s14 + $0x190] sm:$0xf]
        %v7733 = vld [vmem:[%s14 + $0x194] sm:$0xf]
        %v7734 = vld [vmem:[%s14 + $0x198] sm:$0xf]
        %v7735 = vld [vmem:[%s14 + $0x19c] sm:$0xf]
        %v7736 = vld [vmem:[%s14 + $0x1a0] sm:$0xf]
        %v7737 = vld [vmem:[%s14 + $0x1a4] sm:$0xf]
        %v7738 = vld [vmem:[%s14 + $0x1a8] sm:$0xf]
        %v7739 = vld [vmem:[%s14 + $0x1ac] sm:$0xf]
        %v7740 = vld [vmem:[%s14 + $0x1b0] sm:$0xf]
        %v7741 = vld [vmem:[%s14 + $0x1b4] sm:$0xf]
        %v7742 = vld [vmem:[%s14 + $0x1b8] sm:$0xf]
        %v7743 = vld [vmem:[%s14 + $0x1bc] sm:$0xf]
        %v7744 = vld [vmem:[%s14 + $0x1c0] sm:$0xf]
        %v7745 = vld [vmem:[%s14 + $0x1c4] sm:$0xf]
        %v7746 = vld [vmem:[%s14 + $0x1c8] sm:$0xf]
        %v7747 = vld [vmem:[%s14 + $0x1cc] sm:$0xf]
        %v7748 = vld [vmem:[%s14 + $0x1d0] sm:$0xf]
        %v7749 = vld [vmem:[%s14 + $0x1d4] sm:$0xf]
        %v7750 = vld [vmem:[%s14 + $0x1d8] sm:$0xf]
        %v7751 = vld [vmem:[%s14 + $0x1dc] sm:$0xf]
        %v7752 = vld [vmem:[%s14 + $0x1e0] sm:$0xf]
        %v7753 = vld [vmem:[%s14 + $0x1e4] sm:$0xf]
        %v7754 = vld [vmem:[%s14 + $0x1e8] sm:$0xf]
        %v7755 = vld [vmem:[%s14 + $0x1ec] sm:$0xf]
        %v7756 = vld [vmem:[%s14 + $0x1f0] sm:$0xf]
        %v7757 = vld [vmem:[%s14 + $0x1f4] sm:$0xf]
        %v7758 = vld [vmem:[%s14 + $0x1f8] sm:$0xf]
        %v7759 = vld [vmem:[%s14 + $0x1fc] sm:$0xf]
        %v7824 = vunpack.c.l.b16 %v7696
        %v7825 = vunpack.c.l.b16 %v7697
        %v7826 = vunpack.c.l.b16 %v7698
        %v7827 = vunpack.c.l.b16 %v7699
        %v7828 = vunpack.c.l.b16 %v7700
        %v7829 = vunpack.c.l.b16 %v7701
        %v7830 = vunpack.c.l.b16 %v7702
        %v7831 = vunpack.c.l.b16 %v7703
        %v7832 = vunpack.c.l.b16 %v7704
        %v7833 = vunpack.c.l.b16 %v7705
        %v7834 = vunpack.c.l.b16 %v7706
        %v7835 = vunpack.c.l.b16 %v7707
        %v7836 = vunpack.c.l.b16 %v7708
        %v7837 = vunpack.c.l.b16 %v7709
        %v7838 = vunpack.c.l.b16 %v7710
        %v7839 = vunpack.c.l.b16 %v7711
        %v7840 = vunpack.c.l.b16 %v7712
        %v7841 = vunpack.c.l.b16 %v7713
        %v7842 = vunpack.c.l.b16 %v7714
        %v7843 = vunpack.c.l.b16 %v7715
        %v7844 = vunpack.c.l.b16 %v7716
        %v7845 = vunpack.c.l.b16 %v7717
        %v7846 = vunpack.c.l.b16 %v7718
        %v7847 = vunpack.c.l.b16 %v7719
        %v7848 = vunpack.c.l.b16 %v7720
        %v7849 = vunpack.c.l.b16 %v7721
        %v7850 = vunpack.c.l.b16 %v7722
        %v7851 = vunpack.c.l.b16 %v7723
        %v7852 = vunpack.c.l.b16 %v7724
        %v7853 = vunpack.c.l.b16 %v7725
        %v7854 = vunpack.c.l.b16 %v7726
        %v7855 = vunpack.c.l.b16 %v7727
        %v7856 = vunpack.c.l.b16 %v7728
        %v7857 = vunpack.c.l.b16 %v7729
        %v7858 = vunpack.c.l.b16 %v7730
        %v7859 = vunpack.c.l.b16 %v7731
        %v7860 = vunpack.c.l.b16 %v7732
        %v7861 = vunpack.c.l.b16 %v7733
        %v7862 = vunpack.c.l.b16 %v7734
        %v7863 = vunpack.c.l.b16 %v7735
        %v7864 = vunpack.c.l.b16 %v7736
        %v7865 = vunpack.c.l.b16 %v7737
        %v7866 = vunpack.c.l.b16 %v7738
        %v7867 = vunpack.c.l.b16 %v7739
        %v7868 = vunpack.c.l.b16 %v7740
        %v7869 = vunpack.c.l.b16 %v7741
        %v7870 = vunpack.c.l.b16 %v7742
        %v7871 = vunpack.c.l.b16 %v7743
        %v7872 = vunpack.c.l.b16 %v7744
        %v7873 = vunpack.c.l.b16 %v7745
        %v7874 = vunpack.c.l.b16 %v7746
        %v7875 = vunpack.c.l.b16 %v7747
        %v7876 = vunpack.c.l.b16 %v7748
        %v7877 = vunpack.c.l.b16 %v7749
        %v7878 = vunpack.c.l.b16 %v7750
        %v7879 = vunpack.c.l.b16 %v7751
        %v7880 = vunpack.c.l.b16 %v7752
        %v7881 = vunpack.c.l.b16 %v7753
        %v7882 = vunpack.c.l.b16 %v7754
        %v7883 = vunpack.c.l.b16 %v7755
        %v7884 = vunpack.c.l.b16 %v7756
        %v7885 = vunpack.c.l.b16 %v7757
        %v7886 = vunpack.c.l.b16 %v7758
        %v7887 = vunpack.c.l.b16 %v7759
        %v7888 = vpack.c.b16 %v7825, %v7824
        %v7889 = vpack.c.b16 %v7827, %v7826
        %v7890 = vpack.c.b16 %v7829, %v7828
        %v7891 = vpack.c.b16 %v7831, %v7830
        %v7892 = vpack.c.b16 %v7833, %v7832
        %v7893 = vpack.c.b16 %v7835, %v7834
        %v7894 = vpack.c.b16 %v7837, %v7836
        %v7895 = vpack.c.b16 %v7839, %v7838
        %v7896 = vpack.c.b16 %v7841, %v7840
        %v7897 = vpack.c.b16 %v7843, %v7842
        %v7898 = vpack.c.b16 %v7845, %v7844
        %v7899 = vpack.c.b16 %v7847, %v7846
        %v7900 = vpack.c.b16 %v7849, %v7848
        %v7901 = vpack.c.b16 %v7851, %v7850
        %v7902 = vpack.c.b16 %v7853, %v7852
        %v7903 = vpack.c.b16 %v7855, %v7854
        %v7904 = vpack.c.b16 %v7857, %v7856
        %v7905 = vpack.c.b16 %v7859, %v7858
        %v7906 = vpack.c.b16 %v7861, %v7860
        %v7907 = vpack.c.b16 %v7863, %v7862
        %v7908 = vpack.c.b16 %v7865, %v7864
        %v7909 = vpack.c.b16 %v7867, %v7866
        %v7910 = vpack.c.b16 %v7869, %v7868
        %v7911 = vpack.c.b16 %v7871, %v7870
        %v7912 = vpack.c.b16 %v7873, %v7872
        %v7913 = vpack.c.b16 %v7875, %v7874
        %v7914 = vpack.c.b16 %v7877, %v7876
        %v7915 = vpack.c.b16 %v7879, %v7878
        %v7916 = vpack.c.b16 %v7881, %v7880
        %v7917 = vpack.c.b16 %v7883, %v7882
        %v7918 = vpack.c.b16 %v7885, %v7884
        %v7919 = vpack.c.b16 %v7887, %v7886
        %7952 = vmatprep.subr.bf16.mxu0 0
        %7953 = vmatpush1.bf16.msra.mxu0 %v7895
        %7954 = vmatprep.subr.bf16.mxu0 0
        %7955 = vmatpush1.bf16.msra.mxu0 %v7894
        %7956 = vmatprep.subr.bf16.mxu0 0
        %7957 = vmatpush1.bf16.msra.mxu0 %v7893
        %7958 = vmatprep.subr.bf16.mxu0 0
        %7959 = vmatpush1.bf16.msra.mxu0 %v7892
        %7960 = vmatprep.subr.bf16.mxu0 0
        %7961 = vmatpush1.bf16.msra.mxu0 %v7891
        %7962 = vmatprep.subr.bf16.mxu0 0
        %7963 = vmatpush1.bf16.msra.mxu0 %v7890
        %7964 = vmatprep.subr.bf16.mxu0 0
        %7965 = vmatpush1.bf16.msra.mxu0 %v7889
        %7966 = vmatprep.subr.bf16.mxu0 0
        %7967 = vmatpush1.bf16.msra.mxu0 %v7888
        %7968 = vmatprep.subr.bf16.mxu0 0
        %7969 = vmatpush2.bf16.msra.mxu0 %v7903
        %7970 = vmatprep.subr.bf16.mxu0 0
        %7971 = vmatpush2.bf16.msra.mxu0 %v7902
        %7972 = vmatprep.subr.bf16.mxu0 0
        %7973 = vmatpush2.bf16.msra.mxu0 %v7901
        %7974 = vmatprep.subr.bf16.mxu0 0
        %7975 = vmatpush2.bf16.msra.mxu0 %v7900
        %7976 = vmatprep.subr.bf16.mxu0 0
        %7977 = vmatpush2.bf16.msra.mxu0 %v7899
        %7978 = vmatprep.subr.bf16.mxu0 0
        %7979 = vmatpush2.bf16.msra.mxu0 %v7898
        %7980 = vmatprep.subr.bf16.mxu0 0
        %7981 = vmatpush2.bf16.msra.mxu0 %v7897
        %7982 = vmatprep.subr.bf16.mxu0 0
        %7983 = vmatpush2.bf16.msra.mxu0 %v7896
        %7984 = vmatprep.mubr.bf16.mxu0 %v7681
        %7985 = vmatmul.mubr.bf16.gmra.mxu0 %v7680
        %v7986 = vpop.f32.mrf.mxu0
        %v7987 = vadd.f32 0.0, %v7986
        %v7988 = vpop.f32.mrf.mxu0
        %v7989 = vpop.f32.mrf.mxu0
        %v7990 = vadd.f32 0.0, %v7989
        %v7991 = vpop.f32.mrf.mxu0
        %7992 = vmatprep.mubr.bf16.mxu0 %v7685
        %7993 = vmatmul.mubr.bf16.gmra.mxu0 %v7684
        %v7994 = vpop.f32.mrf.mxu0
        %v7995 = vadd.f32 0.0, %v7994
        %v7996 = vpop.f32.mrf.mxu0
        %v7997 = vpop.f32.mrf.mxu0
        %v7998 = vadd.f32 0.0, %v7997
        %v7999 = vpop.f32.mrf.mxu0
        %8000 = vmatprep.mubr.bf16.mxu0 %v7689
        %8001 = vmatmul.mubr.bf16.gmra.mxu0 %v7688
        %v8002 = vpop.f32.mrf.mxu0
        %v8003 = vadd.f32 0.0, %v8002
        %v8004 = vpop.f32.mrf.mxu0
        %v8005 = vpop.f32.mrf.mxu0
        %v8006 = vadd.f32 0.0, %v8005
        %v8007 = vpop.f32.mrf.mxu0
        %8008 = vmatprep.mubr.bf16.mxu0 %v7693
        %8009 = vmatmul.mubr.bf16.gmra.mxu0 %v7692
        %v8010 = vpop.f32.mrf.mxu0
        %v8011 = vadd.f32 0.0, %v8010
        %v8012 = vpop.f32.mrf.mxu0
        %v8013 = vpop.f32.mrf.mxu0
        %v8014 = vadd.f32 0.0, %v8013
        %v8015 = vpop.f32.mrf.mxu0
        %8016 = vdwg.mxu0
        %8017 = vmatprep.subr.bf16.mxu0 0
        %8018 = vmatpush1.bf16.msra.mxu0 %v7911
        %8019 = vmatprep.subr.bf16.mxu0 0
        %8020 = vmatpush1.bf16.msra.mxu0 %v7910
        %8021 = vmatprep.subr.bf16.mxu0 0
        %8022 = vmatpush1.bf16.msra.mxu0 %v7909
        %8023 = vmatprep.subr.bf16.mxu0 0
        %8024 = vmatpush1.bf16.msra.mxu0 %v7908
        %8025 = vmatprep.subr.bf16.mxu0 0
        %8026 = vmatpush1.bf16.msra.mxu0 %v7907
        %8027 = vmatprep.subr.bf16.mxu0 0
        %8028 = vmatpush1.bf16.msra.mxu0 %v7906
        %8029 = vmatprep.subr.bf16.mxu0 0
        %8030 = vmatpush1.bf16.msra.mxu0 %v7905
        %8031 = vmatprep.subr.bf16.mxu0 0
        %8032 = vmatpush1.bf16.msra.mxu0 %v7904
        %8033 = vmatprep.subr.bf16.mxu0 0
        %8034 = vmatpush2.bf16.msra.mxu0 %v7919
        %8035 = vmatprep.subr.bf16.mxu0 0
        %8036 = vmatpush2.bf16.msra.mxu0 %v7918
        %8037 = vmatprep.subr.bf16.mxu0 0
        %8038 = vmatpush2.bf16.msra.mxu0 %v7917
        %8039 = vmatprep.subr.bf16.mxu0 0
        %8040 = vmatpush2.bf16.msra.mxu0 %v7916
        %8041 = vmatprep.subr.bf16.mxu0 0
        %8042 = vmatpush2.bf16.msra.mxu0 %v7915
        %8043 = vmatprep.subr.bf16.mxu0 0
        %8044 = vmatpush2.bf16.msra.mxu0 %v7914
        %8045 = vmatprep.subr.bf16.mxu0 0
        %8046 = vmatpush2.bf16.msra.mxu0 %v7913
        %8047 = vmatprep.subr.bf16.mxu0 0
        %8048 = vmatpush2.bf16.msra.mxu0 %v7912
        %8049 = vmatprep.mubr.bf16.mxu0 %v7683
        %8050 = vmatmul.mubr.bf16.gmra.mxu0 %v7682
        %v8051 = vpop.f32.mrf.mxu0
        %v8052 = vadd.f32 %v7987, %v8051
        %v8053 = vpop.f32.mrf.mxu0
        %v8054 = vpop.f32.mrf.mxu0
        %v8055 = vadd.f32 %v7990, %v8054
        %v8056 = vpop.f32.mrf.mxu0
        %8057 = vmatprep.mubr.bf16.mxu0 %v7687
        %8058 = vmatmul.mubr.bf16.gmra.mxu0 %v7686
        %v8059 = vpop.f32.mrf.mxu0
        %v8060 = vadd.f32 %v7995, %v8059
        %v8061 = vpop.f32.mrf.mxu0
        %v8062 = vpop.f32.mrf.mxu0
        %v8063 = vadd.f32 %v7998, %v8062
        %v8064 = vpop.f32.mrf.mxu0
        %8065 = vmatprep.mubr.bf16.mxu0 %v7691
        %8066 = vmatmul.mubr.bf16.gmra.mxu0 %v7690
        %v8067 = vpop.f32.mrf.mxu0
        %v8068 = vadd.f32 %v8003, %v8067
        %v8069 = vpop.f32.mrf.mxu0
        %v8070 = vpop.f32.mrf.mxu0
        %v8071 = vadd.f32 %v8006, %v8070
        %v8072 = vpop.f32.mrf.mxu0
        %8073 = vmatprep.mubr.bf16.mxu0 %v7695
        %8074 = vmatmul.mubr.bf16.gmra.mxu0 %v7694
        %v8075 = vpop.f32.mrf.mxu0
        %v8076 = vadd.f32 %v8011, %v8075
        %v8077 = vpop.f32.mrf.mxu0
        %v8078 = vpop.f32.mrf.mxu0
        %v8079 = vadd.f32 %v8014, %v8078
        %v8080 = vpop.f32.mrf.mxu0
        %8081 = vdwg.mxu0
        %v8082 = vadd.f32 %v7424, %v8052
        %v8083 = vadd.f32 %v7425, %v8055
        %v8084 = vadd.f32 %v7426, %v8060
        %v8085 = vadd.f32 %v7427, %v8063
        %v8086 = vadd.f32 %v7428, %v8068
        %v8087 = vadd.f32 %v7429, %v8071
        %v8088 = vadd.f32 %v7430, %v8076
        %v8089 = vadd.f32 %v7431, %v8079
        %v8090 = vld [vmem:[%s13 + $0x20] sm:$0xff]
        %v8091 = vld [vmem:[%s13 + $0x28] sm:$0xff]
        %v8092 = vld [vmem:[%s13 + $0x60] sm:$0xff]
        %v8093 = vld [vmem:[%s13 + $0x68] sm:$0xff]
        %v8094 = vld [vmem:[%s13 + $0xa0] sm:$0xff]
        %v8095 = vld [vmem:[%s13 + $0xa8] sm:$0xff]
        %v8096 = vld [vmem:[%s13 + $0xe0] sm:$0xff]
        %v8097 = vld [vmem:[%s13 + $0xe8] sm:$0xff]
        %v8098 = vld [vmem:[%s16 + $0x8] sm:$0xf]
        %v8100 = vlaneseq
        %v8101 = vshrl.u32 %v8100, 7
        %v8102 = vsub.s32 0, %v8101
        %v8103 = vrot.slane %v8098, %v8102
        %v8104 = vlaneseq
        %v8105 = vshrl.u32 %v8104, 7
        %v8106 = vsub.s32 1, %v8105
        %v8107 = vrot.slane %v8098, %v8106
        %v8108 = vlaneseq
        %v8109 = vshrl.u32 %v8108, 7
        %v8110 = vsub.s32 2, %v8109
        %v8111 = vrot.slane %v8098, %v8110
        %v8112 = vlaneseq
        %v8113 = vshrl.u32 %v8112, 7
        %v8114 = vsub.s32 3, %v8113
        %v8115 = vrot.slane %v8098, %v8114
        %v8128 = vunpack.c.l.b16 %v8090
        %v8129 = vunpack.c.h.b16 %v8090
        %v8130 = vunpack.c.l.b16 %v8091
        %v8131 = vunpack.c.h.b16 %v8091
        %v8132 = vunpack.c.l.b16 %v8092
        %v8133 = vunpack.c.h.b16 %v8092
        %v8134 = vunpack.c.l.b16 %v8093
        %v8135 = vunpack.c.h.b16 %v8093
        %v8136 = vunpack.c.l.b16 %v8094
        %v8137 = vunpack.c.h.b16 %v8094
        %v8138 = vunpack.c.l.b16 %v8095
        %v8139 = vunpack.c.h.b16 %v8095
        %v8140 = vunpack.c.l.b16 %v8096
        %v8141 = vunpack.c.h.b16 %v8096
        %v8142 = vunpack.c.l.b16 %v8097
        %v8143 = vunpack.c.h.b16 %v8097
        %v8144 = vpack.c.b16 %v8132, %v8128
        %v8145 = vpack.c.b16 %v8133, %v8129
        %v8146 = vpack.c.b16 %v8134, %v8130
        %v8147 = vpack.c.b16 %v8135, %v8131
        %v8148 = vpack.c.b16 %v8140, %v8136
        %v8149 = vpack.c.b16 %v8141, %v8137
        %v8150 = vpack.c.b16 %v8142, %v8138
        %v8151 = vpack.c.b16 %v8143, %v8139
        %8160 = vmatprep.subr.bf16.mxu0 0
        %8161 = vmatpush1.bf16.msra.mxu0 0
        %8162 = vmatprep.subr.bf16.mxu0 0
        %8163 = vmatpush1.bf16.msra.mxu0 0
        %8164 = vmatprep.subr.bf16.mxu0 0
        %8165 = vmatpush1.bf16.msra.mxu0 0
        %8166 = vmatprep.subr.bf16.mxu0 0
        %8167 = vmatpush1.bf16.msra.mxu0 0
        %8168 = vmatprep.subr.bf16.mxu0 0
        %8169 = vmatpush1.bf16.msra.mxu0 0
        %8170 = vmatprep.subr.bf16.mxu0 0
        %8171 = vmatpush1.bf16.msra.mxu0 0
        %8172 = vmatprep.subr.bf16.mxu0 %v8149
        %8173 = vmatpush1.bf16.msra.mxu0 %v8148
        %8174 = vmatprep.subr.bf16.mxu0 %v8145
        %8175 = vmatpush1.bf16.msra.mxu0 %v8144
        %8176 = vmatprep.subr.bf16.mxu0 0
        %8177 = vmatpush2.bf16.msra.mxu0 0
        %8178 = vmatprep.subr.bf16.mxu0 0
        %8179 = vmatpush2.bf16.msra.mxu0 0
        %8180 = vmatprep.subr.bf16.mxu0 0
        %8181 = vmatpush2.bf16.msra.mxu0 0
        %8182 = vmatprep.subr.bf16.mxu0 0
        %8183 = vmatpush2.bf16.msra.mxu0 0
        %8184 = vmatprep.subr.bf16.mxu0 0
        %8185 = vmatpush2.bf16.msra.mxu0 0
        %8186 = vmatprep.subr.bf16.mxu0 0
        %8187 = vmatpush2.bf16.msra.mxu0 0
        %8188 = vmatprep.subr.bf16.mxu0 0
        %8189 = vmatpush2.bf16.msra.mxu0 0
        %8190 = vmatprep.subr.bf16.mxu0 0
        %8191 = vmatpush2.bf16.msra.mxu0 0
        %8192 = vmatprep.mubr.bf16.mxu0 0
        %8193 = vmatmul.mubr.bf16.gmra.mxu0 %v6833
        %v8194 = vpop.f32.mrf.mxu0
        %v8195 = vadd.f32 %v8103, %v8194
        %v8196 = vpop.f32.mrf.mxu0
        %v8197 = vadd.f32 %v8107, %v8196
        %v8198 = vpop.f32.mrf.mxu0
        %v8199 = vadd.f32 %v8103, %v8198
        %v8200 = vpop.f32.mrf.mxu0
        %v8201 = vadd.f32 %v8107, %v8200
        %8202 = vmatprep.mubr.bf16.mxu0 0
        %8203 = vmatmul.mubr.bf16.gmra.mxu0 %v6836
        %v8204 = vpop.f32.mrf.mxu0
        %v8205 = vadd.f32 %v8103, %v8204
        %v8206 = vpop.f32.mrf.mxu0
        %v8207 = vadd.f32 %v8107, %v8206
        %v8208 = vpop.f32.mrf.mxu0
        %v8209 = vadd.f32 %v8103, %v8208
        %v8210 = vpop.f32.mrf.mxu0
        %v8211 = vadd.f32 %v8107, %v8210
        %8212 = vmatprep.mubr.bf16.mxu0 0
        %8213 = vmatmul.mubr.bf16.gmra.mxu0 %v6839
        %v8214 = vpop.f32.mrf.mxu0
        %v8215 = vadd.f32 %v8103, %v8214
        %v8216 = vpop.f32.mrf.mxu0
        %v8217 = vadd.f32 %v8107, %v8216
        %v8218 = vpop.f32.mrf.mxu0
        %v8219 = vadd.f32 %v8103, %v8218
        %v8220 = vpop.f32.mrf.mxu0
        %v8221 = vadd.f32 %v8107, %v8220
        %8222 = vmatprep.mubr.bf16.mxu0 0
        %8223 = vmatmul.mubr.bf16.gmra.mxu0 %v6842
        %v8224 = vpop.f32.mrf.mxu0
        %v8225 = vadd.f32 %v8103, %v8224
        %v8226 = vpop.f32.mrf.mxu0
        %v8227 = vadd.f32 %v8107, %v8226
        %v8228 = vpop.f32.mrf.mxu0
        %v8229 = vadd.f32 %v8103, %v8228
        %v8230 = vpop.f32.mrf.mxu0
        %v8231 = vadd.f32 %v8107, %v8230
        %8232 = vdwg.mxu0
        %8233 = vmatprep.subr.bf16.mxu0 0
        %8234 = vmatpush1.bf16.msra.mxu0 0
        %8235 = vmatprep.subr.bf16.mxu0 0
        %8236 = vmatpush1.bf16.msra.mxu0 0
        %8237 = vmatprep.subr.bf16.mxu0 0
        %8238 = vmatpush1.bf16.msra.mxu0 0
        %8239 = vmatprep.subr.bf16.mxu0 0
        %8240 = vmatpush1.bf16.msra.mxu0 0
        %8241 = vmatprep.subr.bf16.mxu0 0
        %8242 = vmatpush1.bf16.msra.mxu0 0
        %8243 = vmatprep.subr.bf16.mxu0 0
        %8244 = vmatpush1.bf16.msra.mxu0 0
        %8245 = vmatprep.subr.bf16.mxu0 %v8151
        %8246 = vmatpush1.bf16.msra.mxu0 %v8150
        %8247 = vmatprep.subr.bf16.mxu0 %v8147
        %8248 = vmatpush1.bf16.msra.mxu0 %v8146
        %8249 = vmatprep.subr.bf16.mxu0 0
        %8250 = vmatpush2.bf16.msra.mxu0 0
        %8251 = vmatprep.subr.bf16.mxu0 0
        %8252 = vmatpush2.bf16.msra.mxu0 0
        %8253 = vmatprep.subr.bf16.mxu0 0
        %8254 = vmatpush2.bf16.msra.mxu0 0
        %8255 = vmatprep.subr.bf16.mxu0 0
        %8256 = vmatpush2.bf16.msra.mxu0 0
        %8257 = vmatprep.subr.bf16.mxu0 0
        %8258 = vmatpush2.bf16.msra.mxu0 0
        %8259 = vmatprep.subr.bf16.mxu0 0
        %8260 = vmatpush2.bf16.msra.mxu0 0
        %8261 = vmatprep.subr.bf16.mxu0 0
        %8262 = vmatpush2.bf16.msra.mxu0 0
        %8263 = vmatprep.subr.bf16.mxu0 0
        %8264 = vmatpush2.bf16.msra.mxu0 0
        %8265 = vmatprep.mubr.bf16.mxu0 0
        %8266 = vmatmul.mubr.bf16.gmra.mxu0 %v6833
        %v8267 = vpop.f32.mrf.mxu0
        %v8268 = vadd.f32 %v8111, %v8267
        %v8269 = vpop.f32.mrf.mxu0
        %v8270 = vadd.f32 %v8115, %v8269
        %v8271 = vpop.f32.mrf.mxu0
        %v8272 = vadd.f32 %v8111, %v8271
        %v8273 = vpop.f32.mrf.mxu0
        %v8274 = vadd.f32 %v8115, %v8273
        %8275 = vmatprep.mubr.bf16.mxu0 0
        %8276 = vmatmul.mubr.bf16.gmra.mxu0 %v6836
        %v8277 = vpop.f32.mrf.mxu0
        %v8278 = vadd.f32 %v8111, %v8277
        %v8279 = vpop.f32.mrf.mxu0
        %v8280 = vadd.f32 %v8115, %v8279
        %v8281 = vpop.f32.mrf.mxu0
        %v8282 = vadd.f32 %v8111, %v8281
        %v8283 = vpop.f32.mrf.mxu0
        %v8284 = vadd.f32 %v8115, %v8283
        %8285 = vmatprep.mubr.bf16.mxu0 0
        %8286 = vmatmul.mubr.bf16.gmra.mxu0 %v6839
        %v8287 = vpop.f32.mrf.mxu0
        %v8288 = vadd.f32 %v8111, %v8287
        %v8289 = vpop.f32.mrf.mxu0
        %v8290 = vadd.f32 %v8115, %v8289
        %v8291 = vpop.f32.mrf.mxu0
        %v8292 = vadd.f32 %v8111, %v8291
        %v8293 = vpop.f32.mrf.mxu0
        %v8294 = vadd.f32 %v8115, %v8293
        %8295 = vmatprep.mubr.bf16.mxu0 0
        %8296 = vmatmul.mubr.bf16.gmra.mxu0 %v6842
        %v8297 = vpop.f32.mrf.mxu0
        %v8298 = vadd.f32 %v8111, %v8297
        %v8299 = vpop.f32.mrf.mxu0
        %v8300 = vadd.f32 %v8115, %v8299
        %v8301 = vpop.f32.mrf.mxu0
        %v8302 = vadd.f32 %v8111, %v8301
        %v8303 = vpop.f32.mrf.mxu0
        %v8304 = vadd.f32 %v8115, %v8303
        %8305 = vdwg.mxu0
        %v8306 = vmax.f32 %v8195, 0.0
        %v8307 = vmax.f32 %v8197, 0.0
        %v8308 = vmax.f32 %v8268, 0.0
        %v8309 = vmax.f32 %v8270, 0.0
        %v8310 = vmax.f32 %v8199, 0.0
        %v8311 = vmax.f32 %v8201, 0.0
        %v8312 = vmax.f32 %v8272, 0.0
        %v8313 = vmax.f32 %v8274, 0.0
        %v8314 = vmax.f32 %v8205, 0.0
        %v8315 = vmax.f32 %v8207, 0.0
        %v8316 = vmax.f32 %v8278, 0.0
        %v8317 = vmax.f32 %v8280, 0.0
        %v8318 = vmax.f32 %v8209, 0.0
        %v8319 = vmax.f32 %v8211, 0.0
        %v8320 = vmax.f32 %v8282, 0.0
        %v8321 = vmax.f32 %v8284, 0.0
        %v8322 = vmax.f32 %v8215, 0.0
        %v8323 = vmax.f32 %v8217, 0.0
        %v8324 = vmax.f32 %v8288, 0.0
        %v8325 = vmax.f32 %v8290, 0.0
        %v8326 = vmax.f32 %v8219, 0.0
        %v8327 = vmax.f32 %v8221, 0.0
        %v8328 = vmax.f32 %v8292, 0.0
        %v8329 = vmax.f32 %v8294, 0.0
        %v8330 = vmax.f32 %v8225, 0.0
        %v8331 = vmax.f32 %v8227, 0.0
        %v8332 = vmax.f32 %v8298, 0.0
        %v8333 = vmax.f32 %v8300, 0.0
        %v8334 = vmax.f32 %v8229, 0.0
        %v8335 = vmax.f32 %v8231, 0.0
        %v8336 = vmax.f32 %v8302, 0.0
        %v8337 = vmax.f32 %v8304, 0.0
        %v8338 = vpack.c.bf16 %v8310, %v8306
        %v8339 = vpack.c.bf16 %v8311, %v8307
        %v8340 = vpack.c.bf16 %v8312, %v8308
        %v8341 = vpack.c.bf16 %v8313, %v8309
        %v8342 = vpack.c.bf16 %v8318, %v8314
        %v8343 = vpack.c.bf16 %v8319, %v8315
        %v8344 = vpack.c.bf16 %v8320, %v8316
        %v8345 = vpack.c.bf16 %v8321, %v8317
        %v8346 = vpack.c.bf16 %v8326, %v8322
        %v8347 = vpack.c.bf16 %v8327, %v8323
        %v8348 = vpack.c.bf16 %v8328, %v8324
        %v8349 = vpack.c.bf16 %v8329, %v8325
        %v8350 = vpack.c.bf16 %v8334, %v8330
        %v8351 = vpack.c.bf16 %v8335, %v8331
        %v8352 = vpack.c.bf16 %v8336, %v8332
        %v8353 = vpack.c.bf16 %v8337, %v8333
        %v8354 = vld [vmem:[%s14 + $0x200] sm:$0xf]
        %v8355 = vld [vmem:[%s14 + $0x204] sm:$0xf]
        %v8356 = vld [vmem:[%s14 + $0x208] sm:$0xf]
        %v8357 = vld [vmem:[%s14 + $0x20c] sm:$0xf]
        %v8358 = vld [vmem:[%s14 + $0x210] sm:$0xf]
        %v8359 = vld [vmem:[%s14 + $0x214] sm:$0xf]
        %v8360 = vld [vmem:[%s14 + $0x218] sm:$0xf]
        %v8361 = vld [vmem:[%s14 + $0x21c] sm:$0xf]
        %v8362 = vld [vmem:[%s14 + $0x220] sm:$0xf]
        %v8363 = vld [vmem:[%s14 + $0x224] sm:$0xf]
        %v8364 = vld [vmem:[%s14 + $0x228] sm:$0xf]
        %v8365 = vld [vmem:[%s14 + $0x22c] sm:$0xf]
        %v8366 = vld [vmem:[%s14 + $0x230] sm:$0xf]
        %v8367 = vld [vmem:[%s14 + $0x234] sm:$0xf]
        %v8368 = vld [vmem:[%s14 + $0x238] sm:$0xf]
        %v8369 = vld [vmem:[%s14 + $0x23c] sm:$0xf]
        %v8370 = vld [vmem:[%s14 + $0x240] sm:$0xf]
        %v8371 = vld [vmem:[%s14 + $0x244] sm:$0xf]
        %v8372 = vld [vmem:[%s14 + $0x248] sm:$0xf]
        %v8373 = vld [vmem:[%s14 + $0x24c] sm:$0xf]
        %v8374 = vld [vmem:[%s14 + $0x250] sm:$0xf]
        %v8375 = vld [vmem:[%s14 + $0x254] sm:$0xf]
        %v8376 = vld [vmem:[%s14 + $0x258] sm:$0xf]
        %v8377 = vld [vmem:[%s14 + $0x25c] sm:$0xf]
        %v8378 = vld [vmem:[%s14 + $0x260] sm:$0xf]
        %v8379 = vld [vmem:[%s14 + $0x264] sm:$0xf]
        %v8380 = vld [vmem:[%s14 + $0x268] sm:$0xf]
        %v8381 = vld [vmem:[%s14 + $0x26c] sm:$0xf]
        %v8382 = vld [vmem:[%s14 + $0x270] sm:$0xf]
        %v8383 = vld [vmem:[%s14 + $0x274] sm:$0xf]
        %v8384 = vld [vmem:[%s14 + $0x278] sm:$0xf]
        %v8385 = vld [vmem:[%s14 + $0x27c] sm:$0xf]
        %v8386 = vld [vmem:[%s14 + $0x280] sm:$0xf]
        %v8387 = vld [vmem:[%s14 + $0x284] sm:$0xf]
        %v8388 = vld [vmem:[%s14 + $0x288] sm:$0xf]
        %v8389 = vld [vmem:[%s14 + $0x28c] sm:$0xf]
        %v8390 = vld [vmem:[%s14 + $0x290] sm:$0xf]
        %v8391 = vld [vmem:[%s14 + $0x294] sm:$0xf]
        %v8392 = vld [vmem:[%s14 + $0x298] sm:$0xf]
        %v8393 = vld [vmem:[%s14 + $0x29c] sm:$0xf]
        %v8394 = vld [vmem:[%s14 + $0x2a0] sm:$0xf]
        %v8395 = vld [vmem:[%s14 + $0x2a4] sm:$0xf]
        %v8396 = vld [vmem:[%s14 + $0x2a8] sm:$0xf]
        %v8397 = vld [vmem:[%s14 + $0x2ac] sm:$0xf]
        %v8398 = vld [vmem:[%s14 + $0x2b0] sm:$0xf]
        %v8399 = vld [vmem:[%s14 + $0x2b4] sm:$0xf]
        %v8400 = vld [vmem:[%s14 + $0x2b8] sm:$0xf]
        %v8401 = vld [vmem:[%s14 + $0x2bc] sm:$0xf]
        %v8402 = vld [vmem:[%s14 + $0x2c0] sm:$0xf]
        %v8403 = vld [vmem:[%s14 + $0x2c4] sm:$0xf]
        %v8404 = vld [vmem:[%s14 + $0x2c8] sm:$0xf]
        %v8405 = vld [vmem:[%s14 + $0x2cc] sm:$0xf]
        %v8406 = vld [vmem:[%s14 + $0x2d0] sm:$0xf]
        %v8407 = vld [vmem:[%s14 + $0x2d4] sm:$0xf]
        %v8408 = vld [vmem:[%s14 + $0x2d8] sm:$0xf]
        %v8409 = vld [vmem:[%s14 + $0x2dc] sm:$0xf]
        %v8410 = vld [vmem:[%s14 + $0x2e0] sm:$0xf]
        %v8411 = vld [vmem:[%s14 + $0x2e4] sm:$0xf]
        %v8412 = vld [vmem:[%s14 + $0x2e8] sm:$0xf]
        %v8413 = vld [vmem:[%s14 + $0x2ec] sm:$0xf]
        %v8414 = vld [vmem:[%s14 + $0x2f0] sm:$0xf]
        %v8415 = vld [vmem:[%s14 + $0x2f4] sm:$0xf]
        %v8416 = vld [vmem:[%s14 + $0x2f8] sm:$0xf]
        %v8417 = vld [vmem:[%s14 + $0x2fc] sm:$0xf]
        %v8482 = vunpack.c.l.b16 %v8354
        %v8483 = vunpack.c.l.b16 %v8355
        %v8484 = vunpack.c.l.b16 %v8356
        %v8485 = vunpack.c.l.b16 %v8357
        %v8486 = vunpack.c.l.b16 %v8358
        %v8487 = vunpack.c.l.b16 %v8359
        %v8488 = vunpack.c.l.b16 %v8360
        %v8489 = vunpack.c.l.b16 %v8361
        %v8490 = vunpack.c.l.b16 %v8362
        %v8491 = vunpack.c.l.b16 %v8363
        %v8492 = vunpack.c.l.b16 %v8364
        %v8493 = vunpack.c.l.b16 %v8365
        %v8494 = vunpack.c.l.b16 %v8366
        %v8495 = vunpack.c.l.b16 %v8367
        %v8496 = vunpack.c.l.b16 %v8368
        %v8497 = vunpack.c.l.b16 %v8369
        %v8498 = vunpack.c.l.b16 %v8370
        %v8499 = vunpack.c.l.b16 %v8371
        %v8500 = vunpack.c.l.b16 %v8372
        %v8501 = vunpack.c.l.b16 %v8373
        %v8502 = vunpack.c.l.b16 %v8374
        %v8503 = vunpack.c.l.b16 %v8375
        %v8504 = vunpack.c.l.b16 %v8376
        %v8505 = vunpack.c.l.b16 %v8377
        %v8506 = vunpack.c.l.b16 %v8378
        %v8507 = vunpack.c.l.b16 %v8379
        %v8508 = vunpack.c.l.b16 %v8380
        %v8509 = vunpack.c.l.b16 %v8381
        %v8510 = vunpack.c.l.b16 %v8382
        %v8511 = vunpack.c.l.b16 %v8383
        %v8512 = vunpack.c.l.b16 %v8384
        %v8513 = vunpack.c.l.b16 %v8385
        %v8514 = vunpack.c.l.b16 %v8386
        %v8515 = vunpack.c.l.b16 %v8387
        %v8516 = vunpack.c.l.b16 %v8388
        %v8517 = vunpack.c.l.b16 %v8389
        %v8518 = vunpack.c.l.b16 %v8390
        %v8519 = vunpack.c.l.b16 %v8391
        %v8520 = vunpack.c.l.b16 %v8392
        %v8521 = vunpack.c.l.b16 %v8393
        %v8522 = vunpack.c.l.b16 %v8394
        %v8523 = vunpack.c.l.b16 %v8395
        %v8524 = vunpack.c.l.b16 %v8396
        %v8525 = vunpack.c.l.b16 %v8397
        %v8526 = vunpack.c.l.b16 %v8398
        %v8527 = vunpack.c.l.b16 %v8399
        %v8528 = vunpack.c.l.b16 %v8400
        %v8529 = vunpack.c.l.b16 %v8401
        %v8530 = vunpack.c.l.b16 %v8402
        %v8531 = vunpack.c.l.b16 %v8403
        %v8532 = vunpack.c.l.b16 %v8404
        %v8533 = vunpack.c.l.b16 %v8405
        %v8534 = vunpack.c.l.b16 %v8406
        %v8535 = vunpack.c.l.b16 %v8407
        %v8536 = vunpack.c.l.b16 %v8408
        %v8537 = vunpack.c.l.b16 %v8409
        %v8538 = vunpack.c.l.b16 %v8410
        %v8539 = vunpack.c.l.b16 %v8411
        %v8540 = vunpack.c.l.b16 %v8412
        %v8541 = vunpack.c.l.b16 %v8413
        %v8542 = vunpack.c.l.b16 %v8414
        %v8543 = vunpack.c.l.b16 %v8415
        %v8544 = vunpack.c.l.b16 %v8416
        %v8545 = vunpack.c.l.b16 %v8417
        %v8546 = vpack.c.b16 %v8483, %v8482
        %v8547 = vpack.c.b16 %v8485, %v8484
        %v8548 = vpack.c.b16 %v8487, %v8486
        %v8549 = vpack.c.b16 %v8489, %v8488
        %v8550 = vpack.c.b16 %v8491, %v8490
        %v8551 = vpack.c.b16 %v8493, %v8492
        %v8552 = vpack.c.b16 %v8495, %v8494
        %v8553 = vpack.c.b16 %v8497, %v8496
        %v8554 = vpack.c.b16 %v8499, %v8498
        %v8555 = vpack.c.b16 %v8501, %v8500
        %v8556 = vpack.c.b16 %v8503, %v8502
        %v8557 = vpack.c.b16 %v8505, %v8504
        %v8558 = vpack.c.b16 %v8507, %v8506
        %v8559 = vpack.c.b16 %v8509, %v8508
        %v8560 = vpack.c.b16 %v8511, %v8510
        %v8561 = vpack.c.b16 %v8513, %v8512
        %v8562 = vpack.c.b16 %v8515, %v8514
        %v8563 = vpack.c.b16 %v8517, %v8516
        %v8564 = vpack.c.b16 %v8519, %v8518
        %v8565 = vpack.c.b16 %v8521, %v8520
        %v8566 = vpack.c.b16 %v8523, %v8522
        %v8567 = vpack.c.b16 %v8525, %v8524
        %v8568 = vpack.c.b16 %v8527, %v8526
        %v8569 = vpack.c.b16 %v8529, %v8528
        %v8570 = vpack.c.b16 %v8531, %v8530
        %v8571 = vpack.c.b16 %v8533, %v8532
        %v8572 = vpack.c.b16 %v8535, %v8534
        %v8573 = vpack.c.b16 %v8537, %v8536
        %v8574 = vpack.c.b16 %v8539, %v8538
        %v8575 = vpack.c.b16 %v8541, %v8540
        %v8576 = vpack.c.b16 %v8543, %v8542
        %v8577 = vpack.c.b16 %v8545, %v8544
        %8610 = vmatprep.subr.bf16.mxu0 0
        %8611 = vmatpush1.bf16.msra.mxu0 %v8553
        %8612 = vmatprep.subr.bf16.mxu0 0
        %8613 = vmatpush1.bf16.msra.mxu0 %v8552
        %8614 = vmatprep.subr.bf16.mxu0 0
        %8615 = vmatpush1.bf16.msra.mxu0 %v8551
        %8616 = vmatprep.subr.bf16.mxu0 0
        %8617 = vmatpush1.bf16.msra.mxu0 %v8550
        %8618 = vmatprep.subr.bf16.mxu0 0
        %8619 = vmatpush1.bf16.msra.mxu0 %v8549
        %8620 = vmatprep.subr.bf16.mxu0 0
        %8621 = vmatpush1.bf16.msra.mxu0 %v8548
        %8622 = vmatprep.subr.bf16.mxu0 0
        %8623 = vmatpush1.bf16.msra.mxu0 %v8547
        %8624 = vmatprep.subr.bf16.mxu0 0
        %8625 = vmatpush1.bf16.msra.mxu0 %v8546
        %8626 = vmatprep.subr.bf16.mxu0 0
        %8627 = vmatpush2.bf16.msra.mxu0 %v8561
        %8628 = vmatprep.subr.bf16.mxu0 0
        %8629 = vmatpush2.bf16.msra.mxu0 %v8560
        %8630 = vmatprep.subr.bf16.mxu0 0
        %8631 = vmatpush2.bf16.msra.mxu0 %v8559
        %8632 = vmatprep.subr.bf16.mxu0 0
        %8633 = vmatpush2.bf16.msra.mxu0 %v8558
        %8634 = vmatprep.subr.bf16.mxu0 0
        %8635 = vmatpush2.bf16.msra.mxu0 %v8557
        %8636 = vmatprep.subr.bf16.mxu0 0
        %8637 = vmatpush2.bf16.msra.mxu0 %v8556
        %8638 = vmatprep.subr.bf16.mxu0 0
        %8639 = vmatpush2.bf16.msra.mxu0 %v8555
        %8640 = vmatprep.subr.bf16.mxu0 0
        %8641 = vmatpush2.bf16.msra.mxu0 %v8554
        %8642 = vmatprep.mubr.bf16.mxu0 %v8339
        %8643 = vmatmul.mubr.bf16.gmra.mxu0 %v8338
        %v8644 = vpop.f32.mrf.mxu0
        %v8645 = vadd.f32 0.0, %v8644
        %v8646 = vpop.f32.mrf.mxu0
        %v8647 = vpop.f32.mrf.mxu0
        %v8648 = vadd.f32 0.0, %v8647
        %v8649 = vpop.f32.mrf.mxu0
        %8650 = vmatprep.mubr.bf16.mxu0 %v8343
        %8651 = vmatmul.mubr.bf16.gmra.mxu0 %v8342
        %v8652 = vpop.f32.mrf.mxu0
        %v8653 = vadd.f32 0.0, %v8652
        %v8654 = vpop.f32.mrf.mxu0
        %v8655 = vpop.f32.mrf.mxu0
        %v8656 = vadd.f32 0.0, %v8655
        %v8657 = vpop.f32.mrf.mxu0
        %8658 = vmatprep.mubr.bf16.mxu0 %v8347
        %8659 = vmatmul.mubr.bf16.gmra.mxu0 %v8346
        %v8660 = vpop.f32.mrf.mxu0
        %v8661 = vadd.f32 0.0, %v8660
        %v8662 = vpop.f32.mrf.mxu0
        %v8663 = vpop.f32.mrf.mxu0
        %v8664 = vadd.f32 0.0, %v8663
        %v8665 = vpop.f32.mrf.mxu0
        %8666 = vmatprep.mubr.bf16.mxu0 %v8351
        %8667 = vmatmul.mubr.bf16.gmra.mxu0 %v8350
        %v8668 = vpop.f32.mrf.mxu0
        %v8669 = vadd.f32 0.0, %v8668
        %v8670 = vpop.f32.mrf.mxu0
        %v8671 = vpop.f32.mrf.mxu0
        %v8672 = vadd.f32 0.0, %v8671
        %v8673 = vpop.f32.mrf.mxu0
        %8674 = vdwg.mxu0
        %8675 = vmatprep.subr.bf16.mxu0 0
        %8676 = vmatpush1.bf16.msra.mxu0 %v8569
        %8677 = vmatprep.subr.bf16.mxu0 0
        %8678 = vmatpush1.bf16.msra.mxu0 %v8568
        %8679 = vmatprep.subr.bf16.mxu0 0
        %8680 = vmatpush1.bf16.msra.mxu0 %v8567
        %8681 = vmatprep.subr.bf16.mxu0 0
        %8682 = vmatpush1.bf16.msra.mxu0 %v8566
        %8683 = vmatprep.subr.bf16.mxu0 0
        %8684 = vmatpush1.bf16.msra.mxu0 %v8565
        %8685 = vmatprep.subr.bf16.mxu0 0
        %8686 = vmatpush1.bf16.msra.mxu0 %v8564
        %8687 = vmatprep.subr.bf16.mxu0 0
        %8688 = vmatpush1.bf16.msra.mxu0 %v8563
        %8689 = vmatprep.subr.bf16.mxu0 0
        %8690 = vmatpush1.bf16.msra.mxu0 %v8562
        %8691 = vmatprep.subr.bf16.mxu0 0
        %8692 = vmatpush2.bf16.msra.mxu0 %v8577
        %8693 = vmatprep.subr.bf16.mxu0 0
        %8694 = vmatpush2.bf16.msra.mxu0 %v8576
        %8695 = vmatprep.subr.bf16.mxu0 0
        %8696 = vmatpush2.bf16.msra.mxu0 %v8575
        %8697 = vmatprep.subr.bf16.mxu0 0
        %8698 = vmatpush2.bf16.msra.mxu0 %v8574
        %8699 = vmatprep.subr.bf16.mxu0 0
        %8700 = vmatpush2.bf16.msra.mxu0 %v8573
        %8701 = vmatprep.subr.bf16.mxu0 0
        %8702 = vmatpush2.bf16.msra.mxu0 %v8572
        %8703 = vmatprep.subr.bf16.mxu0 0
        %8704 = vmatpush2.bf16.msra.mxu0 %v8571
        %8705 = vmatprep.subr.bf16.mxu0 0
        %8706 = vmatpush2.bf16.msra.mxu0 %v8570
        %8707 = vmatprep.mubr.bf16.mxu0 %v8341
        %8708 = vmatmul.mubr.bf16.gmra.mxu0 %v8340
        %v8709 = vpop.f32.mrf.mxu0
        %v8710 = vadd.f32 %v8645, %v8709
        %v8711 = vpop.f32.mrf.mxu0
        %v8712 = vpop.f32.mrf.mxu0
        %v8713 = vadd.f32 %v8648, %v8712
        %v8714 = vpop.f32.mrf.mxu0
        %8715 = vmatprep.mubr.bf16.mxu0 %v8345
        %8716 = vmatmul.mubr.bf16.gmra.mxu0 %v8344
        %v8717 = vpop.f32.mrf.mxu0
        %v8718 = vadd.f32 %v8653, %v8717
        %v8719 = vpop.f32.mrf.mxu0
        %v8720 = vpop.f32.mrf.mxu0
        %v8721 = vadd.f32 %v8656, %v8720
        %v8722 = vpop.f32.mrf.mxu0
        %8723 = vmatprep.mubr.bf16.mxu0 %v8349
        %8724 = vmatmul.mubr.bf16.gmra.mxu0 %v8348
        %v8725 = vpop.f32.mrf.mxu0
        %v8726 = vadd.f32 %v8661, %v8725
        %v8727 = vpop.f32.mrf.mxu0
        %v8728 = vpop.f32.mrf.mxu0
        %v8729 = vadd.f32 %v8664, %v8728
        %v8730 = vpop.f32.mrf.mxu0
        %8731 = vmatprep.mubr.bf16.mxu0 %v8353
        %8732 = vmatmul.mubr.bf16.gmra.mxu0 %v8352
        %v8733 = vpop.f32.mrf.mxu0
        %v8734 = vadd.f32 %v8669, %v8733
        %v8735 = vpop.f32.mrf.mxu0
        %v8736 = vpop.f32.mrf.mxu0
        %v8737 = vadd.f32 %v8672, %v8736
        %v8738 = vpop.f32.mrf.mxu0
        %8739 = vdwg.mxu0
        %v8740 = vadd.f32 %v8082, %v8710
        %v8741 = vadd.f32 %v8083, %v8713
        %v8742 = vadd.f32 %v8084, %v8718
        %v8743 = vadd.f32 %v8085, %v8721
        %v8744 = vadd.f32 %v8086, %v8726
        %v8745 = vadd.f32 %v8087, %v8729
        %v8746 = vadd.f32 %v8088, %v8734
        %v8747 = vadd.f32 %v8089, %v8737
        %v8748 = vld [vmem:[%s13 + $0x30] sm:$0xff]
        %v8749 = vld [vmem:[%s13 + $0x38] sm:$0xff]
        %v8750 = vld [vmem:[%s13 + $0x70] sm:$0xff]
        %v8751 = vld [vmem:[%s13 + $0x78] sm:$0xff]
        %v8752 = vld [vmem:[%s13 + $0xb0] sm:$0xff]
        %v8753 = vld [vmem:[%s13 + $0xb8] sm:$0xff]
        %v8754 = vld [vmem:[%s13 + $0xf0] sm:$0xff]
        %v8755 = vld [vmem:[%s13 + $0xf8] sm:$0xff]
        %v8756 = vld [vmem:[%s16 + $0xc] sm:$0xf]
        %v8758 = vlaneseq
        %v8759 = vshrl.u32 %v8758, 7
        %v8760 = vsub.s32 0, %v8759
        %v8761 = vrot.slane %v8756, %v8760
        %v8762 = vlaneseq
        %v8763 = vshrl.u32 %v8762, 7
        %v8764 = vsub.s32 1, %v8763
        %v8765 = vrot.slane %v8756, %v8764
        %v8766 = vlaneseq
        %v8767 = vshrl.u32 %v8766, 7
        %v8768 = vsub.s32 2, %v8767
        %v8769 = vrot.slane %v8756, %v8768
        %v8770 = vlaneseq
        %v8771 = vshrl.u32 %v8770, 7
        %v8772 = vsub.s32 3, %v8771
        %v8773 = vrot.slane %v8756, %v8772
        %v8786 = vunpack.c.l.b16 %v8748
        %v8787 = vunpack.c.h.b16 %v8748
        %v8788 = vunpack.c.l.b16 %v8749
        %v8789 = vunpack.c.h.b16 %v8749
        %v8790 = vunpack.c.l.b16 %v8750
        %v8791 = vunpack.c.h.b16 %v8750
        %v8792 = vunpack.c.l.b16 %v8751
        %v8793 = vunpack.c.h.b16 %v8751
        %v8794 = vunpack.c.l.b16 %v8752
        %v8795 = vunpack.c.h.b16 %v8752
        %v8796 = vunpack.c.l.b16 %v8753
        %v8797 = vunpack.c.h.b16 %v8753
        %v8798 = vunpack.c.l.b16 %v8754
        %v8799 = vunpack.c.h.b16 %v8754
        %v8800 = vunpack.c.l.b16 %v8755
        %v8801 = vunpack.c.h.b16 %v8755
        %v8802 = vpack.c.b16 %v8790, %v8786
        %v8803 = vpack.c.b16 %v8791, %v8787
        %v8804 = vpack.c.b16 %v8792, %v8788
        %v8805 = vpack.c.b16 %v8793, %v8789
        %v8806 = vpack.c.b16 %v8798, %v8794
        %v8807 = vpack.c.b16 %v8799, %v8795
        %v8808 = vpack.c.b16 %v8800, %v8796
        %v8809 = vpack.c.b16 %v8801, %v8797
        %8818 = vmatprep.subr.bf16.mxu0 0
        %8819 = vmatpush1.bf16.msra.mxu0 0
        %8820 = vmatprep.subr.bf16.mxu0 0
        %8821 = vmatpush1.bf16.msra.mxu0 0
        %8822 = vmatprep.subr.bf16.mxu0 0
        %8823 = vmatpush1.bf16.msra.mxu0 0
        %8824 = vmatprep.subr.bf16.mxu0 0
        %8825 = vmatpush1.bf16.msra.mxu0 0
        %8826 = vmatprep.subr.bf16.mxu0 0
        %8827 = vmatpush1.bf16.msra.mxu0 0
        %8828 = vmatprep.subr.bf16.mxu0 0
        %8829 = vmatpush1.bf16.msra.mxu0 0
        %8830 = vmatprep.subr.bf16.mxu0 %v8807
        %8831 = vmatpush1.bf16.msra.mxu0 %v8806
        %8832 = vmatprep.subr.bf16.mxu0 %v8803
        %8833 = vmatpush1.bf16.msra.mxu0 %v8802
        %8834 = vmatprep.subr.bf16.mxu0 0
        %8835 = vmatpush2.bf16.msra.mxu0 0
        %8836 = vmatprep.subr.bf16.mxu0 0
        %8837 = vmatpush2.bf16.msra.mxu0 0
        %8838 = vmatprep.subr.bf16.mxu0 0
        %8839 = vmatpush2.bf16.msra.mxu0 0
        %8840 = vmatprep.subr.bf16.mxu0 0
        %8841 = vmatpush2.bf16.msra.mxu0 0
        %8842 = vmatprep.subr.bf16.mxu0 0
        %8843 = vmatpush2.bf16.msra.mxu0 0
        %8844 = vmatprep.subr.bf16.mxu0 0
        %8845 = vmatpush2.bf16.msra.mxu0 0
        %8846 = vmatprep.subr.bf16.mxu0 0
        %8847 = vmatpush2.bf16.msra.mxu0 0
        %8848 = vmatprep.subr.bf16.mxu0 0
        %8849 = vmatpush2.bf16.msra.mxu0 0
        %8850 = vmatprep.mubr.bf16.mxu0 0
        %8851 = vmatmul.mubr.bf16.gmra.mxu0 %v6833
        %v8852 = vpop.f32.mrf.mxu0
        %v8853 = vadd.f32 %v8761, %v8852
        %v8854 = vpop.f32.mrf.mxu0
        %v8855 = vadd.f32 %v8765, %v8854
        %v8856 = vpop.f32.mrf.mxu0
        %v8857 = vadd.f32 %v8761, %v8856
        %v8858 = vpop.f32.mrf.mxu0
        %v8859 = vadd.f32 %v8765, %v8858
        %8860 = vmatprep.mubr.bf16.mxu0 0
        %8861 = vmatmul.mubr.bf16.gmra.mxu0 %v6836
        %v8862 = vpop.f32.mrf.mxu0
        %v8863 = vadd.f32 %v8761, %v8862
        %v8864 = vpop.f32.mrf.mxu0
        %v8865 = vadd.f32 %v8765, %v8864
        %v8866 = vpop.f32.mrf.mxu0
        %v8867 = vadd.f32 %v8761, %v8866
        %v8868 = vpop.f32.mrf.mxu0
        %v8869 = vadd.f32 %v8765, %v8868
        %8870 = vmatprep.mubr.bf16.mxu0 0
        %8871 = vmatmul.mubr.bf16.gmra.mxu0 %v6839
        %v8872 = vpop.f32.mrf.mxu0
        %v8873 = vadd.f32 %v8761, %v8872
        %v8874 = vpop.f32.mrf.mxu0
        %v8875 = vadd.f32 %v8765, %v8874
        %v8876 = vpop.f32.mrf.mxu0
        %v8877 = vadd.f32 %v8761, %v8876
        %v8878 = vpop.f32.mrf.mxu0
        %v8879 = vadd.f32 %v8765, %v8878
        %8880 = vmatprep.mubr.bf16.mxu0 0
        %8881 = vmatmul.mubr.bf16.gmra.mxu0 %v6842
        %v8882 = vpop.f32.mrf.mxu0
        %v8883 = vadd.f32 %v8761, %v8882
        %v8884 = vpop.f32.mrf.mxu0
        %v8885 = vadd.f32 %v8765, %v8884
        %v8886 = vpop.f32.mrf.mxu0
        %v8887 = vadd.f32 %v8761, %v8886
        %v8888 = vpop.f32.mrf.mxu0
        %v8889 = vadd.f32 %v8765, %v8888
        %8890 = vdwg.mxu0
        %8891 = vmatprep.subr.bf16.mxu0 0
        %8892 = vmatpush1.bf16.msra.mxu0 0
        %8893 = vmatprep.subr.bf16.mxu0 0
        %8894 = vmatpush1.bf16.msra.mxu0 0
        %8895 = vmatprep.subr.bf16.mxu0 0
        %8896 = vmatpush1.bf16.msra.mxu0 0
        %8897 = vmatprep.subr.bf16.mxu0 0
        %8898 = vmatpush1.bf16.msra.mxu0 0
        %8899 = vmatprep.subr.bf16.mxu0 0
        %8900 = vmatpush1.bf16.msra.mxu0 0
        %8901 = vmatprep.subr.bf16.mxu0 0
        %8902 = vmatpush1.bf16.msra.mxu0 0
        %8903 = vmatprep.subr.bf16.mxu0 %v8809
        %8904 = vmatpush1.bf16.msra.mxu0 %v8808
        %8905 = vmatprep.subr.bf16.mxu0 %v8805
        %8906 = vmatpush1.bf16.msra.mxu0 %v8804
        %8907 = vmatprep.subr.bf16.mxu0 0
        %8908 = vmatpush2.bf16.msra.mxu0 0
        %8909 = vmatprep.subr.bf16.mxu0 0
        %8910 = vmatpush2.bf16.msra.mxu0 0
        %8911 = vmatprep.subr.bf16.mxu0 0
        %8912 = vmatpush2.bf16.msra.mxu0 0
        %8913 = vmatprep.subr.bf16.mxu0 0
        %8914 = vmatpush2.bf16.msra.mxu0 0
        %8915 = vmatprep.subr.bf16.mxu0 0
        %8916 = vmatpush2.bf16.msra.mxu0 0
        %8917 = vmatprep.subr.bf16.mxu0 0
        %8918 = vmatpush2.bf16.msra.mxu0 0
        %8919 = vmatprep.subr.bf16.mxu0 0
        %8920 = vmatpush2.bf16.msra.mxu0 0
        %8921 = vmatprep.subr.bf16.mxu0 0
        %8922 = vmatpush2.bf16.msra.mxu0 0
        %8923 = vmatprep.mubr.bf16.mxu0 0
        %8924 = vmatmul.mubr.bf16.gmra.mxu0 %v6833
        %v8925 = vpop.f32.mrf.mxu0
        %v8926 = vadd.f32 %v8769, %v8925
        %v8927 = vpop.f32.mrf.mxu0
        %v8928 = vadd.f32 %v8773, %v8927
        %v8929 = vpop.f32.mrf.mxu0
        %v8930 = vadd.f32 %v8769, %v8929
        %v8931 = vpop.f32.mrf.mxu0
        %v8932 = vadd.f32 %v8773, %v8931
        %8933 = vmatprep.mubr.bf16.mxu0 0
        %8934 = vmatmul.mubr.bf16.gmra.mxu0 %v6836
        %v8935 = vpop.f32.mrf.mxu0
        %v8936 = vadd.f32 %v8769, %v8935
        %v8937 = vpop.f32.mrf.mxu0
        %v8938 = vadd.f32 %v8773, %v8937
        %v8939 = vpop.f32.mrf.mxu0
        %v8940 = vadd.f32 %v8769, %v8939
        %v8941 = vpop.f32.mrf.mxu0
        %v8942 = vadd.f32 %v8773, %v8941
        %8943 = vmatprep.mubr.bf16.mxu0 0
        %8944 = vmatmul.mubr.bf16.gmra.mxu0 %v6839
        %v8945 = vpop.f32.mrf.mxu0
        %v8946 = vadd.f32 %v8769, %v8945
        %v8947 = vpop.f32.mrf.mxu0
        %v8948 = vadd.f32 %v8773, %v8947
        %v8949 = vpop.f32.mrf.mxu0
        %v8950 = vadd.f32 %v8769, %v8949
        %v8951 = vpop.f32.mrf.mxu0
        %v8952 = vadd.f32 %v8773, %v8951
        %8953 = vmatprep.mubr.bf16.mxu0 0
        %8954 = vmatmul.mubr.bf16.gmra.mxu0 %v6842
        %v8955 = vpop.f32.mrf.mxu0
        %v8956 = vadd.f32 %v8769, %v8955
        %v8957 = vpop.f32.mrf.mxu0
        %v8958 = vadd.f32 %v8773, %v8957
        %v8959 = vpop.f32.mrf.mxu0
        %v8960 = vadd.f32 %v8769, %v8959
        %v8961 = vpop.f32.mrf.mxu0
        %v8962 = vadd.f32 %v8773, %v8961
        %8963 = vdwg.mxu0
        %v8964 = vmax.f32 %v8853, 0.0
        %v8965 = vmax.f32 %v8855, 0.0
        %v8966 = vmax.f32 %v8926, 0.0
        %v8967 = vmax.f32 %v8928, 0.0
        %v8968 = vmax.f32 %v8857, 0.0
        %v8969 = vmax.f32 %v8859, 0.0
        %v8970 = vmax.f32 %v8930, 0.0
        %v8971 = vmax.f32 %v8932, 0.0
        %v8972 = vmax.f32 %v8863, 0.0
        %v8973 = vmax.f32 %v8865, 0.0
        %v8974 = vmax.f32 %v8936, 0.0
        %v8975 = vmax.f32 %v8938, 0.0
        %v8976 = vmax.f32 %v8867, 0.0
        %v8977 = vmax.f32 %v8869, 0.0
        %v8978 = vmax.f32 %v8940, 0.0
        %v8979 = vmax.f32 %v8942, 0.0
        %v8980 = vmax.f32 %v8873, 0.0
        %v8981 = vmax.f32 %v8875, 0.0
        %v8982 = vmax.f32 %v8946, 0.0
        %v8983 = vmax.f32 %v8948, 0.0
        %v8984 = vmax.f32 %v8877, 0.0
        %v8985 = vmax.f32 %v8879, 0.0
        %v8986 = vmax.f32 %v8950, 0.0
        %v8987 = vmax.f32 %v8952, 0.0
        %v8988 = vmax.f32 %v8883, 0.0
        %v8989 = vmax.f32 %v8885, 0.0
        %v8990 = vmax.f32 %v8956, 0.0
        %v8991 = vmax.f32 %v8958, 0.0
        %v8992 = vmax.f32 %v8887, 0.0
        %v8993 = vmax.f32 %v8889, 0.0
        %v8994 = vmax.f32 %v8960, 0.0
        %v8995 = vmax.f32 %v8962, 0.0
        %v8996 = vpack.c.bf16 %v8968, %v8964
        %v8997 = vpack.c.bf16 %v8969, %v8965
        %v8998 = vpack.c.bf16 %v8970, %v8966
        %v8999 = vpack.c.bf16 %v8971, %v8967
        %v9000 = vpack.c.bf16 %v8976, %v8972
        %v9001 = vpack.c.bf16 %v8977, %v8973
        %v9002 = vpack.c.bf16 %v8978, %v8974
        %v9003 = vpack.c.bf16 %v8979, %v8975
        %v9004 = vpack.c.bf16 %v8984, %v8980
        %v9005 = vpack.c.bf16 %v8985, %v8981
        %v9006 = vpack.c.bf16 %v8986, %v8982
        %v9007 = vpack.c.bf16 %v8987, %v8983
        %v9008 = vpack.c.bf16 %v8992, %v8988
        %v9009 = vpack.c.bf16 %v8993, %v8989
        %v9010 = vpack.c.bf16 %v8994, %v8990
        %v9011 = vpack.c.bf16 %v8995, %v8991
        %v9012 = vld [vmem:[%s14 + $0x300] sm:$0xf]
        %v9013 = vld [vmem:[%s14 + $0x304] sm:$0xf]
        %v9014 = vld [vmem:[%s14 + $0x308] sm:$0xf]
        %v9015 = vld [vmem:[%s14 + $0x30c] sm:$0xf]
        %v9016 = vld [vmem:[%s14 + $0x310] sm:$0xf]
        %v9017 = vld [vmem:[%s14 + $0x314] sm:$0xf]
        %v9018 = vld [vmem:[%s14 + $0x318] sm:$0xf]
        %v9019 = vld [vmem:[%s14 + $0x31c] sm:$0xf]
        %v9020 = vld [vmem:[%s14 + $0x320] sm:$0xf]
        %v9021 = vld [vmem:[%s14 + $0x324] sm:$0xf]
        %v9022 = vld [vmem:[%s14 + $0x328] sm:$0xf]
        %v9023 = vld [vmem:[%s14 + $0x32c] sm:$0xf]
        %v9024 = vld [vmem:[%s14 + $0x330] sm:$0xf]
        %v9025 = vld [vmem:[%s14 + $0x334] sm:$0xf]
        %v9026 = vld [vmem:[%s14 + $0x338] sm:$0xf]
        %v9027 = vld [vmem:[%s14 + $0x33c] sm:$0xf]
        %v9028 = vld [vmem:[%s14 + $0x340] sm:$0xf]
        %v9029 = vld [vmem:[%s14 + $0x344] sm:$0xf]
        %v9030 = vld [vmem:[%s14 + $0x348] sm:$0xf]
        %v9031 = vld [vmem:[%s14 + $0x34c] sm:$0xf]
        %v9032 = vld [vmem:[%s14 + $0x350] sm:$0xf]
        %v9033 = vld [vmem:[%s14 + $0x354] sm:$0xf]
        %v9034 = vld [vmem:[%s14 + $0x358] sm:$0xf]
        %v9035 = vld [vmem:[%s14 + $0x35c] sm:$0xf]
        %v9036 = vld [vmem:[%s14 + $0x360] sm:$0xf]
        %v9037 = vld [vmem:[%s14 + $0x364] sm:$0xf]
        %v9038 = vld [vmem:[%s14 + $0x368] sm:$0xf]
        %v9039 = vld [vmem:[%s14 + $0x36c] sm:$0xf]
        %v9040 = vld [vmem:[%s14 + $0x370] sm:$0xf]
        %v9041 = vld [vmem:[%s14 + $0x374] sm:$0xf]
        %v9042 = vld [vmem:[%s14 + $0x378] sm:$0xf]
        %v9043 = vld [vmem:[%s14 + $0x37c] sm:$0xf]
        %v9044 = vld [vmem:[%s14 + $0x380] sm:$0xf]
        %v9045 = vld [vmem:[%s14 + $0x384] sm:$0xf]
        %v9046 = vld [vmem:[%s14 + $0x388] sm:$0xf]
        %v9047 = vld [vmem:[%s14 + $0x38c] sm:$0xf]
        %v9048 = vld [vmem:[%s14 + $0x390] sm:$0xf]
        %v9049 = vld [vmem:[%s14 + $0x394] sm:$0xf]
        %v9050 = vld [vmem:[%s14 + $0x398] sm:$0xf]
        %v9051 = vld [vmem:[%s14 + $0x39c] sm:$0xf]
        %v9052 = vld [vmem:[%s14 + $0x3a0] sm:$0xf]
        %v9053 = vld [vmem:[%s14 + $0x3a4] sm:$0xf]
        %v9054 = vld [vmem:[%s14 + $0x3a8] sm:$0xf]
        %v9055 = vld [vmem:[%s14 + $0x3ac] sm:$0xf]
        %v9056 = vld [vmem:[%s14 + $0x3b0] sm:$0xf]
        %v9057 = vld [vmem:[%s14 + $0x3b4] sm:$0xf]
        %v9058 = vld [vmem:[%s14 + $0x3b8] sm:$0xf]
        %v9059 = vld [vmem:[%s14 + $0x3bc] sm:$0xf]
        %v9060 = vld [vmem:[%s14 + $0x3c0] sm:$0xf]
        %v9061 = vld [vmem:[%s14 + $0x3c4] sm:$0xf]
        %v9062 = vld [vmem:[%s14 + $0x3c8] sm:$0xf]
        %v9063 = vld [vmem:[%s14 + $0x3cc] sm:$0xf]
        %v9064 = vld [vmem:[%s14 + $0x3d0] sm:$0xf]
        %v9065 = vld [vmem:[%s14 + $0x3d4] sm:$0xf]
        %v9066 = vld [vmem:[%s14 + $0x3d8] sm:$0xf]
        %v9067 = vld [vmem:[%s14 + $0x3dc] sm:$0xf]
        %v9068 = vld [vmem:[%s14 + $0x3e0] sm:$0xf]
        %v9069 = vld [vmem:[%s14 + $0x3e4] sm:$0xf]
        %v9070 = vld [vmem:[%s14 + $0x3e8] sm:$0xf]
        %v9071 = vld [vmem:[%s14 + $0x3ec] sm:$0xf]
        %v9072 = vld [vmem:[%s14 + $0x3f0] sm:$0xf]
        %v9073 = vld [vmem:[%s14 + $0x3f4] sm:$0xf]
        %v9074 = vld [vmem:[%s14 + $0x3f8] sm:$0xf]
        %v9075 = vld [vmem:[%s14 + $0x3fc] sm:$0xf]
        %v9140 = vunpack.c.l.b16 %v9012
        %v9141 = vunpack.c.l.b16 %v9013
        %v9142 = vunpack.c.l.b16 %v9014
        %v9143 = vunpack.c.l.b16 %v9015
        %v9144 = vunpack.c.l.b16 %v9016
        %v9145 = vunpack.c.l.b16 %v9017
        %v9146 = vunpack.c.l.b16 %v9018
        %v9147 = vunpack.c.l.b16 %v9019
        %v9148 = vunpack.c.l.b16 %v9020
        %v9149 = vunpack.c.l.b16 %v9021
        %v9150 = vunpack.c.l.b16 %v9022
        %v9151 = vunpack.c.l.b16 %v9023
        %v9152 = vunpack.c.l.b16 %v9024
        %v9153 = vunpack.c.l.b16 %v9025
        %v9154 = vunpack.c.l.b16 %v9026
        %v9155 = vunpack.c.l.b16 %v9027
        %v9156 = vunpack.c.l.b16 %v9028
        %v9157 = vunpack.c.l.b16 %v9029
        %v9158 = vunpack.c.l.b16 %v9030
        %v9159 = vunpack.c.l.b16 %v9031
        %v9160 = vunpack.c.l.b16 %v9032
        %v9161 = vunpack.c.l.b16 %v9033
        %v9162 = vunpack.c.l.b16 %v9034
        %v9163 = vunpack.c.l.b16 %v9035
        %v9164 = vunpack.c.l.b16 %v9036
        %v9165 = vunpack.c.l.b16 %v9037
        %v9166 = vunpack.c.l.b16 %v9038
        %v9167 = vunpack.c.l.b16 %v9039
        %v9168 = vunpack.c.l.b16 %v9040
        %v9169 = vunpack.c.l.b16 %v9041
        %v9170 = vunpack.c.l.b16 %v9042
        %v9171 = vunpack.c.l.b16 %v9043
        %v9172 = vunpack.c.l.b16 %v9044
        %v9173 = vunpack.c.l.b16 %v9045
        %v9174 = vunpack.c.l.b16 %v9046
        %v9175 = vunpack.c.l.b16 %v9047
        %v9176 = vunpack.c.l.b16 %v9048
        %v9177 = vunpack.c.l.b16 %v9049
        %v9178 = vunpack.c.l.b16 %v9050
        %v9179 = vunpack.c.l.b16 %v9051
        %v9180 = vunpack.c.l.b16 %v9052
        %v9181 = vunpack.c.l.b16 %v9053
        %v9182 = vunpack.c.l.b16 %v9054
        %v9183 = vunpack.c.l.b16 %v9055
        %v9184 = vunpack.c.l.b16 %v9056
        %v9185 = vunpack.c.l.b16 %v9057
        %v9186 = vunpack.c.l.b16 %v9058
        %v9187 = vunpack.c.l.b16 %v9059
        %v9188 = vunpack.c.l.b16 %v9060
        %v9189 = vunpack.c.l.b16 %v9061
        %v9190 = vunpack.c.l.b16 %v9062
        %v9191 = vunpack.c.l.b16 %v9063
        %v9192 = vunpack.c.l.b16 %v9064
        %v9193 = vunpack.c.l.b16 %v9065
        %v9194 = vunpack.c.l.b16 %v9066
        %v9195 = vunpack.c.l.b16 %v9067
        %v9196 = vunpack.c.l.b16 %v9068
        %v9197 = vunpack.c.l.b16 %v9069
        %v9198 = vunpack.c.l.b16 %v9070
        %v9199 = vunpack.c.l.b16 %v9071
        %v9200 = vunpack.c.l.b16 %v9072
        %v9201 = vunpack.c.l.b16 %v9073
        %v9202 = vunpack.c.l.b16 %v9074
        %v9203 = vunpack.c.l.b16 %v9075
        %v9204 = vpack.c.b16 %v9141, %v9140
        %v9205 = vpack.c.b16 %v9143, %v9142
        %v9206 = vpack.c.b16 %v9145, %v9144
        %v9207 = vpack.c.b16 %v9147, %v9146
        %v9208 = vpack.c.b16 %v9149, %v9148
        %v9209 = vpack.c.b16 %v9151, %v9150
        %v9210 = vpack.c.b16 %v9153, %v9152
        %v9211 = vpack.c.b16 %v9155, %v9154
        %v9212 = vpack.c.b16 %v9157, %v9156
        %v9213 = vpack.c.b16 %v9159, %v9158
        %v9214 = vpack.c.b16 %v9161, %v9160
        %v9215 = vpack.c.b16 %v9163, %v9162
        %v9216 = vpack.c.b16 %v9165, %v9164
        %v9217 = vpack.c.b16 %v9167, %v9166
        %v9218 = vpack.c.b16 %v9169, %v9168
        %v9219 = vpack.c.b16 %v9171, %v9170
        %v9220 = vpack.c.b16 %v9173, %v9172
        %v9221 = vpack.c.b16 %v9175, %v9174
        %v9222 = vpack.c.b16 %v9177, %v9176
        %v9223 = vpack.c.b16 %v9179, %v9178
        %v9224 = vpack.c.b16 %v9181, %v9180
        %v9225 = vpack.c.b16 %v9183, %v9182
        %v9226 = vpack.c.b16 %v9185, %v9184
        %v9227 = vpack.c.b16 %v9187, %v9186
        %v9228 = vpack.c.b16 %v9189, %v9188
        %v9229 = vpack.c.b16 %v9191, %v9190
        %v9230 = vpack.c.b16 %v9193, %v9192
        %v9231 = vpack.c.b16 %v9195, %v9194
        %v9232 = vpack.c.b16 %v9197, %v9196
        %v9233 = vpack.c.b16 %v9199, %v9198
        %v9234 = vpack.c.b16 %v9201, %v9200
        %v9235 = vpack.c.b16 %v9203, %v9202
        %9268 = vmatprep.subr.bf16.mxu0 0
        %9269 = vmatpush1.bf16.msra.mxu0 %v9211
        %9270 = vmatprep.subr.bf16.mxu0 0
        %9271 = vmatpush1.bf16.msra.mxu0 %v9210
        %9272 = vmatprep.subr.bf16.mxu0 0
        %9273 = vmatpush1.bf16.msra.mxu0 %v9209
        %9274 = vmatprep.subr.bf16.mxu0 0
        %9275 = vmatpush1.bf16.msra.mxu0 %v9208
        %9276 = vmatprep.subr.bf16.mxu0 0
        %9277 = vmatpush1.bf16.msra.mxu0 %v9207
        %9278 = vmatprep.subr.bf16.mxu0 0
        %9279 = vmatpush1.bf16.msra.mxu0 %v9206
        %9280 = vmatprep.subr.bf16.mxu0 0
        %9281 = vmatpush1.bf16.msra.mxu0 %v9205
        %9282 = vmatprep.subr.bf16.mxu0 0
        %9283 = vmatpush1.bf16.msra.mxu0 %v9204
        %9284 = vmatprep.subr.bf16.mxu0 0
        %9285 = vmatpush2.bf16.msra.mxu0 %v9219
        %9286 = vmatprep.subr.bf16.mxu0 0
        %9287 = vmatpush2.bf16.msra.mxu0 %v9218
        %9288 = vmatprep.subr.bf16.mxu0 0
        %9289 = vmatpush2.bf16.msra.mxu0 %v9217
        %9290 = vmatprep.subr.bf16.mxu0 0
        %9291 = vmatpush2.bf16.msra.mxu0 %v9216
        %9292 = vmatprep.subr.bf16.mxu0 0
        %9293 = vmatpush2.bf16.msra.mxu0 %v9215
        %9294 = vmatprep.subr.bf16.mxu0 0
        %9295 = vmatpush2.bf16.msra.mxu0 %v9214
        %9296 = vmatprep.subr.bf16.mxu0 0
        %9297 = vmatpush2.bf16.msra.mxu0 %v9213
        %9298 = vmatprep.subr.bf16.mxu0 0
        %9299 = vmatpush2.bf16.msra.mxu0 %v9212
        %9300 = vmatprep.mubr.bf16.mxu0 %v8997
        %9301 = vmatmul.mubr.bf16.gmra.mxu0 %v8996
        %v9302 = vpop.f32.mrf.mxu0
        %v9303 = vadd.f32 0.0, %v9302
        %v9304 = vpop.f32.mrf.mxu0
        %v9305 = vpop.f32.mrf.mxu0
        %v9306 = vadd.f32 0.0, %v9305
        %v9307 = vpop.f32.mrf.mxu0
        %9308 = vmatprep.mubr.bf16.mxu0 %v9001
        %9309 = vmatmul.mubr.bf16.gmra.mxu0 %v9000
        %v9310 = vpop.f32.mrf.mxu0
        %v9311 = vadd.f32 0.0, %v9310
        %v9312 = vpop.f32.mrf.mxu0
        %v9313 = vpop.f32.mrf.mxu0
        %v9314 = vadd.f32 0.0, %v9313
        %v9315 = vpop.f32.mrf.mxu0
        %9316 = vmatprep.mubr.bf16.mxu0 %v9005
        %9317 = vmatmul.mubr.bf16.gmra.mxu0 %v9004
        %v9318 = vpop.f32.mrf.mxu0
        %v9319 = vadd.f32 0.0, %v9318
        %v9320 = vpop.f32.mrf.mxu0
        %v9321 = vpop.f32.mrf.mxu0
        %v9322 = vadd.f32 0.0, %v9321
        %v9323 = vpop.f32.mrf.mxu0
        %9324 = vmatprep.mubr.bf16.mxu0 %v9009
        %9325 = vmatmul.mubr.bf16.gmra.mxu0 %v9008
        %v9326 = vpop.f32.mrf.mxu0
        %v9327 = vadd.f32 0.0, %v9326
        %v9328 = vpop.f32.mrf.mxu0
        %v9329 = vpop.f32.mrf.mxu0
        %v9330 = vadd.f32 0.0, %v9329
        %v9331 = vpop.f32.mrf.mxu0
        %9332 = vdwg.mxu0
        %9333 = vmatprep.subr.bf16.mxu0 0
        %9334 = vmatpush1.bf16.msra.mxu0 %v9227
        %9335 = vmatprep.subr.bf16.mxu0 0
        %9336 = vmatpush1.bf16.msra.mxu0 %v9226
        %9337 = vmatprep.subr.bf16.mxu0 0
        %9338 = vmatpush1.bf16.msra.mxu0 %v9225
        %9339 = vmatprep.subr.bf16.mxu0 0
        %9340 = vmatpush1.bf16.msra.mxu0 %v9224
        %9341 = vmatprep.subr.bf16.mxu0 0
        %9342 = vmatpush1.bf16.msra.mxu0 %v9223
        %9343 = vmatprep.subr.bf16.mxu0 0
        %9344 = vmatpush1.bf16.msra.mxu0 %v9222
        %9345 = vmatprep.subr.bf16.mxu0 0
        %9346 = vmatpush1.bf16.msra.mxu0 %v9221
        %9347 = vmatprep.subr.bf16.mxu0 0
        %9348 = vmatpush1.bf16.msra.mxu0 %v9220
        %9349 = vmatprep.subr.bf16.mxu0 0
        %9350 = vmatpush2.bf16.msra.mxu0 %v9235
        %9351 = vmatprep.subr.bf16.mxu0 0
        %9352 = vmatpush2.bf16.msra.mxu0 %v9234
        %9353 = vmatprep.subr.bf16.mxu0 0
        %9354 = vmatpush2.bf16.msra.mxu0 %v9233
        %9355 = vmatprep.subr.bf16.mxu0 0
        %9356 = vmatpush2.bf16.msra.mxu0 %v9232
        %9357 = vmatprep.subr.bf16.mxu0 0
        %9358 = vmatpush2.bf16.msra.mxu0 %v9231
        %9359 = vmatprep.subr.bf16.mxu0 0
        %9360 = vmatpush2.bf16.msra.mxu0 %v9230
        %9361 = vmatprep.subr.bf16.mxu0 0
        %9362 = vmatpush2.bf16.msra.mxu0 %v9229
        %9363 = vmatprep.subr.bf16.mxu0 0
        %9364 = vmatpush2.bf16.msra.mxu0 %v9228
        %9365 = vmatprep.mubr.bf16.mxu0 %v8999
        %9366 = vmatmul.mubr.bf16.gmra.mxu0 %v8998
        %v9367 = vpop.f32.mrf.mxu0
        %v9368 = vadd.f32 %v9303, %v9367
        %v9369 = vpop.f32.mrf.mxu0
        %v9370 = vpop.f32.mrf.mxu0
        %v9371 = vadd.f32 %v9306, %v9370
        %v9372 = vpop.f32.mrf.mxu0
        %9373 = vmatprep.mubr.bf16.mxu0 %v9003
        %9374 = vmatmul.mubr.bf16.gmra.mxu0 %v9002
        %v9375 = vpop.f32.mrf.mxu0
        %v9376 = vadd.f32 %v9311, %v9375
        %v9377 = vpop.f32.mrf.mxu0
        %v9378 = vpop.f32.mrf.mxu0
        %v9379 = vadd.f32 %v9314, %v9378
        %v9380 = vpop.f32.mrf.mxu0
        %9381 = vmatprep.mubr.bf16.mxu0 %v9007
        %9382 = vmatmul.mubr.bf16.gmra.mxu0 %v9006
        %v9383 = vpop.f32.mrf.mxu0
        %v9384 = vadd.f32 %v9319, %v9383
        %v9385 = vpop.f32.mrf.mxu0
        %v9386 = vpop.f32.mrf.mxu0
        %v9387 = vadd.f32 %v9322, %v9386
        %v9388 = vpop.f32.mrf.mxu0
        %9389 = vmatprep.mubr.bf16.mxu0 %v9011
        %9390 = vmatmul.mubr.bf16.gmra.mxu0 %v9010
        %v9391 = vpop.f32.mrf.mxu0
        %v9392 = vadd.f32 %v9327, %v9391
        %v9393 = vpop.f32.mrf.mxu0
        %v9394 = vpop.f32.mrf.mxu0
        %v9395 = vadd.f32 %v9330, %v9394
        %v9396 = vpop.f32.mrf.mxu0
        %9397 = vdwg.mxu0
        %v9398 = vadd.f32 %v8740, %v9368
        %v9399 = vadd.f32 %v8741, %v9371
        %v9400 = vadd.f32 %v8742, %v9376
        %v9401 = vadd.f32 %v8743, %v9379
        %v9402 = vadd.f32 %v8744, %v9384
        %v9403 = vadd.f32 %v8745, %v9387
        %v9404 = vadd.f32 %v8746, %v9392
        %v9405 = vadd.f32 %v8747, %v9395
        %v9406 = vadd.f32 %v6745, %v9398
        %v9407 = vadd.f32 %v6746, %v9399
        %v9408 = vadd.f32 %v6747, %v9400
        %v9409 = vadd.f32 %v6748, %v9401
        %v9410 = vadd.f32 %v6749, %v9402
        %v9411 = vadd.f32 %v6750, %v9403
        %v9412 = vadd.f32 %v6751, %v9404
        %v9413 = vadd.f32 %v6752, %v9405
        %v9414 = vsel %vm771, %v9406, 0.0
        %9415 = vadd.xlane.f32.xlu0 %v9414
        %v9416 = vpop.xlane.xlu0 %9415
        %v9417 = vsel %vm771, %v9407, 0.0
        %9418 = vadd.xlane.f32.xlu0 %v9417
        %v9419 = vpop.xlane.xlu0 %9418
        %v9420 = vsel %vm771, %v9408, 0.0
        %9421 = vadd.xlane.f32.xlu0 %v9420
        %v9422 = vpop.xlane.xlu0 %9421
        %v9423 = vsel %vm771, %v9409, 0.0
        %9424 = vadd.xlane.f32.xlu0 %v9423
        %v9425 = vpop.xlane.xlu0 %9424
        %v9426 = vsel %vm771, %v9410, 0.0
        %9427 = vadd.xlane.f32.xlu0 %v9426
        %v9428 = vpop.xlane.xlu0 %9427
        %v9429 = vsel %vm771, %v9411, 0.0
        %9430 = vadd.xlane.f32.xlu0 %v9429
        %v9431 = vpop.xlane.xlu0 %9430
        %v9432 = vsel %vm771, %v9412, 0.0
        %9433 = vadd.xlane.f32.xlu0 %v9432
        %v9434 = vpop.xlane.xlu0 %9433
        %v9435 = vsel %vm771, %v9413, 0.0
        %9436 = vadd.xlane.f32.xlu0 %v9435
        %v9437 = vpop.xlane.xlu0 %9436
        %v9438 = vmul.f32 %v9416, %v2250
        %v9439 = vmul.f32 %v9419, %v2250
        %v9440 = vmul.f32 %v9422, %v2250
        %v9441 = vmul.f32 %v9425, %v2250
        %v9442 = vmul.f32 %v9428, %v2250
        %v9443 = vmul.f32 %v9431, %v2250
        %v9444 = vmul.f32 %v9434, %v2250
        %v9445 = vmul.f32 %v9437, %v2250
        %v9446 = vsub.f32 %v9406, %v9438
        %v9447 = vsub.f32 %v9407, %v9439
        %v9448 = vsub.f32 %v9408, %v9440
        %v9449 = vsub.f32 %v9409, %v9441
        %v9450 = vsub.f32 %v9410, %v9442
        %v9451 = vsub.f32 %v9411, %v9443
        %v9452 = vsub.f32 %v9412, %v9444
        %v9453 = vsub.f32 %v9413, %v9445
        %v9454 = vmul.f32 %v9446, %v9446
        %v9455 = vmul.f32 %v9447, %v9447
        %v9456 = vmul.f32 %v9448, %v9448
        %v9457 = vmul.f32 %v9449, %v9449
        %v9458 = vmul.f32 %v9450, %v9450
        %v9459 = vmul.f32 %v9451, %v9451
        %v9460 = vmul.f32 %v9452, %v9452
        %v9461 = vmul.f32 %v9453, %v9453
        %v9462 = vsel %vm771, %v9454, 0.0
        %9463 = vadd.xlane.f32.xlu0 %v9462
        %v9464 = vpop.xlane.xlu0 %9463
        %v9465 = vsel %vm771, %v9455, 0.0
        %9466 = vadd.xlane.f32.xlu0 %v9465
        %v9467 = vpop.xlane.xlu0 %9466
        %v9468 = vsel %vm771, %v9456, 0.0
        %9469 = vadd.xlane.f32.xlu0 %v9468
        %v9470 = vpop.xlane.xlu0 %9469
        %v9471 = vsel %vm771, %v9457, 0.0
        %9472 = vadd.xlane.f32.xlu0 %v9471
        %v9473 = vpop.xlane.xlu0 %9472
        %v9474 = vsel %vm771, %v9458, 0.0
        %9475 = vadd.xlane.f32.xlu0 %v9474
        %v9476 = vpop.xlane.xlu0 %9475
        %v9477 = vsel %vm771, %v9459, 0.0
        %9478 = vadd.xlane.f32.xlu0 %v9477
        %v9479 = vpop.xlane.xlu0 %9478
        %v9480 = vsel %vm771, %v9460, 0.0
        %9481 = vadd.xlane.f32.xlu0 %v9480
        %v9482 = vpop.xlane.xlu0 %9481
        %v9483 = vsel %vm771, %v9461, 0.0
        %9484 = vadd.xlane.f32.xlu0 %v9483
        %v9485 = vpop.xlane.xlu0 %9484
        %v9486 = vmul.f32 %v9464, %v2250
        %v9487 = vmul.f32 %v9467, %v2250
        %v9488 = vmul.f32 %v9470, %v2250
        %v9489 = vmul.f32 %v9473, %v2250
        %v9490 = vmul.f32 %v9476, %v2250
        %v9491 = vmul.f32 %v9479, %v2250
        %v9492 = vmul.f32 %v9482, %v2250
        %v9493 = vmul.f32 %v9485, %v2250
        %v9494 = vadd.f32 %v9486, 1e-05
        %v9495 = vadd.f32 %v9487, 1e-05
        %v9496 = vadd.f32 %v9488, 1e-05
        %v9497 = vadd.f32 %v9489, 1e-05
        %v9498 = vadd.f32 %v9490, 1e-05
        %v9499 = vadd.f32 %v9491, 1e-05
        %v9500 = vadd.f32 %v9492, 1e-05
        %v9501 = vadd.f32 %v9493, 1e-05
        %v9502 = vrsqrt.pop %v9494
        %v9503 = vrsqrt.pop %v9495
        %v9504 = vrsqrt.pop %v9496
        %v9505 = vrsqrt.pop %v9497
        %v9506 = vrsqrt.pop %v9498
        %v9507 = vrsqrt.pop %v9499
        %v9508 = vrsqrt.pop %v9500
        %v9509 = vrsqrt.pop %v9501
        %v9510 = vmul.f32 %v9446, %v9502
        %v9511 = vmul.f32 %v9447, %v9503
        %v9512 = vmul.f32 %v9448, %v9504
        %v9513 = vmul.f32 %v9449, %v9505
        %v9514 = vmul.f32 %v9450, %v9506
        %v9515 = vmul.f32 %v9451, %v9507
        %v9516 = vmul.f32 %v9452, %v9508
        %v9517 = vmul.f32 %v9453, %v9509
        %v9518 = vlaneseq
        %v9519 = vshrl.u32 %v9518, 7
        %v9520 = vsub.s32 0, %v9519
        %v9521 = vrot.slane %v5149, %v9520
        %v9522 = vmul.f32 %v9510, %v9521
        %v9523 = vmul.f32 %v9511, %v9521
        %v9524 = vmul.f32 %v9512, %v9521
        %v9525 = vmul.f32 %v9513, %v9521
        %v9526 = vmul.f32 %v9514, %v9521
        %v9527 = vmul.f32 %v9515, %v9521
        %v9528 = vmul.f32 %v9516, %v9521
        %v9529 = vmul.f32 %v9517, %v9521
        %v9530 = vlaneseq
        %v9531 = vshrl.u32 %v9530, 7
        %v9532 = vsub.s32 0, %v9531
        %v9533 = vrot.slane %v5150, %v9532
        %v9534 = vadd.f32 %v9522, %v9533
        %v9535 = vadd.f32 %v9523, %v9533
        %v9536 = vadd.f32 %v9524, %v9533
        %v9537 = vadd.f32 %v9525, %v9533
        %v9538 = vadd.f32 %v9526, %v9533
        %v9539 = vadd.f32 %v9527, %v9533
        %v9540 = vadd.f32 %v9528, %v9533
        %v9541 = vadd.f32 %v9529, %v9533
        %9542 = vst.msk [vmem:[%s558] sm:$0xff] %vm771, %v9534
        %9543 = vst.msk [vmem:[%s558 + $0x8] sm:$0xff] %vm771, %v9535
        %9544 = vst.msk [vmem:[%s558 + $0x10] sm:$0xff] %vm771, %v9536
        %9545 = vst.msk [vmem:[%s558 + $0x18] sm:$0xff] %vm771, %v9537
        %9546 = vst.msk [vmem:[%s558 + $0x20] sm:$0xff] %vm771, %v9538
        %9547 = vst.msk [vmem:[%s558 + $0x28] sm:$0xff] %vm771, %v9539
        %9548 = vst.msk [vmem:[%s558 + $0x30] sm:$0xff] %vm771, %v9540
        %9549 = vst.msk [vmem:[%s558 + $0x38] sm:$0xff] %vm771, %v9541
        %s9550 = sand.u32 %s406, 1
        %s9551 = scalar_lea.sflag [#allocation3], %s9550
        %s9552 = sand.u32 %s406, 1
        %s9553 = smul.addr %s9552, 64
        %s9554 = scalar_lea.vmem [#allocation2], %s9553
        // Predicated region
        $region89: #{crossed_transformer_encoder.1} parent=87 // pred_check
          %p9555 = pneg %p416
        $region90: #{crossed_transformer_encoder.1} parent=87 // pred_check_branch
          %9557 = sbr.rel (%p9555) target = $region92
        $region91: #{crossed_transformer_encoder.1} parent=87 // pred_region
          %s9558 = smul.u32 8, %s31
          %s9560 = ssub.s32 1024, 1024
          %9561 = vsyncadd %s9551, %s9560
          %s9562 = smul.addr %s9558, 128
          %s9563 = scalar_lea.hbm %s17, %s9562
          %s9564 = sshll.u32 %s9554, 4
          %s9565 = int_to_ptr.vmem [resolvable:$true] %s9564
          %9570 = dma.vmem_to_hbm [thread:$0]  %s9565, 1024, %s9563, %s9551, 128, 128, 8
        $region92: #{crossed_transformer_encoder.1} parent=87 // pred_fallthru
          _
      $region88: #{crossed_transformer_encoder.1} parent=5 // pred_fallthru
        _
      %p9571 = scmp.le.s32.totalorder 2, %s26
      // Predicated region
      $region93: #{crossed_transformer_encoder.1} parent=5 // pred_check
        %p9572 = pneg %p9571
      $region94: #{crossed_transformer_encoder.1} parent=5 // pred_check_branch
        %9574 = sbr.rel (%p9572) target = $region96
      $region95: #{crossed_transformer_encoder.1} parent=5 // pred_region
        %s9575 = ssub.s32 %s26, 2
        // Predicated region
        $region97: #{crossed_transformer_encoder.1} parent=95 // pred_check
          %p9576 = pneg %p422
        $region98: #{crossed_transformer_encoder.1} parent=95 // pred_check_branch
          %9578 = sbr.rel (%p9576) target = $region100
        $region99: #{crossed_transformer_encoder.1} parent=95 // pred_region
          %s9579 = sand.u32 %s407, 1
          %s9580 = scalar_lea.sflag [#allocation3], %s9579
          %s9581 = sand.u32 %s407, 1
          %s9582 = smul.addr %s9581, 64
          %s9583 = scalar_lea.vmem [#allocation2], %s9582
          %9584 = dma.done %s9580, 1024
        $region100: #{crossed_transformer_encoder.1} parent=95 // pred_fallthru
          _
      $region96: #{crossed_transformer_encoder.1} parent=5 // pred_fallthru
        _
    $region6: #{crossed_transformer_encoder.1} parent=1 // loop_footer
      %s30 = sadd.s32 1, %s26
    $region7: #{crossed_transformer_encoder.1} parent=1 // loop_footer_branch
      %25 = sbr.rel target = $region3
    $region8: #{crossed_transformer_encoder.1} parent=1 // loop_exit
      _
    %9585 = vsyncpa [#allocation3], 1
    %s9586 = scalar_lea.sflag [#allocation3], 1
    %9587 = vsyncpa %s9586, 1

</llo_original>
